<compile_context>
chip_gen: v7x
topology: tpu7x:2x2x1
jax: 0.10.0
libtpu: 0.0.40
codegen_flags: <defaults>
</compile_context>

<pallas_src>
import functools

import jax
import jax.numpy as jnp
import numpy as np
from jax.experimental import pallas as pl
from jax.experimental.pallas import tpu as pltpu


# ---------------------------------------------------------------------------
# Pallas kernel
# ---------------------------------------------------------------------------
def _conv3x3_taps(xpad, w_ref, H, W, cout):
    """3x3 / stride-1 conv of a pre-padded (H+2, W+2, Cin) value.

    Accumulates the 9 taps with 9 MXU matmuls on contiguous slices of the
    row-flattened input (no im2col tensor is ever materialized).
    Returns an (H*W, cout) f32 accumulator.
    """
    cin = xpad.shape[-1]
    acc = jnp.zeros((H * W, cout), jnp.float32)
    for kj in range(3):
        # All padded rows, output-width columns shifted by kj, row-major flat.
        col = xpad[:, kj:kj + W, :].reshape((H + 2) * W, cin)
        for ki in range(3):
            acc = acc + jnp.dot(
                col[ki * W:(ki + H) * W, :],
                w_ref[ki * 3 + kj],
                preferred_element_type=jnp.float32,
            )
    return acc


def _conv_block_kernel(x_ref, w1_ref, sb1_ref, w2_ref, sb2_ref, o_ref, h_ref,
                       *, H, W):
    cp = o_ref.shape[-1]

    # ---- conv1 (3x3, pad=1) + folded BatchNorm + ReLU ----
    acc1 = _conv3x3_taps(x_ref[...], w1_ref, H, W, cp)
    y1 = jnp.maximum(acc1 * sb1_ref[0:1, :] + sb1_ref[1:2, :], 0.0)

    # Stash conv1's activation (with a zero halo) in VMEM scratch; it never
    # touches HBM.  Padded channels have scale=shift=0 -> stay exactly zero.
    h_ref[...] = jnp.zeros(h_ref.shape, h_ref.dtype)
    h_ref[1:H + 1, 1:W + 1, :] = y1.reshape(H, W, cp).astype(h_ref.dtype)

    # ---- conv2 (3x3, pad=1) + folded BatchNorm + ReLU ----
    acc2 = _conv3x3_taps(h_ref[...], w2_ref, H, W, cp)
    y2 = jnp.maximum(acc2 * sb2_ref[0:1, :] + sb2_ref[1:2, :], 0.0)
    o_ref[...] = y2.reshape(H, W, cp).astype(o_ref.dtype)


# ---------------------------------------------------------------------------
# Wrapper
# ---------------------------------------------------------------------------
def conv_block_forward(x_nchw, packed, ch_out):
    """x_nchw: (N, C_in, H, W) f32 -> (N, ch_out, H, W) f32."""
    x = jnp.transpose(x_nchw, (0, 2, 3, 1))                       # NHWC
    n, h, w, cin = x.shape
    cp = packed["w1"].shape[-1]                                   # padded Cout
    xp = jnp.pad(x, ((0, 0), (1, 1), (1, 1), (0, 0))).astype(jnp.bfloat16)

    out = pl.pallas_call(
        functools.partial(_conv_block_kernel, H=h, W=w),
        out_shape=jax.ShapeDtypeStruct((n, h, w, cp), jnp.float32),
        grid=(n,),
        in_specs=[
            pl.BlockSpec((None, h + 2, w + 2, cin), lambda i: (i, 0, 0, 0)),
            pl.BlockSpec((9, cin, cp), lambda i: (0, 0, 0)),
            pl.BlockSpec((2, cp), lambda i: (0, 0)),
            pl.BlockSpec((9, cp, cp), lambda i: (0, 0, 0)),
            pl.BlockSpec((2, cp), lambda i: (0, 0)),
        ],
        out_specs=pl.BlockSpec((None, h, w, cp), lambda i: (i, 0, 0, 0)),
        scratch_shapes=[pltpu.VMEM((h + 2, w + 2, cp), jnp.bfloat16)],
        compiler_params=pltpu.CompilerParams(
            dimension_semantics=("parallel",)),
    )(xp, packed["w1"], packed["sb1"], packed["w2"], packed["sb2"])

    return jnp.transpose(out[..., :ch_out], (0, 3, 1, 2))


# ---------------------------------------------------------------------------
# Deterministic parameters (eval-mode BN folded into scale/shift) + packing
# ---------------------------------------------------------------------------
def _fold_bn(gamma, beta, mean, var, conv_bias, eps=1e-5):
    scale = gamma / jnp.sqrt(var + eps)
    shift = beta + (conv_bias - mean) * scale
    return scale, shift


def build_params(ch_in, ch_out, key):
    ks = jax.random.split(key, 4)

    def conv(k, cin, cout):
        kw, kb = jax.random.split(k)
        w = jax.random.normal(kw, (3, 3, cin, cout), jnp.float32) / np.sqrt(9.0 * cin)
        b = 0.05 * jax.random.normal(kb, (cout,), jnp.float32)
        return w, b

    def bn(k, c):
        k1, k2, k3, k4 = jax.random.split(k, 4)
        gamma = 1.0 + 0.05 * jax.random.normal(k1, (c,), jnp.float32)
        beta = 0.05 * jax.random.normal(k2, (c,), jnp.float32)
        mean = 0.05 * jax.random.normal(k3, (c,), jnp.float32)
        var = 1.0 + 0.1 * jnp.abs(jax.random.normal(k4, (c,), jnp.float32))
        return gamma, beta, mean, var

    w1, b1 = conv(ks[0], ch_in, ch_out)
    s1, t1 = _fold_bn(*bn(ks[1], ch_out), b1)
    w2, b2 = conv(ks[2], ch_out, ch_out)
    s2, t2 = _fold_bn(*bn(ks[3], ch_out), b2)
    return dict(w1=w1, s1=s1, t1=t1, w2=w2, s2=s2, t2=t2)


def pack_params(p, ch_out):
    """Zero-pad Cout (and conv2's Cin) to a multiple of 128; bf16 weights."""
    cp = ((ch_out + 127) // 128) * 128

    def pack_w(w, cin_p, cout_p):
        kh, kw, cin, cout = w.shape
        wp = jnp.zeros((kh * kw, cin_p, cout_p), jnp.float32)
        wp = wp.at[:, :cin, :cout].set(w.reshape(kh * kw, cin, cout))
        return wp.astype(jnp.bfloat16)

    def pack_sb(s, t, cout_p):
        sb = jnp.zeros((2, cout_p), jnp.float32)
        sb = sb.at[0, :s.shape[0]].set(s)
        sb = sb.at[1, :t.shape[0]].set(t)
        return sb

    cin1 = p["w1"].shape[2]
    return dict(
        w1=pack_w(p["w1"], cin1, cp),
        sb1=pack_sb(p["s1"], p["t1"], cp),
        w2=pack_w(p["w2"], cp, cp),
        sb2=pack_sb(p["s2"], p["t2"], cp),
    )


# ---------------------------------------------------------------------------
# Pure-JAX reference (f32) for a correctness sanity check
# ---------------------------------------------------------------------------
def conv_block_reference(x_nchw, p):
    dn = ("NHWC", "HWIO", "NHWC")
    x = jnp.transpose(x_nchw, (0, 2, 3, 1))
    y = jax.lax.conv_general_dilated(x, p["w1"], (1, 1), "SAME",
                                     dimension_numbers=dn)
    y = jnp.maximum(y * p["s1"] + p["t1"], 0.0)
    y = jax.lax.conv_general_dilated(y, p["w2"], (1, 1), "SAME",
                                     dimension_numbers=dn)
    y = jnp.maximum(y * p["s2"] + p["t2"], 0.0)
    return jnp.transpose(y, (0, 3, 1, 2))


if __name__ == "__main__":
    ch_in, ch_out = 4, 32
    n, hh, ww = 2, 16, 16

    params = build_params(ch_in, ch_out, jax.random.PRNGKey(1))
    packed = pack_params(params, ch_out)
    x = jax.random.normal(jax.random.PRNGKey(0), (n, ch_in, hh, ww), jnp.float32)

    fwd = jax.jit(conv_block_forward, static_argnames=("ch_out",))
    y = fwd(x, packed, ch_out=ch_out)
    y = jax.block_until_ready(y)

    assert y.shape == (n, ch_out, hh, ww), y.shape
    assert bool(jnp.all(jnp.isfinite(y)))

    # bf16-operand kernel vs f32 reference: loose relative-to-max tolerance.
    y_ref = conv_block_reference(x, params)
    err = float(jnp.max(jnp.abs(y - y_ref)) / (jnp.max(jnp.abs(y_ref)) + 1e-6))
    assert err < 5e-2, f"relative max error {err}"

    print("KERNEL_OK")
</pallas_src>

<mosaic_0001>
module attributes {stable_mosaic.version = 11 : i64} {
  func.func @_conv_block_kernel(%arg0: i32, %arg1: memref<1x18x18x4xbf16, #tpu.memory_space<vmem>>, %arg2: memref<9x4x128xbf16, #tpu.memory_space<vmem>>, %arg3: memref<2x128xf32, #tpu.memory_space<vmem>>, %arg4: memref<9x128x128xbf16, #tpu.memory_space<vmem>>, %arg5: memref<2x128xf32, #tpu.memory_space<vmem>>, %arg6: memref<1x16x16x128xf32, #tpu.memory_space<vmem>>, %arg7: memref<18x18x128xbf16, #tpu.memory_space<vmem>>) attributes {dimension_semantics = [#tpu.dimension_semantics<parallel>], iteration_bounds = array<i64: 2>, scalar_prefetch = 0 : i64, scratch_operands = 1 : i64, tpu.core_type = #tpu.core_type<tc>, window_params = [{transform_indices = @transform_0, window_bounds = array<i64: 1, 18, 18, 4>}, {pipeline_mode = #tpu.pipeline_mode<synchronous>, transform_indices = @transform_1, window_bounds = array<i64: 9, 4, 128>}, {pipeline_mode = #tpu.pipeline_mode<synchronous>, transform_indices = @transform_2, window_bounds = array<i64: 2, 128>}, {pipeline_mode = #tpu.pipeline_mode<synchronous>, transform_indices = @transform_3, window_bounds = array<i64: 9, 128, 128>}, {pipeline_mode = #tpu.pipeline_mode<synchronous>, transform_indices = @transform_4, window_bounds = array<i64: 2, 128>}, {transform_indices = @transform_5, window_bounds = array<i64: 1, 16, 16, 128>}]} {
    %c0 = arith.constant 0 : index
    %c0_0 = arith.constant 0 : index
    %c0_1 = arith.constant 0 : index
    %c0_2 = arith.constant 0 : index
    %0 = vector.load %arg1[%c0, %c0_0, %c0_1, %c0_2] : memref<1x18x18x4xbf16, #tpu.memory_space<vmem>>, vector<1x18x18x4xbf16>
    %1 = vector.shape_cast %0 : vector<1x18x18x4xbf16> to vector<18x18x4xbf16>
    %cst = arith.constant 0.000000e+00 : f32
    %2 = vector.broadcast %cst : f32 to vector<256x128xf32>
    %3 = vector.extract_strided_slice %1 {offsets = [0, 0, 0], sizes = [18, 16, 4], strides = [1, 1, 1]} : vector<18x18x4xbf16> to vector<18x16x4xbf16>
    %4 = vector.shape_cast %3 : vector<18x16x4xbf16> to vector<288x4xbf16>
    %5 = vector.extract_strided_slice %4 {offsets = [0, 0], sizes = [256, 4], strides = [1, 1]} : vector<288x4xbf16> to vector<256x4xbf16>
    %c0_3 = arith.constant 0 : index
    %c0_4 = arith.constant 0 : index
    %c0_5 = arith.constant 0 : index
    %6 = vector.load %arg2[%c0_3, %c0_4, %c0_5] : memref<9x4x128xbf16, #tpu.memory_space<vmem>>, vector<1x4x128xbf16>
    %7 = vector.shape_cast %6 : vector<1x4x128xbf16> to vector<4x128xbf16>
    %cst_6 = arith.constant dense<0.000000e+00> : vector<256x128xf32>
    %8 = tpu.matmul %5, %7, %cst_6 {dimension_numbers = #tpu.dot_dimension_numbers<[1], [0], [0], [1], [0, 0, 1, 1], [], []>} : vector<256x4xbf16>, vector<4x128xbf16>, vector<256x128xf32> -> vector<256x128xf32>
    %9 = arith.addf %2, %8 : vector<256x128xf32>
    %10 = vector.extract_strided_slice %4 {offsets = [16, 0], sizes = [256, 4], strides = [1, 1]} : vector<288x4xbf16> to vector<256x4xbf16>
    %c3 = arith.constant 3 : index
    %c0_7 = arith.constant 0 : index
    %c0_8 = arith.constant 0 : index
    %11 = vector.load %arg2[%c3, %c0_7, %c0_8] : memref<9x4x128xbf16, #tpu.memory_space<vmem>>, vector<1x4x128xbf16>
    %12 = vector.shape_cast %11 : vector<1x4x128xbf16> to vector<4x128xbf16>
    %cst_9 = arith.constant dense<0.000000e+00> : vector<256x128xf32>
    %13 = tpu.matmul %10, %12, %cst_9 {dimension_numbers = #tpu.dot_dimension_numbers<[1], [0], [0], [1], [0, 0, 1, 1], [], []>} : vector<256x4xbf16>, vector<4x128xbf16>, vector<256x128xf32> -> vector<256x128xf32>
    %14 = arith.addf %9, %13 : vector<256x128xf32>
    %15 = vector.extract_strided_slice %4 {offsets = [32, 0], sizes = [256, 4], strides = [1, 1]} : vector<288x4xbf16> to vector<256x4xbf16>
    %c6 = arith.constant 6 : index
    %c0_10 = arith.constant 0 : index
    %c0_11 = arith.constant 0 : index
    %16 = vector.load %arg2[%c6, %c0_10, %c0_11] : memref<9x4x128xbf16, #tpu.memory_space<vmem>>, vector<1x4x128xbf16>
    %17 = vector.shape_cast %16 : vector<1x4x128xbf16> to vector<4x128xbf16>
    %cst_12 = arith.constant dense<0.000000e+00> : vector<256x128xf32>
    %18 = tpu.matmul %15, %17, %cst_12 {dimension_numbers = #tpu.dot_dimension_numbers<[1], [0], [0], [1], [0, 0, 1, 1], [], []>} : vector<256x4xbf16>, vector<4x128xbf16>, vector<256x128xf32> -> vector<256x128xf32>
    %19 = arith.addf %14, %18 : vector<256x128xf32>
    %20 = vector.extract_strided_slice %1 {offsets = [0, 1, 0], sizes = [18, 16, 4], strides = [1, 1, 1]} : vector<18x18x4xbf16> to vector<18x16x4xbf16>
    %21 = vector.shape_cast %20 : vector<18x16x4xbf16> to vector<288x4xbf16>
    %22 = vector.extract_strided_slice %21 {offsets = [0, 0], sizes = [256, 4], strides = [1, 1]} : vector<288x4xbf16> to vector<256x4xbf16>
    %c1 = arith.constant 1 : index
    %c0_13 = arith.constant 0 : index
    %c0_14 = arith.constant 0 : index
    %23 = vector.load %arg2[%c1, %c0_13, %c0_14] : memref<9x4x128xbf16, #tpu.memory_space<vmem>>, vector<1x4x128xbf16>
    %24 = vector.shape_cast %23 : vector<1x4x128xbf16> to vector<4x128xbf16>
    %cst_15 = arith.constant dense<0.000000e+00> : vector<256x128xf32>
    %25 = tpu.matmul %22, %24, %cst_15 {dimension_numbers = #tpu.dot_dimension_numbers<[1], [0], [0], [1], [0, 0, 1, 1], [], []>} : vector<256x4xbf16>, vector<4x128xbf16>, vector<256x128xf32> -> vector<256x128xf32>
    %26 = arith.addf %19, %25 : vector<256x128xf32>
    %27 = vector.extract_strided_slice %21 {offsets = [16, 0], sizes = [256, 4], strides = [1, 1]} : vector<288x4xbf16> to vector<256x4xbf16>
    %c4 = arith.constant 4 : index
    %c0_16 = arith.constant 0 : index
    %c0_17 = arith.constant 0 : index
    %28 = vector.load %arg2[%c4, %c0_16, %c0_17] : memref<9x4x128xbf16, #tpu.memory_space<vmem>>, vector<1x4x128xbf16>
    %29 = vector.shape_cast %28 : vector<1x4x128xbf16> to vector<4x128xbf16>
    %cst_18 = arith.constant dense<0.000000e+00> : vector<256x128xf32>
    %30 = tpu.matmul %27, %29, %cst_18 {dimension_numbers = #tpu.dot_dimension_numbers<[1], [0], [0], [1], [0, 0, 1, 1], [], []>} : vector<256x4xbf16>, vector<4x128xbf16>, vector<256x128xf32> -> vector<256x128xf32>
    %31 = arith.addf %26, %30 : vector<256x128xf32>
    %32 = vector.extract_strided_slice %21 {offsets = [32, 0], sizes = [256, 4], strides = [1, 1]} : vector<288x4xbf16> to vector<256x4xbf16>
    %c7 = arith.constant 7 : index
    %c0_19 = arith.constant 0 : index
    %c0_20 = arith.constant 0 : index
    %33 = vector.load %arg2[%c7, %c0_19, %c0_20] : memref<9x4x128xbf16, #tpu.memory_space<vmem>>, vector<1x4x128xbf16>
    %34 = vector.shape_cast %33 : vector<1x4x128xbf16> to vector<4x128xbf16>
    %cst_21 = arith.constant dense<0.000000e+00> : vector<256x128xf32>
    %35 = tpu.matmul %32, %34, %cst_21 {dimension_numbers = #tpu.dot_dimension_numbers<[1], [0], [0], [1], [0, 0, 1, 1], [], []>} : vector<256x4xbf16>, vector<4x128xbf16>, vector<256x128xf32> -> vector<256x128xf32>
    %36 = arith.addf %31, %35 : vector<256x128xf32>
    %37 = vector.extract_strided_slice %1 {offsets = [0, 2, 0], sizes = [18, 16, 4], strides = [1, 1, 1]} : vector<18x18x4xbf16> to vector<18x16x4xbf16>
    %38 = vector.shape_cast %37 : vector<18x16x4xbf16> to vector<288x4xbf16>
    %39 = vector.extract_strided_slice %38 {offsets = [0, 0], sizes = [256, 4], strides = [1, 1]} : vector<288x4xbf16> to vector<256x4xbf16>
    %c2 = arith.constant 2 : index
    %c0_22 = arith.constant 0 : index
    %c0_23 = arith.constant 0 : index
    %40 = vector.load %arg2[%c2, %c0_22, %c0_23] : memref<9x4x128xbf16, #tpu.memory_space<vmem>>, vector<1x4x128xbf16>
    %41 = vector.shape_cast %40 : vector<1x4x128xbf16> to vector<4x128xbf16>
    %cst_24 = arith.constant dense<0.000000e+00> : vector<256x128xf32>
    %42 = tpu.matmul %39, %41, %cst_24 {dimension_numbers = #tpu.dot_dimension_numbers<[1], [0], [0], [1], [0, 0, 1, 1], [], []>} : vector<256x4xbf16>, vector<4x128xbf16>, vector<256x128xf32> -> vector<256x128xf32>
    %43 = arith.addf %36, %42 : vector<256x128xf32>
    %44 = vector.extract_strided_slice %38 {offsets = [16, 0], sizes = [256, 4], strides = [1, 1]} : vector<288x4xbf16> to vector<256x4xbf16>
    %c5 = arith.constant 5 : index
    %c0_25 = arith.constant 0 : index
    %c0_26 = arith.constant 0 : index
    %45 = vector.load %arg2[%c5, %c0_25, %c0_26] : memref<9x4x128xbf16, #tpu.memory_space<vmem>>, vector<1x4x128xbf16>
    %46 = vector.shape_cast %45 : vector<1x4x128xbf16> to vector<4x128xbf16>
    %cst_27 = arith.constant dense<0.000000e+00> : vector<256x128xf32>
    %47 = tpu.matmul %44, %46, %cst_27 {dimension_numbers = #tpu.dot_dimension_numbers<[1], [0], [0], [1], [0, 0, 1, 1], [], []>} : vector<256x4xbf16>, vector<4x128xbf16>, vector<256x128xf32> -> vector<256x128xf32>
    %48 = arith.addf %43, %47 : vector<256x128xf32>
    %49 = vector.extract_strided_slice %38 {offsets = [32, 0], sizes = [256, 4], strides = [1, 1]} : vector<288x4xbf16> to vector<256x4xbf16>
    %c8 = arith.constant 8 : index
    %c0_28 = arith.constant 0 : index
    %c0_29 = arith.constant 0 : index
    %50 = vector.load %arg2[%c8, %c0_28, %c0_29] : memref<9x4x128xbf16, #tpu.memory_space<vmem>>, vector<1x4x128xbf16>
    %51 = vector.shape_cast %50 : vector<1x4x128xbf16> to vector<4x128xbf16>
    %cst_30 = arith.constant dense<0.000000e+00> : vector<256x128xf32>
    %52 = tpu.matmul %49, %51, %cst_30 {dimension_numbers = #tpu.dot_dimension_numbers<[1], [0], [0], [1], [0, 0, 1, 1], [], []>} : vector<256x4xbf16>, vector<4x128xbf16>, vector<256x128xf32> -> vector<256x128xf32>
    %53 = arith.addf %48, %52 : vector<256x128xf32>
    %c0_31 = arith.constant 0 : index
    %c0_32 = arith.constant 0 : index
    %54 = vector.load %arg3[%c0_31, %c0_32] : memref<2x128xf32, #tpu.memory_space<vmem>>, vector<1x128xf32>
    %55 = vector.broadcast %54 : vector<1x128xf32> to vector<256x128xf32>
    %56 = arith.mulf %53, %55 : vector<256x128xf32>
    %c1_33 = arith.constant 1 : index
    %c0_34 = arith.constant 0 : index
    %57 = vector.load %arg3[%c1_33, %c0_34] : memref<2x128xf32, #tpu.memory_space<vmem>>, vector<1x128xf32>
    %58 = vector.broadcast %57 : vector<1x128xf32> to vector<256x128xf32>
    %59 = arith.addf %56, %58 : vector<256x128xf32>
    %cst_35 = arith.constant 0.000000e+00 : f32
    %60 = vector.broadcast %cst_35 : f32 to vector<256x128xf32>
    %61 = arith.maximumf %59, %60 : vector<256x128xf32>
    %cst_36 = arith.constant 0.000000e+00 : bf16
    %62 = vector.broadcast %cst_36 : bf16 to vector<18x18x128xbf16>
    %c0_37 = arith.constant 0 : index
    %c0_38 = arith.constant 0 : index
    %c0_39 = arith.constant 0 : index
    %63 = vector.load %arg7[%c0_37, %c0_38, %c0_39] : memref<18x18x128xbf16, #tpu.memory_space<vmem>>, vector<18x18x128xbf16>
    tpu.vector_store %arg7[%c0_37, %c0_38, %c0_39], %62 {strides = array<i32>} : memref<18x18x128xbf16, #tpu.memory_space<vmem>>, vector<18x18x128xbf16>,
    %64 = vector.shape_cast %61 : vector<256x128xf32> to vector<16x16x128xf32>
    %65 = arith.truncf %64 : vector<16x16x128xf32> to vector<16x16x128xbf16>
    %c1_40 = arith.constant 1 : index
    %c1_41 = arith.constant 1 : index
    %c0_42 = arith.constant 0 : index
    %66 = vector.load %arg7[%c1_40, %c1_41, %c0_42] : memref<18x18x128xbf16, #tpu.memory_space<vmem>>, vector<16x16x128xbf16>
    tpu.vector_store %arg7[%c1_40, %c1_41, %c0_42], %65 {strides = array<i32>} : memref<18x18x128xbf16, #tpu.memory_space<vmem>>, vector<16x16x128xbf16>,
    %c0_43 = arith.constant 0 : index
    %c0_44 = arith.constant 0 : index
    %c0_45 = arith.constant 0 : index
    %67 = vector.load %arg7[%c0_43, %c0_44, %c0_45] : memref<18x18x128xbf16, #tpu.memory_space<vmem>>, vector<18x18x128xbf16>
    %cst_46 = arith.constant 0.000000e+00 : f32
    %68 = vector.broadcast %cst_46 : f32 to vector<256x128xf32>
    %69 = vector.extract_strided_slice %67 {offsets = [0, 0, 0], sizes = [18, 16, 128], strides = [1, 1, 1]} : vector<18x18x128xbf16> to vector<18x16x128xbf16>
    %70 = vector.shape_cast %69 : vector<18x16x128xbf16> to vector<288x128xbf16>
    %71 = vector.extract_strided_slice %70 {offsets = [0, 0], sizes = [256, 128], strides = [1, 1]} : vector<288x128xbf16> to vector<256x128xbf16>
    %c0_47 = arith.constant 0 : index
    %c0_48 = arith.constant 0 : index
    %c0_49 = arith.constant 0 : index
    %72 = vector.load %arg4[%c0_47, %c0_48, %c0_49] : memref<9x128x128xbf16, #tpu.memory_space<vmem>>, vector<1x128x128xbf16>
    %73 = vector.shape_cast %72 : vector<1x128x128xbf16> to vector<128x128xbf16>
    %cst_50 = arith.constant dense<0.000000e+00> : vector<256x128xf32>
    %74 = tpu.matmul %71, %73, %cst_50 {dimension_numbers = #tpu.dot_dimension_numbers<[1], [0], [0], [1], [0, 0, 1, 1], [], []>} : vector<256x128xbf16>, vector<128x128xbf16>, vector<256x128xf32> -> vector<256x128xf32>
    %75 = arith.addf %68, %74 : vector<256x128xf32>
    %76 = vector.extract_strided_slice %70 {offsets = [16, 0], sizes = [256, 128], strides = [1, 1]} : vector<288x128xbf16> to vector<256x128xbf16>
    %c3_51 = arith.constant 3 : index
    %c0_52 = arith.constant 0 : index
    %c0_53 = arith.constant 0 : index
    %77 = vector.load %arg4[%c3_51, %c0_52, %c0_53] : memref<9x128x128xbf16, #tpu.memory_space<vmem>>, vector<1x128x128xbf16>
    %78 = vector.shape_cast %77 : vector<1x128x128xbf16> to vector<128x128xbf16>
    %cst_54 = arith.constant dense<0.000000e+00> : vector<256x128xf32>
    %79 = tpu.matmul %76, %78, %cst_54 {dimension_numbers = #tpu.dot_dimension_numbers<[1], [0], [0], [1], [0, 0, 1, 1], [], []>} : vector<256x128xbf16>, vector<128x128xbf16>, vector<256x128xf32> -> vector<256x128xf32>
    %80 = arith.addf %75, %79 : vector<256x128xf32>
    %81 = vector.extract_strided_slice %70 {offsets = [32, 0], sizes = [256, 128], strides = [1, 1]} : vector<288x128xbf16> to vector<256x128xbf16>
    %c6_55 = arith.constant 6 : index
    %c0_56 = arith.constant 0 : index
    %c0_57 = arith.constant 0 : index
    %82 = vector.load %arg4[%c6_55, %c0_56, %c0_57] : memref<9x128x128xbf16, #tpu.memory_space<vmem>>, vector<1x128x128xbf16>
    %83 = vector.shape_cast %82 : vector<1x128x128xbf16> to vector<128x128xbf16>
    %cst_58 = arith.constant dense<0.000000e+00> : vector<256x128xf32>
    %84 = tpu.matmul %81, %83, %cst_58 {dimension_numbers = #tpu.dot_dimension_numbers<[1], [0], [0], [1], [0, 0, 1, 1], [], []>} : vector<256x128xbf16>, vector<128x128xbf16>, vector<256x128xf32> -> vector<256x128xf32>
    %85 = arith.addf %80, %84 : vector<256x128xf32>
    %86 = vector.extract_strided_slice %67 {offsets = [0, 1, 0], sizes = [18, 16, 128], strides = [1, 1, 1]} : vector<18x18x128xbf16> to vector<18x16x128xbf16>
    %87 = vector.shape_cast %86 : vector<18x16x128xbf16> to vector<288x128xbf16>
    %88 = vector.extract_strided_slice %87 {offsets = [0, 0], sizes = [256, 128], strides = [1, 1]} : vector<288x128xbf16> to vector<256x128xbf16>
    %c1_59 = arith.constant 1 : index
    %c0_60 = arith.constant 0 : index
    %c0_61 = arith.constant 0 : index
    %89 = vector.load %arg4[%c1_59, %c0_60, %c0_61] : memref<9x128x128xbf16, #tpu.memory_space<vmem>>, vector<1x128x128xbf16>
    %90 = vector.shape_cast %89 : vector<1x128x128xbf16> to vector<128x128xbf16>
    %cst_62 = arith.constant dense<0.000000e+00> : vector<256x128xf32>
    %91 = tpu.matmul %88, %90, %cst_62 {dimension_numbers = #tpu.dot_dimension_numbers<[1], [0], [0], [1], [0, 0, 1, 1], [], []>} : vector<256x128xbf16>, vector<128x128xbf16>, vector<256x128xf32> -> vector<256x128xf32>
    %92 = arith.addf %85, %91 : vector<256x128xf32>
    %93 = vector.extract_strided_slice %87 {offsets = [16, 0], sizes = [256, 128], strides = [1, 1]} : vector<288x128xbf16> to vector<256x128xbf16>
    %c4_63 = arith.constant 4 : index
    %c0_64 = arith.constant 0 : index
    %c0_65 = arith.constant 0 : index
    %94 = vector.load %arg4[%c4_63, %c0_64, %c0_65] : memref<9x128x128xbf16, #tpu.memory_space<vmem>>, vector<1x128x128xbf16>
    %95 = vector.shape_cast %94 : vector<1x128x128xbf16> to vector<128x128xbf16>
    %cst_66 = arith.constant dense<0.000000e+00> : vector<256x128xf32>
    %96 = tpu.matmul %93, %95, %cst_66 {dimension_numbers = #tpu.dot_dimension_numbers<[1], [0], [0], [1], [0, 0, 1, 1], [], []>} : vector<256x128xbf16>, vector<128x128xbf16>, vector<256x128xf32> -> vector<256x128xf32>
    %97 = arith.addf %92, %96 : vector<256x128xf32>
    %98 = vector.extract_strided_slice %87 {offsets = [32, 0], sizes = [256, 128], strides = [1, 1]} : vector<288x128xbf16> to vector<256x128xbf16>
    %c7_67 = arith.constant 7 : index
    %c0_68 = arith.constant 0 : index
    %c0_69 = arith.constant 0 : index
    %99 = vector.load %arg4[%c7_67, %c0_68, %c0_69] : memref<9x128x128xbf16, #tpu.memory_space<vmem>>, vector<1x128x128xbf16>
    %100 = vector.shape_cast %99 : vector<1x128x128xbf16> to vector<128x128xbf16>
    %cst_70 = arith.constant dense<0.000000e+00> : vector<256x128xf32>
    %101 = tpu.matmul %98, %100, %cst_70 {dimension_numbers = #tpu.dot_dimension_numbers<[1], [0], [0], [1], [0, 0, 1, 1], [], []>} : vector<256x128xbf16>, vector<128x128xbf16>, vector<256x128xf32> -> vector<256x128xf32>
    %102 = arith.addf %97, %101 : vector<256x128xf32>
    %103 = vector.extract_strided_slice %67 {offsets = [0, 2, 0], sizes = [18, 16, 128], strides = [1, 1, 1]} : vector<18x18x128xbf16> to vector<18x16x128xbf16>
    %104 = vector.shape_cast %103 : vector<18x16x128xbf16> to vector<288x128xbf16>
    %105 = vector.extract_strided_slice %104 {offsets = [0, 0], sizes = [256, 128], strides = [1, 1]} : vector<288x128xbf16> to vector<256x128xbf16>
    %c2_71 = arith.constant 2 : index
    %c0_72 = arith.constant 0 : index
    %c0_73 = arith.constant 0 : index
    %106 = vector.load %arg4[%c2_71, %c0_72, %c0_73] : memref<9x128x128xbf16, #tpu.memory_space<vmem>>, vector<1x128x128xbf16>
    %107 = vector.shape_cast %106 : vector<1x128x128xbf16> to vector<128x128xbf16>
    %cst_74 = arith.constant dense<0.000000e+00> : vector<256x128xf32>
    %108 = tpu.matmul %105, %107, %cst_74 {dimension_numbers = #tpu.dot_dimension_numbers<[1], [0], [0], [1], [0, 0, 1, 1], [], []>} : vector<256x128xbf16>, vector<128x128xbf16>, vector<256x128xf32> -> vector<256x128xf32>
    %109 = arith.addf %102, %108 : vector<256x128xf32>
    %110 = vector.extract_strided_slice %104 {offsets = [16, 0], sizes = [256, 128], strides = [1, 1]} : vector<288x128xbf16> to vector<256x128xbf16>
    %c5_75 = arith.constant 5 : index
    %c0_76 = arith.constant 0 : index
    %c0_77 = arith.constant 0 : index
    %111 = vector.load %arg4[%c5_75, %c0_76, %c0_77] : memref<9x128x128xbf16, #tpu.memory_space<vmem>>, vector<1x128x128xbf16>
    %112 = vector.shape_cast %111 : vector<1x128x128xbf16> to vector<128x128xbf16>
    %cst_78 = arith.constant dense<0.000000e+00> : vector<256x128xf32>
    %113 = tpu.matmul %110, %112, %cst_78 {dimension_numbers = #tpu.dot_dimension_numbers<[1], [0], [0], [1], [0, 0, 1, 1], [], []>} : vector<256x128xbf16>, vector<128x128xbf16>, vector<256x128xf32> -> vector<256x128xf32>
    %114 = arith.addf %109, %113 : vector<256x128xf32>
    %115 = vector.extract_strided_slice %104 {offsets = [32, 0], sizes = [256, 128], strides = [1, 1]} : vector<288x128xbf16> to vector<256x128xbf16>
    %c8_79 = arith.constant 8 : index
    %c0_80 = arith.constant 0 : index
    %c0_81 = arith.constant 0 : index
    %116 = vector.load %arg4[%c8_79, %c0_80, %c0_81] : memref<9x128x128xbf16, #tpu.memory_space<vmem>>, vector<1x128x128xbf16>
    %117 = vector.shape_cast %116 : vector<1x128x128xbf16> to vector<128x128xbf16>
    %cst_82 = arith.constant dense<0.000000e+00> : vector<256x128xf32>
    %118 = tpu.matmul %115, %117, %cst_82 {dimension_numbers = #tpu.dot_dimension_numbers<[1], [0], [0], [1], [0, 0, 1, 1], [], []>} : vector<256x128xbf16>, vector<128x128xbf16>, vector<256x128xf32> -> vector<256x128xf32>
    %119 = arith.addf %114, %118 : vector<256x128xf32>
    %c0_83 = arith.constant 0 : index
    %c0_84 = arith.constant 0 : index
    %120 = vector.load %arg5[%c0_83, %c0_84] : memref<2x128xf32, #tpu.memory_space<vmem>>, vector<1x128xf32>
    %121 = vector.broadcast %120 : vector<1x128xf32> to vector<256x128xf32>
    %122 = arith.mulf %119, %121 : vector<256x128xf32>
    %c1_85 = arith.constant 1 : index
    %c0_86 = arith.constant 0 : index
    %123 = vector.load %arg5[%c1_85, %c0_86] : memref<2x128xf32, #tpu.memory_space<vmem>>, vector<1x128xf32>
    %124 = vector.broadcast %123 : vector<1x128xf32> to vector<256x128xf32>
    %125 = arith.addf %122, %124 : vector<256x128xf32>
    %cst_87 = arith.constant 0.000000e+00 : f32
    %126 = vector.broadcast %cst_87 : f32 to vector<256x128xf32>
    %127 = arith.maximumf %125, %126 : vector<256x128xf32>
    %128 = vector.shape_cast %127 : vector<256x128xf32> to vector<16x16x128xf32>
    %c0_88 = arith.constant 0 : index
    %c0_89 = arith.constant 0 : index
    %c0_90 = arith.constant 0 : index
    %c0_91 = arith.constant 0 : index
    %129 = vector.load %arg6[%c0_88, %c0_89, %c0_90, %c0_91] : memref<1x16x16x128xf32, #tpu.memory_space<vmem>>, vector<1x16x16x128xf32>
    %130 = vector.shape_cast %129 : vector<1x16x16x128xf32> to vector<16x16x128xf32>
    %131 = vector.shape_cast %128 : vector<16x16x128xf32> to vector<1x16x16x128xf32>
    tpu.vector_store %arg6[%c0_88, %c0_89, %c0_90, %c0_91], %131 {strides = array<i32>} : memref<1x16x16x128xf32, #tpu.memory_space<vmem>>, vector<1x16x16x128xf32>,
    return
  }
  func.func @transform_0(%arg0: i32) -> (i32, i32, i32, i32) {
    %c0_i32 = arith.constant 0 : i32
    %c0_i32_0 = arith.constant 0 : i32
    %c0_i32_1 = arith.constant 0 : i32
    %c0_i32_2 = arith.constant 0 : i32
    return %arg0, %c0_i32, %c0_i32_0, %c0_i32_1 : i32, i32, i32, i32
  }
  func.func @transform_1(%arg0: i32) -> (i32, i32, i32) {
    %c0_i32 = arith.constant 0 : i32
    %c0_i32_0 = arith.constant 0 : i32
    %c0_i32_1 = arith.constant 0 : i32
    %c0_i32_2 = arith.constant 0 : i32
    return %c0_i32, %c0_i32_0, %c0_i32_1 : i32, i32, i32
  }
  func.func @transform_2(%arg0: i32) -> (i32, i32) {
    %c0_i32 = arith.constant 0 : i32
    %c0_i32_0 = arith.constant 0 : i32
    %c0_i32_1 = arith.constant 0 : i32
    return %c0_i32, %c0_i32_0 : i32, i32
  }
  func.func @transform_3(%arg0: i32) -> (i32, i32, i32) {
    %c0_i32 = arith.constant 0 : i32
    %c0_i32_0 = arith.constant 0 : i32
    %c0_i32_1 = arith.constant 0 : i32
    %c0_i32_2 = arith.constant 0 : i32
    return %c0_i32, %c0_i32_0, %c0_i32_1 : i32, i32, i32
  }
  func.func @transform_4(%arg0: i32) -> (i32, i32) {
    %c0_i32 = arith.constant 0 : i32
    %c0_i32_0 = arith.constant 0 : i32
    %c0_i32_1 = arith.constant 0 : i32
    return %c0_i32, %c0_i32_0 : i32, i32
  }
  func.func @transform_5(%arg0: i32) -> (i32, i32, i32, i32) {
    %c0_i32 = arith.constant 0 : i32
    %c0_i32_0 = arith.constant 0 : i32
    %c0_i32_1 = arith.constant 0 : i32
    %c0_i32_2 = arith.constant 0 : i32
    return %arg0, %c0_i32, %c0_i32_0, %c0_i32_1 : i32, i32, i32, i32
  }
}

</mosaic_0001>

<llo_original>
// kernel: conv_block_forward.1
$region0: #{conv_block_forward.1}
  #allocation0 [shape = 'u32[]', space=smem, size = 0x4, offset = 0x4, fixed_abs, tag = 'smem constant byte address 0x4 - core index']
  #allocation1 [shape = 'u32[144,128]{1,0:T(1,128)}', space=vmem, size = 0x12000, scoped, tag = 'internal scratch']
  #allocation2 [shape = 'bf16[18,18,128]{2,1,0:T(8,128)(2,1)}', space=vmem, size = 0x1b000, scoped, tag = 'scratch operand']
  %s0 = inlined_call_operand.vmem [shape: bf16[2,18,18,4], index: 0, kind: input, shape index: {}]
  %s1 = inlined_call_operand.vmem [shape: bf16[9,4,128], index: 1, kind: input, shape index: {}]
  %s2 = inlined_call_operand.vmem [shape: f32[2,128], index: 2, kind: input, shape index: {}]
  %s3 = inlined_call_operand.vmem [shape: bf16[9,128,128], index: 3, kind: input, shape index: {}]
  %s4 = inlined_call_operand.vmem [shape: f32[2,128], index: 4, kind: input, shape index: {}]
  %s5 = inlined_call_operand.vmem [shape: f32[2,16,16,128], index: 5, kind: output, shape index: {}]
  %s6 = sld [smem:[#allocation0]]
  $region53: #{conv_block_forward.1} parent=0
    _
  %s8 = ssub.s32 1, %s6
  %s9 = scalar_select 0, %s8, %s6
  loop: start=0, step=1, limit=4
  $region2: #{conv_block_forward.1} parent=0 // loop_pre_header
    _
  $region3: #{conv_block_forward.1} parent=0 // loop_header
    %s11 = sphi 0, %s15
    %p12 = scmp.ge.s32.totalorder %s11, 4
    %s21 = sphi 0, %s23
    %s24 = sphi 0, %s21
    %s25 = sphi 0, %s24
    %s41 = sphi 0, %s25
    %s45 = sphi 0, %s45
    %s47 = sphi 0, %s45
    %s48 = sphi 0, %s47
    %s62 = sphi 0, %s48
    %s66 = sphi 0, %s66
    %s68 = sphi 0, %s66
    %s69 = sphi 0, %s68
    %s83 = sphi 0, %s69
    %s87 = sphi 0, %s87
    %s89 = sphi 0, %s87
    %s90 = sphi 0, %s89
    %s104 = sphi 0, %s90
    %s108 = sphi 0, %s108
    %s110 = sphi 0, %s108
    %s111 = sphi 0, %s110
    %s125 = sphi 0, %s111
    %s131 = sphi 0, %s133
    %s134 = sphi 0, %s131
    %s135 = sphi 0, %s134
    %s151 = sphi 0, %s135
  $region4: #{conv_block_forward.1} parent=0 // loop_header_branch
    %14 = sbr.rel (%p12) target = $region8
  $region5: #{conv_block_forward.1} parent=0 // loop_body
    %s16 = ssub.s32 %s11, 1
    %s17 = ssub.s32 %s11, 2
    %s18 = sadd.s32 %s11, 1
    %s19 = ssub.s32 %s11, %s18
    %p20 = scmp.eq.s32.totalorder %s19, 0
    %s22 = sadd.s32 %s21, 1
    %s23 = scalar_select %p20, %s21, %s22
    %p26 = pneg %p20
    %p27 = scmp.eq.s32.totalorder %s11, 1
    %p28 = por %p26, %p27
    %p29 = scmp.ne.s32.totalorder %s21, %s24
    %p30 = scmp.eq.s32.totalorder %s11, 0
    %p31 = por %p29, %p30
    %p32 = scmp.ne.s32.totalorder %s21, %s24
    %p33 = scmp.eq.s32.totalorder %s16, 1
    %p34 = por %p32, %p33
    %p35 = scmp.ne.s32.totalorder %s24, %s25
    %p36 = scmp.eq.s32.totalorder %s16, 0
    %p37 = por %p35, %p36
    %p38 = scmp.ne.s32.totalorder %s24, %s25
    %p39 = scmp.eq.s32.totalorder %s17, 1
    %p40 = por %p38, %p39
    %p42 = scmp.ne.s32.totalorder %s25, %s41
    %p43 = scmp.eq.s32.totalorder %s17, 0
    %p44 = por %p42, %p43
    %s46 = sadd.s32 %s45, 1
    %p49 = scmp.eq.s32.totalorder %s11, 1
    %p50 = scmp.ne.s32.totalorder %s45, %s47
    %p51 = scmp.eq.s32.totalorder %s11, 0
    %p52 = por %p50, %p51
    %p53 = scmp.ne.s32.totalorder %s45, %s47
    %p54 = scmp.eq.s32.totalorder %s16, 1
    %p55 = por %p53, %p54
    %p56 = scmp.ne.s32.totalorder %s47, %s48
    %p57 = scmp.eq.s32.totalorder %s16, 0
    %p58 = por %p56, %p57
    %p59 = scmp.ne.s32.totalorder %s47, %s48
    %p60 = scmp.eq.s32.totalorder %s17, 1
    %p61 = por %p59, %p60
    %p63 = scmp.ne.s32.totalorder %s48, %s62
    %p64 = scmp.eq.s32.totalorder %s17, 0
    %p65 = por %p63, %p64
    %s67 = sadd.s32 %s66, 1
    %p70 = scmp.eq.s32.totalorder %s11, 1
    %p71 = scmp.ne.s32.totalorder %s66, %s68
    %p72 = scmp.eq.s32.totalorder %s11, 0
    %p73 = por %p71, %p72
    %p74 = scmp.ne.s32.totalorder %s66, %s68
    %p75 = scmp.eq.s32.totalorder %s16, 1
    %p76 = por %p74, %p75
    %p77 = scmp.ne.s32.totalorder %s68, %s69
    %p78 = scmp.eq.s32.totalorder %s16, 0
    %p79 = por %p77, %p78
    %p80 = scmp.ne.s32.totalorder %s68, %s69
    %p81 = scmp.eq.s32.totalorder %s17, 1
    %p82 = por %p80, %p81
    %p84 = scmp.ne.s32.totalorder %s69, %s83
    %p85 = scmp.eq.s32.totalorder %s17, 0
    %p86 = por %p84, %p85
    %s88 = sadd.s32 %s87, 1
    %p91 = scmp.eq.s32.totalorder %s11, 1
    %p92 = scmp.ne.s32.totalorder %s87, %s89
    %p93 = scmp.eq.s32.totalorder %s11, 0
    %p94 = por %p92, %p93
    %p95 = scmp.ne.s32.totalorder %s87, %s89
    %p96 = scmp.eq.s32.totalorder %s16, 1
    %p97 = por %p95, %p96
    %p98 = scmp.ne.s32.totalorder %s89, %s90
    %p99 = scmp.eq.s32.totalorder %s16, 0
    %p100 = por %p98, %p99
    %p101 = scmp.ne.s32.totalorder %s89, %s90
    %p102 = scmp.eq.s32.totalorder %s17, 1
    %p103 = por %p101, %p102
    %p105 = scmp.ne.s32.totalorder %s90, %s104
    %p106 = scmp.eq.s32.totalorder %s17, 0
    %p107 = por %p105, %p106
    %s109 = sadd.s32 %s108, 1
    %p112 = scmp.eq.s32.totalorder %s11, 1
    %p113 = scmp.ne.s32.totalorder %s108, %s110
    %p114 = scmp.eq.s32.totalorder %s11, 0
    %p115 = por %p113, %p114
    %p116 = scmp.ne.s32.totalorder %s108, %s110
    %p117 = scmp.eq.s32.totalorder %s16, 1
    %p118 = por %p116, %p117
    %p119 = scmp.ne.s32.totalorder %s110, %s111
    %p120 = scmp.eq.s32.totalorder %s16, 0
    %p121 = por %p119, %p120
    %p122 = scmp.ne.s32.totalorder %s110, %s111
    %p123 = scmp.eq.s32.totalorder %s17, 1
    %p124 = por %p122, %p123
    %p126 = scmp.ne.s32.totalorder %s111, %s125
    %p127 = scmp.eq.s32.totalorder %s17, 0
    %p128 = por %p126, %p127
    %s129 = ssub.s32 %s11, %s18
    %p130 = scmp.eq.s32.totalorder %s129, 0
    %s132 = sadd.s32 %s131, 1
    %s133 = scalar_select %p130, %s131, %s132
    %p136 = pneg %p130
    %p137 = scmp.eq.s32.totalorder %s11, 1
    %p138 = por %p136, %p137
    %p139 = scmp.ne.s32.totalorder %s131, %s134
    %p140 = scmp.eq.s32.totalorder %s11, 0
    %p141 = por %p139, %p140
    %p142 = scmp.ne.s32.totalorder %s131, %s134
    %p143 = scmp.eq.s32.totalorder %s16, 1
    %p144 = por %p142, %p143
    %p145 = scmp.ne.s32.totalorder %s134, %s135
    %p146 = scmp.eq.s32.totalorder %s16, 0
    %p147 = por %p145, %p146
    %p148 = scmp.ne.s32.totalorder %s134, %s135
    %p149 = scmp.eq.s32.totalorder %s17, 1
    %p150 = por %p148, %p149
    %p152 = scmp.ne.s32.totalorder %s135, %s151
    %p153 = scmp.eq.s32.totalorder %s17, 0
    %p154 = por %p152, %p153
    %p155 = scmp.le.s32.totalorder 1, %s11
    %p156 = scmp.lt.s32.totalorder %s11, 3
    %p157 = pnand %p155, %p156
    %p158 = pneg %p157
    // Predicated region
    $region9: #{conv_block_forward.1} parent=5 // pred_check
      _
    $region10: #{conv_block_forward.1} parent=5 // pred_check_branch
      %160 = sbr.rel (%p157) target = $region12
    $region11: #{conv_block_forward.1} parent=5 // pred_region
      %s161 = ssub.s32 %s11, 1
      // Predicated region
      $region13: #{conv_block_forward.1} parent=11 // pred_check
        %p162 = pneg %p58
      $region14: #{conv_block_forward.1} parent=11 // pred_check_branch
        %164 = sbr.rel (%p162) target = $region16
      $region15: #{conv_block_forward.1} parent=11 // pred_region
        _
      $region16: #{conv_block_forward.1} parent=11 // pred_fallthru
        _
      // Predicated region
      $region17: #{conv_block_forward.1} parent=11 // pred_check
        %p165 = pneg %p79
      $region18: #{conv_block_forward.1} parent=11 // pred_check_branch
        %167 = sbr.rel (%p165) target = $region20
      $region19: #{conv_block_forward.1} parent=11 // pred_region
        _
      $region20: #{conv_block_forward.1} parent=11 // pred_fallthru
        _
      // Predicated region
      $region21: #{conv_block_forward.1} parent=11 // pred_check
        %p168 = pneg %p100
      $region22: #{conv_block_forward.1} parent=11 // pred_check_branch
        %170 = sbr.rel (%p168) target = $region24
      $region23: #{conv_block_forward.1} parent=11 // pred_region
        _
      $region24: #{conv_block_forward.1} parent=11 // pred_fallthru
        _
      // Predicated region
      $region25: #{conv_block_forward.1} parent=11 // pred_check
        %p171 = pneg %p121
      $region26: #{conv_block_forward.1} parent=11 // pred_check_branch
        %173 = sbr.rel (%p171) target = $region28
      $region27: #{conv_block_forward.1} parent=11 // pred_region
        _
      $region28: #{conv_block_forward.1} parent=11 // pred_fallthru
        _
    $region12: #{conv_block_forward.1} parent=5 // pred_fallthru
      _
    %p174 = scmp.lt.s32.totalorder %s11, 2
    // Predicated region
    $region29: #{conv_block_forward.1} parent=5 // pred_check
      %p175 = pneg %p174
    $region30: #{conv_block_forward.1} parent=5 // pred_check_branch
      %177 = sbr.rel (%p175) target = $region32
    $region31: #{conv_block_forward.1} parent=5 // pred_region
      // Predicated region
      $region33: #{conv_block_forward.1} parent=31 // pred_check
        %p178 = pneg %p31
      $region34: #{conv_block_forward.1} parent=31 // pred_check_branch
        %180 = sbr.rel (%p178) target = $region36
      $region35: #{conv_block_forward.1} parent=31 // pred_region
        %p181 = scmp.lt.s32.totalorder %s11, 1
        %s182 = scalar_select %p181, %s11, 1
        %s183 = smul.addr %s182, 54
        %s184 = smul.addr %s183, 4
        %s185 = scalar_lea.vmem %s0, %s184
      $region36: #{conv_block_forward.1} parent=31 // pred_fallthru
        _
    $region32: #{conv_block_forward.1} parent=5 // pred_fallthru
      _
    %p186 = scmp.le.s32.totalorder 1, %s11
    %p187 = scmp.lt.s32.totalorder %s11, 3
    %p188 = pnand %p186, %p187
    %p189 = pneg %p188
    // Predicated region
    $region37: #{conv_block_forward.1} parent=5 // pred_check
      _
    $region38: #{conv_block_forward.1} parent=5 // pred_check_branch
      %191 = sbr.rel (%p188) target = $region40
    $region39: #{conv_block_forward.1} parent=5 // pred_region
      %s192 = ssub.s32 %s11, 1
      %p193 = scmp.lt.s32.totalorder %s16, 1
      %s194 = scalar_select %p193, %s16, 1
      %s195 = smul.addr %s194, 54
      %s196 = smul.addr %s195, 4
      %s197 = scalar_lea.vmem %s0, %s196
      %p198 = pneg %p37
      %p199 = pneg %p34
      %p200 = pneg %p58
      %p201 = pneg %p55
      %p202 = pneg %p79
      %p203 = pneg %p76
      %p204 = pneg %p100
      %p205 = pneg %p97
      %p206 = pneg %p121
      %p207 = pneg %p118
      %p208 = pneg %p147
      %p209 = pneg %p144
      %p210 = scmp.lt.s32.totalorder %s16, 1
      %s211 = scalar_select %p210, %s16, 1
      %s212 = smul.addr %s211, 32
      %s213 = smul.addr %s212, 8
      %s214 = scalar_lea.vmem %s5, %s213
      %p215 = scmp.lt.s32.totalorder %s16, 1
      %s216 = scalar_select %p215, %s16, 1
      %s217 = smul.addr %s216, 54
      %s218 = smul.addr %s217, 4
      %s219 = scalar_lea.vmem %s0, %s218
      %p220 = scmp.lt.s32.totalorder %s16, 1
      %s221 = scalar_select %p220, %s16, 1
      %s222 = smul.addr %s221, 32
      %s223 = smul.addr %s222, 8
      %s224 = scalar_lea.vmem %s5, %s223
      %v226 = vld [vmem:[%s219] sm:$0xf]
      %v227 = vld [vmem:[%s219 + $0x4] sm:$0xf]
      %v228 = vld [vmem:[%s219 + $0x8] sm:$0x1]
      %v229 = vld [vmem:[%s219 + $0xc] sm:$0xf]
      %v230 = vld [vmem:[%s219 + $0x10] sm:$0xf]
      %v231 = vld [vmem:[%s219 + $0x14] sm:$0x1]
      %v232 = vld [vmem:[%s219 + $0x18] sm:$0xf]
      %v233 = vld [vmem:[%s219 + $0x1c] sm:$0xf]
      %v234 = vld [vmem:[%s219 + $0x20] sm:$0x1]
      %v235 = vld [vmem:[%s219 + $0x24] sm:$0xf]
      %v236 = vld [vmem:[%s219 + $0x28] sm:$0xf]
      %v237 = vld [vmem:[%s219 + $0x2c] sm:$0x1]
      %v238 = vld [vmem:[%s219 + $0x30] sm:$0xf]
      %v239 = vld [vmem:[%s219 + $0x34] sm:$0xf]
      %v240 = vld [vmem:[%s219 + $0x38] sm:$0x1]
      %v241 = vld [vmem:[%s219 + $0x3c] sm:$0xf]
      %v242 = vld [vmem:[%s219 + $0x40] sm:$0xf]
      %v243 = vld [vmem:[%s219 + $0x44] sm:$0x1]
      %v244 = vld [vmem:[%s219 + $0x48] sm:$0xf]
      %v245 = vld [vmem:[%s219 + $0x4c] sm:$0xf]
      %v246 = vld [vmem:[%s219 + $0x50] sm:$0x1]
      %v247 = vld [vmem:[%s219 + $0x54] sm:$0xf]
      %v248 = vld [vmem:[%s219 + $0x58] sm:$0xf]
      %v249 = vld [vmem:[%s219 + $0x5c] sm:$0x1]
      %v250 = vld [vmem:[%s219 + $0x60] sm:$0xf]
      %v251 = vld [vmem:[%s219 + $0x64] sm:$0xf]
      %v252 = vld [vmem:[%s219 + $0x68] sm:$0x1]
      %v253 = vld [vmem:[%s219 + $0x6c] sm:$0xf]
      %v254 = vld [vmem:[%s219 + $0x70] sm:$0xf]
      %v255 = vld [vmem:[%s219 + $0x74] sm:$0x1]
      %v256 = vld [vmem:[%s219 + $0x78] sm:$0xf]
      %v257 = vld [vmem:[%s219 + $0x7c] sm:$0xf]
      %v258 = vld [vmem:[%s219 + $0x80] sm:$0x1]
      %v259 = vld [vmem:[%s219 + $0x84] sm:$0xf]
      %v260 = vld [vmem:[%s219 + $0x88] sm:$0xf]
      %v261 = vld [vmem:[%s219 + $0x8c] sm:$0x1]
      %v262 = vld [vmem:[%s219 + $0x90] sm:$0xf]
      %v263 = vld [vmem:[%s219 + $0x94] sm:$0xf]
      %v264 = vld [vmem:[%s219 + $0x98] sm:$0x1]
      %v265 = vld [vmem:[%s219 + $0x9c] sm:$0xf]
      %v266 = vld [vmem:[%s219 + $0xa0] sm:$0xf]
      %v267 = vld [vmem:[%s219 + $0xa4] sm:$0x1]
      %v268 = vld [vmem:[%s219 + $0xa8] sm:$0xf]
      %v269 = vld [vmem:[%s219 + $0xac] sm:$0xf]
      %v270 = vld [vmem:[%s219 + $0xb0] sm:$0x1]
      %v271 = vld [vmem:[%s219 + $0xb4] sm:$0xf]
      %v272 = vld [vmem:[%s219 + $0xb8] sm:$0xf]
      %v273 = vld [vmem:[%s219 + $0xbc] sm:$0x1]
      %v274 = vld [vmem:[%s219 + $0xc0] sm:$0xf]
      %v275 = vld [vmem:[%s219 + $0xc4] sm:$0xf]
      %v276 = vld [vmem:[%s219 + $0xc8] sm:$0x1]
      %v277 = vld [vmem:[%s219 + $0xcc] sm:$0xf]
      %v278 = vld [vmem:[%s219 + $0xd0] sm:$0xf]
      %v279 = vld [vmem:[%s219 + $0xd4] sm:$0x1]
      %v280 = vld [vmem:[%s1] sm:$0x3]
      %s281 = scalar_lea.vmem %s1, 6
      %v282 = vld [vmem:[%s281] sm:$0x3]
      %v315 = vunpack.c.l.b16 %v229
      %v316 = vunpack.c.l.b16 %v230
      %v317 = vunpack.c.l.b16 %v232
      %v318 = vunpack.c.l.b16 %v233
      %v319 = vunpack.c.l.b16 %v235
      %v320 = vunpack.c.l.b16 %v236
      %v321 = vunpack.c.l.b16 %v238
      %v322 = vunpack.c.l.b16 %v239
      %v323 = vunpack.c.l.b16 %v241
      %v324 = vunpack.c.l.b16 %v242
      %v325 = vunpack.c.l.b16 %v244
      %v326 = vunpack.c.l.b16 %v245
      %v327 = vunpack.c.l.b16 %v247
      %v328 = vunpack.c.l.b16 %v248
      %v329 = vunpack.c.l.b16 %v250
      %v330 = vunpack.c.l.b16 %v251
      %v331 = vunpack.c.l.b16 %v253
      %v332 = vunpack.c.l.b16 %v254
      %v333 = vunpack.c.l.b16 %v256
      %v334 = vunpack.c.l.b16 %v257
      %v335 = vunpack.c.l.b16 %v259
      %v336 = vunpack.c.l.b16 %v260
      %v337 = vunpack.c.l.b16 %v262
      %v338 = vunpack.c.l.b16 %v263
      %v339 = vunpack.c.l.b16 %v265
      %v340 = vunpack.c.l.b16 %v266
      %v341 = vunpack.c.l.b16 %v268
      %v342 = vunpack.c.l.b16 %v269
      %v343 = vunpack.c.l.b16 %v271
      %v344 = vunpack.c.l.b16 %v272
      %v345 = vunpack.c.l.b16 %v274
      %v346 = vunpack.c.l.b16 %v275
      %v347 = vpack.c.b16 %v316, %v315
      %v348 = vpack.c.b16 %v318, %v317
      %v349 = vpack.c.b16 %v320, %v319
      %v350 = vpack.c.b16 %v322, %v321
      %v351 = vpack.c.b16 %v324, %v323
      %v352 = vpack.c.b16 %v326, %v325
      %v353 = vpack.c.b16 %v328, %v327
      %v354 = vpack.c.b16 %v330, %v329
      %v355 = vpack.c.b16 %v332, %v331
      %v356 = vpack.c.b16 %v334, %v333
      %v357 = vpack.c.b16 %v336, %v335
      %v358 = vpack.c.b16 %v338, %v337
      %v359 = vpack.c.b16 %v340, %v339
      %v360 = vpack.c.b16 %v342, %v341
      %v361 = vpack.c.b16 %v344, %v343
      %v362 = vpack.c.b16 %v346, %v345
      %vm363 = vcmask 31744
      %v365 = vsel %vm363, %v347, 0
      %v368 = vsel %vm363, %v348, 0
      %v371 = vsel %vm363, %v349, 0
      %v374 = vsel %vm363, %v350, 0
      %v377 = vsel %vm363, %v351, 0
      %v380 = vsel %vm363, %v352, 0
      %v383 = vsel %vm363, %v353, 0
      %v386 = vsel %vm363, %v354, 0
      %v389 = vsel %vm363, %v355, 0
      %v392 = vsel %vm363, %v356, 0
      %v395 = vsel %vm363, %v357, 0
      %v398 = vsel %vm363, %v358, 0
      %v401 = vsel %vm363, %v359, 0
      %v404 = vsel %vm363, %v360, 0
      %v407 = vsel %vm363, %v361, 0
      %v410 = vsel %vm363, %v362, 0
      %vm412 = vcmask 1041408
      %v414 = vsel %vm412, %v282, 0
      %416 = vmatprep.subr.bf16.mxu0 0
      %417 = vmatpush1.bf16.msra.mxu0 %v414
      %418 = vmatprep.subr.bf16.mxu0 0
      %419 = vmatpush1.bf16.msra.mxu0 0
      %420 = vmatprep.subr.bf16.mxu0 0
      %421 = vmatpush1.bf16.msra.mxu0 0
      %422 = vmatprep.subr.bf16.mxu0 0
      %423 = vmatpush1.bf16.msra.mxu0 0
      %424 = vmatprep.subr.bf16.mxu0 0
      %425 = vmatpush1.bf16.msra.mxu0 0
      %426 = vmatprep.subr.bf16.mxu0 0
      %427 = vmatpush1.bf16.msra.mxu0 0
      %428 = vmatprep.subr.bf16.mxu0 0
      %429 = vmatpush1.bf16.msra.mxu0 0
      %430 = vmatprep.subr.bf16.mxu0 0
      %431 = vmatpush1.bf16.msra.mxu0 0
      %432 = vmatprep.subr.bf16.mxu0 0
      %433 = vmatpush1.bf16.msra.mxu0 0
      %434 = vmatprep.subr.bf16.mxu0 0
      %435 = vmatpush1.bf16.msra.mxu0 0
      %436 = vmatprep.subr.bf16.mxu0 0
      %437 = vmatpush1.bf16.msra.mxu0 0
      %438 = vmatprep.subr.bf16.mxu0 0
      %439 = vmatpush1.bf16.msra.mxu0 0
      %440 = vmatprep.subr.bf16.mxu0 0
      %441 = vmatpush1.bf16.msra.mxu0 0
      %442 = vmatprep.subr.bf16.mxu0 0
      %443 = vmatpush1.bf16.msra.mxu0 0
      %444 = vmatprep.subr.bf16.mxu0 0
      %445 = vmatpush1.bf16.msra.mxu0 0
      %446 = vmatprep.subr.bf16.mxu0 0
      %447 = vmatpush1.bf16.msra.mxu0 0
      %448 = vmatprep.mubr.bf16.mxu0 0
      %449 = vmatmul.mubr.bf16.gmra.mrb[0].mxu0 %v365
      %v450 = vpop.f32.mrb[0].mxu0
      %v451 = vadd.f32 0.0, %v450
      %v452 = vpop.f32.mrb[0].mxu0
      %v453 = vpop.f32.mrb[0].mxu0
      %v454 = vadd.f32 0.0, %v453
      %v455 = vpop.f32.mrb[0].mxu0
      %456 = vmatprep.mubr.bf16.mxu0 0
      %457 = vmatmul.mubr.bf16.gmra.mrb[0].mxu0 %v368
      %v458 = vpop.f32.mrb[0].mxu0
      %v459 = vadd.f32 0.0, %v458
      %v460 = vpop.f32.mrb[0].mxu0
      %v461 = vpop.f32.mrb[0].mxu0
      %v462 = vadd.f32 0.0, %v461
      %v463 = vpop.f32.mrb[0].mxu0
      %464 = vmatprep.mubr.bf16.mxu0 0
      %465 = vmatmul.mubr.bf16.gmra.mrb[0].mxu0 %v371
      %v466 = vpop.f32.mrb[0].mxu0
      %v467 = vadd.f32 0.0, %v466
      %v468 = vpop.f32.mrb[0].mxu0
      %v469 = vpop.f32.mrb[0].mxu0
      %v470 = vadd.f32 0.0, %v469
      %v471 = vpop.f32.mrb[0].mxu0
      %472 = vmatprep.mubr.bf16.mxu0 0
      %473 = vmatmul.mubr.bf16.gmra.mrb[0].mxu0 %v374
      %v474 = vpop.f32.mrb[0].mxu0
      %v475 = vadd.f32 0.0, %v474
      %v476 = vpop.f32.mrb[0].mxu0
      %v477 = vpop.f32.mrb[0].mxu0
      %v478 = vadd.f32 0.0, %v477
      %v479 = vpop.f32.mrb[0].mxu0
      %480 = vmatprep.mubr.bf16.mxu0 0
      %481 = vmatmul.mubr.bf16.gmra.mrb[0].mxu0 %v377
      %v482 = vpop.f32.mrb[0].mxu0
      %v483 = vadd.f32 0.0, %v482
      %v484 = vpop.f32.mrb[0].mxu0
      %v485 = vpop.f32.mrb[0].mxu0
      %v486 = vadd.f32 0.0, %v485
      %v487 = vpop.f32.mrb[0].mxu0
      %488 = vmatprep.mubr.bf16.mxu0 0
      %489 = vmatmul.mubr.bf16.gmra.mrb[0].mxu0 %v380
      %v490 = vpop.f32.mrb[0].mxu0
      %v491 = vadd.f32 0.0, %v490
      %v492 = vpop.f32.mrb[0].mxu0
      %v493 = vpop.f32.mrb[0].mxu0
      %v494 = vadd.f32 0.0, %v493
      %v495 = vpop.f32.mrb[0].mxu0
      %496 = vmatprep.mubr.bf16.mxu0 0
      %497 = vmatmul.mubr.bf16.gmra.mrb[0].mxu0 %v383
      %v498 = vpop.f32.mrb[0].mxu0
      %v499 = vadd.f32 0.0, %v498
      %v500 = vpop.f32.mrb[0].mxu0
      %v501 = vpop.f32.mrb[0].mxu0
      %v502 = vadd.f32 0.0, %v501
      %v503 = vpop.f32.mrb[0].mxu0
      %504 = vmatprep.mubr.bf16.mxu0 0
      %505 = vmatmul.mubr.bf16.gmra.mrb[0].mxu0 %v386
      %v506 = vpop.f32.mrb[0].mxu0
      %v507 = vadd.f32 0.0, %v506
      %v508 = vpop.f32.mrb[0].mxu0
      %v509 = vpop.f32.mrb[0].mxu0
      %v510 = vadd.f32 0.0, %v509
      %v511 = vpop.f32.mrb[0].mxu0
      %512 = vmatprep.mubr.bf16.mxu0 0
      %513 = vmatmul.mubr.bf16.gmra.mrb[0].mxu0 %v389
      %v514 = vpop.f32.mrb[0].mxu0
      %v515 = vadd.f32 0.0, %v514
      %v516 = vpop.f32.mrb[0].mxu0
      %v517 = vpop.f32.mrb[0].mxu0
      %v518 = vadd.f32 0.0, %v517
      %v519 = vpop.f32.mrb[0].mxu0
      %520 = vmatprep.mubr.bf16.mxu0 0
      %521 = vmatmul.mubr.bf16.gmra.mrb[0].mxu0 %v392
      %v522 = vpop.f32.mrb[0].mxu0
      %v523 = vadd.f32 0.0, %v522
      %v524 = vpop.f32.mrb[0].mxu0
      %v525 = vpop.f32.mrb[0].mxu0
      %v526 = vadd.f32 0.0, %v525
      %v527 = vpop.f32.mrb[0].mxu0
      %528 = vmatprep.mubr.bf16.mxu0 0
      %529 = vmatmul.mubr.bf16.gmra.mrb[0].mxu0 %v395
      %v530 = vpop.f32.mrb[0].mxu0
      %v531 = vadd.f32 0.0, %v530
      %v532 = vpop.f32.mrb[0].mxu0
      %v533 = vpop.f32.mrb[0].mxu0
      %v534 = vadd.f32 0.0, %v533
      %v535 = vpop.f32.mrb[0].mxu0
      %536 = vmatprep.mubr.bf16.mxu0 0
      %537 = vmatmul.mubr.bf16.gmra.mrb[0].mxu0 %v398
      %v538 = vpop.f32.mrb[0].mxu0
      %v539 = vadd.f32 0.0, %v538
      %v540 = vpop.f32.mrb[0].mxu0
      %v541 = vpop.f32.mrb[0].mxu0
      %v542 = vadd.f32 0.0, %v541
      %v543 = vpop.f32.mrb[0].mxu0
      %544 = vmatprep.mubr.bf16.mxu0 0
      %545 = vmatmul.mubr.bf16.gmra.mrb[0].mxu0 %v401
      %v546 = vpop.f32.mrb[0].mxu0
      %v547 = vadd.f32 0.0, %v546
      %v548 = vpop.f32.mrb[0].mxu0
      %v549 = vpop.f32.mrb[0].mxu0
      %v550 = vadd.f32 0.0, %v549
      %v551 = vpop.f32.mrb[0].mxu0
      %552 = vmatprep.mubr.bf16.mxu0 0
      %553 = vmatmul.mubr.bf16.gmra.mrb[0].mxu0 %v404
      %v554 = vpop.f32.mrb[0].mxu0
      %v555 = vadd.f32 0.0, %v554
      %v556 = vpop.f32.mrb[0].mxu0
      %v557 = vpop.f32.mrb[0].mxu0
      %v558 = vadd.f32 0.0, %v557
      %v559 = vpop.f32.mrb[0].mxu0
      %560 = vmatprep.mubr.bf16.mxu0 0
      %561 = vmatmul.mubr.bf16.gmra.mrb[0].mxu0 %v407
      %v562 = vpop.f32.mrb[0].mxu0
      %v563 = vadd.f32 0.0, %v562
      %v564 = vpop.f32.mrb[0].mxu0
      %v565 = vpop.f32.mrb[0].mxu0
      %v566 = vadd.f32 0.0, %v565
      %v567 = vpop.f32.mrb[0].mxu0
      %568 = vmatprep.mubr.bf16.mxu0 0
      %569 = vmatmul.mubr.bf16.gmra.mrb[0].mxu0 %v410
      %v570 = vpop.f32.mrb[0].mxu0
      %v571 = vadd.f32 0.0, %v570
      %v572 = vpop.f32.mrb[0].mxu0
      %v573 = vpop.f32.mrb[0].mxu0
      %v574 = vadd.f32 0.0, %v573
      %v575 = vpop.f32.mrb[0].mxu0
      %576 = vdwg.mxu0
      %v579 = vunpack.c.l.b16 %v226
      %v580 = vunpack.c.l.b16 %v227
      %v581 = vpack.c.b16 %v580, %v579
      %v583 = vsel %vm363, %v581, 0
      %v586 = vsel %vm412, %v280, 0
      %588 = vmatprep.subr.bf16.mxu0 0
      %589 = vmatpush1.bf16.msra.mxu0 %v586
      %590 = vmatprep.subr.bf16.mxu0 0
      %591 = vmatpush1.bf16.msra.mxu0 0
      %592 = vmatprep.subr.bf16.mxu0 0
      %593 = vmatpush1.bf16.msra.mxu0 0
      %594 = vmatprep.subr.bf16.mxu0 0
      %595 = vmatpush1.bf16.msra.mxu0 0
      %596 = vmatprep.subr.bf16.mxu0 0
      %597 = vmatpush1.bf16.msra.mxu0 0
      %598 = vmatprep.subr.bf16.mxu0 0
      %599 = vmatpush1.bf16.msra.mxu0 0
      %600 = vmatprep.subr.bf16.mxu0 0
      %601 = vmatpush1.bf16.msra.mxu0 0
      %602 = vmatprep.subr.bf16.mxu0 0
      %603 = vmatpush1.bf16.msra.mxu0 0
      %604 = vmatprep.subr.bf16.mxu0 0
      %605 = vmatpush1.bf16.msra.mxu0 0
      %606 = vmatprep.subr.bf16.mxu0 0
      %607 = vmatpush1.bf16.msra.mxu0 0
      %608 = vmatprep.subr.bf16.mxu0 0
      %609 = vmatpush1.bf16.msra.mxu0 0
      %610 = vmatprep.subr.bf16.mxu0 0
      %611 = vmatpush1.bf16.msra.mxu0 0
      %612 = vmatprep.subr.bf16.mxu0 0
      %613 = vmatpush1.bf16.msra.mxu0 0
      %614 = vmatprep.subr.bf16.mxu0 0
      %615 = vmatpush1.bf16.msra.mxu0 0
      %616 = vmatprep.subr.bf16.mxu0 0
      %617 = vmatpush1.bf16.msra.mxu0 0
      %618 = vmatprep.subr.bf16.mxu0 0
      %619 = vmatpush1.bf16.msra.mxu0 0
      %620 = vmatprep.mubr.bf16.mxu0 0
      %621 = vmatmul.mubr.bf16.gmra.mrb[0].mxu0 %v583
      %v622 = vpop.f32.mrb[0].mxu0
      %v623 = vadd.f32 %v451, %v622
      %v624 = vpop.f32.mrb[0].mxu0
      %v625 = vpop.f32.mrb[0].mxu0
      %v626 = vadd.f32 %v454, %v625
      %v627 = vpop.f32.mrb[0].mxu0
      %628 = vmatprep.mubr.bf16.mxu0 0
      %629 = vmatmul.mubr.bf16.gmra.mrb[0].mxu0 %v365
      %v630 = vpop.f32.mrb[0].mxu0
      %v631 = vadd.f32 %v459, %v630
      %v632 = vpop.f32.mrb[0].mxu0
      %v633 = vpop.f32.mrb[0].mxu0
      %v634 = vadd.f32 %v462, %v633
      %v635 = vpop.f32.mrb[0].mxu0
      %636 = vmatprep.mubr.bf16.mxu0 0
      %637 = vmatmul.mubr.bf16.gmra.mrb[0].mxu0 %v368
      %v638 = vpop.f32.mrb[0].mxu0
      %v639 = vadd.f32 %v467, %v638
      %v640 = vpop.f32.mrb[0].mxu0
      %v641 = vpop.f32.mrb[0].mxu0
      %v642 = vadd.f32 %v470, %v641
      %v643 = vpop.f32.mrb[0].mxu0
      %644 = vmatprep.mubr.bf16.mxu0 0
      %645 = vmatmul.mubr.bf16.gmra.mrb[0].mxu0 %v371
      %v646 = vpop.f32.mrb[0].mxu0
      %v647 = vadd.f32 %v475, %v646
      %v648 = vpop.f32.mrb[0].mxu0
      %v649 = vpop.f32.mrb[0].mxu0
      %v650 = vadd.f32 %v478, %v649
      %v651 = vpop.f32.mrb[0].mxu0
      %652 = vmatprep.mubr.bf16.mxu0 0
      %653 = vmatmul.mubr.bf16.gmra.mrb[0].mxu0 %v374
      %v654 = vpop.f32.mrb[0].mxu0
      %v655 = vadd.f32 %v483, %v654
      %v656 = vpop.f32.mrb[0].mxu0
      %v657 = vpop.f32.mrb[0].mxu0
      %v658 = vadd.f32 %v486, %v657
      %v659 = vpop.f32.mrb[0].mxu0
      %660 = vmatprep.mubr.bf16.mxu0 0
      %661 = vmatmul.mubr.bf16.gmra.mrb[0].mxu0 %v377
      %v662 = vpop.f32.mrb[0].mxu0
      %v663 = vadd.f32 %v491, %v662
      %v664 = vpop.f32.mrb[0].mxu0
      %v665 = vpop.f32.mrb[0].mxu0
      %v666 = vadd.f32 %v494, %v665
      %v667 = vpop.f32.mrb[0].mxu0
      %668 = vmatprep.mubr.bf16.mxu0 0
      %669 = vmatmul.mubr.bf16.gmra.mrb[0].mxu0 %v380
      %v670 = vpop.f32.mrb[0].mxu0
      %v671 = vadd.f32 %v499, %v670
      %v672 = vpop.f32.mrb[0].mxu0
      %v673 = vpop.f32.mrb[0].mxu0
      %v674 = vadd.f32 %v502, %v673
      %v675 = vpop.f32.mrb[0].mxu0
      %676 = vmatprep.mubr.bf16.mxu0 0
      %677 = vmatmul.mubr.bf16.gmra.mrb[0].mxu0 %v383
      %v678 = vpop.f32.mrb[0].mxu0
      %v679 = vadd.f32 %v507, %v678
      %v680 = vpop.f32.mrb[0].mxu0
      %v681 = vpop.f32.mrb[0].mxu0
      %v682 = vadd.f32 %v510, %v681
      %v683 = vpop.f32.mrb[0].mxu0
      %684 = vmatprep.mubr.bf16.mxu0 0
      %685 = vmatmul.mubr.bf16.gmra.mrb[0].mxu0 %v386
      %v686 = vpop.f32.mrb[0].mxu0
      %v687 = vadd.f32 %v515, %v686
      %v688 = vpop.f32.mrb[0].mxu0
      %v689 = vpop.f32.mrb[0].mxu0
      %v690 = vadd.f32 %v518, %v689
      %v691 = vpop.f32.mrb[0].mxu0
      %692 = vmatprep.mubr.bf16.mxu0 0
      %693 = vmatmul.mubr.bf16.gmra.mrb[0].mxu0 %v389
      %v694 = vpop.f32.mrb[0].mxu0
      %v695 = vadd.f32 %v523, %v694
      %v696 = vpop.f32.mrb[0].mxu0
      %v697 = vpop.f32.mrb[0].mxu0
      %v698 = vadd.f32 %v526, %v697
      %v699 = vpop.f32.mrb[0].mxu0
      %700 = vmatprep.mubr.bf16.mxu0 0
      %701 = vmatmul.mubr.bf16.gmra.mrb[0].mxu0 %v392
      %v702 = vpop.f32.mrb[0].mxu0
      %v703 = vadd.f32 %v531, %v702
      %v704 = vpop.f32.mrb[0].mxu0
      %v705 = vpop.f32.mrb[0].mxu0
      %v706 = vadd.f32 %v534, %v705
      %v707 = vpop.f32.mrb[0].mxu0
      %708 = vmatprep.mubr.bf16.mxu0 0
      %709 = vmatmul.mubr.bf16.gmra.mrb[0].mxu0 %v395
      %v710 = vpop.f32.mrb[0].mxu0
      %v711 = vadd.f32 %v539, %v710
      %v712 = vpop.f32.mrb[0].mxu0
      %v713 = vpop.f32.mrb[0].mxu0
      %v714 = vadd.f32 %v542, %v713
      %v715 = vpop.f32.mrb[0].mxu0
      %716 = vmatprep.mubr.bf16.mxu0 0
      %717 = vmatmul.mubr.bf16.gmra.mrb[0].mxu0 %v398
      %v718 = vpop.f32.mrb[0].mxu0
      %v719 = vadd.f32 %v547, %v718
      %v720 = vpop.f32.mrb[0].mxu0
      %v721 = vpop.f32.mrb[0].mxu0
      %v722 = vadd.f32 %v550, %v721
      %v723 = vpop.f32.mrb[0].mxu0
      %724 = vmatprep.mubr.bf16.mxu0 0
      %725 = vmatmul.mubr.bf16.gmra.mrb[0].mxu0 %v401
      %v726 = vpop.f32.mrb[0].mxu0
      %v727 = vadd.f32 %v555, %v726
      %v728 = vpop.f32.mrb[0].mxu0
      %v729 = vpop.f32.mrb[0].mxu0
      %v730 = vadd.f32 %v558, %v729
      %v731 = vpop.f32.mrb[0].mxu0
      %732 = vmatprep.mubr.bf16.mxu0 0
      %733 = vmatmul.mubr.bf16.gmra.mrb[0].mxu0 %v404
      %v734 = vpop.f32.mrb[0].mxu0
      %v735 = vadd.f32 %v563, %v734
      %v736 = vpop.f32.mrb[0].mxu0
      %v737 = vpop.f32.mrb[0].mxu0
      %v738 = vadd.f32 %v566, %v737
      %v739 = vpop.f32.mrb[0].mxu0
      %740 = vmatprep.mubr.bf16.mxu0 0
      %741 = vmatmul.mubr.bf16.gmra.mrb[0].mxu0 %v407
      %v742 = vpop.f32.mrb[0].mxu0
      %v743 = vadd.f32 %v571, %v742
      %v744 = vpop.f32.mrb[0].mxu0
      %v745 = vpop.f32.mrb[0].mxu0
      %v746 = vadd.f32 %v574, %v745
      %v747 = vpop.f32.mrb[0].mxu0
      %748 = vdwg.mxu0
      %s749 = scalar_lea.vmem %s1, 12
      %v750 = vld [vmem:[%s749] sm:$0x3]
      %v753 = vunpack.c.l.b16 %v277
      %v754 = vunpack.c.l.b16 %v278
      %v755 = vpack.c.b16 %v754, %v753
      %v757 = vsel %vm363, %v755, 0
      %v760 = vsel %vm412, %v750, 0
      %762 = vmatprep.subr.bf16.mxu0 0
      %763 = vmatpush1.bf16.msra.mxu0 %v760
      %764 = vmatprep.subr.bf16.mxu0 0
      %765 = vmatpush1.bf16.msra.mxu0 0
      %766 = vmatprep.subr.bf16.mxu0 0
      %767 = vmatpush1.bf16.msra.mxu0 0
      %768 = vmatprep.subr.bf16.mxu0 0
      %769 = vmatpush1.bf16.msra.mxu0 0
      %770 = vmatprep.subr.bf16.mxu0 0
      %771 = vmatpush1.bf16.msra.mxu0 0
      %772 = vmatprep.subr.bf16.mxu0 0
      %773 = vmatpush1.bf16.msra.mxu0 0
      %774 = vmatprep.subr.bf16.mxu0 0
      %775 = vmatpush1.bf16.msra.mxu0 0
      %776 = vmatprep.subr.bf16.mxu0 0
      %777 = vmatpush1.bf16.msra.mxu0 0
      %778 = vmatprep.subr.bf16.mxu0 0
      %779 = vmatpush1.bf16.msra.mxu0 0
      %780 = vmatprep.subr.bf16.mxu0 0
      %781 = vmatpush1.bf16.msra.mxu0 0
      %782 = vmatprep.subr.bf16.mxu0 0
      %783 = vmatpush1.bf16.msra.mxu0 0
      %784 = vmatprep.subr.bf16.mxu0 0
      %785 = vmatpush1.bf16.msra.mxu0 0
      %786 = vmatprep.subr.bf16.mxu0 0
      %787 = vmatpush1.bf16.msra.mxu0 0
      %788 = vmatprep.subr.bf16.mxu0 0
      %789 = vmatpush1.bf16.msra.mxu0 0
      %790 = vmatprep.subr.bf16.mxu0 0
      %791 = vmatpush1.bf16.msra.mxu0 0
      %792 = vmatprep.subr.bf16.mxu0 0
      %793 = vmatpush1.bf16.msra.mxu0 0
      %794 = vmatprep.mubr.bf16.mxu0 0
      %795 = vmatmul.mubr.bf16.gmra.mrb[0].mxu0 %v368
      %v796 = vpop.f32.mrb[0].mxu0
      %v797 = vadd.f32 0.0, %v796
      %v798 = vpop.f32.mrb[0].mxu0
      %v799 = vpop.f32.mrb[0].mxu0
      %v800 = vadd.f32 0.0, %v799
      %v801 = vpop.f32.mrb[0].mxu0
      %802 = vmatprep.mubr.bf16.mxu0 0
      %803 = vmatmul.mubr.bf16.gmra.mrb[0].mxu0 %v371
      %v804 = vpop.f32.mrb[0].mxu0
      %v805 = vadd.f32 0.0, %v804
      %v806 = vpop.f32.mrb[0].mxu0
      %v807 = vpop.f32.mrb[0].mxu0
      %v808 = vadd.f32 0.0, %v807
      %v809 = vpop.f32.mrb[0].mxu0
      %810 = vmatprep.mubr.bf16.mxu0 0
      %811 = vmatmul.mubr.bf16.gmra.mrb[0].mxu0 %v374
      %v812 = vpop.f32.mrb[0].mxu0
      %v813 = vadd.f32 0.0, %v812
      %v814 = vpop.f32.mrb[0].mxu0
      %v815 = vpop.f32.mrb[0].mxu0
      %v816 = vadd.f32 0.0, %v815
      %v817 = vpop.f32.mrb[0].mxu0
      %818 = vmatprep.mubr.bf16.mxu0 0
      %819 = vmatmul.mubr.bf16.gmra.mrb[0].mxu0 %v377
      %v820 = vpop.f32.mrb[0].mxu0
      %v821 = vadd.f32 0.0, %v820
      %v822 = vpop.f32.mrb[0].mxu0
      %v823 = vpop.f32.mrb[0].mxu0
      %v824 = vadd.f32 0.0, %v823
      %v825 = vpop.f32.mrb[0].mxu0
      %826 = vmatprep.mubr.bf16.mxu0 0
      %827 = vmatmul.mubr.bf16.gmra.mrb[0].mxu0 %v380
      %v828 = vpop.f32.mrb[0].mxu0
      %v829 = vadd.f32 0.0, %v828
      %v830 = vpop.f32.mrb[0].mxu0
      %v831 = vpop.f32.mrb[0].mxu0
      %v832 = vadd.f32 0.0, %v831
      %v833 = vpop.f32.mrb[0].mxu0
      %834 = vmatprep.mubr.bf16.mxu0 0
      %835 = vmatmul.mubr.bf16.gmra.mrb[0].mxu0 %v383
      %v836 = vpop.f32.mrb[0].mxu0
      %v837 = vadd.f32 0.0, %v836
      %v838 = vpop.f32.mrb[0].mxu0
      %v839 = vpop.f32.mrb[0].mxu0
      %v840 = vadd.f32 0.0, %v839
      %v841 = vpop.f32.mrb[0].mxu0
      %842 = vmatprep.mubr.bf16.mxu0 0
      %843 = vmatmul.mubr.bf16.gmra.mrb[0].mxu0 %v386
      %v844 = vpop.f32.mrb[0].mxu0
      %v845 = vadd.f32 0.0, %v844
      %v846 = vpop.f32.mrb[0].mxu0
      %v847 = vpop.f32.mrb[0].mxu0
      %v848 = vadd.f32 0.0, %v847
      %v849 = vpop.f32.mrb[0].mxu0
      %850 = vmatprep.mubr.bf16.mxu0 0
      %851 = vmatmul.mubr.bf16.gmra.mrb[0].mxu0 %v389
      %v852 = vpop.f32.mrb[0].mxu0
      %v853 = vadd.f32 0.0, %v852
      %v854 = vpop.f32.mrb[0].mxu0
      %v855 = vpop.f32.mrb[0].mxu0
      %v856 = vadd.f32 0.0, %v855
      %v857 = vpop.f32.mrb[0].mxu0
      %858 = vmatprep.mubr.bf16.mxu0 0
      %859 = vmatmul.mubr.bf16.gmra.mrb[0].mxu0 %v392
      %v860 = vpop.f32.mrb[0].mxu0
      %v861 = vadd.f32 0.0, %v860
      %v862 = vpop.f32.mrb[0].mxu0
      %v863 = vpop.f32.mrb[0].mxu0
      %v864 = vadd.f32 0.0, %v863
      %v865 = vpop.f32.mrb[0].mxu0
      %866 = vmatprep.mubr.bf16.mxu0 0
      %867 = vmatmul.mubr.bf16.gmra.mrb[0].mxu0 %v395
      %v868 = vpop.f32.mrb[0].mxu0
      %v869 = vadd.f32 0.0, %v868
      %v870 = vpop.f32.mrb[0].mxu0
      %v871 = vpop.f32.mrb[0].mxu0
      %v872 = vadd.f32 0.0, %v871
      %v873 = vpop.f32.mrb[0].mxu0
      %874 = vmatprep.mubr.bf16.mxu0 0
      %875 = vmatmul.mubr.bf16.gmra.mrb[0].mxu0 %v398
      %v876 = vpop.f32.mrb[0].mxu0
      %v877 = vadd.f32 0.0, %v876
      %v878 = vpop.f32.mrb[0].mxu0
      %v879 = vpop.f32.mrb[0].mxu0
      %v880 = vadd.f32 0.0, %v879
      %v881 = vpop.f32.mrb[0].mxu0
      %882 = vmatprep.mubr.bf16.mxu0 0
      %883 = vmatmul.mubr.bf16.gmra.mrb[0].mxu0 %v401
      %v884 = vpop.f32.mrb[0].mxu0
      %v885 = vadd.f32 0.0, %v884
      %v886 = vpop.f32.mrb[0].mxu0
      %v887 = vpop.f32.mrb[0].mxu0
      %v888 = vadd.f32 0.0, %v887
      %v889 = vpop.f32.mrb[0].mxu0
      %890 = vmatprep.mubr.bf16.mxu0 0
      %891 = vmatmul.mubr.bf16.gmra.mrb[0].mxu0 %v404
      %v892 = vpop.f32.mrb[0].mxu0
      %v893 = vadd.f32 0.0, %v892
      %v894 = vpop.f32.mrb[0].mxu0
      %v895 = vpop.f32.mrb[0].mxu0
      %v896 = vadd.f32 0.0, %v895
      %v897 = vpop.f32.mrb[0].mxu0
      %898 = vmatprep.mubr.bf16.mxu0 0
      %899 = vmatmul.mubr.bf16.gmra.mrb[0].mxu0 %v407
      %v900 = vpop.f32.mrb[0].mxu0
      %v901 = vadd.f32 0.0, %v900
      %v902 = vpop.f32.mrb[0].mxu0
      %v903 = vpop.f32.mrb[0].mxu0
      %v904 = vadd.f32 0.0, %v903
      %v905 = vpop.f32.mrb[0].mxu0
      %906 = vmatprep.mubr.bf16.mxu0 0
      %907 = vmatmul.mubr.bf16.gmra.mrb[0].mxu0 %v410
      %v908 = vpop.f32.mrb[0].mxu0
      %v909 = vadd.f32 0.0, %v908
      %v910 = vpop.f32.mrb[0].mxu0
      %v911 = vpop.f32.mrb[0].mxu0
      %v912 = vadd.f32 0.0, %v911
      %v913 = vpop.f32.mrb[0].mxu0
      %914 = vmatprep.mubr.bf16.mxu0 0
      %915 = vmatmul.mubr.bf16.gmra.mrb[0].mxu0 %v757
      %v916 = vpop.f32.mrb[0].mxu0
      %v917 = vadd.f32 0.0, %v916
      %v918 = vpop.f32.mrb[0].mxu0
      %v919 = vpop.f32.mrb[0].mxu0
      %v920 = vadd.f32 0.0, %v919
      %v921 = vpop.f32.mrb[0].mxu0
      %922 = vdwg.mxu0
      %v923 = vadd.f32 %v623, %v797
      %v924 = vadd.f32 %v626, %v800
      %v925 = vadd.f32 %v631, %v805
      %v926 = vadd.f32 %v634, %v808
      %v927 = vadd.f32 %v639, %v813
      %v928 = vadd.f32 %v642, %v816
      %v929 = vadd.f32 %v647, %v821
      %v930 = vadd.f32 %v650, %v824
      %v931 = vadd.f32 %v655, %v829
      %v932 = vadd.f32 %v658, %v832
      %v933 = vadd.f32 %v663, %v837
      %v934 = vadd.f32 %v666, %v840
      %v935 = vadd.f32 %v671, %v845
      %v936 = vadd.f32 %v674, %v848
      %v937 = vadd.f32 %v679, %v853
      %v938 = vadd.f32 %v682, %v856
      %v939 = vadd.f32 %v687, %v861
      %v940 = vadd.f32 %v690, %v864
      %v941 = vadd.f32 %v695, %v869
      %v942 = vadd.f32 %v698, %v872
      %v943 = vadd.f32 %v703, %v877
      %v944 = vadd.f32 %v706, %v880
      %v945 = vadd.f32 %v711, %v885
      %v946 = vadd.f32 %v714, %v888
      %v947 = vadd.f32 %v719, %v893
      %v948 = vadd.f32 %v722, %v896
      %v949 = vadd.f32 %v727, %v901
      %v950 = vadd.f32 %v730, %v904
      %v951 = vadd.f32 %v735, %v909
      %v952 = vadd.f32 %v738, %v912
      %v953 = vadd.f32 %v743, %v917
      %v954 = vadd.f32 %v746, %v920
      %vm955 = vsmask.f32 3328
      %vm956 = vsmask.f32 7440
      %vm957 = vmor %vm955, %vm956
      %v959 = vshrl.u32 %v226, 16
      %v961 = vrot.slane %v959, 4
      %v962 = vshll.u32 %v226, 16
      %v964 = vrot.slane %v962, 5
      %v965 = vor.u32 %v961, %v964
      %v966 = vrot.slane %v965, 4
      %v968 = vshll.u32 %v227, 16
      %v970 = vrot.slane %v968, 5
      %v971 = vsel %vm957, %v966, %v970
      %v972 = vshrl.u32 %v227, 16
      %v974 = vrot.slane %v972, 4
      %v975 = vor.u32 %v974, %v970
      %v976 = vrot.slane %v975, 4
      %v978 = vshll.u32 %v228, 16
      %v980 = vrot.slane %v978, 5
      %v981 = vsel %vm957, %v976, %v980
      %v983 = vshrl.u32 %v229, 16
      %v985 = vrot.slane %v983, 4
      %v986 = vshll.u32 %v229, 16
      %v988 = vrot.slane %v986, 5
      %v989 = vor.u32 %v985, %v988
      %v990 = vrot.slane %v989, 4
      %v992 = vshll.u32 %v230, 16
      %v994 = vrot.slane %v992, 5
      %v995 = vsel %vm957, %v990, %v994
      %v996 = vshrl.u32 %v230, 16
      %v998 = vrot.slane %v996, 4
      %v999 = vor.u32 %v998, %v994
      %v1000 = vrot.slane %v999, 4
      %v1002 = vshll.u32 %v231, 16
      %v1004 = vrot.slane %v1002, 5
      %v1005 = vsel %vm957, %v1000, %v1004
      %v1007 = vshrl.u32 %v232, 16
      %v1009 = vrot.slane %v1007, 4
      %v1010 = vshll.u32 %v232, 16
      %v1012 = vrot.slane %v1010, 5
      %v1013 = vor.u32 %v1009, %v1012
      %v1014 = vrot.slane %v1013, 4
      %v1016 = vshll.u32 %v233, 16
      %v1018 = vrot.slane %v1016, 5
      %v1019 = vsel %vm957, %v1014, %v1018
      %v1020 = vshrl.u32 %v233, 16
      %v1022 = vrot.slane %v1020, 4
      %v1023 = vor.u32 %v1022, %v1018
      %v1024 = vrot.slane %v1023, 4
      %v1026 = vshll.u32 %v234, 16
      %v1028 = vrot.slane %v1026, 5
      %v1029 = vsel %vm957, %v1024, %v1028
      %v1031 = vshrl.u32 %v235, 16
      %v1033 = vrot.slane %v1031, 4
      %v1034 = vshll.u32 %v235, 16
      %v1036 = vrot.slane %v1034, 5
      %v1037 = vor.u32 %v1033, %v1036
      %v1038 = vrot.slane %v1037, 4
      %v1040 = vshll.u32 %v236, 16
      %v1042 = vrot.slane %v1040, 5
      %v1043 = vsel %vm957, %v1038, %v1042
      %v1044 = vshrl.u32 %v236, 16
      %v1046 = vrot.slane %v1044, 4
      %v1047 = vor.u32 %v1046, %v1042
      %v1048 = vrot.slane %v1047, 4
      %v1050 = vshll.u32 %v237, 16
      %v1052 = vrot.slane %v1050, 5
      %v1053 = vsel %vm957, %v1048, %v1052
      %v1055 = vshrl.u32 %v238, 16
      %v1057 = vrot.slane %v1055, 4
      %v1058 = vshll.u32 %v238, 16
      %v1060 = vrot.slane %v1058, 5
      %v1061 = vor.u32 %v1057, %v1060
      %v1062 = vrot.slane %v1061, 4
      %v1064 = vshll.u32 %v239, 16
      %v1066 = vrot.slane %v1064, 5
      %v1067 = vsel %vm957, %v1062, %v1066
      %v1068 = vshrl.u32 %v239, 16
      %v1070 = vrot.slane %v1068, 4
      %v1071 = vor.u32 %v1070, %v1066
      %v1072 = vrot.slane %v1071, 4
      %v1074 = vshll.u32 %v240, 16
      %v1076 = vrot.slane %v1074, 5
      %v1077 = vsel %vm957, %v1072, %v1076
      %v1079 = vshrl.u32 %v241, 16
      %v1081 = vrot.slane %v1079, 4
      %v1082 = vshll.u32 %v241, 16
      %v1084 = vrot.slane %v1082, 5
      %v1085 = vor.u32 %v1081, %v1084
      %v1086 = vrot.slane %v1085, 4
      %v1088 = vshll.u32 %v242, 16
      %v1090 = vrot.slane %v1088, 5
      %v1091 = vsel %vm957, %v1086, %v1090
      %v1092 = vshrl.u32 %v242, 16
      %v1094 = vrot.slane %v1092, 4
      %v1095 = vor.u32 %v1094, %v1090
      %v1096 = vrot.slane %v1095, 4
      %v1098 = vshll.u32 %v243, 16
      %v1100 = vrot.slane %v1098, 5
      %v1101 = vsel %vm957, %v1096, %v1100
      %v1103 = vshrl.u32 %v244, 16
      %v1105 = vrot.slane %v1103, 4
      %v1106 = vshll.u32 %v244, 16
      %v1108 = vrot.slane %v1106, 5
      %v1109 = vor.u32 %v1105, %v1108
      %v1110 = vrot.slane %v1109, 4
      %v1112 = vshll.u32 %v245, 16
      %v1114 = vrot.slane %v1112, 5
      %v1115 = vsel %vm957, %v1110, %v1114
      %v1116 = vshrl.u32 %v245, 16
      %v1118 = vrot.slane %v1116, 4
      %v1119 = vor.u32 %v1118, %v1114
      %v1120 = vrot.slane %v1119, 4
      %v1122 = vshll.u32 %v246, 16
      %v1124 = vrot.slane %v1122, 5
      %v1125 = vsel %vm957, %v1120, %v1124
      %v1127 = vshrl.u32 %v247, 16
      %v1129 = vrot.slane %v1127, 4
      %v1130 = vshll.u32 %v247, 16
      %v1132 = vrot.slane %v1130, 5
      %v1133 = vor.u32 %v1129, %v1132
      %v1134 = vrot.slane %v1133, 4
      %v1136 = vshll.u32 %v248, 16
      %v1138 = vrot.slane %v1136, 5
      %v1139 = vsel %vm957, %v1134, %v1138
      %v1140 = vshrl.u32 %v248, 16
      %v1142 = vrot.slane %v1140, 4
      %v1143 = vor.u32 %v1142, %v1138
      %v1144 = vrot.slane %v1143, 4
      %v1146 = vshll.u32 %v249, 16
      %v1148 = vrot.slane %v1146, 5
      %v1149 = vsel %vm957, %v1144, %v1148
      %v1151 = vshrl.u32 %v250, 16
      %v1153 = vrot.slane %v1151, 4
      %v1154 = vshll.u32 %v250, 16
      %v1156 = vrot.slane %v1154, 5
      %v1157 = vor.u32 %v1153, %v1156
      %v1158 = vrot.slane %v1157, 4
      %v1160 = vshll.u32 %v251, 16
      %v1162 = vrot.slane %v1160, 5
      %v1163 = vsel %vm957, %v1158, %v1162
      %v1164 = vshrl.u32 %v251, 16
      %v1166 = vrot.slane %v1164, 4
      %v1167 = vor.u32 %v1166, %v1162
      %v1168 = vrot.slane %v1167, 4
      %v1170 = vshll.u32 %v252, 16
      %v1172 = vrot.slane %v1170, 5
      %v1173 = vsel %vm957, %v1168, %v1172
      %v1175 = vshrl.u32 %v253, 16
      %v1177 = vrot.slane %v1175, 4
      %v1178 = vshll.u32 %v253, 16
      %v1180 = vrot.slane %v1178, 5
      %v1181 = vor.u32 %v1177, %v1180
      %v1182 = vrot.slane %v1181, 4
      %v1184 = vshll.u32 %v254, 16
      %v1186 = vrot.slane %v1184, 5
      %v1187 = vsel %vm957, %v1182, %v1186
      %v1188 = vshrl.u32 %v254, 16
      %v1190 = vrot.slane %v1188, 4
      %v1191 = vor.u32 %v1190, %v1186
      %v1192 = vrot.slane %v1191, 4
      %v1194 = vshll.u32 %v255, 16
      %v1196 = vrot.slane %v1194, 5
      %v1197 = vsel %vm957, %v1192, %v1196
      %v1199 = vshrl.u32 %v256, 16
      %v1201 = vrot.slane %v1199, 4
      %v1202 = vshll.u32 %v256, 16
      %v1204 = vrot.slane %v1202, 5
      %v1205 = vor.u32 %v1201, %v1204
      %v1206 = vrot.slane %v1205, 4
      %v1208 = vshll.u32 %v257, 16
      %v1210 = vrot.slane %v1208, 5
      %v1211 = vsel %vm957, %v1206, %v1210
      %v1212 = vshrl.u32 %v257, 16
      %v1214 = vrot.slane %v1212, 4
      %v1215 = vor.u32 %v1214, %v1210
      %v1216 = vrot.slane %v1215, 4
      %v1218 = vshll.u32 %v258, 16
      %v1220 = vrot.slane %v1218, 5
      %v1221 = vsel %vm957, %v1216, %v1220
      %v1223 = vshrl.u32 %v259, 16
      %v1225 = vrot.slane %v1223, 4
      %v1226 = vshll.u32 %v259, 16
      %v1228 = vrot.slane %v1226, 5
      %v1229 = vor.u32 %v1225, %v1228
      %v1230 = vrot.slane %v1229, 4
      %v1232 = vshll.u32 %v260, 16
      %v1234 = vrot.slane %v1232, 5
      %v1235 = vsel %vm957, %v1230, %v1234
      %v1236 = vshrl.u32 %v260, 16
      %v1238 = vrot.slane %v1236, 4
      %v1239 = vor.u32 %v1238, %v1234
      %v1240 = vrot.slane %v1239, 4
      %v1242 = vshll.u32 %v261, 16
      %v1244 = vrot.slane %v1242, 5
      %v1245 = vsel %vm957, %v1240, %v1244
      %v1247 = vshrl.u32 %v262, 16
      %v1249 = vrot.slane %v1247, 4
      %v1250 = vshll.u32 %v262, 16
      %v1252 = vrot.slane %v1250, 5
      %v1253 = vor.u32 %v1249, %v1252
      %v1254 = vrot.slane %v1253, 4
      %v1256 = vshll.u32 %v263, 16
      %v1258 = vrot.slane %v1256, 5
      %v1259 = vsel %vm957, %v1254, %v1258
      %v1260 = vshrl.u32 %v263, 16
      %v1262 = vrot.slane %v1260, 4
      %v1263 = vor.u32 %v1262, %v1258
      %v1264 = vrot.slane %v1263, 4
      %v1266 = vshll.u32 %v264, 16
      %v1268 = vrot.slane %v1266, 5
      %v1269 = vsel %vm957, %v1264, %v1268
      %v1271 = vshrl.u32 %v265, 16
      %v1273 = vrot.slane %v1271, 4
      %v1274 = vshll.u32 %v265, 16
      %v1276 = vrot.slane %v1274, 5
      %v1277 = vor.u32 %v1273, %v1276
      %v1278 = vrot.slane %v1277, 4
      %v1280 = vshll.u32 %v266, 16
      %v1282 = vrot.slane %v1280, 5
      %v1283 = vsel %vm957, %v1278, %v1282
      %v1284 = vshrl.u32 %v266, 16
      %v1286 = vrot.slane %v1284, 4
      %v1287 = vor.u32 %v1286, %v1282
      %v1288 = vrot.slane %v1287, 4
      %v1290 = vshll.u32 %v267, 16
      %v1292 = vrot.slane %v1290, 5
      %v1293 = vsel %vm957, %v1288, %v1292
      %v1295 = vshrl.u32 %v268, 16
      %v1297 = vrot.slane %v1295, 4
      %v1298 = vshll.u32 %v268, 16
      %v1300 = vrot.slane %v1298, 5
      %v1301 = vor.u32 %v1297, %v1300
      %v1302 = vrot.slane %v1301, 4
      %v1304 = vshll.u32 %v269, 16
      %v1306 = vrot.slane %v1304, 5
      %v1307 = vsel %vm957, %v1302, %v1306
      %v1308 = vshrl.u32 %v269, 16
      %v1310 = vrot.slane %v1308, 4
      %v1311 = vor.u32 %v1310, %v1306
      %v1312 = vrot.slane %v1311, 4
      %v1314 = vshll.u32 %v270, 16
      %v1316 = vrot.slane %v1314, 5
      %v1317 = vsel %vm957, %v1312, %v1316
      %v1319 = vshrl.u32 %v271, 16
      %v1321 = vrot.slane %v1319, 4
      %v1322 = vshll.u32 %v271, 16
      %v1324 = vrot.slane %v1322, 5
      %v1325 = vor.u32 %v1321, %v1324
      %v1326 = vrot.slane %v1325, 4
      %v1328 = vshll.u32 %v272, 16
      %v1330 = vrot.slane %v1328, 5
      %v1331 = vsel %vm957, %v1326, %v1330
      %v1332 = vshrl.u32 %v272, 16
      %v1334 = vrot.slane %v1332, 4
      %v1335 = vor.u32 %v1334, %v1330
      %v1336 = vrot.slane %v1335, 4
      %v1338 = vshll.u32 %v273, 16
      %v1340 = vrot.slane %v1338, 5
      %v1341 = vsel %vm957, %v1336, %v1340
      %v1343 = vshrl.u32 %v274, 16
      %v1345 = vrot.slane %v1343, 4
      %v1346 = vshll.u32 %v274, 16
      %v1348 = vrot.slane %v1346, 5
      %v1349 = vor.u32 %v1345, %v1348
      %v1350 = vrot.slane %v1349, 4
      %v1352 = vshll.u32 %v275, 16
      %v1354 = vrot.slane %v1352, 5
      %v1355 = vsel %vm957, %v1350, %v1354
      %v1356 = vshrl.u32 %v275, 16
      %v1358 = vrot.slane %v1356, 4
      %v1359 = vor.u32 %v1358, %v1354
      %v1360 = vrot.slane %v1359, 4
      %v1362 = vshll.u32 %v276, 16
      %v1364 = vrot.slane %v1362, 5
      %v1365 = vsel %vm957, %v1360, %v1364
      %v1367 = vshrl.u32 %v277, 16
      %v1369 = vrot.slane %v1367, 4
      %v1370 = vshll.u32 %v277, 16
      %v1372 = vrot.slane %v1370, 5
      %v1373 = vor.u32 %v1369, %v1372
      %v1374 = vrot.slane %v1373, 4
      %v1376 = vshll.u32 %v278, 16
      %v1378 = vrot.slane %v1376, 5
      %v1379 = vsel %vm957, %v1374, %v1378
      %v1380 = vshrl.u32 %v278, 16
      %v1382 = vrot.slane %v1380, 4
      %v1383 = vor.u32 %v1382, %v1378
      %v1384 = vrot.slane %v1383, 4
      %v1386 = vshll.u32 %v279, 16
      %v1388 = vrot.slane %v1386, 5
      %v1389 = vsel %vm957, %v1384, %v1388
      %s1390 = scalar_lea.vmem %s1, 2
      %v1391 = vld [vmem:[%s1390] sm:$0x3]
      %v1392 = vunpack.c.l.b16 %v971
      %v1393 = vunpack.c.l.b16 %v981
      %v1394 = vunpack.c.l.b16 %v995
      %v1395 = vunpack.c.l.b16 %v1005
      %v1396 = vunpack.c.l.b16 %v1019
      %v1397 = vunpack.c.l.b16 %v1029
      %v1398 = vunpack.c.l.b16 %v1043
      %v1399 = vunpack.c.l.b16 %v1053
      %v1400 = vunpack.c.l.b16 %v1067
      %v1401 = vunpack.c.l.b16 %v1077
      %v1402 = vunpack.c.l.b16 %v1091
      %v1403 = vunpack.c.l.b16 %v1101
      %v1404 = vunpack.c.l.b16 %v1115
      %v1405 = vunpack.c.l.b16 %v1125
      %v1406 = vunpack.c.l.b16 %v1139
      %v1407 = vunpack.c.l.b16 %v1149
      %v1408 = vunpack.c.l.b16 %v1163
      %v1409 = vunpack.c.l.b16 %v1173
      %v1410 = vunpack.c.l.b16 %v1187
      %v1411 = vunpack.c.l.b16 %v1197
      %v1412 = vunpack.c.l.b16 %v1211
      %v1413 = vunpack.c.l.b16 %v1221
      %v1414 = vunpack.c.l.b16 %v1235
      %v1415 = vunpack.c.l.b16 %v1245
      %v1416 = vunpack.c.l.b16 %v1259
      %v1417 = vunpack.c.l.b16 %v1269
      %v1418 = vunpack.c.l.b16 %v1283
      %v1419 = vunpack.c.l.b16 %v1293
      %v1420 = vunpack.c.l.b16 %v1307
      %v1421 = vunpack.c.l.b16 %v1317
      %v1422 = vunpack.c.l.b16 %v1331
      %v1423 = vunpack.c.l.b16 %v1341
      %v1424 = vpack.c.b16 %v1393, %v1392
      %v1425 = vpack.c.b16 %v1395, %v1394
      %v1426 = vpack.c.b16 %v1397, %v1396
      %v1427 = vpack.c.b16 %v1399, %v1398
      %v1428 = vpack.c.b16 %v1401, %v1400
      %v1429 = vpack.c.b16 %v1403, %v1402
      %v1430 = vpack.c.b16 %v1405, %v1404
      %v1431 = vpack.c.b16 %v1407, %v1406
      %v1432 = vpack.c.b16 %v1409, %v1408
      %v1433 = vpack.c.b16 %v1411, %v1410
      %v1434 = vpack.c.b16 %v1413, %v1412
      %v1435 = vpack.c.b16 %v1415, %v1414
      %v1436 = vpack.c.b16 %v1417, %v1416
      %v1437 = vpack.c.b16 %v1419, %v1418
      %v1438 = vpack.c.b16 %v1421, %v1420
      %v1439 = vpack.c.b16 %v1423, %v1422
      %v1441 = vsel %vm363, %v1424, 0
      %v1444 = vsel %vm363, %v1425, 0
      %v1447 = vsel %vm363, %v1426, 0
      %v1450 = vsel %vm363, %v1427, 0
      %v1453 = vsel %vm363, %v1428, 0
      %v1456 = vsel %vm363, %v1429, 0
      %v1459 = vsel %vm363, %v1430, 0
      %v1462 = vsel %vm363, %v1431, 0
      %v1465 = vsel %vm363, %v1432, 0
      %v1468 = vsel %vm363, %v1433, 0
      %v1471 = vsel %vm363, %v1434, 0
      %v1474 = vsel %vm363, %v1435, 0
      %v1477 = vsel %vm363, %v1436, 0
      %v1480 = vsel %vm363, %v1437, 0
      %v1483 = vsel %vm363, %v1438, 0
      %v1486 = vsel %vm363, %v1439, 0
      %v1489 = vsel %vm412, %v1391, 0
      %1491 = vmatprep.subr.bf16.mxu0 0
      %1492 = vmatpush1.bf16.msra.mxu0 %v1489
      %1493 = vmatprep.subr.bf16.mxu0 0
      %1494 = vmatpush1.bf16.msra.mxu0 0
      %1495 = vmatprep.subr.bf16.mxu0 0
      %1496 = vmatpush1.bf16.msra.mxu0 0
      %1497 = vmatprep.subr.bf16.mxu0 0
      %1498 = vmatpush1.bf16.msra.mxu0 0
      %1499 = vmatprep.subr.bf16.mxu0 0
      %1500 = vmatpush1.bf16.msra.mxu0 0
      %1501 = vmatprep.subr.bf16.mxu0 0
      %1502 = vmatpush1.bf16.msra.mxu0 0
      %1503 = vmatprep.subr.bf16.mxu0 0
      %1504 = vmatpush1.bf16.msra.mxu0 0
      %1505 = vmatprep.subr.bf16.mxu0 0
      %1506 = vmatpush1.bf16.msra.mxu0 0
      %1507 = vmatprep.subr.bf16.mxu0 0
      %1508 = vmatpush1.bf16.msra.mxu0 0
      %1509 = vmatprep.subr.bf16.mxu0 0
      %1510 = vmatpush1.bf16.msra.mxu0 0
      %1511 = vmatprep.subr.bf16.mxu0 0
      %1512 = vmatpush1.bf16.msra.mxu0 0
      %1513 = vmatprep.subr.bf16.mxu0 0
      %1514 = vmatpush1.bf16.msra.mxu0 0
      %1515 = vmatprep.subr.bf16.mxu0 0
      %1516 = vmatpush1.bf16.msra.mxu0 0
      %1517 = vmatprep.subr.bf16.mxu0 0
      %1518 = vmatpush1.bf16.msra.mxu0 0
      %1519 = vmatprep.subr.bf16.mxu0 0
      %1520 = vmatpush1.bf16.msra.mxu0 0
      %1521 = vmatprep.subr.bf16.mxu0 0
      %1522 = vmatpush1.bf16.msra.mxu0 0
      %1523 = vmatprep.mubr.bf16.mxu0 0
      %1524 = vmatmul.mubr.bf16.gmra.mrb[0].mxu0 %v1441
      %v1525 = vpop.f32.mrb[0].mxu0
      %v1526 = vadd.f32 0.0, %v1525
      %v1527 = vpop.f32.mrb[0].mxu0
      %v1528 = vpop.f32.mrb[0].mxu0
      %v1529 = vadd.f32 0.0, %v1528
      %v1530 = vpop.f32.mrb[0].mxu0
      %1531 = vmatprep.mubr.bf16.mxu0 0
      %1532 = vmatmul.mubr.bf16.gmra.mrb[0].mxu0 %v1444
      %v1533 = vpop.f32.mrb[0].mxu0
      %v1534 = vadd.f32 0.0, %v1533
      %v1535 = vpop.f32.mrb[0].mxu0
      %v1536 = vpop.f32.mrb[0].mxu0
      %v1537 = vadd.f32 0.0, %v1536
      %v1538 = vpop.f32.mrb[0].mxu0
      %1539 = vmatprep.mubr.bf16.mxu0 0
      %1540 = vmatmul.mubr.bf16.gmra.mrb[0].mxu0 %v1447
      %v1541 = vpop.f32.mrb[0].mxu0
      %v1542 = vadd.f32 0.0, %v1541
      %v1543 = vpop.f32.mrb[0].mxu0
      %v1544 = vpop.f32.mrb[0].mxu0
      %v1545 = vadd.f32 0.0, %v1544
      %v1546 = vpop.f32.mrb[0].mxu0
      %1547 = vmatprep.mubr.bf16.mxu0 0
      %1548 = vmatmul.mubr.bf16.gmra.mrb[0].mxu0 %v1450
      %v1549 = vpop.f32.mrb[0].mxu0
      %v1550 = vadd.f32 0.0, %v1549
      %v1551 = vpop.f32.mrb[0].mxu0
      %v1552 = vpop.f32.mrb[0].mxu0
      %v1553 = vadd.f32 0.0, %v1552
      %v1554 = vpop.f32.mrb[0].mxu0
      %1555 = vmatprep.mubr.bf16.mxu0 0
      %1556 = vmatmul.mubr.bf16.gmra.mrb[0].mxu0 %v1453
      %v1557 = vpop.f32.mrb[0].mxu0
      %v1558 = vadd.f32 0.0, %v1557
      %v1559 = vpop.f32.mrb[0].mxu0
      %v1560 = vpop.f32.mrb[0].mxu0
      %v1561 = vadd.f32 0.0, %v1560
      %v1562 = vpop.f32.mrb[0].mxu0
      %1563 = vmatprep.mubr.bf16.mxu0 0
      %1564 = vmatmul.mubr.bf16.gmra.mrb[0].mxu0 %v1456
      %v1565 = vpop.f32.mrb[0].mxu0
      %v1566 = vadd.f32 0.0, %v1565
      %v1567 = vpop.f32.mrb[0].mxu0
      %v1568 = vpop.f32.mrb[0].mxu0
      %v1569 = vadd.f32 0.0, %v1568
      %v1570 = vpop.f32.mrb[0].mxu0
      %1571 = vmatprep.mubr.bf16.mxu0 0
      %1572 = vmatmul.mubr.bf16.gmra.mrb[0].mxu0 %v1459
      %v1573 = vpop.f32.mrb[0].mxu0
      %v1574 = vadd.f32 0.0, %v1573
      %v1575 = vpop.f32.mrb[0].mxu0
      %v1576 = vpop.f32.mrb[0].mxu0
      %v1577 = vadd.f32 0.0, %v1576
      %v1578 = vpop.f32.mrb[0].mxu0
      %1579 = vmatprep.mubr.bf16.mxu0 0
      %1580 = vmatmul.mubr.bf16.gmra.mrb[0].mxu0 %v1462
      %v1581 = vpop.f32.mrb[0].mxu0
      %v1582 = vadd.f32 0.0, %v1581
      %v1583 = vpop.f32.mrb[0].mxu0
      %v1584 = vpop.f32.mrb[0].mxu0
      %v1585 = vadd.f32 0.0, %v1584
      %v1586 = vpop.f32.mrb[0].mxu0
      %1587 = vmatprep.mubr.bf16.mxu0 0
      %1588 = vmatmul.mubr.bf16.gmra.mrb[0].mxu0 %v1465
      %v1589 = vpop.f32.mrb[0].mxu0
      %v1590 = vadd.f32 0.0, %v1589
      %v1591 = vpop.f32.mrb[0].mxu0
      %v1592 = vpop.f32.mrb[0].mxu0
      %v1593 = vadd.f32 0.0, %v1592
      %v1594 = vpop.f32.mrb[0].mxu0
      %1595 = vmatprep.mubr.bf16.mxu0 0
      %1596 = vmatmul.mubr.bf16.gmra.mrb[0].mxu0 %v1468
      %v1597 = vpop.f32.mrb[0].mxu0
      %v1598 = vadd.f32 0.0, %v1597
      %v1599 = vpop.f32.mrb[0].mxu0
      %v1600 = vpop.f32.mrb[0].mxu0
      %v1601 = vadd.f32 0.0, %v1600
      %v1602 = vpop.f32.mrb[0].mxu0
      %1603 = vmatprep.mubr.bf16.mxu0 0
      %1604 = vmatmul.mubr.bf16.gmra.mrb[0].mxu0 %v1471
      %v1605 = vpop.f32.mrb[0].mxu0
      %v1606 = vadd.f32 0.0, %v1605
      %v1607 = vpop.f32.mrb[0].mxu0
      %v1608 = vpop.f32.mrb[0].mxu0
      %v1609 = vadd.f32 0.0, %v1608
      %v1610 = vpop.f32.mrb[0].mxu0
      %1611 = vmatprep.mubr.bf16.mxu0 0
      %1612 = vmatmul.mubr.bf16.gmra.mrb[0].mxu0 %v1474
      %v1613 = vpop.f32.mrb[0].mxu0
      %v1614 = vadd.f32 0.0, %v1613
      %v1615 = vpop.f32.mrb[0].mxu0
      %v1616 = vpop.f32.mrb[0].mxu0
      %v1617 = vadd.f32 0.0, %v1616
      %v1618 = vpop.f32.mrb[0].mxu0
      %1619 = vmatprep.mubr.bf16.mxu0 0
      %1620 = vmatmul.mubr.bf16.gmra.mrb[0].mxu0 %v1477
      %v1621 = vpop.f32.mrb[0].mxu0
      %v1622 = vadd.f32 0.0, %v1621
      %v1623 = vpop.f32.mrb[0].mxu0
      %v1624 = vpop.f32.mrb[0].mxu0
      %v1625 = vadd.f32 0.0, %v1624
      %v1626 = vpop.f32.mrb[0].mxu0
      %1627 = vmatprep.mubr.bf16.mxu0 0
      %1628 = vmatmul.mubr.bf16.gmra.mrb[0].mxu0 %v1480
      %v1629 = vpop.f32.mrb[0].mxu0
      %v1630 = vadd.f32 0.0, %v1629
      %v1631 = vpop.f32.mrb[0].mxu0
      %v1632 = vpop.f32.mrb[0].mxu0
      %v1633 = vadd.f32 0.0, %v1632
      %v1634 = vpop.f32.mrb[0].mxu0
      %1635 = vmatprep.mubr.bf16.mxu0 0
      %1636 = vmatmul.mubr.bf16.gmra.mrb[0].mxu0 %v1483
      %v1637 = vpop.f32.mrb[0].mxu0
      %v1638 = vadd.f32 0.0, %v1637
      %v1639 = vpop.f32.mrb[0].mxu0
      %v1640 = vpop.f32.mrb[0].mxu0
      %v1641 = vadd.f32 0.0, %v1640
      %v1642 = vpop.f32.mrb[0].mxu0
      %1643 = vmatprep.mubr.bf16.mxu0 0
      %1644 = vmatmul.mubr.bf16.gmra.mrb[0].mxu0 %v1486
      %v1645 = vpop.f32.mrb[0].mxu0
      %v1646 = vadd.f32 0.0, %v1645
      %v1647 = vpop.f32.mrb[0].mxu0
      %v1648 = vpop.f32.mrb[0].mxu0
      %v1649 = vadd.f32 0.0, %v1648
      %v1650 = vpop.f32.mrb[0].mxu0
      %1651 = vdwg.mxu0
      %v1652 = vadd.f32 %v923, %v1526
      %v1653 = vadd.f32 %v924, %v1529
      %v1654 = vadd.f32 %v925, %v1534
      %v1655 = vadd.f32 %v926, %v1537
      %v1656 = vadd.f32 %v927, %v1542
      %v1657 = vadd.f32 %v928, %v1545
      %v1658 = vadd.f32 %v929, %v1550
      %v1659 = vadd.f32 %v930, %v1553
      %v1660 = vadd.f32 %v931, %v1558
      %v1661 = vadd.f32 %v932, %v1561
      %v1662 = vadd.f32 %v933, %v1566
      %v1663 = vadd.f32 %v934, %v1569
      %v1664 = vadd.f32 %v935, %v1574
      %v1665 = vadd.f32 %v936, %v1577
      %v1666 = vadd.f32 %v937, %v1582
      %v1667 = vadd.f32 %v938, %v1585
      %v1668 = vadd.f32 %v939, %v1590
      %v1669 = vadd.f32 %v940, %v1593
      %v1670 = vadd.f32 %v941, %v1598
      %v1671 = vadd.f32 %v942, %v1601
      %v1672 = vadd.f32 %v943, %v1606
      %v1673 = vadd.f32 %v944, %v1609
      %v1674 = vadd.f32 %v945, %v1614
      %v1675 = vadd.f32 %v946, %v1617
      %v1676 = vadd.f32 %v947, %v1622
      %v1677 = vadd.f32 %v948, %v1625
      %v1678 = vadd.f32 %v949, %v1630
      %v1679 = vadd.f32 %v950, %v1633
      %v1680 = vadd.f32 %v951, %v1638
      %v1681 = vadd.f32 %v952, %v1641
      %v1682 = vadd.f32 %v953, %v1646
      %v1683 = vadd.f32 %v954, %v1649
      %s1684 = scalar_lea.vmem %s1, 8
      %v1685 = vld [vmem:[%s1684] sm:$0x3]
      %v1686 = vunpack.c.l.b16 %v1355
      %v1687 = vunpack.c.l.b16 %v1365
      %v1688 = vpack.c.b16 %v1687, %v1686
      %v1690 = vsel %vm363, %v1688, 0
      %v1693 = vsel %vm412, %v1685, 0
      %1695 = vmatprep.subr.bf16.mxu0 0
      %1696 = vmatpush1.bf16.msra.mxu0 %v1693
      %1697 = vmatprep.subr.bf16.mxu0 0
      %1698 = vmatpush1.bf16.msra.mxu0 0
      %1699 = vmatprep.subr.bf16.mxu0 0
      %1700 = vmatpush1.bf16.msra.mxu0 0
      %1701 = vmatprep.subr.bf16.mxu0 0
      %1702 = vmatpush1.bf16.msra.mxu0 0
      %1703 = vmatprep.subr.bf16.mxu0 0
      %1704 = vmatpush1.bf16.msra.mxu0 0
      %1705 = vmatprep.subr.bf16.mxu0 0
      %1706 = vmatpush1.bf16.msra.mxu0 0
      %1707 = vmatprep.subr.bf16.mxu0 0
      %1708 = vmatpush1.bf16.msra.mxu0 0
      %1709 = vmatprep.subr.bf16.mxu0 0
      %1710 = vmatpush1.bf16.msra.mxu0 0
      %1711 = vmatprep.subr.bf16.mxu0 0
      %1712 = vmatpush1.bf16.msra.mxu0 0
      %1713 = vmatprep.subr.bf16.mxu0 0
      %1714 = vmatpush1.bf16.msra.mxu0 0
      %1715 = vmatprep.subr.bf16.mxu0 0
      %1716 = vmatpush1.bf16.msra.mxu0 0
      %1717 = vmatprep.subr.bf16.mxu0 0
      %1718 = vmatpush1.bf16.msra.mxu0 0
      %1719 = vmatprep.subr.bf16.mxu0 0
      %1720 = vmatpush1.bf16.msra.mxu0 0
      %1721 = vmatprep.subr.bf16.mxu0 0
      %1722 = vmatpush1.bf16.msra.mxu0 0
      %1723 = vmatprep.subr.bf16.mxu0 0
      %1724 = vmatpush1.bf16.msra.mxu0 0
      %1725 = vmatprep.subr.bf16.mxu0 0
      %1726 = vmatpush1.bf16.msra.mxu0 0
      %1727 = vmatprep.mubr.bf16.mxu0 0
      %1728 = vmatmul.mubr.bf16.gmra.mrb[0].mxu0 %v1444
      %v1729 = vpop.f32.mrb[0].mxu0
      %v1730 = vadd.f32 0.0, %v1729
      %v1731 = vpop.f32.mrb[0].mxu0
      %v1732 = vpop.f32.mrb[0].mxu0
      %v1733 = vadd.f32 0.0, %v1732
      %v1734 = vpop.f32.mrb[0].mxu0
      %1735 = vmatprep.mubr.bf16.mxu0 0
      %1736 = vmatmul.mubr.bf16.gmra.mrb[0].mxu0 %v1447
      %v1737 = vpop.f32.mrb[0].mxu0
      %v1738 = vadd.f32 0.0, %v1737
      %v1739 = vpop.f32.mrb[0].mxu0
      %v1740 = vpop.f32.mrb[0].mxu0
      %v1741 = vadd.f32 0.0, %v1740
      %v1742 = vpop.f32.mrb[0].mxu0
      %1743 = vmatprep.mubr.bf16.mxu0 0
      %1744 = vmatmul.mubr.bf16.gmra.mrb[0].mxu0 %v1450
      %v1745 = vpop.f32.mrb[0].mxu0
      %v1746 = vadd.f32 0.0, %v1745
      %v1747 = vpop.f32.mrb[0].mxu0
      %v1748 = vpop.f32.mrb[0].mxu0
      %v1749 = vadd.f32 0.0, %v1748
      %v1750 = vpop.f32.mrb[0].mxu0
      %1751 = vmatprep.mubr.bf16.mxu0 0
      %1752 = vmatmul.mubr.bf16.gmra.mrb[0].mxu0 %v1453
      %v1753 = vpop.f32.mrb[0].mxu0
      %v1754 = vadd.f32 0.0, %v1753
      %v1755 = vpop.f32.mrb[0].mxu0
      %v1756 = vpop.f32.mrb[0].mxu0
      %v1757 = vadd.f32 0.0, %v1756
      %v1758 = vpop.f32.mrb[0].mxu0
      %1759 = vmatprep.mubr.bf16.mxu0 0
      %1760 = vmatmul.mubr.bf16.gmra.mrb[0].mxu0 %v1456
      %v1761 = vpop.f32.mrb[0].mxu0
      %v1762 = vadd.f32 0.0, %v1761
      %v1763 = vpop.f32.mrb[0].mxu0
      %v1764 = vpop.f32.mrb[0].mxu0
      %v1765 = vadd.f32 0.0, %v1764
      %v1766 = vpop.f32.mrb[0].mxu0
      %1767 = vmatprep.mubr.bf16.mxu0 0
      %1768 = vmatmul.mubr.bf16.gmra.mrb[0].mxu0 %v1459
      %v1769 = vpop.f32.mrb[0].mxu0
      %v1770 = vadd.f32 0.0, %v1769
      %v1771 = vpop.f32.mrb[0].mxu0
      %v1772 = vpop.f32.mrb[0].mxu0
      %v1773 = vadd.f32 0.0, %v1772
      %v1774 = vpop.f32.mrb[0].mxu0
      %1775 = vmatprep.mubr.bf16.mxu0 0
      %1776 = vmatmul.mubr.bf16.gmra.mrb[0].mxu0 %v1462
      %v1777 = vpop.f32.mrb[0].mxu0
      %v1778 = vadd.f32 0.0, %v1777
      %v1779 = vpop.f32.mrb[0].mxu0
      %v1780 = vpop.f32.mrb[0].mxu0
      %v1781 = vadd.f32 0.0, %v1780
      %v1782 = vpop.f32.mrb[0].mxu0
      %1783 = vmatprep.mubr.bf16.mxu0 0
      %1784 = vmatmul.mubr.bf16.gmra.mrb[0].mxu0 %v1465
      %v1785 = vpop.f32.mrb[0].mxu0
      %v1786 = vadd.f32 0.0, %v1785
      %v1787 = vpop.f32.mrb[0].mxu0
      %v1788 = vpop.f32.mrb[0].mxu0
      %v1789 = vadd.f32 0.0, %v1788
      %v1790 = vpop.f32.mrb[0].mxu0
      %1791 = vmatprep.mubr.bf16.mxu0 0
      %1792 = vmatmul.mubr.bf16.gmra.mrb[0].mxu0 %v1468
      %v1793 = vpop.f32.mrb[0].mxu0
      %v1794 = vadd.f32 0.0, %v1793
      %v1795 = vpop.f32.mrb[0].mxu0
      %v1796 = vpop.f32.mrb[0].mxu0
      %v1797 = vadd.f32 0.0, %v1796
      %v1798 = vpop.f32.mrb[0].mxu0
      %1799 = vmatprep.mubr.bf16.mxu0 0
      %1800 = vmatmul.mubr.bf16.gmra.mrb[0].mxu0 %v1471
      %v1801 = vpop.f32.mrb[0].mxu0
      %v1802 = vadd.f32 0.0, %v1801
      %v1803 = vpop.f32.mrb[0].mxu0
      %v1804 = vpop.f32.mrb[0].mxu0
      %v1805 = vadd.f32 0.0, %v1804
      %v1806 = vpop.f32.mrb[0].mxu0
      %1807 = vmatprep.mubr.bf16.mxu0 0
      %1808 = vmatmul.mubr.bf16.gmra.mrb[0].mxu0 %v1474
      %v1809 = vpop.f32.mrb[0].mxu0
      %v1810 = vadd.f32 0.0, %v1809
      %v1811 = vpop.f32.mrb[0].mxu0
      %v1812 = vpop.f32.mrb[0].mxu0
      %v1813 = vadd.f32 0.0, %v1812
      %v1814 = vpop.f32.mrb[0].mxu0
      %1815 = vmatprep.mubr.bf16.mxu0 0
      %1816 = vmatmul.mubr.bf16.gmra.mrb[0].mxu0 %v1477
      %v1817 = vpop.f32.mrb[0].mxu0
      %v1818 = vadd.f32 0.0, %v1817
      %v1819 = vpop.f32.mrb[0].mxu0
      %v1820 = vpop.f32.mrb[0].mxu0
      %v1821 = vadd.f32 0.0, %v1820
      %v1822 = vpop.f32.mrb[0].mxu0
      %1823 = vmatprep.mubr.bf16.mxu0 0
      %1824 = vmatmul.mubr.bf16.gmra.mrb[0].mxu0 %v1480
      %v1825 = vpop.f32.mrb[0].mxu0
      %v1826 = vadd.f32 0.0, %v1825
      %v1827 = vpop.f32.mrb[0].mxu0
      %v1828 = vpop.f32.mrb[0].mxu0
      %v1829 = vadd.f32 0.0, %v1828
      %v1830 = vpop.f32.mrb[0].mxu0
      %1831 = vmatprep.mubr.bf16.mxu0 0
      %1832 = vmatmul.mubr.bf16.gmra.mrb[0].mxu0 %v1483
      %v1833 = vpop.f32.mrb[0].mxu0
      %v1834 = vadd.f32 0.0, %v1833
      %v1835 = vpop.f32.mrb[0].mxu0
      %v1836 = vpop.f32.mrb[0].mxu0
      %v1837 = vadd.f32 0.0, %v1836
      %v1838 = vpop.f32.mrb[0].mxu0
      %1839 = vmatprep.mubr.bf16.mxu0 0
      %1840 = vmatmul.mubr.bf16.gmra.mrb[0].mxu0 %v1486
      %v1841 = vpop.f32.mrb[0].mxu0
      %v1842 = vadd.f32 0.0, %v1841
      %v1843 = vpop.f32.mrb[0].mxu0
      %v1844 = vpop.f32.mrb[0].mxu0
      %v1845 = vadd.f32 0.0, %v1844
      %v1846 = vpop.f32.mrb[0].mxu0
      %1847 = vmatprep.mubr.bf16.mxu0 0
      %1848 = vmatmul.mubr.bf16.gmra.mrb[0].mxu0 %v1690
      %v1849 = vpop.f32.mrb[0].mxu0
      %v1850 = vadd.f32 0.0, %v1849
      %v1851 = vpop.f32.mrb[0].mxu0
      %v1852 = vpop.f32.mrb[0].mxu0
      %v1853 = vadd.f32 0.0, %v1852
      %v1854 = vpop.f32.mrb[0].mxu0
      %1855 = vdwg.mxu0
      %v1856 = vadd.f32 %v1652, %v1730
      %v1857 = vadd.f32 %v1653, %v1733
      %v1858 = vadd.f32 %v1654, %v1738
      %v1859 = vadd.f32 %v1655, %v1741
      %v1860 = vadd.f32 %v1656, %v1746
      %v1861 = vadd.f32 %v1657, %v1749
      %v1862 = vadd.f32 %v1658, %v1754
      %v1863 = vadd.f32 %v1659, %v1757
      %v1864 = vadd.f32 %v1660, %v1762
      %v1865 = vadd.f32 %v1661, %v1765
      %v1866 = vadd.f32 %v1662, %v1770
      %v1867 = vadd.f32 %v1663, %v1773
      %v1868 = vadd.f32 %v1664, %v1778
      %v1869 = vadd.f32 %v1665, %v1781
      %v1870 = vadd.f32 %v1666, %v1786
      %v1871 = vadd.f32 %v1667, %v1789
      %v1872 = vadd.f32 %v1668, %v1794
      %v1873 = vadd.f32 %v1669, %v1797
      %v1874 = vadd.f32 %v1670, %v1802
      %v1875 = vadd.f32 %v1671, %v1805
      %v1876 = vadd.f32 %v1672, %v1810
      %v1877 = vadd.f32 %v1673, %v1813
      %v1878 = vadd.f32 %v1674, %v1818
      %v1879 = vadd.f32 %v1675, %v1821
      %v1880 = vadd.f32 %v1676, %v1826
      %v1881 = vadd.f32 %v1677, %v1829
      %v1882 = vadd.f32 %v1678, %v1834
      %v1883 = vadd.f32 %v1679, %v1837
      %v1884 = vadd.f32 %v1680, %v1842
      %v1885 = vadd.f32 %v1681, %v1845
      %v1886 = vadd.f32 %v1682, %v1850
      %v1887 = vadd.f32 %v1683, %v1853
      %s1888 = scalar_lea.vmem %s1, 14
      %v1889 = vld [vmem:[%s1888] sm:$0x3]
      %v1890 = vunpack.c.l.b16 %v1379
      %v1891 = vunpack.c.l.b16 %v1389
      %v1892 = vpack.c.b16 %v1891, %v1890
      %v1894 = vsel %vm363, %v1892, 0
      %v1897 = vsel %vm412, %v1889, 0
      %1899 = vmatprep.subr.bf16.mxu0 0
      %1900 = vmatpush1.bf16.msra.mxu0 %v1897
      %1901 = vmatprep.subr.bf16.mxu0 0
      %1902 = vmatpush1.bf16.msra.mxu0 0
      %1903 = vmatprep.subr.bf16.mxu0 0
      %1904 = vmatpush1.bf16.msra.mxu0 0
      %1905 = vmatprep.subr.bf16.mxu0 0
      %1906 = vmatpush1.bf16.msra.mxu0 0
      %1907 = vmatprep.subr.bf16.mxu0 0
      %1908 = vmatpush1.bf16.msra.mxu0 0
      %1909 = vmatprep.subr.bf16.mxu0 0
      %1910 = vmatpush1.bf16.msra.mxu0 0
      %1911 = vmatprep.subr.bf16.mxu0 0
      %1912 = vmatpush1.bf16.msra.mxu0 0
      %1913 = vmatprep.subr.bf16.mxu0 0
      %1914 = vmatpush1.bf16.msra.mxu0 0
      %1915 = vmatprep.subr.bf16.mxu0 0
      %1916 = vmatpush1.bf16.msra.mxu0 0
      %1917 = vmatprep.subr.bf16.mxu0 0
      %1918 = vmatpush1.bf16.msra.mxu0 0
      %1919 = vmatprep.subr.bf16.mxu0 0
      %1920 = vmatpush1.bf16.msra.mxu0 0
      %1921 = vmatprep.subr.bf16.mxu0 0
      %1922 = vmatpush1.bf16.msra.mxu0 0
      %1923 = vmatprep.subr.bf16.mxu0 0
      %1924 = vmatpush1.bf16.msra.mxu0 0
      %1925 = vmatprep.subr.bf16.mxu0 0
      %1926 = vmatpush1.bf16.msra.mxu0 0
      %1927 = vmatprep.subr.bf16.mxu0 0
      %1928 = vmatpush1.bf16.msra.mxu0 0
      %1929 = vmatprep.subr.bf16.mxu0 0
      %1930 = vmatpush1.bf16.msra.mxu0 0
      %1931 = vmatprep.mubr.bf16.mxu0 0
      %1932 = vmatmul.mubr.bf16.gmra.mrb[0].mxu0 %v1447
      %v1933 = vpop.f32.mrb[0].mxu0
      %v1934 = vadd.f32 0.0, %v1933
      %v1935 = vpop.f32.mrb[0].mxu0
      %v1936 = vpop.f32.mrb[0].mxu0
      %v1937 = vadd.f32 0.0, %v1936
      %v1938 = vpop.f32.mrb[0].mxu0
      %1939 = vmatprep.mubr.bf16.mxu0 0
      %1940 = vmatmul.mubr.bf16.gmra.mrb[0].mxu0 %v1450
      %v1941 = vpop.f32.mrb[0].mxu0
      %v1942 = vadd.f32 0.0, %v1941
      %v1943 = vpop.f32.mrb[0].mxu0
      %v1944 = vpop.f32.mrb[0].mxu0
      %v1945 = vadd.f32 0.0, %v1944
      %v1946 = vpop.f32.mrb[0].mxu0
      %1947 = vmatprep.mubr.bf16.mxu0 0
      %1948 = vmatmul.mubr.bf16.gmra.mrb[0].mxu0 %v1453
      %v1949 = vpop.f32.mrb[0].mxu0
      %v1950 = vadd.f32 0.0, %v1949
      %v1951 = vpop.f32.mrb[0].mxu0
      %v1952 = vpop.f32.mrb[0].mxu0
      %v1953 = vadd.f32 0.0, %v1952
      %v1954 = vpop.f32.mrb[0].mxu0
      %1955 = vmatprep.mubr.bf16.mxu0 0
      %1956 = vmatmul.mubr.bf16.gmra.mrb[0].mxu0 %v1456
      %v1957 = vpop.f32.mrb[0].mxu0
      %v1958 = vadd.f32 0.0, %v1957
      %v1959 = vpop.f32.mrb[0].mxu0
      %v1960 = vpop.f32.mrb[0].mxu0
      %v1961 = vadd.f32 0.0, %v1960
      %v1962 = vpop.f32.mrb[0].mxu0
      %1963 = vmatprep.mubr.bf16.mxu0 0
      %1964 = vmatmul.mubr.bf16.gmra.mrb[0].mxu0 %v1459
      %v1965 = vpop.f32.mrb[0].mxu0
      %v1966 = vadd.f32 0.0, %v1965
      %v1967 = vpop.f32.mrb[0].mxu0
      %v1968 = vpop.f32.mrb[0].mxu0
      %v1969 = vadd.f32 0.0, %v1968
      %v1970 = vpop.f32.mrb[0].mxu0
      %1971 = vmatprep.mubr.bf16.mxu0 0
      %1972 = vmatmul.mubr.bf16.gmra.mrb[0].mxu0 %v1462
      %v1973 = vpop.f32.mrb[0].mxu0
      %v1974 = vadd.f32 0.0, %v1973
      %v1975 = vpop.f32.mrb[0].mxu0
      %v1976 = vpop.f32.mrb[0].mxu0
      %v1977 = vadd.f32 0.0, %v1976
      %v1978 = vpop.f32.mrb[0].mxu0
      %1979 = vmatprep.mubr.bf16.mxu0 0
      %1980 = vmatmul.mubr.bf16.gmra.mrb[0].mxu0 %v1465
      %v1981 = vpop.f32.mrb[0].mxu0
      %v1982 = vadd.f32 0.0, %v1981
      %v1983 = vpop.f32.mrb[0].mxu0
      %v1984 = vpop.f32.mrb[0].mxu0
      %v1985 = vadd.f32 0.0, %v1984
      %v1986 = vpop.f32.mrb[0].mxu0
      %1987 = vmatprep.mubr.bf16.mxu0 0
      %1988 = vmatmul.mubr.bf16.gmra.mrb[0].mxu0 %v1468
      %v1989 = vpop.f32.mrb[0].mxu0
      %v1990 = vadd.f32 0.0, %v1989
      %v1991 = vpop.f32.mrb[0].mxu0
      %v1992 = vpop.f32.mrb[0].mxu0
      %v1993 = vadd.f32 0.0, %v1992
      %v1994 = vpop.f32.mrb[0].mxu0
      %1995 = vmatprep.mubr.bf16.mxu0 0
      %1996 = vmatmul.mubr.bf16.gmra.mrb[0].mxu0 %v1471
      %v1997 = vpop.f32.mrb[0].mxu0
      %v1998 = vadd.f32 0.0, %v1997
      %v1999 = vpop.f32.mrb[0].mxu0
      %v2000 = vpop.f32.mrb[0].mxu0
      %v2001 = vadd.f32 0.0, %v2000
      %v2002 = vpop.f32.mrb[0].mxu0
      %2003 = vmatprep.mubr.bf16.mxu0 0
      %2004 = vmatmul.mubr.bf16.gmra.mrb[0].mxu0 %v1474
      %v2005 = vpop.f32.mrb[0].mxu0
      %v2006 = vadd.f32 0.0, %v2005
      %v2007 = vpop.f32.mrb[0].mxu0
      %v2008 = vpop.f32.mrb[0].mxu0
      %v2009 = vadd.f32 0.0, %v2008
      %v2010 = vpop.f32.mrb[0].mxu0
      %2011 = vmatprep.mubr.bf16.mxu0 0
      %2012 = vmatmul.mubr.bf16.gmra.mrb[0].mxu0 %v1477
      %v2013 = vpop.f32.mrb[0].mxu0
      %v2014 = vadd.f32 0.0, %v2013
      %v2015 = vpop.f32.mrb[0].mxu0
      %v2016 = vpop.f32.mrb[0].mxu0
      %v2017 = vadd.f32 0.0, %v2016
      %v2018 = vpop.f32.mrb[0].mxu0
      %2019 = vmatprep.mubr.bf16.mxu0 0
      %2020 = vmatmul.mubr.bf16.gmra.mrb[0].mxu0 %v1480
      %v2021 = vpop.f32.mrb[0].mxu0
      %v2022 = vadd.f32 0.0, %v2021
      %v2023 = vpop.f32.mrb[0].mxu0
      %v2024 = vpop.f32.mrb[0].mxu0
      %v2025 = vadd.f32 0.0, %v2024
      %v2026 = vpop.f32.mrb[0].mxu0
      %2027 = vmatprep.mubr.bf16.mxu0 0
      %2028 = vmatmul.mubr.bf16.gmra.mrb[0].mxu0 %v1483
      %v2029 = vpop.f32.mrb[0].mxu0
      %v2030 = vadd.f32 0.0, %v2029
      %v2031 = vpop.f32.mrb[0].mxu0
      %v2032 = vpop.f32.mrb[0].mxu0
      %v2033 = vadd.f32 0.0, %v2032
      %v2034 = vpop.f32.mrb[0].mxu0
      %2035 = vmatprep.mubr.bf16.mxu0 0
      %2036 = vmatmul.mubr.bf16.gmra.mrb[0].mxu0 %v1486
      %v2037 = vpop.f32.mrb[0].mxu0
      %v2038 = vadd.f32 0.0, %v2037
      %v2039 = vpop.f32.mrb[0].mxu0
      %v2040 = vpop.f32.mrb[0].mxu0
      %v2041 = vadd.f32 0.0, %v2040
      %v2042 = vpop.f32.mrb[0].mxu0
      %2043 = vmatprep.mubr.bf16.mxu0 0
      %2044 = vmatmul.mubr.bf16.gmra.mrb[0].mxu0 %v1690
      %v2045 = vpop.f32.mrb[0].mxu0
      %v2046 = vadd.f32 0.0, %v2045
      %v2047 = vpop.f32.mrb[0].mxu0
      %v2048 = vpop.f32.mrb[0].mxu0
      %v2049 = vadd.f32 0.0, %v2048
      %v2050 = vpop.f32.mrb[0].mxu0
      %2051 = vmatprep.mubr.bf16.mxu0 0
      %2052 = vmatmul.mubr.bf16.gmra.mrb[0].mxu0 %v1894
      %v2053 = vpop.f32.mrb[0].mxu0
      %v2054 = vadd.f32 0.0, %v2053
      %v2055 = vpop.f32.mrb[0].mxu0
      %v2056 = vpop.f32.mrb[0].mxu0
      %v2057 = vadd.f32 0.0, %v2056
      %v2058 = vpop.f32.mrb[0].mxu0
      %2059 = vdwg.mxu0
      %v2060 = vadd.f32 %v1856, %v1934
      %v2061 = vadd.f32 %v1857, %v1937
      %v2062 = vadd.f32 %v1858, %v1942
      %v2063 = vadd.f32 %v1859, %v1945
      %v2064 = vadd.f32 %v1860, %v1950
      %v2065 = vadd.f32 %v1861, %v1953
      %v2066 = vadd.f32 %v1862, %v1958
      %v2067 = vadd.f32 %v1863, %v1961
      %v2068 = vadd.f32 %v1864, %v1966
      %v2069 = vadd.f32 %v1865, %v1969
      %v2070 = vadd.f32 %v1866, %v1974
      %v2071 = vadd.f32 %v1867, %v1977
      %v2072 = vadd.f32 %v1868, %v1982
      %v2073 = vadd.f32 %v1869, %v1985
      %v2074 = vadd.f32 %v1870, %v1990
      %v2075 = vadd.f32 %v1871, %v1993
      %v2076 = vadd.f32 %v1872, %v1998
      %v2077 = vadd.f32 %v1873, %v2001
      %v2078 = vadd.f32 %v1874, %v2006
      %v2079 = vadd.f32 %v1875, %v2009
      %v2080 = vadd.f32 %v1876, %v2014
      %v2081 = vadd.f32 %v1877, %v2017
      %v2082 = vadd.f32 %v1878, %v2022
      %v2083 = vadd.f32 %v1879, %v2025
      %v2084 = vadd.f32 %v1880, %v2030
      %v2085 = vadd.f32 %v1881, %v2033
      %v2086 = vadd.f32 %v1882, %v2038
      %v2087 = vadd.f32 %v1883, %v2041
      %v2088 = vadd.f32 %v1884, %v2046
      %v2089 = vadd.f32 %v1885, %v2049
      %v2090 = vadd.f32 %v1886, %v2054
      %v2091 = vadd.f32 %v1887, %v2057
      %vm2110 = vcmask 1042432
      %vm2111 = vcmask 1046532
      %vm2112 = vmor %vm2110, %vm2111
      %v2113 = vrot.slane %v226, 5
      %v2114 = vrot.slane %v2113, 4
      %v2115 = vrot.slane %v227, 5
      %v2116 = vsel %vm2112, %v2114, %v2115
      %v2117 = vrot.slane %v2115, 4
      %v2118 = vrot.slane %v228, 5
      %v2119 = vsel %vm2112, %v2117, %v2118
      %v2120 = vrot.slane %v229, 5
      %v2121 = vrot.slane %v2120, 4
      %v2122 = vrot.slane %v230, 5
      %v2123 = vsel %vm2112, %v2121, %v2122
      %v2124 = vrot.slane %v2122, 4
      %v2125 = vrot.slane %v231, 5
      %v2126 = vsel %vm2112, %v2124, %v2125
      %v2127 = vrot.slane %v232, 5
      %v2128 = vrot.slane %v2127, 4
      %v2129 = vrot.slane %v233, 5
      %v2130 = vsel %vm2112, %v2128, %v2129
      %v2131 = vrot.slane %v2129, 4
      %v2132 = vrot.slane %v234, 5
      %v2133 = vsel %vm2112, %v2131, %v2132
      %v2134 = vrot.slane %v235, 5
      %v2135 = vrot.slane %v2134, 4
      %v2136 = vrot.slane %v236, 5
      %v2137 = vsel %vm2112, %v2135, %v2136
      %v2138 = vrot.slane %v2136, 4
      %v2139 = vrot.slane %v237, 5
      %v2140 = vsel %vm2112, %v2138, %v2139
      %v2141 = vrot.slane %v238, 5
      %v2142 = vrot.slane %v2141, 4
      %v2143 = vrot.slane %v239, 5
      %v2144 = vsel %vm2112, %v2142, %v2143
      %v2145 = vrot.slane %v2143, 4
      %v2146 = vrot.slane %v240, 5
      %v2147 = vsel %vm2112, %v2145, %v2146
      %v2148 = vrot.slane %v241, 5
      %v2149 = vrot.slane %v2148, 4
      %v2150 = vrot.slane %v242, 5
      %v2151 = vsel %vm2112, %v2149, %v2150
      %v2152 = vrot.slane %v2150, 4
      %v2153 = vrot.slane %v243, 5
      %v2154 = vsel %vm2112, %v2152, %v2153
      %v2155 = vrot.slane %v244, 5
      %v2156 = vrot.slane %v2155, 4
      %v2157 = vrot.slane %v245, 5
      %v2158 = vsel %vm2112, %v2156, %v2157
      %v2159 = vrot.slane %v2157, 4
      %v2160 = vrot.slane %v246, 5
      %v2161 = vsel %vm2112, %v2159, %v2160
      %v2162 = vrot.slane %v247, 5
      %v2163 = vrot.slane %v2162, 4
      %v2164 = vrot.slane %v248, 5
      %v2165 = vsel %vm2112, %v2163, %v2164
      %v2166 = vrot.slane %v2164, 4
      %v2167 = vrot.slane %v249, 5
      %v2168 = vsel %vm2112, %v2166, %v2167
      %v2169 = vrot.slane %v250, 5
      %v2170 = vrot.slane %v2169, 4
      %v2171 = vrot.slane %v251, 5
      %v2172 = vsel %vm2112, %v2170, %v2171
      %v2173 = vrot.slane %v2171, 4
      %v2174 = vrot.slane %v252, 5
      %v2175 = vsel %vm2112, %v2173, %v2174
      %v2176 = vrot.slane %v253, 5
      %v2177 = vrot.slane %v2176, 4
      %v2178 = vrot.slane %v254, 5
      %v2179 = vsel %vm2112, %v2177, %v2178
      %v2180 = vrot.slane %v2178, 4
      %v2181 = vrot.slane %v255, 5
      %v2182 = vsel %vm2112, %v2180, %v2181
      %v2183 = vrot.slane %v256, 5
      %v2184 = vrot.slane %v2183, 4
      %v2185 = vrot.slane %v257, 5
      %v2186 = vsel %vm2112, %v2184, %v2185
      %v2187 = vrot.slane %v2185, 4
      %v2188 = vrot.slane %v258, 5
      %v2189 = vsel %vm2112, %v2187, %v2188
      %v2190 = vrot.slane %v259, 5
      %v2191 = vrot.slane %v2190, 4
      %v2192 = vrot.slane %v260, 5
      %v2193 = vsel %vm2112, %v2191, %v2192
      %v2194 = vrot.slane %v2192, 4
      %v2195 = vrot.slane %v261, 5
      %v2196 = vsel %vm2112, %v2194, %v2195
      %v2197 = vrot.slane %v262, 5
      %v2198 = vrot.slane %v2197, 4
      %v2199 = vrot.slane %v263, 5
      %v2200 = vsel %vm2112, %v2198, %v2199
      %v2201 = vrot.slane %v2199, 4
      %v2202 = vrot.slane %v264, 5
      %v2203 = vsel %vm2112, %v2201, %v2202
      %v2204 = vrot.slane %v265, 5
      %v2205 = vrot.slane %v2204, 4
      %v2206 = vrot.slane %v266, 5
      %v2207 = vsel %vm2112, %v2205, %v2206
      %v2208 = vrot.slane %v2206, 4
      %v2209 = vrot.slane %v267, 5
      %v2210 = vsel %vm2112, %v2208, %v2209
      %v2211 = vrot.slane %v268, 5
      %v2212 = vrot.slane %v2211, 4
      %v2213 = vrot.slane %v269, 5
      %v2214 = vsel %vm2112, %v2212, %v2213
      %v2215 = vrot.slane %v2213, 4
      %v2216 = vrot.slane %v270, 5
      %v2217 = vsel %vm2112, %v2215, %v2216
      %v2218 = vrot.slane %v271, 5
      %v2219 = vrot.slane %v2218, 4
      %v2220 = vrot.slane %v272, 5
      %v2221 = vsel %vm2112, %v2219, %v2220
      %v2222 = vrot.slane %v2220, 4
      %v2223 = vrot.slane %v273, 5
      %v2224 = vsel %vm2112, %v2222, %v2223
      %v2225 = vrot.slane %v274, 5
      %v2226 = vrot.slane %v2225, 4
      %v2227 = vrot.slane %v275, 5
      %v2228 = vsel %vm2112, %v2226, %v2227
      %v2229 = vrot.slane %v2227, 4
      %v2230 = vrot.slane %v276, 5
      %v2231 = vsel %vm2112, %v2229, %v2230
      %v2232 = vrot.slane %v277, 5
      %v2233 = vrot.slane %v2232, 4
      %v2234 = vrot.slane %v278, 5
      %v2235 = vsel %vm2112, %v2233, %v2234
      %v2236 = vrot.slane %v2234, 4
      %v2237 = vrot.slane %v279, 5
      %v2238 = vsel %vm2112, %v2236, %v2237
      %s2239 = scalar_lea.vmem %s1, 4
      %v2240 = vld [vmem:[%s2239] sm:$0x3]
      %v2241 = vunpack.c.l.b16 %v2116
      %v2242 = vunpack.c.l.b16 %v2119
      %v2243 = vunpack.c.l.b16 %v2123
      %v2244 = vunpack.c.l.b16 %v2126
      %v2245 = vunpack.c.l.b16 %v2130
      %v2246 = vunpack.c.l.b16 %v2133
      %v2247 = vunpack.c.l.b16 %v2137
      %v2248 = vunpack.c.l.b16 %v2140
      %v2249 = vunpack.c.l.b16 %v2144
      %v2250 = vunpack.c.l.b16 %v2147
      %v2251 = vunpack.c.l.b16 %v2151
      %v2252 = vunpack.c.l.b16 %v2154
      %v2253 = vunpack.c.l.b16 %v2158
      %v2254 = vunpack.c.l.b16 %v2161
      %v2255 = vunpack.c.l.b16 %v2165
      %v2256 = vunpack.c.l.b16 %v2168
      %v2257 = vunpack.c.l.b16 %v2172
      %v2258 = vunpack.c.l.b16 %v2175
      %v2259 = vunpack.c.l.b16 %v2179
      %v2260 = vunpack.c.l.b16 %v2182
      %v2261 = vunpack.c.l.b16 %v2186
      %v2262 = vunpack.c.l.b16 %v2189
      %v2263 = vunpack.c.l.b16 %v2193
      %v2264 = vunpack.c.l.b16 %v2196
      %v2265 = vunpack.c.l.b16 %v2200
      %v2266 = vunpack.c.l.b16 %v2203
      %v2267 = vunpack.c.l.b16 %v2207
      %v2268 = vunpack.c.l.b16 %v2210
      %v2269 = vunpack.c.l.b16 %v2214
      %v2270 = vunpack.c.l.b16 %v2217
      %v2271 = vunpack.c.l.b16 %v2221
      %v2272 = vunpack.c.l.b16 %v2224
      %v2273 = vpack.c.b16 %v2242, %v2241
      %v2274 = vpack.c.b16 %v2244, %v2243
      %v2275 = vpack.c.b16 %v2246, %v2245
      %v2276 = vpack.c.b16 %v2248, %v2247
      %v2277 = vpack.c.b16 %v2250, %v2249
      %v2278 = vpack.c.b16 %v2252, %v2251
      %v2279 = vpack.c.b16 %v2254, %v2253
      %v2280 = vpack.c.b16 %v2256, %v2255
      %v2281 = vpack.c.b16 %v2258, %v2257
      %v2282 = vpack.c.b16 %v2260, %v2259
      %v2283 = vpack.c.b16 %v2262, %v2261
      %v2284 = vpack.c.b16 %v2264, %v2263
      %v2285 = vpack.c.b16 %v2266, %v2265
      %v2286 = vpack.c.b16 %v2268, %v2267
      %v2287 = vpack.c.b16 %v2270, %v2269
      %v2288 = vpack.c.b16 %v2272, %v2271
      %v2290 = vsel %vm363, %v2273, 0
      %v2293 = vsel %vm363, %v2274, 0
      %v2296 = vsel %vm363, %v2275, 0
      %v2299 = vsel %vm363, %v2276, 0
      %v2302 = vsel %vm363, %v2277, 0
      %v2305 = vsel %vm363, %v2278, 0
      %v2308 = vsel %vm363, %v2279, 0
      %v2311 = vsel %vm363, %v2280, 0
      %v2314 = vsel %vm363, %v2281, 0
      %v2317 = vsel %vm363, %v2282, 0
      %v2320 = vsel %vm363, %v2283, 0
      %v2323 = vsel %vm363, %v2284, 0
      %v2326 = vsel %vm363, %v2285, 0
      %v2329 = vsel %vm363, %v2286, 0
      %v2332 = vsel %vm363, %v2287, 0
      %v2335 = vsel %vm363, %v2288, 0
      %v2338 = vsel %vm412, %v2240, 0
      %2340 = vmatprep.subr.bf16.mxu0 0
      %2341 = vmatpush1.bf16.msra.mxu0 %v2338
      %2342 = vmatprep.subr.bf16.mxu0 0
      %2343 = vmatpush1.bf16.msra.mxu0 0
      %2344 = vmatprep.subr.bf16.mxu0 0
      %2345 = vmatpush1.bf16.msra.mxu0 0
      %2346 = vmatprep.subr.bf16.mxu0 0
      %2347 = vmatpush1.bf16.msra.mxu0 0
      %2348 = vmatprep.subr.bf16.mxu0 0
      %2349 = vmatpush1.bf16.msra.mxu0 0
      %2350 = vmatprep.subr.bf16.mxu0 0
      %2351 = vmatpush1.bf16.msra.mxu0 0
      %2352 = vmatprep.subr.bf16.mxu0 0
      %2353 = vmatpush1.bf16.msra.mxu0 0
      %2354 = vmatprep.subr.bf16.mxu0 0
      %2355 = vmatpush1.bf16.msra.mxu0 0
      %2356 = vmatprep.subr.bf16.mxu0 0
      %2357 = vmatpush1.bf16.msra.mxu0 0
      %2358 = vmatprep.subr.bf16.mxu0 0
      %2359 = vmatpush1.bf16.msra.mxu0 0
      %2360 = vmatprep.subr.bf16.mxu0 0
      %2361 = vmatpush1.bf16.msra.mxu0 0
      %2362 = vmatprep.subr.bf16.mxu0 0
      %2363 = vmatpush1.bf16.msra.mxu0 0
      %2364 = vmatprep.subr.bf16.mxu0 0
      %2365 = vmatpush1.bf16.msra.mxu0 0
      %2366 = vmatprep.subr.bf16.mxu0 0
      %2367 = vmatpush1.bf16.msra.mxu0 0
      %2368 = vmatprep.subr.bf16.mxu0 0
      %2369 = vmatpush1.bf16.msra.mxu0 0
      %2370 = vmatprep.subr.bf16.mxu0 0
      %2371 = vmatpush1.bf16.msra.mxu0 0
      %2372 = vmatprep.mubr.bf16.mxu0 0
      %2373 = vmatmul.mubr.bf16.gmra.mrb[0].mxu0 %v2290
      %v2374 = vpop.f32.mrb[0].mxu0
      %v2375 = vadd.f32 0.0, %v2374
      %v2376 = vpop.f32.mrb[0].mxu0
      %v2377 = vpop.f32.mrb[0].mxu0
      %v2378 = vadd.f32 0.0, %v2377
      %v2379 = vpop.f32.mrb[0].mxu0
      %2380 = vmatprep.mubr.bf16.mxu0 0
      %2381 = vmatmul.mubr.bf16.gmra.mrb[0].mxu0 %v2293
      %v2382 = vpop.f32.mrb[0].mxu0
      %v2383 = vadd.f32 0.0, %v2382
      %v2384 = vpop.f32.mrb[0].mxu0
      %v2385 = vpop.f32.mrb[0].mxu0
      %v2386 = vadd.f32 0.0, %v2385
      %v2387 = vpop.f32.mrb[0].mxu0
      %2388 = vmatprep.mubr.bf16.mxu0 0
      %2389 = vmatmul.mubr.bf16.gmra.mrb[0].mxu0 %v2296
      %v2390 = vpop.f32.mrb[0].mxu0
      %v2391 = vadd.f32 0.0, %v2390
      %v2392 = vpop.f32.mrb[0].mxu0
      %v2393 = vpop.f32.mrb[0].mxu0
      %v2394 = vadd.f32 0.0, %v2393
      %v2395 = vpop.f32.mrb[0].mxu0
      %2396 = vmatprep.mubr.bf16.mxu0 0
      %2397 = vmatmul.mubr.bf16.gmra.mrb[0].mxu0 %v2299
      %v2398 = vpop.f32.mrb[0].mxu0
      %v2399 = vadd.f32 0.0, %v2398
      %v2400 = vpop.f32.mrb[0].mxu0
      %v2401 = vpop.f32.mrb[0].mxu0
      %v2402 = vadd.f32 0.0, %v2401
      %v2403 = vpop.f32.mrb[0].mxu0
      %2404 = vmatprep.mubr.bf16.mxu0 0
      %2405 = vmatmul.mubr.bf16.gmra.mrb[0].mxu0 %v2302
      %v2406 = vpop.f32.mrb[0].mxu0
      %v2407 = vadd.f32 0.0, %v2406
      %v2408 = vpop.f32.mrb[0].mxu0
      %v2409 = vpop.f32.mrb[0].mxu0
      %v2410 = vadd.f32 0.0, %v2409
      %v2411 = vpop.f32.mrb[0].mxu0
      %2412 = vmatprep.mubr.bf16.mxu0 0
      %2413 = vmatmul.mubr.bf16.gmra.mrb[0].mxu0 %v2305
      %v2414 = vpop.f32.mrb[0].mxu0
      %v2415 = vadd.f32 0.0, %v2414
      %v2416 = vpop.f32.mrb[0].mxu0
      %v2417 = vpop.f32.mrb[0].mxu0
      %v2418 = vadd.f32 0.0, %v2417
      %v2419 = vpop.f32.mrb[0].mxu0
      %2420 = vmatprep.mubr.bf16.mxu0 0
      %2421 = vmatmul.mubr.bf16.gmra.mrb[0].mxu0 %v2308
      %v2422 = vpop.f32.mrb[0].mxu0
      %v2423 = vadd.f32 0.0, %v2422
      %v2424 = vpop.f32.mrb[0].mxu0
      %v2425 = vpop.f32.mrb[0].mxu0
      %v2426 = vadd.f32 0.0, %v2425
      %v2427 = vpop.f32.mrb[0].mxu0
      %2428 = vmatprep.mubr.bf16.mxu0 0
      %2429 = vmatmul.mubr.bf16.gmra.mrb[0].mxu0 %v2311
      %v2430 = vpop.f32.mrb[0].mxu0
      %v2431 = vadd.f32 0.0, %v2430
      %v2432 = vpop.f32.mrb[0].mxu0
      %v2433 = vpop.f32.mrb[0].mxu0
      %v2434 = vadd.f32 0.0, %v2433
      %v2435 = vpop.f32.mrb[0].mxu0
      %2436 = vmatprep.mubr.bf16.mxu0 0
      %2437 = vmatmul.mubr.bf16.gmra.mrb[0].mxu0 %v2314
      %v2438 = vpop.f32.mrb[0].mxu0
      %v2439 = vadd.f32 0.0, %v2438
      %v2440 = vpop.f32.mrb[0].mxu0
      %v2441 = vpop.f32.mrb[0].mxu0
      %v2442 = vadd.f32 0.0, %v2441
      %v2443 = vpop.f32.mrb[0].mxu0
      %2444 = vmatprep.mubr.bf16.mxu0 0
      %2445 = vmatmul.mubr.bf16.gmra.mrb[0].mxu0 %v2317
      %v2446 = vpop.f32.mrb[0].mxu0
      %v2447 = vadd.f32 0.0, %v2446
      %v2448 = vpop.f32.mrb[0].mxu0
      %v2449 = vpop.f32.mrb[0].mxu0
      %v2450 = vadd.f32 0.0, %v2449
      %v2451 = vpop.f32.mrb[0].mxu0
      %2452 = vmatprep.mubr.bf16.mxu0 0
      %2453 = vmatmul.mubr.bf16.gmra.mrb[0].mxu0 %v2320
      %v2454 = vpop.f32.mrb[0].mxu0
      %v2455 = vadd.f32 0.0, %v2454
      %v2456 = vpop.f32.mrb[0].mxu0
      %v2457 = vpop.f32.mrb[0].mxu0
      %v2458 = vadd.f32 0.0, %v2457
      %v2459 = vpop.f32.mrb[0].mxu0
      %2460 = vmatprep.mubr.bf16.mxu0 0
      %2461 = vmatmul.mubr.bf16.gmra.mrb[0].mxu0 %v2323
      %v2462 = vpop.f32.mrb[0].mxu0
      %v2463 = vadd.f32 0.0, %v2462
      %v2464 = vpop.f32.mrb[0].mxu0
      %v2465 = vpop.f32.mrb[0].mxu0
      %v2466 = vadd.f32 0.0, %v2465
      %v2467 = vpop.f32.mrb[0].mxu0
      %2468 = vmatprep.mubr.bf16.mxu0 0
      %2469 = vmatmul.mubr.bf16.gmra.mrb[0].mxu0 %v2326
      %v2470 = vpop.f32.mrb[0].mxu0
      %v2471 = vadd.f32 0.0, %v2470
      %v2472 = vpop.f32.mrb[0].mxu0
      %v2473 = vpop.f32.mrb[0].mxu0
      %v2474 = vadd.f32 0.0, %v2473
      %v2475 = vpop.f32.mrb[0].mxu0
      %2476 = vmatprep.mubr.bf16.mxu0 0
      %2477 = vmatmul.mubr.bf16.gmra.mrb[0].mxu0 %v2329
      %v2478 = vpop.f32.mrb[0].mxu0
      %v2479 = vadd.f32 0.0, %v2478
      %v2480 = vpop.f32.mrb[0].mxu0
      %v2481 = vpop.f32.mrb[0].mxu0
      %v2482 = vadd.f32 0.0, %v2481
      %v2483 = vpop.f32.mrb[0].mxu0
      %2484 = vmatprep.mubr.bf16.mxu0 0
      %2485 = vmatmul.mubr.bf16.gmra.mrb[0].mxu0 %v2332
      %v2486 = vpop.f32.mrb[0].mxu0
      %v2487 = vadd.f32 0.0, %v2486
      %v2488 = vpop.f32.mrb[0].mxu0
      %v2489 = vpop.f32.mrb[0].mxu0
      %v2490 = vadd.f32 0.0, %v2489
      %v2491 = vpop.f32.mrb[0].mxu0
      %2492 = vmatprep.mubr.bf16.mxu0 0
      %2493 = vmatmul.mubr.bf16.gmra.mrb[0].mxu0 %v2335
      %v2494 = vpop.f32.mrb[0].mxu0
      %v2495 = vadd.f32 0.0, %v2494
      %v2496 = vpop.f32.mrb[0].mxu0
      %v2497 = vpop.f32.mrb[0].mxu0
      %v2498 = vadd.f32 0.0, %v2497
      %v2499 = vpop.f32.mrb[0].mxu0
      %2500 = vdwg.mxu0
      %v2501 = vadd.f32 %v2060, %v2375
      %v2502 = vadd.f32 %v2061, %v2378
      %v2503 = vadd.f32 %v2062, %v2383
      %v2504 = vadd.f32 %v2063, %v2386
      %v2505 = vadd.f32 %v2064, %v2391
      %v2506 = vadd.f32 %v2065, %v2394
      %v2507 = vadd.f32 %v2066, %v2399
      %v2508 = vadd.f32 %v2067, %v2402
      %v2509 = vadd.f32 %v2068, %v2407
      %v2510 = vadd.f32 %v2069, %v2410
      %v2511 = vadd.f32 %v2070, %v2415
      %v2512 = vadd.f32 %v2071, %v2418
      %v2513 = vadd.f32 %v2072, %v2423
      %v2514 = vadd.f32 %v2073, %v2426
      %v2515 = vadd.f32 %v2074, %v2431
      %v2516 = vadd.f32 %v2075, %v2434
      %v2517 = vadd.f32 %v2076, %v2439
      %v2518 = vadd.f32 %v2077, %v2442
      %v2519 = vadd.f32 %v2078, %v2447
      %v2520 = vadd.f32 %v2079, %v2450
      %v2521 = vadd.f32 %v2080, %v2455
      %v2522 = vadd.f32 %v2081, %v2458
      %v2523 = vadd.f32 %v2082, %v2463
      %v2524 = vadd.f32 %v2083, %v2466
      %v2525 = vadd.f32 %v2084, %v2471
      %v2526 = vadd.f32 %v2085, %v2474
      %v2527 = vadd.f32 %v2086, %v2479
      %v2528 = vadd.f32 %v2087, %v2482
      %v2529 = vadd.f32 %v2088, %v2487
      %v2530 = vadd.f32 %v2089, %v2490
      %v2531 = vadd.f32 %v2090, %v2495
      %v2532 = vadd.f32 %v2091, %v2498
      %s2533 = scalar_lea.vmem %s1, 10
      %v2534 = vld [vmem:[%s2533] sm:$0x3]
      %v2535 = vunpack.c.l.b16 %v2228
      %v2536 = vunpack.c.l.b16 %v2231
      %v2537 = vpack.c.b16 %v2536, %v2535
      %v2539 = vsel %vm363, %v2537, 0
      %v2542 = vsel %vm412, %v2534, 0
      %2544 = vmatprep.subr.bf16.mxu0 0
      %2545 = vmatpush1.bf16.msra.mxu0 %v2542
      %2546 = vmatprep.subr.bf16.mxu0 0
      %2547 = vmatpush1.bf16.msra.mxu0 0
      %2548 = vmatprep.subr.bf16.mxu0 0
      %2549 = vmatpush1.bf16.msra.mxu0 0
      %2550 = vmatprep.subr.bf16.mxu0 0
      %2551 = vmatpush1.bf16.msra.mxu0 0
      %2552 = vmatprep.subr.bf16.mxu0 0
      %2553 = vmatpush1.bf16.msra.mxu0 0
      %2554 = vmatprep.subr.bf16.mxu0 0
      %2555 = vmatpush1.bf16.msra.mxu0 0
      %2556 = vmatprep.subr.bf16.mxu0 0
      %2557 = vmatpush1.bf16.msra.mxu0 0
      %2558 = vmatprep.subr.bf16.mxu0 0
      %2559 = vmatpush1.bf16.msra.mxu0 0
      %2560 = vmatprep.subr.bf16.mxu0 0
      %2561 = vmatpush1.bf16.msra.mxu0 0
      %2562 = vmatprep.subr.bf16.mxu0 0
      %2563 = vmatpush1.bf16.msra.mxu0 0
      %2564 = vmatprep.subr.bf16.mxu0 0
      %2565 = vmatpush1.bf16.msra.mxu0 0
      %2566 = vmatprep.subr.bf16.mxu0 0
      %2567 = vmatpush1.bf16.msra.mxu0 0
      %2568 = vmatprep.subr.bf16.mxu0 0
      %2569 = vmatpush1.bf16.msra.mxu0 0
      %2570 = vmatprep.subr.bf16.mxu0 0
      %2571 = vmatpush1.bf16.msra.mxu0 0
      %2572 = vmatprep.subr.bf16.mxu0 0
      %2573 = vmatpush1.bf16.msra.mxu0 0
      %2574 = vmatprep.subr.bf16.mxu0 0
      %2575 = vmatpush1.bf16.msra.mxu0 0
      %2576 = vmatprep.mubr.bf16.mxu0 0
      %2577 = vmatmul.mubr.bf16.gmra.mrb[0].mxu0 %v2293
      %v2578 = vpop.f32.mrb[0].mxu0
      %v2579 = vadd.f32 0.0, %v2578
      %v2580 = vpop.f32.mrb[0].mxu0
      %v2581 = vpop.f32.mrb[0].mxu0
      %v2582 = vadd.f32 0.0, %v2581
      %v2583 = vpop.f32.mrb[0].mxu0
      %2584 = vmatprep.mubr.bf16.mxu0 0
      %2585 = vmatmul.mubr.bf16.gmra.mrb[0].mxu0 %v2296
      %v2586 = vpop.f32.mrb[0].mxu0
      %v2587 = vadd.f32 0.0, %v2586
      %v2588 = vpop.f32.mrb[0].mxu0
      %v2589 = vpop.f32.mrb[0].mxu0
      %v2590 = vadd.f32 0.0, %v2589
      %v2591 = vpop.f32.mrb[0].mxu0
      %2592 = vmatprep.mubr.bf16.mxu0 0
      %2593 = vmatmul.mubr.bf16.gmra.mrb[0].mxu0 %v2299
      %v2594 = vpop.f32.mrb[0].mxu0
      %v2595 = vadd.f32 0.0, %v2594
      %v2596 = vpop.f32.mrb[0].mxu0
      %v2597 = vpop.f32.mrb[0].mxu0
      %v2598 = vadd.f32 0.0, %v2597
      %v2599 = vpop.f32.mrb[0].mxu0
      %2600 = vmatprep.mubr.bf16.mxu0 0
      %2601 = vmatmul.mubr.bf16.gmra.mrb[0].mxu0 %v2302
      %v2602 = vpop.f32.mrb[0].mxu0
      %v2603 = vadd.f32 0.0, %v2602
      %v2604 = vpop.f32.mrb[0].mxu0
      %v2605 = vpop.f32.mrb[0].mxu0
      %v2606 = vadd.f32 0.0, %v2605
      %v2607 = vpop.f32.mrb[0].mxu0
      %2608 = vmatprep.mubr.bf16.mxu0 0
      %2609 = vmatmul.mubr.bf16.gmra.mrb[0].mxu0 %v2305
      %v2610 = vpop.f32.mrb[0].mxu0
      %v2611 = vadd.f32 0.0, %v2610
      %v2612 = vpop.f32.mrb[0].mxu0
      %v2613 = vpop.f32.mrb[0].mxu0
      %v2614 = vadd.f32 0.0, %v2613
      %v2615 = vpop.f32.mrb[0].mxu0
      %2616 = vmatprep.mubr.bf16.mxu0 0
      %2617 = vmatmul.mubr.bf16.gmra.mrb[0].mxu0 %v2308
      %v2618 = vpop.f32.mrb[0].mxu0
      %v2619 = vadd.f32 0.0, %v2618
      %v2620 = vpop.f32.mrb[0].mxu0
      %v2621 = vpop.f32.mrb[0].mxu0
      %v2622 = vadd.f32 0.0, %v2621
      %v2623 = vpop.f32.mrb[0].mxu0
      %2624 = vmatprep.mubr.bf16.mxu0 0
      %2625 = vmatmul.mubr.bf16.gmra.mrb[0].mxu0 %v2311
      %v2626 = vpop.f32.mrb[0].mxu0
      %v2627 = vadd.f32 0.0, %v2626
      %v2628 = vpop.f32.mrb[0].mxu0
      %v2629 = vpop.f32.mrb[0].mxu0
      %v2630 = vadd.f32 0.0, %v2629
      %v2631 = vpop.f32.mrb[0].mxu0
      %2632 = vmatprep.mubr.bf16.mxu0 0
      %2633 = vmatmul.mubr.bf16.gmra.mrb[0].mxu0 %v2314
      %v2634 = vpop.f32.mrb[0].mxu0
      %v2635 = vadd.f32 0.0, %v2634
      %v2636 = vpop.f32.mrb[0].mxu0
      %v2637 = vpop.f32.mrb[0].mxu0
      %v2638 = vadd.f32 0.0, %v2637
      %v2639 = vpop.f32.mrb[0].mxu0
      %2640 = vmatprep.mubr.bf16.mxu0 0
      %2641 = vmatmul.mubr.bf16.gmra.mrb[0].mxu0 %v2317
      %v2642 = vpop.f32.mrb[0].mxu0
      %v2643 = vadd.f32 0.0, %v2642
      %v2644 = vpop.f32.mrb[0].mxu0
      %v2645 = vpop.f32.mrb[0].mxu0
      %v2646 = vadd.f32 0.0, %v2645
      %v2647 = vpop.f32.mrb[0].mxu0
      %2648 = vmatprep.mubr.bf16.mxu0 0
      %2649 = vmatmul.mubr.bf16.gmra.mrb[0].mxu0 %v2320
      %v2650 = vpop.f32.mrb[0].mxu0
      %v2651 = vadd.f32 0.0, %v2650
      %v2652 = vpop.f32.mrb[0].mxu0
      %v2653 = vpop.f32.mrb[0].mxu0
      %v2654 = vadd.f32 0.0, %v2653
      %v2655 = vpop.f32.mrb[0].mxu0
      %2656 = vmatprep.mubr.bf16.mxu0 0
      %2657 = vmatmul.mubr.bf16.gmra.mrb[0].mxu0 %v2323
      %v2658 = vpop.f32.mrb[0].mxu0
      %v2659 = vadd.f32 0.0, %v2658
      %v2660 = vpop.f32.mrb[0].mxu0
      %v2661 = vpop.f32.mrb[0].mxu0
      %v2662 = vadd.f32 0.0, %v2661
      %v2663 = vpop.f32.mrb[0].mxu0
      %2664 = vmatprep.mubr.bf16.mxu0 0
      %2665 = vmatmul.mubr.bf16.gmra.mrb[0].mxu0 %v2326
      %v2666 = vpop.f32.mrb[0].mxu0
      %v2667 = vadd.f32 0.0, %v2666
      %v2668 = vpop.f32.mrb[0].mxu0
      %v2669 = vpop.f32.mrb[0].mxu0
      %v2670 = vadd.f32 0.0, %v2669
      %v2671 = vpop.f32.mrb[0].mxu0
      %2672 = vmatprep.mubr.bf16.mxu0 0
      %2673 = vmatmul.mubr.bf16.gmra.mrb[0].mxu0 %v2329
      %v2674 = vpop.f32.mrb[0].mxu0
      %v2675 = vadd.f32 0.0, %v2674
      %v2676 = vpop.f32.mrb[0].mxu0
      %v2677 = vpop.f32.mrb[0].mxu0
      %v2678 = vadd.f32 0.0, %v2677
      %v2679 = vpop.f32.mrb[0].mxu0
      %2680 = vmatprep.mubr.bf16.mxu0 0
      %2681 = vmatmul.mubr.bf16.gmra.mrb[0].mxu0 %v2332
      %v2682 = vpop.f32.mrb[0].mxu0
      %v2683 = vadd.f32 0.0, %v2682
      %v2684 = vpop.f32.mrb[0].mxu0
      %v2685 = vpop.f32.mrb[0].mxu0
      %v2686 = vadd.f32 0.0, %v2685
      %v2687 = vpop.f32.mrb[0].mxu0
      %2688 = vmatprep.mubr.bf16.mxu0 0
      %2689 = vmatmul.mubr.bf16.gmra.mrb[0].mxu0 %v2335
      %v2690 = vpop.f32.mrb[0].mxu0
      %v2691 = vadd.f32 0.0, %v2690
      %v2692 = vpop.f32.mrb[0].mxu0
      %v2693 = vpop.f32.mrb[0].mxu0
      %v2694 = vadd.f32 0.0, %v2693
      %v2695 = vpop.f32.mrb[0].mxu0
      %2696 = vmatprep.mubr.bf16.mxu0 0
      %2697 = vmatmul.mubr.bf16.gmra.mrb[0].mxu0 %v2539
      %v2698 = vpop.f32.mrb[0].mxu0
      %v2699 = vadd.f32 0.0, %v2698
      %v2700 = vpop.f32.mrb[0].mxu0
      %v2701 = vpop.f32.mrb[0].mxu0
      %v2702 = vadd.f32 0.0, %v2701
      %v2703 = vpop.f32.mrb[0].mxu0
      %2704 = vdwg.mxu0
      %v2705 = vadd.f32 %v2501, %v2579
      %v2706 = vadd.f32 %v2502, %v2582
      %v2707 = vadd.f32 %v2503, %v2587
      %v2708 = vadd.f32 %v2504, %v2590
      %v2709 = vadd.f32 %v2505, %v2595
      %v2710 = vadd.f32 %v2506, %v2598
      %v2711 = vadd.f32 %v2507, %v2603
      %v2712 = vadd.f32 %v2508, %v2606
      %v2713 = vadd.f32 %v2509, %v2611
      %v2714 = vadd.f32 %v2510, %v2614
      %v2715 = vadd.f32 %v2511, %v2619
      %v2716 = vadd.f32 %v2512, %v2622
      %v2717 = vadd.f32 %v2513, %v2627
      %v2718 = vadd.f32 %v2514, %v2630
      %v2719 = vadd.f32 %v2515, %v2635
      %v2720 = vadd.f32 %v2516, %v2638
      %v2721 = vadd.f32 %v2517, %v2643
      %v2722 = vadd.f32 %v2518, %v2646
      %v2723 = vadd.f32 %v2519, %v2651
      %v2724 = vadd.f32 %v2520, %v2654
      %v2725 = vadd.f32 %v2521, %v2659
      %v2726 = vadd.f32 %v2522, %v2662
      %v2727 = vadd.f32 %v2523, %v2667
      %v2728 = vadd.f32 %v2524, %v2670
      %v2729 = vadd.f32 %v2525, %v2675
      %v2730 = vadd.f32 %v2526, %v2678
      %v2731 = vadd.f32 %v2527, %v2683
      %v2732 = vadd.f32 %v2528, %v2686
      %v2733 = vadd.f32 %v2529, %v2691
      %v2734 = vadd.f32 %v2530, %v2694
      %v2735 = vadd.f32 %v2531, %v2699
      %v2736 = vadd.f32 %v2532, %v2702
      %s2737 = scalar_lea.vmem %s1, 16
      %v2738 = vld [vmem:[%s2737] sm:$0x3]
      %v2739 = vunpack.c.l.b16 %v2235
      %v2740 = vunpack.c.l.b16 %v2238
      %v2741 = vpack.c.b16 %v2740, %v2739
      %v2743 = vsel %vm363, %v2741, 0
      %v2746 = vsel %vm412, %v2738, 0
      %2748 = vmatprep.subr.bf16.mxu0 0
      %2749 = vmatpush1.bf16.msra.mxu0 %v2746
      %2750 = vmatprep.subr.bf16.mxu0 0
      %2751 = vmatpush1.bf16.msra.mxu0 0
      %2752 = vmatprep.subr.bf16.mxu0 0
      %2753 = vmatpush1.bf16.msra.mxu0 0
      %2754 = vmatprep.subr.bf16.mxu0 0
      %2755 = vmatpush1.bf16.msra.mxu0 0
      %2756 = vmatprep.subr.bf16.mxu0 0
      %2757 = vmatpush1.bf16.msra.mxu0 0
      %2758 = vmatprep.subr.bf16.mxu0 0
      %2759 = vmatpush1.bf16.msra.mxu0 0
      %2760 = vmatprep.subr.bf16.mxu0 0
      %2761 = vmatpush1.bf16.msra.mxu0 0
      %2762 = vmatprep.subr.bf16.mxu0 0
      %2763 = vmatpush1.bf16.msra.mxu0 0
      %2764 = vmatprep.subr.bf16.mxu0 0
      %2765 = vmatpush1.bf16.msra.mxu0 0
      %2766 = vmatprep.subr.bf16.mxu0 0
      %2767 = vmatpush1.bf16.msra.mxu0 0
      %2768 = vmatprep.subr.bf16.mxu0 0
      %2769 = vmatpush1.bf16.msra.mxu0 0
      %2770 = vmatprep.subr.bf16.mxu0 0
      %2771 = vmatpush1.bf16.msra.mxu0 0
      %2772 = vmatprep.subr.bf16.mxu0 0
      %2773 = vmatpush1.bf16.msra.mxu0 0
      %2774 = vmatprep.subr.bf16.mxu0 0
      %2775 = vmatpush1.bf16.msra.mxu0 0
      %2776 = vmatprep.subr.bf16.mxu0 0
      %2777 = vmatpush1.bf16.msra.mxu0 0
      %2778 = vmatprep.subr.bf16.mxu0 0
      %2779 = vmatpush1.bf16.msra.mxu0 0
      %2780 = vmatprep.mubr.bf16.mxu0 0
      %2781 = vmatmul.mubr.bf16.gmra.mrb[0].mxu0 %v2296
      %v2782 = vpop.f32.mrb[0].mxu0
      %v2783 = vadd.f32 0.0, %v2782
      %v2784 = vpop.f32.mrb[0].mxu0
      %v2785 = vpop.f32.mrb[0].mxu0
      %v2786 = vadd.f32 0.0, %v2785
      %v2787 = vpop.f32.mrb[0].mxu0
      %2788 = vmatprep.mubr.bf16.mxu0 0
      %2789 = vmatmul.mubr.bf16.gmra.mrb[0].mxu0 %v2299
      %v2790 = vpop.f32.mrb[0].mxu0
      %v2791 = vadd.f32 0.0, %v2790
      %v2792 = vpop.f32.mrb[0].mxu0
      %v2793 = vpop.f32.mrb[0].mxu0
      %v2794 = vadd.f32 0.0, %v2793
      %v2795 = vpop.f32.mrb[0].mxu0
      %2796 = vmatprep.mubr.bf16.mxu0 0
      %2797 = vmatmul.mubr.bf16.gmra.mrb[0].mxu0 %v2302
      %v2798 = vpop.f32.mrb[0].mxu0
      %v2799 = vadd.f32 0.0, %v2798
      %v2800 = vpop.f32.mrb[0].mxu0
      %v2801 = vpop.f32.mrb[0].mxu0
      %v2802 = vadd.f32 0.0, %v2801
      %v2803 = vpop.f32.mrb[0].mxu0
      %2804 = vmatprep.mubr.bf16.mxu0 0
      %2805 = vmatmul.mubr.bf16.gmra.mrb[0].mxu0 %v2305
      %v2806 = vpop.f32.mrb[0].mxu0
      %v2807 = vadd.f32 0.0, %v2806
      %v2808 = vpop.f32.mrb[0].mxu0
      %v2809 = vpop.f32.mrb[0].mxu0
      %v2810 = vadd.f32 0.0, %v2809
      %v2811 = vpop.f32.mrb[0].mxu0
      %2812 = vmatprep.mubr.bf16.mxu0 0
      %2813 = vmatmul.mubr.bf16.gmra.mrb[0].mxu0 %v2308
      %v2814 = vpop.f32.mrb[0].mxu0
      %v2815 = vadd.f32 0.0, %v2814
      %v2816 = vpop.f32.mrb[0].mxu0
      %v2817 = vpop.f32.mrb[0].mxu0
      %v2818 = vadd.f32 0.0, %v2817
      %v2819 = vpop.f32.mrb[0].mxu0
      %2820 = vmatprep.mubr.bf16.mxu0 0
      %2821 = vmatmul.mubr.bf16.gmra.mrb[0].mxu0 %v2311
      %v2822 = vpop.f32.mrb[0].mxu0
      %v2823 = vadd.f32 0.0, %v2822
      %v2824 = vpop.f32.mrb[0].mxu0
      %v2825 = vpop.f32.mrb[0].mxu0
      %v2826 = vadd.f32 0.0, %v2825
      %v2827 = vpop.f32.mrb[0].mxu0
      %2828 = vmatprep.mubr.bf16.mxu0 0
      %2829 = vmatmul.mubr.bf16.gmra.mrb[0].mxu0 %v2314
      %v2830 = vpop.f32.mrb[0].mxu0
      %v2831 = vadd.f32 0.0, %v2830
      %v2832 = vpop.f32.mrb[0].mxu0
      %v2833 = vpop.f32.mrb[0].mxu0
      %v2834 = vadd.f32 0.0, %v2833
      %v2835 = vpop.f32.mrb[0].mxu0
      %2836 = vmatprep.mubr.bf16.mxu0 0
      %2837 = vmatmul.mubr.bf16.gmra.mrb[0].mxu0 %v2317
      %v2838 = vpop.f32.mrb[0].mxu0
      %v2839 = vadd.f32 0.0, %v2838
      %v2840 = vpop.f32.mrb[0].mxu0
      %v2841 = vpop.f32.mrb[0].mxu0
      %v2842 = vadd.f32 0.0, %v2841
      %v2843 = vpop.f32.mrb[0].mxu0
      %2844 = vmatprep.mubr.bf16.mxu0 0
      %2845 = vmatmul.mubr.bf16.gmra.mrb[0].mxu0 %v2320
      %v2846 = vpop.f32.mrb[0].mxu0
      %v2847 = vadd.f32 0.0, %v2846
      %v2848 = vpop.f32.mrb[0].mxu0
      %v2849 = vpop.f32.mrb[0].mxu0
      %v2850 = vadd.f32 0.0, %v2849
      %v2851 = vpop.f32.mrb[0].mxu0
      %2852 = vmatprep.mubr.bf16.mxu0 0
      %2853 = vmatmul.mubr.bf16.gmra.mrb[0].mxu0 %v2323
      %v2854 = vpop.f32.mrb[0].mxu0
      %v2855 = vadd.f32 0.0, %v2854
      %v2856 = vpop.f32.mrb[0].mxu0
      %v2857 = vpop.f32.mrb[0].mxu0
      %v2858 = vadd.f32 0.0, %v2857
      %v2859 = vpop.f32.mrb[0].mxu0
      %2860 = vmatprep.mubr.bf16.mxu0 0
      %2861 = vmatmul.mubr.bf16.gmra.mrb[0].mxu0 %v2326
      %v2862 = vpop.f32.mrb[0].mxu0
      %v2863 = vadd.f32 0.0, %v2862
      %v2864 = vpop.f32.mrb[0].mxu0
      %v2865 = vpop.f32.mrb[0].mxu0
      %v2866 = vadd.f32 0.0, %v2865
      %v2867 = vpop.f32.mrb[0].mxu0
      %2868 = vmatprep.mubr.bf16.mxu0 0
      %2869 = vmatmul.mubr.bf16.gmra.mrb[0].mxu0 %v2329
      %v2870 = vpop.f32.mrb[0].mxu0
      %v2871 = vadd.f32 0.0, %v2870
      %v2872 = vpop.f32.mrb[0].mxu0
      %v2873 = vpop.f32.mrb[0].mxu0
      %v2874 = vadd.f32 0.0, %v2873
      %v2875 = vpop.f32.mrb[0].mxu0
      %2876 = vmatprep.mubr.bf16.mxu0 0
      %2877 = vmatmul.mubr.bf16.gmra.mrb[0].mxu0 %v2332
      %v2878 = vpop.f32.mrb[0].mxu0
      %v2879 = vadd.f32 0.0, %v2878
      %v2880 = vpop.f32.mrb[0].mxu0
      %v2881 = vpop.f32.mrb[0].mxu0
      %v2882 = vadd.f32 0.0, %v2881
      %v2883 = vpop.f32.mrb[0].mxu0
      %2884 = vmatprep.mubr.bf16.mxu0 0
      %2885 = vmatmul.mubr.bf16.gmra.mrb[0].mxu0 %v2335
      %v2886 = vpop.f32.mrb[0].mxu0
      %v2887 = vadd.f32 0.0, %v2886
      %v2888 = vpop.f32.mrb[0].mxu0
      %v2889 = vpop.f32.mrb[0].mxu0
      %v2890 = vadd.f32 0.0, %v2889
      %v2891 = vpop.f32.mrb[0].mxu0
      %2892 = vmatprep.mubr.bf16.mxu0 0
      %2893 = vmatmul.mubr.bf16.gmra.mrb[0].mxu0 %v2539
      %v2894 = vpop.f32.mrb[0].mxu0
      %v2895 = vadd.f32 0.0, %v2894
      %v2896 = vpop.f32.mrb[0].mxu0
      %v2897 = vpop.f32.mrb[0].mxu0
      %v2898 = vadd.f32 0.0, %v2897
      %v2899 = vpop.f32.mrb[0].mxu0
      %2900 = vmatprep.mubr.bf16.mxu0 0
      %2901 = vmatmul.mubr.bf16.gmra.mrb[0].mxu0 %v2743
      %v2902 = vpop.f32.mrb[0].mxu0
      %v2903 = vadd.f32 0.0, %v2902
      %v2904 = vpop.f32.mrb[0].mxu0
      %v2905 = vpop.f32.mrb[0].mxu0
      %v2906 = vadd.f32 0.0, %v2905
      %v2907 = vpop.f32.mrb[0].mxu0
      %2908 = vdwg.mxu0
      %v2909 = vadd.f32 %v2705, %v2783
      %v2910 = vadd.f32 %v2706, %v2786
      %v2911 = vadd.f32 %v2707, %v2791
      %v2912 = vadd.f32 %v2708, %v2794
      %v2913 = vadd.f32 %v2709, %v2799
      %v2914 = vadd.f32 %v2710, %v2802
      %v2915 = vadd.f32 %v2711, %v2807
      %v2916 = vadd.f32 %v2712, %v2810
      %v2917 = vadd.f32 %v2713, %v2815
      %v2918 = vadd.f32 %v2714, %v2818
      %v2919 = vadd.f32 %v2715, %v2823
      %v2920 = vadd.f32 %v2716, %v2826
      %v2921 = vadd.f32 %v2717, %v2831
      %v2922 = vadd.f32 %v2718, %v2834
      %v2923 = vadd.f32 %v2719, %v2839
      %v2924 = vadd.f32 %v2720, %v2842
      %v2925 = vadd.f32 %v2721, %v2847
      %v2926 = vadd.f32 %v2722, %v2850
      %v2927 = vadd.f32 %v2723, %v2855
      %v2928 = vadd.f32 %v2724, %v2858
      %v2929 = vadd.f32 %v2725, %v2863
      %v2930 = vadd.f32 %v2726, %v2866
      %v2931 = vadd.f32 %v2727, %v2871
      %v2932 = vadd.f32 %v2728, %v2874
      %v2933 = vadd.f32 %v2729, %v2879
      %v2934 = vadd.f32 %v2730, %v2882
      %v2935 = vadd.f32 %v2731, %v2887
      %v2936 = vadd.f32 %v2732, %v2890
      %v2937 = vadd.f32 %v2733, %v2895
      %v2938 = vadd.f32 %v2734, %v2898
      %v2939 = vadd.f32 %v2735, %v2903
      %v2940 = vadd.f32 %v2736, %v2906
      %v2941 = vld [vmem:[%s2] sm:$0x1]
      %v2942 = vlaneseq
      %v2943 = vshrl.u32 %v2942, 7
      %v2944 = vsub.s32 0, %v2943
      %v2945 = vrot.slane %v2941, %v2944
      %v2946 = vmul.f32 %v2909, %v2945
      %v2947 = vmul.f32 %v2910, %v2945
      %v2948 = vmul.f32 %v2911, %v2945
      %v2949 = vmul.f32 %v2912, %v2945
      %v2950 = vmul.f32 %v2913, %v2945
      %v2951 = vmul.f32 %v2914, %v2945
      %v2952 = vmul.f32 %v2915, %v2945
      %v2953 = vmul.f32 %v2916, %v2945
      %v2954 = vmul.f32 %v2917, %v2945
      %v2955 = vmul.f32 %v2918, %v2945
      %v2956 = vmul.f32 %v2919, %v2945
      %v2957 = vmul.f32 %v2920, %v2945
      %v2958 = vmul.f32 %v2921, %v2945
      %v2959 = vmul.f32 %v2922, %v2945
      %v2960 = vmul.f32 %v2923, %v2945
      %v2961 = vmul.f32 %v2924, %v2945
      %v2962 = vmul.f32 %v2925, %v2945
      %v2963 = vmul.f32 %v2926, %v2945
      %v2964 = vmul.f32 %v2927, %v2945
      %v2965 = vmul.f32 %v2928, %v2945
      %v2966 = vmul.f32 %v2929, %v2945
      %v2967 = vmul.f32 %v2930, %v2945
      %v2968 = vmul.f32 %v2931, %v2945
      %v2969 = vmul.f32 %v2932, %v2945
      %v2970 = vmul.f32 %v2933, %v2945
      %v2971 = vmul.f32 %v2934, %v2945
      %v2972 = vmul.f32 %v2935, %v2945
      %v2973 = vmul.f32 %v2936, %v2945
      %v2974 = vmul.f32 %v2937, %v2945
      %v2975 = vmul.f32 %v2938, %v2945
      %v2976 = vmul.f32 %v2939, %v2945
      %v2977 = vmul.f32 %v2940, %v2945
      %v2978 = vld [vmem:[%s2 + $0x1] sm:$0x1]
      %v2979 = vlaneseq
      %v2980 = vshrl.u32 %v2979, 7
      %v2981 = vsub.s32 0, %v2980
      %v2982 = vrot.slane %v2978, %v2981
      %v2983 = vadd.f32 %v2946, %v2982
      %v2984 = vadd.f32 %v2947, %v2982
      %v2985 = vadd.f32 %v2948, %v2982
      %v2986 = vadd.f32 %v2949, %v2982
      %v2987 = vadd.f32 %v2950, %v2982
      %v2988 = vadd.f32 %v2951, %v2982
      %v2989 = vadd.f32 %v2952, %v2982
      %v2990 = vadd.f32 %v2953, %v2982
      %v2991 = vadd.f32 %v2954, %v2982
      %v2992 = vadd.f32 %v2955, %v2982
      %v2993 = vadd.f32 %v2956, %v2982
      %v2994 = vadd.f32 %v2957, %v2982
      %v2995 = vadd.f32 %v2958, %v2982
      %v2996 = vadd.f32 %v2959, %v2982
      %v2997 = vadd.f32 %v2960, %v2982
      %v2998 = vadd.f32 %v2961, %v2982
      %v2999 = vadd.f32 %v2962, %v2982
      %v3000 = vadd.f32 %v2963, %v2982
      %v3001 = vadd.f32 %v2964, %v2982
      %v3002 = vadd.f32 %v2965, %v2982
      %v3003 = vadd.f32 %v2966, %v2982
      %v3004 = vadd.f32 %v2967, %v2982
      %v3005 = vadd.f32 %v2968, %v2982
      %v3006 = vadd.f32 %v2969, %v2982
      %v3007 = vadd.f32 %v2970, %v2982
      %v3008 = vadd.f32 %v2971, %v2982
      %v3009 = vadd.f32 %v2972, %v2982
      %v3010 = vadd.f32 %v2973, %v2982
      %v3011 = vadd.f32 %v2974, %v2982
      %v3012 = vadd.f32 %v2975, %v2982
      %v3013 = vadd.f32 %v2976, %v2982
      %v3014 = vadd.f32 %v2977, %v2982
      %v3015 = vmax.f32 %v2983, 0.0
      %v3016 = vmax.f32 %v2984, 0.0
      %v3017 = vmax.f32 %v2985, 0.0
      %v3018 = vmax.f32 %v2986, 0.0
      %v3019 = vmax.f32 %v2987, 0.0
      %v3020 = vmax.f32 %v2988, 0.0
      %v3021 = vmax.f32 %v2989, 0.0
      %v3022 = vmax.f32 %v2990, 0.0
      %v3023 = vmax.f32 %v2991, 0.0
      %v3024 = vmax.f32 %v2992, 0.0
      %v3025 = vmax.f32 %v2993, 0.0
      %v3026 = vmax.f32 %v2994, 0.0
      %v3027 = vmax.f32 %v2995, 0.0
      %v3028 = vmax.f32 %v2996, 0.0
      %v3029 = vmax.f32 %v2997, 0.0
      %v3030 = vmax.f32 %v2998, 0.0
      %v3031 = vmax.f32 %v2999, 0.0
      %v3032 = vmax.f32 %v3000, 0.0
      %v3033 = vmax.f32 %v3001, 0.0
      %v3034 = vmax.f32 %v3002, 0.0
      %v3035 = vmax.f32 %v3003, 0.0
      %v3036 = vmax.f32 %v3004, 0.0
      %v3037 = vmax.f32 %v3005, 0.0
      %v3038 = vmax.f32 %v3006, 0.0
      %v3039 = vmax.f32 %v3007, 0.0
      %v3040 = vmax.f32 %v3008, 0.0
      %v3041 = vmax.f32 %v3009, 0.0
      %v3042 = vmax.f32 %v3010, 0.0
      %v3043 = vmax.f32 %v3011, 0.0
      %v3044 = vmax.f32 %v3012, 0.0
      %v3045 = vmax.f32 %v3013, 0.0
      %v3046 = vmax.f32 %v3014, 0.0
      %3047 = vst [vmem:[#allocation2] sm:$0xf] 0
      %3048 = vst [vmem:[#allocation2 + $0x4] sm:$0xf] 0
      %3049 = vst [vmem:[#allocation2 + $0x8] sm:$0x1] 0
      %3050 = vst [vmem:[#allocation2 + $0xc] sm:$0xf] 0
      %3051 = vst [vmem:[#allocation2 + $0x10] sm:$0xf] 0
      %3052 = vst [vmem:[#allocation2 + $0x14] sm:$0x1] 0
      %3053 = vst [vmem:[#allocation2 + $0x18] sm:$0xf] 0
      %3054 = vst [vmem:[#allocation2 + $0x1c] sm:$0xf] 0
      %3055 = vst [vmem:[#allocation2 + $0x20] sm:$0x1] 0
      %3056 = vst [vmem:[#allocation2 + $0x24] sm:$0xf] 0
      %3057 = vst [vmem:[#allocation2 + $0x28] sm:$0xf] 0
      %3058 = vst [vmem:[#allocation2 + $0x2c] sm:$0x1] 0
      %3059 = vst [vmem:[#allocation2 + $0x30] sm:$0xf] 0
      %3060 = vst [vmem:[#allocation2 + $0x34] sm:$0xf] 0
      %3061 = vst [vmem:[#allocation2 + $0x38] sm:$0x1] 0
      %3062 = vst [vmem:[#allocation2 + $0x3c] sm:$0xf] 0
      %3063 = vst [vmem:[#allocation2 + $0x40] sm:$0xf] 0
      %3064 = vst [vmem:[#allocation2 + $0x44] sm:$0x1] 0
      %3065 = vst [vmem:[#allocation2 + $0x48] sm:$0xf] 0
      %3066 = vst [vmem:[#allocation2 + $0x4c] sm:$0xf] 0
      %3067 = vst [vmem:[#allocation2 + $0x50] sm:$0x1] 0
      %3068 = vst [vmem:[#allocation2 + $0x54] sm:$0xf] 0
      %3069 = vst [vmem:[#allocation2 + $0x58] sm:$0xf] 0
      %3070 = vst [vmem:[#allocation2 + $0x5c] sm:$0x1] 0
      %3071 = vst [vmem:[#allocation2 + $0x60] sm:$0xf] 0
      %3072 = vst [vmem:[#allocation2 + $0x64] sm:$0xf] 0
      %3073 = vst [vmem:[#allocation2 + $0x68] sm:$0x1] 0
      %3074 = vst [vmem:[#allocation2 + $0x6c] sm:$0xf] 0
      %3075 = vst [vmem:[#allocation2 + $0x70] sm:$0xf] 0
      %3076 = vst [vmem:[#allocation2 + $0x74] sm:$0x1] 0
      %3077 = vst [vmem:[#allocation2 + $0x78] sm:$0xf] 0
      %3078 = vst [vmem:[#allocation2 + $0x7c] sm:$0xf] 0
      %3079 = vst [vmem:[#allocation2 + $0x80] sm:$0x1] 0
      %3080 = vst [vmem:[#allocation2 + $0x84] sm:$0xf] 0
      %3081 = vst [vmem:[#allocation2 + $0x88] sm:$0xf] 0
      %3082 = vst [vmem:[#allocation2 + $0x8c] sm:$0x1] 0
      %3083 = vst [vmem:[#allocation2 + $0x90] sm:$0xf] 0
      %3084 = vst [vmem:[#allocation2 + $0x94] sm:$0xf] 0
      %3085 = vst [vmem:[#allocation2 + $0x98] sm:$0x1] 0
      %3086 = vst [vmem:[#allocation2 + $0x9c] sm:$0xf] 0
      %3087 = vst [vmem:[#allocation2 + $0xa0] sm:$0xf] 0
      %3088 = vst [vmem:[#allocation2 + $0xa4] sm:$0x1] 0
      %3089 = vst [vmem:[#allocation2 + $0xa8] sm:$0xf] 0
      %3090 = vst [vmem:[#allocation2 + $0xac] sm:$0xf] 0
      %3091 = vst [vmem:[#allocation2 + $0xb0] sm:$0x1] 0
      %3092 = vst [vmem:[#allocation2 + $0xb4] sm:$0xf] 0
      %3093 = vst [vmem:[#allocation2 + $0xb8] sm:$0xf] 0
      %3094 = vst [vmem:[#allocation2 + $0xbc] sm:$0x1] 0
      %3095 = vst [vmem:[#allocation2 + $0xc0] sm:$0xf] 0
      %3096 = vst [vmem:[#allocation2 + $0xc4] sm:$0xf] 0
      %3097 = vst [vmem:[#allocation2 + $0xc8] sm:$0x1] 0
      %3098 = vst [vmem:[#allocation2 + $0xcc] sm:$0xf] 0
      %3099 = vst [vmem:[#allocation2 + $0xd0] sm:$0xf] 0
      %3100 = vst [vmem:[#allocation2 + $0xd4] sm:$0x1] 0
      %v3101 = vpack.c.bf16 %v3016, %v3015
      %v3102 = vpack.c.bf16 %v3018, %v3017
      %v3103 = vpack.c.bf16 %v3020, %v3019
      %v3104 = vpack.c.bf16 %v3022, %v3021
      %v3105 = vpack.c.bf16 %v3024, %v3023
      %v3106 = vpack.c.bf16 %v3026, %v3025
      %v3107 = vpack.c.bf16 %v3028, %v3027
      %v3108 = vpack.c.bf16 %v3030, %v3029
      %v3109 = vpack.c.bf16 %v3032, %v3031
      %v3110 = vpack.c.bf16 %v3034, %v3033
      %v3111 = vpack.c.bf16 %v3036, %v3035
      %v3112 = vpack.c.bf16 %v3038, %v3037
      %v3113 = vpack.c.bf16 %v3040, %v3039
      %v3114 = vpack.c.bf16 %v3042, %v3041
      %v3115 = vpack.c.bf16 %v3044, %v3043
      %v3116 = vpack.c.bf16 %v3046, %v3045
      %v3133 = vunpack.c.l.b16 %v3101
      %v3134 = vunpack.c.h.b16 %v3101
      %v3135 = vunpack.c.l.b16 %v3102
      %v3136 = vunpack.c.h.b16 %v3102
      %v3137 = vunpack.c.l.b16 %v3103
      %v3138 = vunpack.c.h.b16 %v3103
      %v3139 = vunpack.c.l.b16 %v3104
      %v3140 = vunpack.c.h.b16 %v3104
      %v3141 = vunpack.c.l.b16 %v3105
      %v3142 = vunpack.c.h.b16 %v3105
      %v3143 = vunpack.c.l.b16 %v3106
      %v3144 = vunpack.c.h.b16 %v3106
      %v3145 = vunpack.c.l.b16 %v3107
      %v3146 = vunpack.c.h.b16 %v3107
      %v3147 = vunpack.c.l.b16 %v3108
      %v3148 = vunpack.c.h.b16 %v3108
      %v3149 = vunpack.c.l.b16 %v3109
      %v3150 = vunpack.c.h.b16 %v3109
      %v3151 = vunpack.c.l.b16 %v3110
      %v3152 = vunpack.c.h.b16 %v3110
      %v3153 = vunpack.c.l.b16 %v3111
      %v3154 = vunpack.c.h.b16 %v3111
      %v3155 = vunpack.c.l.b16 %v3112
      %v3156 = vunpack.c.h.b16 %v3112
      %v3157 = vunpack.c.l.b16 %v3113
      %v3158 = vunpack.c.h.b16 %v3113
      %v3159 = vunpack.c.l.b16 %v3114
      %v3160 = vunpack.c.h.b16 %v3114
      %v3161 = vunpack.c.l.b16 %v3115
      %v3162 = vunpack.c.h.b16 %v3115
      %v3163 = vunpack.c.l.b16 %v3116
      %v3164 = vunpack.c.h.b16 %v3116
      %v3165 = vpack.c.b16 %v3133, %v3133
      %v3166 = vpack.c.b16 %v3134, %v3134
      %v3167 = vpack.c.b16 %v3135, %v3135
      %v3168 = vpack.c.b16 %v3136, %v3136
      %v3169 = vpack.c.b16 %v3137, %v3137
      %v3170 = vpack.c.b16 %v3138, %v3138
      %v3171 = vpack.c.b16 %v3139, %v3139
      %v3172 = vpack.c.b16 %v3140, %v3140
      %v3173 = vpack.c.b16 %v3141, %v3141
      %v3174 = vpack.c.b16 %v3142, %v3142
      %v3175 = vpack.c.b16 %v3143, %v3143
      %v3176 = vpack.c.b16 %v3144, %v3144
      %v3177 = vpack.c.b16 %v3145, %v3145
      %v3178 = vpack.c.b16 %v3146, %v3146
      %v3179 = vpack.c.b16 %v3147, %v3147
      %v3180 = vpack.c.b16 %v3148, %v3148
      %v3181 = vpack.c.b16 %v3149, %v3149
      %v3182 = vpack.c.b16 %v3150, %v3150
      %v3183 = vpack.c.b16 %v3151, %v3151
      %v3184 = vpack.c.b16 %v3152, %v3152
      %v3185 = vpack.c.b16 %v3153, %v3153
      %v3186 = vpack.c.b16 %v3154, %v3154
      %v3187 = vpack.c.b16 %v3155, %v3155
      %v3188 = vpack.c.b16 %v3156, %v3156
      %v3189 = vpack.c.b16 %v3157, %v3157
      %v3190 = vpack.c.b16 %v3158, %v3158
      %v3191 = vpack.c.b16 %v3159, %v3159
      %v3192 = vpack.c.b16 %v3160, %v3160
      %v3193 = vpack.c.b16 %v3161, %v3161
      %v3194 = vpack.c.b16 %v3162, %v3162
      %v3195 = vpack.c.b16 %v3163, %v3163
      %v3196 = vpack.c.b16 %v3164, %v3164
      %vm3197 = vsmask.f32 256
      %vm3198 = vsmask.f32 4368
      %vm3199 = vmor %vm3197, %vm3198
      %v3201 = vshrl.u32 %v3165, 16
      %v3203 = vrot.slane %v3201, 7
      %v3204 = vshll.u32 %v3165, 16
      %v3206 = vor.u32 %v3203, %v3204
      %v3207 = vrot.slane %v3203, 4
      %v3209 = vshrl.u32 %v3166, 16
      %v3211 = vrot.slane %v3209, 7
      %v3212 = vshll.u32 %v3166, 16
      %v3214 = vor.u32 %v3211, %v3212
      %v3215 = vsel %vm3199, %v3207, %v3214
      %v3216 = vrot.slane %v3211, 4
      %v3218 = vshrl.u32 %v3167, 16
      %v3220 = vrot.slane %v3218, 7
      %v3221 = vshll.u32 %v3167, 16
      %v3223 = vor.u32 %v3220, %v3221
      %v3224 = vrot.slane %v3220, 4
      %v3226 = vshrl.u32 %v3168, 16
      %v3228 = vrot.slane %v3226, 7
      %v3229 = vshll.u32 %v3168, 16
      %v3231 = vor.u32 %v3228, %v3229
      %v3232 = vsel %vm3199, %v3224, %v3231
      %v3233 = vrot.slane %v3228, 4
      %v3235 = vshrl.u32 %v3169, 16
      %v3237 = vrot.slane %v3235, 7
      %v3238 = vshll.u32 %v3169, 16
      %v3240 = vor.u32 %v3237, %v3238
      %v3241 = vrot.slane %v3237, 4
      %v3243 = vshrl.u32 %v3170, 16
      %v3245 = vrot.slane %v3243, 7
      %v3246 = vshll.u32 %v3170, 16
      %v3248 = vor.u32 %v3245, %v3246
      %v3249 = vsel %vm3199, %v3241, %v3248
      %v3250 = vrot.slane %v3245, 4
      %v3252 = vshrl.u32 %v3171, 16
      %v3254 = vrot.slane %v3252, 7
      %v3255 = vshll.u32 %v3171, 16
      %v3257 = vor.u32 %v3254, %v3255
      %v3258 = vrot.slane %v3254, 4
      %v3260 = vshrl.u32 %v3172, 16
      %v3262 = vrot.slane %v3260, 7
      %v3263 = vshll.u32 %v3172, 16
      %v3265 = vor.u32 %v3262, %v3263
      %v3266 = vsel %vm3199, %v3258, %v3265
      %v3267 = vrot.slane %v3262, 4
      %v3269 = vshrl.u32 %v3173, 16
      %v3271 = vrot.slane %v3269, 7
      %v3272 = vshll.u32 %v3173, 16
      %v3274 = vor.u32 %v3271, %v3272
      %v3275 = vrot.slane %v3271, 4
      %v3277 = vshrl.u32 %v3174, 16
      %v3279 = vrot.slane %v3277, 7
      %v3280 = vshll.u32 %v3174, 16
      %v3282 = vor.u32 %v3279, %v3280
      %v3283 = vsel %vm3199, %v3275, %v3282
      %v3284 = vrot.slane %v3279, 4
      %v3286 = vshrl.u32 %v3175, 16
      %v3288 = vrot.slane %v3286, 7
      %v3289 = vshll.u32 %v3175, 16
      %v3291 = vor.u32 %v3288, %v3289
      %v3292 = vrot.slane %v3288, 4
      %v3294 = vshrl.u32 %v3176, 16
      %v3296 = vrot.slane %v3294, 7
      %v3297 = vshll.u32 %v3176, 16
      %v3299 = vor.u32 %v3296, %v3297
      %v3300 = vsel %vm3199, %v3292, %v3299
      %v3301 = vrot.slane %v3296, 4
      %v3303 = vshrl.u32 %v3177, 16
      %v3305 = vrot.slane %v3303, 7
      %v3306 = vshll.u32 %v3177, 16
      %v3308 = vor.u32 %v3305, %v3306
      %v3309 = vrot.slane %v3305, 4
      %v3311 = vshrl.u32 %v3178, 16
      %v3313 = vrot.slane %v3311, 7
      %v3314 = vshll.u32 %v3178, 16
      %v3316 = vor.u32 %v3313, %v3314
      %v3317 = vsel %vm3199, %v3309, %v3316
      %v3318 = vrot.slane %v3313, 4
      %v3320 = vshrl.u32 %v3179, 16
      %v3322 = vrot.slane %v3320, 7
      %v3323 = vshll.u32 %v3179, 16
      %v3325 = vor.u32 %v3322, %v3323
      %v3326 = vrot.slane %v3322, 4
      %v3328 = vshrl.u32 %v3180, 16
      %v3330 = vrot.slane %v3328, 7
      %v3331 = vshll.u32 %v3180, 16
      %v3333 = vor.u32 %v3330, %v3331
      %v3334 = vsel %vm3199, %v3326, %v3333
      %v3335 = vrot.slane %v3330, 4
      %v3337 = vshrl.u32 %v3181, 16
      %v3339 = vrot.slane %v3337, 7
      %v3340 = vshll.u32 %v3181, 16
      %v3342 = vor.u32 %v3339, %v3340
      %v3343 = vrot.slane %v3339, 4
      %v3345 = vshrl.u32 %v3182, 16
      %v3347 = vrot.slane %v3345, 7
      %v3348 = vshll.u32 %v3182, 16
      %v3350 = vor.u32 %v3347, %v3348
      %v3351 = vsel %vm3199, %v3343, %v3350
      %v3352 = vrot.slane %v3347, 4
      %v3354 = vshrl.u32 %v3183, 16
      %v3356 = vrot.slane %v3354, 7
      %v3357 = vshll.u32 %v3183, 16
      %v3359 = vor.u32 %v3356, %v3357
      %v3360 = vrot.slane %v3356, 4
      %v3362 = vshrl.u32 %v3184, 16
      %v3364 = vrot.slane %v3362, 7
      %v3365 = vshll.u32 %v3184, 16
      %v3367 = vor.u32 %v3364, %v3365
      %v3368 = vsel %vm3199, %v3360, %v3367
      %v3369 = vrot.slane %v3364, 4
      %v3371 = vshrl.u32 %v3185, 16
      %v3373 = vrot.slane %v3371, 7
      %v3374 = vshll.u32 %v3185, 16
      %v3376 = vor.u32 %v3373, %v3374
      %v3377 = vrot.slane %v3373, 4
      %v3379 = vshrl.u32 %v3186, 16
      %v3381 = vrot.slane %v3379, 7
      %v3382 = vshll.u32 %v3186, 16
      %v3384 = vor.u32 %v3381, %v3382
      %v3385 = vsel %vm3199, %v3377, %v3384
      %v3386 = vrot.slane %v3381, 4
      %v3388 = vshrl.u32 %v3187, 16
      %v3390 = vrot.slane %v3388, 7
      %v3391 = vshll.u32 %v3187, 16
      %v3393 = vor.u32 %v3390, %v3391
      %v3394 = vrot.slane %v3390, 4
      %v3396 = vshrl.u32 %v3188, 16
      %v3398 = vrot.slane %v3396, 7
      %v3399 = vshll.u32 %v3188, 16
      %v3401 = vor.u32 %v3398, %v3399
      %v3402 = vsel %vm3199, %v3394, %v3401
      %v3403 = vrot.slane %v3398, 4
      %v3405 = vshrl.u32 %v3189, 16
      %v3407 = vrot.slane %v3405, 7
      %v3408 = vshll.u32 %v3189, 16
      %v3410 = vor.u32 %v3407, %v3408
      %v3411 = vrot.slane %v3407, 4
      %v3413 = vshrl.u32 %v3190, 16
      %v3415 = vrot.slane %v3413, 7
      %v3416 = vshll.u32 %v3190, 16
      %v3418 = vor.u32 %v3415, %v3416
      %v3419 = vsel %vm3199, %v3411, %v3418
      %v3420 = vrot.slane %v3415, 4
      %v3422 = vshrl.u32 %v3191, 16
      %v3424 = vrot.slane %v3422, 7
      %v3425 = vshll.u32 %v3191, 16
      %v3427 = vor.u32 %v3424, %v3425
      %v3428 = vrot.slane %v3424, 4
      %v3430 = vshrl.u32 %v3192, 16
      %v3432 = vrot.slane %v3430, 7
      %v3433 = vshll.u32 %v3192, 16
      %v3435 = vor.u32 %v3432, %v3433
      %v3436 = vsel %vm3199, %v3428, %v3435
      %v3437 = vrot.slane %v3432, 4
      %v3439 = vshrl.u32 %v3193, 16
      %v3441 = vrot.slane %v3439, 7
      %v3442 = vshll.u32 %v3193, 16
      %v3444 = vor.u32 %v3441, %v3442
      %v3445 = vrot.slane %v3441, 4
      %v3447 = vshrl.u32 %v3194, 16
      %v3449 = vrot.slane %v3447, 7
      %v3450 = vshll.u32 %v3194, 16
      %v3452 = vor.u32 %v3449, %v3450
      %v3453 = vsel %vm3199, %v3445, %v3452
      %v3454 = vrot.slane %v3449, 4
      %v3456 = vshrl.u32 %v3195, 16
      %v3458 = vrot.slane %v3456, 7
      %v3459 = vshll.u32 %v3195, 16
      %v3461 = vor.u32 %v3458, %v3459
      %v3462 = vrot.slane %v3458, 4
      %v3464 = vshrl.u32 %v3196, 16
      %v3466 = vrot.slane %v3464, 7
      %v3467 = vshll.u32 %v3196, 16
      %v3469 = vor.u32 %v3466, %v3467
      %v3470 = vsel %vm3199, %v3462, %v3469
      %v3471 = vrot.slane %v3466, 4
      %s3520 = scalar_lea.vmem [#allocation2], 12
      %vm3521 = vcmask 1043456
      %vm3522 = vsmask.f32 7938
      %vm3523 = vmand %vm3521, %vm3522
      %v3524 = vld [vmem:[%s3520] sm:$0xf]
      %v3525 = vsel %vm3523, %v3206, %v3524
      %3526 = vst [vmem:[%s3520] sm:$0xf] %v3525
      %3527 = vst [vmem:[%s3520 + $0x4] sm:$0xf] %v3215
      %vm3528 = vcmask 1040384
      %vm3529 = vmand %vm3528, %vm3197
      %v3530 = vld [vmem:[%s3520 + $0x8] sm:$0x1]
      %v3531 = vsel %vm3529, %v3216, %v3530
      %3532 = vst [vmem:[%s3520 + $0x8] sm:$0x1] %v3531
      %v3533 = vld [vmem:[%s3520 + $0xc] sm:$0xf]
      %v3534 = vsel %vm3523, %v3223, %v3533
      %3535 = vst [vmem:[%s3520 + $0xc] sm:$0xf] %v3534
      %3536 = vst [vmem:[%s3520 + $0x10] sm:$0xf] %v3232
      %v3537 = vld [vmem:[%s3520 + $0x14] sm:$0x1]
      %v3538 = vsel %vm3529, %v3233, %v3537
      %3539 = vst [vmem:[%s3520 + $0x14] sm:$0x1] %v3538
      %v3540 = vld [vmem:[%s3520 + $0x18] sm:$0xf]
      %v3541 = vsel %vm3523, %v3240, %v3540
      %3542 = vst [vmem:[%s3520 + $0x18] sm:$0xf] %v3541
      %3543 = vst [vmem:[%s3520 + $0x1c] sm:$0xf] %v3249
      %v3544 = vld [vmem:[%s3520 + $0x20] sm:$0x1]
      %v3545 = vsel %vm3529, %v3250, %v3544
      %3546 = vst [vmem:[%s3520 + $0x20] sm:$0x1] %v3545
      %v3547 = vld [vmem:[%s3520 + $0x24] sm:$0xf]
      %v3548 = vsel %vm3523, %v3257, %v3547
      %3549 = vst [vmem:[%s3520 + $0x24] sm:$0xf] %v3548
      %3550 = vst [vmem:[%s3520 + $0x28] sm:$0xf] %v3266
      %v3551 = vld [vmem:[%s3520 + $0x2c] sm:$0x1]
      %v3552 = vsel %vm3529, %v3267, %v3551
      %3553 = vst [vmem:[%s3520 + $0x2c] sm:$0x1] %v3552
      %v3554 = vld [vmem:[%s3520 + $0x30] sm:$0xf]
      %v3555 = vsel %vm3523, %v3274, %v3554
      %3556 = vst [vmem:[%s3520 + $0x30] sm:$0xf] %v3555
      %3557 = vst [vmem:[%s3520 + $0x34] sm:$0xf] %v3283
      %v3558 = vld [vmem:[%s3520 + $0x38] sm:$0x1]
      %v3559 = vsel %vm3529, %v3284, %v3558
      %3560 = vst [vmem:[%s3520 + $0x38] sm:$0x1] %v3559
      %v3561 = vld [vmem:[%s3520 + $0x3c] sm:$0xf]
      %v3562 = vsel %vm3523, %v3291, %v3561
      %3563 = vst [vmem:[%s3520 + $0x3c] sm:$0xf] %v3562
      %3564 = vst [vmem:[%s3520 + $0x40] sm:$0xf] %v3300
      %v3565 = vld [vmem:[%s3520 + $0x44] sm:$0x1]
      %v3566 = vsel %vm3529, %v3301, %v3565
      %3567 = vst [vmem:[%s3520 + $0x44] sm:$0x1] %v3566
      %v3568 = vld [vmem:[%s3520 + $0x48] sm:$0xf]
      %v3569 = vsel %vm3523, %v3308, %v3568
      %3570 = vst [vmem:[%s3520 + $0x48] sm:$0xf] %v3569
      %3571 = vst [vmem:[%s3520 + $0x4c] sm:$0xf] %v3317
      %v3572 = vld [vmem:[%s3520 + $0x50] sm:$0x1]
      %v3573 = vsel %vm3529, %v3318, %v3572
      %3574 = vst [vmem:[%s3520 + $0x50] sm:$0x1] %v3573
      %v3575 = vld [vmem:[%s3520 + $0x54] sm:$0xf]
      %v3576 = vsel %vm3523, %v3325, %v3575
      %3577 = vst [vmem:[%s3520 + $0x54] sm:$0xf] %v3576
      %3578 = vst [vmem:[%s3520 + $0x58] sm:$0xf] %v3334
      %v3579 = vld [vmem:[%s3520 + $0x5c] sm:$0x1]
      %v3580 = vsel %vm3529, %v3335, %v3579
      %3581 = vst [vmem:[%s3520 + $0x5c] sm:$0x1] %v3580
      %v3582 = vld [vmem:[%s3520 + $0x60] sm:$0xf]
      %v3583 = vsel %vm3523, %v3342, %v3582
      %3584 = vst [vmem:[%s3520 + $0x60] sm:$0xf] %v3583
      %3585 = vst [vmem:[%s3520 + $0x64] sm:$0xf] %v3351
      %v3586 = vld [vmem:[%s3520 + $0x68] sm:$0x1]
      %v3587 = vsel %vm3529, %v3352, %v3586
      %3588 = vst [vmem:[%s3520 + $0x68] sm:$0x1] %v3587
      %v3589 = vld [vmem:[%s3520 + $0x6c] sm:$0xf]
      %v3590 = vsel %vm3523, %v3359, %v3589
      %3591 = vst [vmem:[%s3520 + $0x6c] sm:$0xf] %v3590
      %3592 = vst [vmem:[%s3520 + $0x70] sm:$0xf] %v3368
      %v3593 = vld [vmem:[%s3520 + $0x74] sm:$0x1]
      %v3594 = vsel %vm3529, %v3369, %v3593
      %3595 = vst [vmem:[%s3520 + $0x74] sm:$0x1] %v3594
      %v3596 = vld [vmem:[%s3520 + $0x78] sm:$0xf]
      %v3597 = vsel %vm3523, %v3376, %v3596
      %3598 = vst [vmem:[%s3520 + $0x78] sm:$0xf] %v3597
      %3599 = vst [vmem:[%s3520 + $0x7c] sm:$0xf] %v3385
      %v3600 = vld [vmem:[%s3520 + $0x80] sm:$0x1]
      %v3601 = vsel %vm3529, %v3386, %v3600
      %3602 = vst [vmem:[%s3520 + $0x80] sm:$0x1] %v3601
      %v3603 = vld [vmem:[%s3520 + $0x84] sm:$0xf]
      %v3604 = vsel %vm3523, %v3393, %v3603
      %3605 = vst [vmem:[%s3520 + $0x84] sm:$0xf] %v3604
      %3606 = vst [vmem:[%s3520 + $0x88] sm:$0xf] %v3402
      %v3607 = vld [vmem:[%s3520 + $0x8c] sm:$0x1]
      %v3608 = vsel %vm3529, %v3403, %v3607
      %3609 = vst [vmem:[%s3520 + $0x8c] sm:$0x1] %v3608
      %v3610 = vld [vmem:[%s3520 + $0x90] sm:$0xf]
      %v3611 = vsel %vm3523, %v3410, %v3610
      %3612 = vst [vmem:[%s3520 + $0x90] sm:$0xf] %v3611
      %3613 = vst [vmem:[%s3520 + $0x94] sm:$0xf] %v3419
      %v3614 = vld [vmem:[%s3520 + $0x98] sm:$0x1]
      %v3615 = vsel %vm3529, %v3420, %v3614
      %3616 = vst [vmem:[%s3520 + $0x98] sm:$0x1] %v3615
      %v3617 = vld [vmem:[%s3520 + $0x9c] sm:$0xf]
      %v3618 = vsel %vm3523, %v3427, %v3617
      %3619 = vst [vmem:[%s3520 + $0x9c] sm:$0xf] %v3618
      %3620 = vst [vmem:[%s3520 + $0xa0] sm:$0xf] %v3436
      %v3621 = vld [vmem:[%s3520 + $0xa4] sm:$0x1]
      %v3622 = vsel %vm3529, %v3437, %v3621
      %3623 = vst [vmem:[%s3520 + $0xa4] sm:$0x1] %v3622
      %v3624 = vld [vmem:[%s3520 + $0xa8] sm:$0xf]
      %v3625 = vsel %vm3523, %v3444, %v3624
      %3626 = vst [vmem:[%s3520 + $0xa8] sm:$0xf] %v3625
      %3627 = vst [vmem:[%s3520 + $0xac] sm:$0xf] %v3453
      %v3628 = vld [vmem:[%s3520 + $0xb0] sm:$0x1]
      %v3629 = vsel %vm3529, %v3454, %v3628
      %3630 = vst [vmem:[%s3520 + $0xb0] sm:$0x1] %v3629
      %v3631 = vld [vmem:[%s3520 + $0xb4] sm:$0xf]
      %v3632 = vsel %vm3523, %v3461, %v3631
      %3633 = vst [vmem:[%s3520 + $0xb4] sm:$0xf] %v3632
      %3634 = vst [vmem:[%s3520 + $0xb8] sm:$0xf] %v3470
      %v3635 = vld [vmem:[%s3520 + $0xbc] sm:$0x1]
      %v3636 = vsel %vm3529, %v3471, %v3635
      %3637 = vst [vmem:[%s3520 + $0xbc] sm:$0x1] %v3636
      %v3638 = vld [vmem:[#allocation2] sm:$0xf]
      %v3639 = vld [vmem:[#allocation2 + $0x4] sm:$0xf]
      %v3640 = vld [vmem:[#allocation2 + $0x8] sm:$0x1]
      %v3641 = vld [vmem:[#allocation2 + $0xc] sm:$0xf]
      %v3642 = vld [vmem:[#allocation2 + $0x10] sm:$0xf]
      %v3643 = vld [vmem:[#allocation2 + $0x14] sm:$0x1]
      %v3644 = vld [vmem:[#allocation2 + $0x18] sm:$0xf]
      %v3645 = vld [vmem:[#allocation2 + $0x1c] sm:$0xf]
      %v3646 = vld [vmem:[#allocation2 + $0x20] sm:$0x1]
      %v3647 = vld [vmem:[#allocation2 + $0x24] sm:$0xf]
      %v3648 = vld [vmem:[#allocation2 + $0x28] sm:$0xf]
      %v3649 = vld [vmem:[#allocation2 + $0x2c] sm:$0x1]
      %v3650 = vld [vmem:[#allocation2 + $0x30] sm:$0xf]
      %v3651 = vld [vmem:[#allocation2 + $0x34] sm:$0xf]
      %v3652 = vld [vmem:[#allocation2 + $0x38] sm:$0x1]
      %v3653 = vld [vmem:[#allocation2 + $0x3c] sm:$0xf]
      %v3654 = vld [vmem:[#allocation2 + $0x40] sm:$0xf]
      %v3655 = vld [vmem:[#allocation2 + $0x44] sm:$0x1]
      %v3656 = vld [vmem:[#allocation2 + $0x48] sm:$0xf]
      %v3657 = vld [vmem:[#allocation2 + $0x4c] sm:$0xf]
      %v3658 = vld [vmem:[#allocation2 + $0x50] sm:$0x1]
      %v3659 = vld [vmem:[#allocation2 + $0x54] sm:$0xf]
      %v3660 = vld [vmem:[#allocation2 + $0x58] sm:$0xf]
      %v3661 = vld [vmem:[#allocation2 + $0x5c] sm:$0x1]
      %v3662 = vld [vmem:[#allocation2 + $0x60] sm:$0xf]
      %v3663 = vld [vmem:[#allocation2 + $0x64] sm:$0xf]
      %v3664 = vld [vmem:[#allocation2 + $0x68] sm:$0x1]
      %v3665 = vld [vmem:[#allocation2 + $0x6c] sm:$0xf]
      %v3666 = vld [vmem:[#allocation2 + $0x70] sm:$0xf]
      %v3667 = vld [vmem:[#allocation2 + $0x74] sm:$0x1]
      %v3668 = vld [vmem:[#allocation2 + $0x78] sm:$0xf]
      %v3669 = vld [vmem:[#allocation2 + $0x7c] sm:$0xf]
      %v3670 = vld [vmem:[#allocation2 + $0x80] sm:$0x1]
      %v3671 = vld [vmem:[#allocation2 + $0x84] sm:$0xf]
      %v3672 = vld [vmem:[#allocation2 + $0x88] sm:$0xf]
      %v3673 = vld [vmem:[#allocation2 + $0x8c] sm:$0x1]
      %v3674 = vld [vmem:[#allocation2 + $0x90] sm:$0xf]
      %v3675 = vld [vmem:[#allocation2 + $0x94] sm:$0xf]
      %v3676 = vld [vmem:[#allocation2 + $0x98] sm:$0x1]
      %v3677 = vld [vmem:[#allocation2 + $0x9c] sm:$0xf]
      %v3678 = vld [vmem:[#allocation2 + $0xa0] sm:$0xf]
      %v3679 = vld [vmem:[#allocation2 + $0xa4] sm:$0x1]
      %v3680 = vld [vmem:[#allocation2 + $0xa8] sm:$0xf]
      %v3681 = vld [vmem:[#allocation2 + $0xac] sm:$0xf]
      %v3682 = vld [vmem:[#allocation2 + $0xb0] sm:$0x1]
      %v3683 = vld [vmem:[#allocation2 + $0xb4] sm:$0xf]
      %v3684 = vld [vmem:[#allocation2 + $0xb8] sm:$0xf]
      %v3685 = vld [vmem:[#allocation2 + $0xbc] sm:$0x1]
      %v3686 = vld [vmem:[#allocation2 + $0xc0] sm:$0xf]
      %v3687 = vld [vmem:[#allocation2 + $0xc4] sm:$0xf]
      %v3688 = vld [vmem:[#allocation2 + $0xc8] sm:$0x1]
      %v3689 = vld [vmem:[#allocation2 + $0xcc] sm:$0xf]
      %v3690 = vld [vmem:[#allocation2 + $0xd0] sm:$0xf]
      %v3691 = vld [vmem:[#allocation2 + $0xd4] sm:$0x1]
      %v3692 = vld [vmem:[%s3] sm:$0xf]
      %v3693 = vld [vmem:[%s3 + $0x4] sm:$0xf]
      %v3694 = vld [vmem:[%s3 + $0x8] sm:$0xf]
      %v3695 = vld [vmem:[%s3 + $0xc] sm:$0xf]
      %v3696 = vld [vmem:[%s3 + $0x10] sm:$0xf]
      %v3697 = vld [vmem:[%s3 + $0x14] sm:$0xf]
      %v3698 = vld [vmem:[%s3 + $0x18] sm:$0xf]
      %v3699 = vld [vmem:[%s3 + $0x1c] sm:$0xf]
      %v3700 = vld [vmem:[%s3 + $0x20] sm:$0xf]
      %v3701 = vld [vmem:[%s3 + $0x24] sm:$0xf]
      %v3702 = vld [vmem:[%s3 + $0x28] sm:$0xf]
      %v3703 = vld [vmem:[%s3 + $0x2c] sm:$0xf]
      %v3704 = vld [vmem:[%s3 + $0x30] sm:$0xf]
      %v3705 = vld [vmem:[%s3 + $0x34] sm:$0xf]
      %v3706 = vld [vmem:[%s3 + $0x38] sm:$0xf]
      %v3707 = vld [vmem:[%s3 + $0x3c] sm:$0xf]
      %s3708 = scalar_lea.vmem %s3, 192
      %v3709 = vld [vmem:[%s3708] sm:$0xf]
      %v3710 = vld [vmem:[%s3708 + $0x4] sm:$0xf]
      %v3711 = vld [vmem:[%s3708 + $0x8] sm:$0xf]
      %v3712 = vld [vmem:[%s3708 + $0xc] sm:$0xf]
      %v3713 = vld [vmem:[%s3708 + $0x10] sm:$0xf]
      %v3714 = vld [vmem:[%s3708 + $0x14] sm:$0xf]
      %v3715 = vld [vmem:[%s3708 + $0x18] sm:$0xf]
      %v3716 = vld [vmem:[%s3708 + $0x1c] sm:$0xf]
      %v3717 = vld [vmem:[%s3708 + $0x20] sm:$0xf]
      %v3718 = vld [vmem:[%s3708 + $0x24] sm:$0xf]
      %v3719 = vld [vmem:[%s3708 + $0x28] sm:$0xf]
      %v3720 = vld [vmem:[%s3708 + $0x2c] sm:$0xf]
      %v3721 = vld [vmem:[%s3708 + $0x30] sm:$0xf]
      %v3722 = vld [vmem:[%s3708 + $0x34] sm:$0xf]
      %v3723 = vld [vmem:[%s3708 + $0x38] sm:$0xf]
      %v3724 = vld [vmem:[%s3708 + $0x3c] sm:$0xf]
      %v3757 = vunpack.c.l.b16 %v3641
      %v3758 = vunpack.c.l.b16 %v3642
      %v3759 = vunpack.c.l.b16 %v3644
      %v3760 = vunpack.c.l.b16 %v3645
      %v3761 = vunpack.c.l.b16 %v3647
      %v3762 = vunpack.c.l.b16 %v3648
      %v3763 = vunpack.c.l.b16 %v3650
      %v3764 = vunpack.c.l.b16 %v3651
      %v3765 = vunpack.c.l.b16 %v3653
      %v3766 = vunpack.c.l.b16 %v3654
      %v3767 = vunpack.c.l.b16 %v3656
      %v3768 = vunpack.c.l.b16 %v3657
      %v3769 = vunpack.c.l.b16 %v3659
      %v3770 = vunpack.c.l.b16 %v3660
      %v3771 = vunpack.c.l.b16 %v3662
      %v3772 = vunpack.c.l.b16 %v3663
      %v3773 = vunpack.c.l.b16 %v3665
      %v3774 = vunpack.c.l.b16 %v3666
      %v3775 = vunpack.c.l.b16 %v3668
      %v3776 = vunpack.c.l.b16 %v3669
      %v3777 = vunpack.c.l.b16 %v3671
      %v3778 = vunpack.c.l.b16 %v3672
      %v3779 = vunpack.c.l.b16 %v3674
      %v3780 = vunpack.c.l.b16 %v3675
      %v3781 = vunpack.c.l.b16 %v3677
      %v3782 = vunpack.c.l.b16 %v3678
      %v3783 = vunpack.c.l.b16 %v3680
      %v3784 = vunpack.c.l.b16 %v3681
      %v3785 = vunpack.c.l.b16 %v3683
      %v3786 = vunpack.c.l.b16 %v3684
      %v3787 = vunpack.c.l.b16 %v3686
      %v3788 = vunpack.c.l.b16 %v3687
      %v3789 = vpack.c.b16 %v3758, %v3757
      %v3790 = vpack.c.b16 %v3760, %v3759
      %v3791 = vpack.c.b16 %v3762, %v3761
      %v3792 = vpack.c.b16 %v3764, %v3763
      %v3793 = vpack.c.b16 %v3766, %v3765
      %v3794 = vpack.c.b16 %v3768, %v3767
      %v3795 = vpack.c.b16 %v3770, %v3769
      %v3796 = vpack.c.b16 %v3772, %v3771
      %v3797 = vpack.c.b16 %v3774, %v3773
      %v3798 = vpack.c.b16 %v3776, %v3775
      %v3799 = vpack.c.b16 %v3778, %v3777
      %v3800 = vpack.c.b16 %v3780, %v3779
      %v3801 = vpack.c.b16 %v3782, %v3781
      %v3802 = vpack.c.b16 %v3784, %v3783
      %v3803 = vpack.c.b16 %v3786, %v3785
      %v3804 = vpack.c.b16 %v3788, %v3787
      %v3837 = vunpack.c.l.b16 %v3709
      %v3838 = vunpack.c.l.b16 %v3710
      %v3839 = vunpack.c.l.b16 %v3711
      %v3840 = vunpack.c.l.b16 %v3712
      %v3841 = vunpack.c.l.b16 %v3713
      %v3842 = vunpack.c.l.b16 %v3714
      %v3843 = vunpack.c.l.b16 %v3715
      %v3844 = vunpack.c.l.b16 %v3716
      %v3845 = vunpack.c.l.b16 %v3717
      %v3846 = vunpack.c.l.b16 %v3718
      %v3847 = vunpack.c.l.b16 %v3719
      %v3848 = vunpack.c.l.b16 %v3720
      %v3849 = vunpack.c.l.b16 %v3721
      %v3850 = vunpack.c.l.b16 %v3722
      %v3851 = vunpack.c.l.b16 %v3723
      %v3852 = vunpack.c.l.b16 %v3724
      %v3853 = vpack.c.b16 %v3838, %v3837
      %v3854 = vpack.c.b16 %v3840, %v3839
      %v3855 = vpack.c.b16 %v3842, %v3841
      %v3856 = vpack.c.b16 %v3844, %v3843
      %v3857 = vpack.c.b16 %v3846, %v3845
      %v3858 = vpack.c.b16 %v3848, %v3847
      %v3859 = vpack.c.b16 %v3850, %v3849
      %v3860 = vpack.c.b16 %v3852, %v3851
      %3869 = vmatprep.subr.bf16.mxu0 0
      %3870 = vmatpush1.bf16.msra.mxu0 %v3853
      %3871 = vmatprep.subr.bf16.mxu0 0
      %3872 = vmatpush1.bf16.msra.mxu0 %v3854
      %3873 = vmatprep.subr.bf16.mxu0 0
      %3874 = vmatpush1.bf16.msra.mxu0 %v3855
      %3875 = vmatprep.subr.bf16.mxu0 0
      %3876 = vmatpush1.bf16.msra.mxu0 %v3856
      %3877 = vmatprep.subr.bf16.mxu0 0
      %3878 = vmatpush1.bf16.msra.mxu0 %v3857
      %3879 = vmatprep.subr.bf16.mxu0 0
      %3880 = vmatpush1.bf16.msra.mxu0 %v3858
      %3881 = vmatprep.subr.bf16.mxu0 0
      %3882 = vmatpush1.bf16.msra.mxu0 %v3859
      %3883 = vmatprep.subr.bf16.mxu0 0
      %3884 = vmatpush1.bf16.msra.mxu0 %v3860
      %3885 = vmatprep.subr.bf16.mxu0 0
      %3886 = vmatpush1.bf16.msra.mxu0 0
      %3887 = vmatprep.subr.bf16.mxu0 0
      %3888 = vmatpush1.bf16.msra.mxu0 0
      %3889 = vmatprep.subr.bf16.mxu0 0
      %3890 = vmatpush1.bf16.msra.mxu0 0
      %3891 = vmatprep.subr.bf16.mxu0 0
      %3892 = vmatpush1.bf16.msra.mxu0 0
      %3893 = vmatprep.subr.bf16.mxu0 0
      %3894 = vmatpush1.bf16.msra.mxu0 0
      %3895 = vmatprep.subr.bf16.mxu0 0
      %3896 = vmatpush1.bf16.msra.mxu0 0
      %3897 = vmatprep.subr.bf16.mxu0 0
      %3898 = vmatpush1.bf16.msra.mxu0 0
      %3899 = vmatprep.subr.bf16.mxu0 0
      %3900 = vmatpush1.bf16.msra.mxu0 0
      %3901 = vmatprep.mubr.bf16.mxu0 0
      %3902 = vmatmul.mubr.bf16.gmra.mrb[0].mxu0 %v3789
      %v3903 = vpop.f32.mrb[0].mxu0
      %v3904 = vadd.f32 0.0, %v3903
      %v3905 = vpop.f32.mrb[0].mxu0
      %v3906 = vpop.f32.mrb[0].mxu0
      %v3907 = vadd.f32 0.0, %v3906
      %v3908 = vpop.f32.mrb[0].mxu0
      %3909 = vmatprep.mubr.bf16.mxu0 0
      %3910 = vmatmul.mubr.bf16.gmra.mrb[0].mxu0 %v3790
      %v3911 = vpop.f32.mrb[0].mxu0
      %v3912 = vadd.f32 0.0, %v3911
      %v3913 = vpop.f32.mrb[0].mxu0
      %v3914 = vpop.f32.mrb[0].mxu0
      %v3915 = vadd.f32 0.0, %v3914
      %v3916 = vpop.f32.mrb[0].mxu0
      %3917 = vmatprep.mubr.bf16.mxu0 0
      %3918 = vmatmul.mubr.bf16.gmra.mrb[0].mxu0 %v3791
      %v3919 = vpop.f32.mrb[0].mxu0
      %v3920 = vadd.f32 0.0, %v3919
      %v3921 = vpop.f32.mrb[0].mxu0
      %v3922 = vpop.f32.mrb[0].mxu0
      %v3923 = vadd.f32 0.0, %v3922
      %v3924 = vpop.f32.mrb[0].mxu0
      %3925 = vmatprep.mubr.bf16.mxu0 0
      %3926 = vmatmul.mubr.bf16.gmra.mrb[0].mxu0 %v3792
      %v3927 = vpop.f32.mrb[0].mxu0
      %v3928 = vadd.f32 0.0, %v3927
      %v3929 = vpop.f32.mrb[0].mxu0
      %v3930 = vpop.f32.mrb[0].mxu0
      %v3931 = vadd.f32 0.0, %v3930
      %v3932 = vpop.f32.mrb[0].mxu0
      %3933 = vmatprep.mubr.bf16.mxu0 0
      %3934 = vmatmul.mubr.bf16.gmra.mrb[0].mxu0 %v3793
      %v3935 = vpop.f32.mrb[0].mxu0
      %v3936 = vadd.f32 0.0, %v3935
      %v3937 = vpop.f32.mrb[0].mxu0
      %v3938 = vpop.f32.mrb[0].mxu0
      %v3939 = vadd.f32 0.0, %v3938
      %v3940 = vpop.f32.mrb[0].mxu0
      %3941 = vmatprep.mubr.bf16.mxu0 0
      %3942 = vmatmul.mubr.bf16.gmra.mrb[0].mxu0 %v3794
      %v3943 = vpop.f32.mrb[0].mxu0
      %v3944 = vadd.f32 0.0, %v3943
      %v3945 = vpop.f32.mrb[0].mxu0
      %v3946 = vpop.f32.mrb[0].mxu0
      %v3947 = vadd.f32 0.0, %v3946
      %v3948 = vpop.f32.mrb[0].mxu0
      %3949 = vmatprep.mubr.bf16.mxu0 0
      %3950 = vmatmul.mubr.bf16.gmra.mrb[0].mxu0 %v3795
      %v3951 = vpop.f32.mrb[0].mxu0
      %v3952 = vadd.f32 0.0, %v3951
      %v3953 = vpop.f32.mrb[0].mxu0
      %v3954 = vpop.f32.mrb[0].mxu0
      %v3955 = vadd.f32 0.0, %v3954
      %v3956 = vpop.f32.mrb[0].mxu0
      %3957 = vmatprep.mubr.bf16.mxu0 0
      %3958 = vmatmul.mubr.bf16.gmra.mrb[0].mxu0 %v3796
      %v3959 = vpop.f32.mrb[0].mxu0
      %v3960 = vadd.f32 0.0, %v3959
      %v3961 = vpop.f32.mrb[0].mxu0
      %v3962 = vpop.f32.mrb[0].mxu0
      %v3963 = vadd.f32 0.0, %v3962
      %v3964 = vpop.f32.mrb[0].mxu0
      %3965 = vmatprep.mubr.bf16.mxu0 0
      %3966 = vmatmul.mubr.bf16.gmra.mrb[0].mxu0 %v3797
      %v3967 = vpop.f32.mrb[0].mxu0
      %v3968 = vadd.f32 0.0, %v3967
      %v3969 = vpop.f32.mrb[0].mxu0
      %v3970 = vpop.f32.mrb[0].mxu0
      %v3971 = vadd.f32 0.0, %v3970
      %v3972 = vpop.f32.mrb[0].mxu0
      %3973 = vmatprep.mubr.bf16.mxu0 0
      %3974 = vmatmul.mubr.bf16.gmra.mrb[0].mxu0 %v3798
      %v3975 = vpop.f32.mrb[0].mxu0
      %v3976 = vadd.f32 0.0, %v3975
      %v3977 = vpop.f32.mrb[0].mxu0
      %v3978 = vpop.f32.mrb[0].mxu0
      %v3979 = vadd.f32 0.0, %v3978
      %v3980 = vpop.f32.mrb[0].mxu0
      %3981 = vmatprep.mubr.bf16.mxu0 0
      %3982 = vmatmul.mubr.bf16.gmra.mrb[0].mxu0 %v3799
      %v3983 = vpop.f32.mrb[0].mxu0
      %v3984 = vadd.f32 0.0, %v3983
      %v3985 = vpop.f32.mrb[0].mxu0
      %v3986 = vpop.f32.mrb[0].mxu0
      %v3987 = vadd.f32 0.0, %v3986
      %v3988 = vpop.f32.mrb[0].mxu0
      %3989 = vmatprep.mubr.bf16.mxu0 0
      %3990 = vmatmul.mubr.bf16.gmra.mrb[0].mxu0 %v3800
      %v3991 = vpop.f32.mrb[0].mxu0
      %v3992 = vadd.f32 0.0, %v3991
      %v3993 = vpop.f32.mrb[0].mxu0
      %v3994 = vpop.f32.mrb[0].mxu0
      %v3995 = vadd.f32 0.0, %v3994
      %v3996 = vpop.f32.mrb[0].mxu0
      %3997 = vmatprep.mubr.bf16.mxu0 0
      %3998 = vmatmul.mubr.bf16.gmra.mrb[0].mxu0 %v3801
      %v3999 = vpop.f32.mrb[0].mxu0
      %v4000 = vadd.f32 0.0, %v3999
      %v4001 = vpop.f32.mrb[0].mxu0
      %v4002 = vpop.f32.mrb[0].mxu0
      %v4003 = vadd.f32 0.0, %v4002
      %v4004 = vpop.f32.mrb[0].mxu0
      %4005 = vmatprep.mubr.bf16.mxu0 0
      %4006 = vmatmul.mubr.bf16.gmra.mrb[0].mxu0 %v3802
      %v4007 = vpop.f32.mrb[0].mxu0
      %v4008 = vadd.f32 0.0, %v4007
      %v4009 = vpop.f32.mrb[0].mxu0
      %v4010 = vpop.f32.mrb[0].mxu0
      %v4011 = vadd.f32 0.0, %v4010
      %v4012 = vpop.f32.mrb[0].mxu0
      %4013 = vmatprep.mubr.bf16.mxu0 0
      %4014 = vmatmul.mubr.bf16.gmra.mrb[0].mxu0 %v3803
      %v4015 = vpop.f32.mrb[0].mxu0
      %v4016 = vadd.f32 0.0, %v4015
      %v4017 = vpop.f32.mrb[0].mxu0
      %v4018 = vpop.f32.mrb[0].mxu0
      %v4019 = vadd.f32 0.0, %v4018
      %v4020 = vpop.f32.mrb[0].mxu0
      %4021 = vmatprep.mubr.bf16.mxu0 0
      %4022 = vmatmul.mubr.bf16.gmra.mrb[0].mxu0 %v3804
      %v4023 = vpop.f32.mrb[0].mxu0
      %v4024 = vadd.f32 0.0, %v4023
      %v4025 = vpop.f32.mrb[0].mxu0
      %v4026 = vpop.f32.mrb[0].mxu0
      %v4027 = vadd.f32 0.0, %v4026
      %v4028 = vpop.f32.mrb[0].mxu0
      %4029 = vdwg.mxu0
      %v4032 = vunpack.c.l.b16 %v3638
      %v4033 = vunpack.c.l.b16 %v3639
      %v4034 = vpack.c.b16 %v4033, %v4032
      %v4052 = vunpack.c.l.b16 %v3692
      %v4053 = vunpack.c.l.b16 %v3693
      %v4054 = vunpack.c.l.b16 %v3694
      %v4055 = vunpack.c.l.b16 %v3695
      %v4056 = vunpack.c.l.b16 %v3696
      %v4057 = vunpack.c.l.b16 %v3697
      %v4058 = vunpack.c.l.b16 %v3698
      %v4059 = vunpack.c.l.b16 %v3699
      %v4060 = vunpack.c.l.b16 %v3700
      %v4061 = vunpack.c.l.b16 %v3701
      %v4062 = vunpack.c.l.b16 %v3702
      %v4063 = vunpack.c.l.b16 %v3703
      %v4064 = vunpack.c.l.b16 %v3704
      %v4065 = vunpack.c.l.b16 %v3705
      %v4066 = vunpack.c.l.b16 %v3706
      %v4067 = vunpack.c.l.b16 %v3707
      %v4068 = vpack.c.b16 %v4053, %v4052
      %v4069 = vpack.c.b16 %v4055, %v4054
      %v4070 = vpack.c.b16 %v4057, %v4056
      %v4071 = vpack.c.b16 %v4059, %v4058
      %v4072 = vpack.c.b16 %v4061, %v4060
      %v4073 = vpack.c.b16 %v4063, %v4062
      %v4074 = vpack.c.b16 %v4065, %v4064
      %v4075 = vpack.c.b16 %v4067, %v4066
      %4084 = vmatprep.subr.bf16.mxu0 0
      %4085 = vmatpush1.bf16.msra.mxu0 %v4068
      %4086 = vmatprep.subr.bf16.mxu0 0
      %4087 = vmatpush1.bf16.msra.mxu0 %v4069
      %4088 = vmatprep.subr.bf16.mxu0 0
      %4089 = vmatpush1.bf16.msra.mxu0 %v4070
      %4090 = vmatprep.subr.bf16.mxu0 0
      %4091 = vmatpush1.bf16.msra.mxu0 %v4071
      %4092 = vmatprep.subr.bf16.mxu0 0
      %4093 = vmatpush1.bf16.msra.mxu0 %v4072
      %4094 = vmatprep.subr.bf16.mxu0 0
      %4095 = vmatpush1.bf16.msra.mxu0 %v4073
      %4096 = vmatprep.subr.bf16.mxu0 0
      %4097 = vmatpush1.bf16.msra.mxu0 %v4074
      %4098 = vmatprep.subr.bf16.mxu0 0
      %4099 = vmatpush1.bf16.msra.mxu0 %v4075
      %4100 = vmatprep.subr.bf16.mxu0 0
      %4101 = vmatpush1.bf16.msra.mxu0 0
      %4102 = vmatprep.subr.bf16.mxu0 0
      %4103 = vmatpush1.bf16.msra.mxu0 0
      %4104 = vmatprep.subr.bf16.mxu0 0
      %4105 = vmatpush1.bf16.msra.mxu0 0
      %4106 = vmatprep.subr.bf16.mxu0 0
      %4107 = vmatpush1.bf16.msra.mxu0 0
      %4108 = vmatprep.subr.bf16.mxu0 0
      %4109 = vmatpush1.bf16.msra.mxu0 0
      %4110 = vmatprep.subr.bf16.mxu0 0
      %4111 = vmatpush1.bf16.msra.mxu0 0
      %4112 = vmatprep.subr.bf16.mxu0 0
      %4113 = vmatpush1.bf16.msra.mxu0 0
      %4114 = vmatprep.subr.bf16.mxu0 0
      %4115 = vmatpush1.bf16.msra.mxu0 0
      %4116 = vmatprep.mubr.bf16.mxu0 0
      %4117 = vmatmul.mubr.bf16.gmra.mrb[0].mxu0 %v4034
      %v4118 = vpop.f32.mrb[0].mxu0
      %v4119 = vadd.f32 %v3904, %v4118
      %v4120 = vpop.f32.mrb[0].mxu0
      %v4121 = vpop.f32.mrb[0].mxu0
      %v4122 = vadd.f32 %v3907, %v4121
      %v4123 = vpop.f32.mrb[0].mxu0
      %4124 = vmatprep.mubr.bf16.mxu0 0
      %4125 = vmatmul.mubr.bf16.gmra.mrb[0].mxu0 %v3789
      %v4126 = vpop.f32.mrb[0].mxu0
      %v4127 = vadd.f32 %v3912, %v4126
      %v4128 = vpop.f32.mrb[0].mxu0
      %v4129 = vpop.f32.mrb[0].mxu0
      %v4130 = vadd.f32 %v3915, %v4129
      %v4131 = vpop.f32.mrb[0].mxu0
      %4132 = vmatprep.mubr.bf16.mxu0 0
      %4133 = vmatmul.mubr.bf16.gmra.mrb[0].mxu0 %v3790
      %v4134 = vpop.f32.mrb[0].mxu0
      %v4135 = vadd.f32 %v3920, %v4134
      %v4136 = vpop.f32.mrb[0].mxu0
      %v4137 = vpop.f32.mrb[0].mxu0
      %v4138 = vadd.f32 %v3923, %v4137
      %v4139 = vpop.f32.mrb[0].mxu0
      %4140 = vmatprep.mubr.bf16.mxu0 0
      %4141 = vmatmul.mubr.bf16.gmra.mrb[0].mxu0 %v3791
      %v4142 = vpop.f32.mrb[0].mxu0
      %v4143 = vadd.f32 %v3928, %v4142
      %v4144 = vpop.f32.mrb[0].mxu0
      %v4145 = vpop.f32.mrb[0].mxu0
      %v4146 = vadd.f32 %v3931, %v4145
      %v4147 = vpop.f32.mrb[0].mxu0
      %4148 = vmatprep.mubr.bf16.mxu0 0
      %4149 = vmatmul.mubr.bf16.gmra.mrb[0].mxu0 %v3792
      %v4150 = vpop.f32.mrb[0].mxu0
      %v4151 = vadd.f32 %v3936, %v4150
      %v4152 = vpop.f32.mrb[0].mxu0
      %v4153 = vpop.f32.mrb[0].mxu0
      %v4154 = vadd.f32 %v3939, %v4153
      %v4155 = vpop.f32.mrb[0].mxu0
      %4156 = vmatprep.mubr.bf16.mxu0 0
      %4157 = vmatmul.mubr.bf16.gmra.mrb[0].mxu0 %v3793
      %v4158 = vpop.f32.mrb[0].mxu0
      %v4159 = vadd.f32 %v3944, %v4158
      %v4160 = vpop.f32.mrb[0].mxu0
      %v4161 = vpop.f32.mrb[0].mxu0
      %v4162 = vadd.f32 %v3947, %v4161
      %v4163 = vpop.f32.mrb[0].mxu0
      %4164 = vmatprep.mubr.bf16.mxu0 0
      %4165 = vmatmul.mubr.bf16.gmra.mrb[0].mxu0 %v3794
      %v4166 = vpop.f32.mrb[0].mxu0
      %v4167 = vadd.f32 %v3952, %v4166
      %v4168 = vpop.f32.mrb[0].mxu0
      %v4169 = vpop.f32.mrb[0].mxu0
      %v4170 = vadd.f32 %v3955, %v4169
      %v4171 = vpop.f32.mrb[0].mxu0
      %4172 = vmatprep.mubr.bf16.mxu0 0
      %4173 = vmatmul.mubr.bf16.gmra.mrb[0].mxu0 %v3795
      %v4174 = vpop.f32.mrb[0].mxu0
      %v4175 = vadd.f32 %v3960, %v4174
      %v4176 = vpop.f32.mrb[0].mxu0
      %v4177 = vpop.f32.mrb[0].mxu0
      %v4178 = vadd.f32 %v3963, %v4177
      %v4179 = vpop.f32.mrb[0].mxu0
      %4180 = vmatprep.mubr.bf16.mxu0 0
      %4181 = vmatmul.mubr.bf16.gmra.mrb[0].mxu0 %v3796
      %v4182 = vpop.f32.mrb[0].mxu0
      %v4183 = vadd.f32 %v3968, %v4182
      %v4184 = vpop.f32.mrb[0].mxu0
      %v4185 = vpop.f32.mrb[0].mxu0
      %v4186 = vadd.f32 %v3971, %v4185
      %v4187 = vpop.f32.mrb[0].mxu0
      %4188 = vmatprep.mubr.bf16.mxu0 0
      %4189 = vmatmul.mubr.bf16.gmra.mrb[0].mxu0 %v3797
      %v4190 = vpop.f32.mrb[0].mxu0
      %v4191 = vadd.f32 %v3976, %v4190
      %v4192 = vpop.f32.mrb[0].mxu0
      %v4193 = vpop.f32.mrb[0].mxu0
      %v4194 = vadd.f32 %v3979, %v4193
      %v4195 = vpop.f32.mrb[0].mxu0
      %4196 = vmatprep.mubr.bf16.mxu0 0
      %4197 = vmatmul.mubr.bf16.gmra.mrb[0].mxu0 %v3798
      %v4198 = vpop.f32.mrb[0].mxu0
      %v4199 = vadd.f32 %v3984, %v4198
      %v4200 = vpop.f32.mrb[0].mxu0
      %v4201 = vpop.f32.mrb[0].mxu0
      %v4202 = vadd.f32 %v3987, %v4201
      %v4203 = vpop.f32.mrb[0].mxu0
      %4204 = vmatprep.mubr.bf16.mxu0 0
      %4205 = vmatmul.mubr.bf16.gmra.mrb[0].mxu0 %v3799
      %v4206 = vpop.f32.mrb[0].mxu0
      %v4207 = vadd.f32 %v3992, %v4206
      %v4208 = vpop.f32.mrb[0].mxu0
      %v4209 = vpop.f32.mrb[0].mxu0
      %v4210 = vadd.f32 %v3995, %v4209
      %v4211 = vpop.f32.mrb[0].mxu0
      %4212 = vmatprep.mubr.bf16.mxu0 0
      %4213 = vmatmul.mubr.bf16.gmra.mrb[0].mxu0 %v3800
      %v4214 = vpop.f32.mrb[0].mxu0
      %v4215 = vadd.f32 %v4000, %v4214
      %v4216 = vpop.f32.mrb[0].mxu0
      %v4217 = vpop.f32.mrb[0].mxu0
      %v4218 = vadd.f32 %v4003, %v4217
      %v4219 = vpop.f32.mrb[0].mxu0
      %4220 = vmatprep.mubr.bf16.mxu0 0
      %4221 = vmatmul.mubr.bf16.gmra.mrb[0].mxu0 %v3801
      %v4222 = vpop.f32.mrb[0].mxu0
      %v4223 = vadd.f32 %v4008, %v4222
      %v4224 = vpop.f32.mrb[0].mxu0
      %v4225 = vpop.f32.mrb[0].mxu0
      %v4226 = vadd.f32 %v4011, %v4225
      %v4227 = vpop.f32.mrb[0].mxu0
      %4228 = vmatprep.mubr.bf16.mxu0 0
      %4229 = vmatmul.mubr.bf16.gmra.mrb[0].mxu0 %v3802
      %v4230 = vpop.f32.mrb[0].mxu0
      %v4231 = vadd.f32 %v4016, %v4230
      %v4232 = vpop.f32.mrb[0].mxu0
      %v4233 = vpop.f32.mrb[0].mxu0
      %v4234 = vadd.f32 %v4019, %v4233
      %v4235 = vpop.f32.mrb[0].mxu0
      %4236 = vmatprep.mubr.bf16.mxu0 0
      %4237 = vmatmul.mubr.bf16.gmra.mrb[0].mxu0 %v3803
      %v4238 = vpop.f32.mrb[0].mxu0
      %v4239 = vadd.f32 %v4024, %v4238
      %v4240 = vpop.f32.mrb[0].mxu0
      %v4241 = vpop.f32.mrb[0].mxu0
      %v4242 = vadd.f32 %v4027, %v4241
      %v4243 = vpop.f32.mrb[0].mxu0
      %4244 = vdwg.mxu0
      %s4245 = scalar_lea.vmem %s3, 384
      %v4246 = vld [vmem:[%s4245] sm:$0xf]
      %v4247 = vld [vmem:[%s4245 + $0x4] sm:$0xf]
      %v4248 = vld [vmem:[%s4245 + $0x8] sm:$0xf]
      %v4249 = vld [vmem:[%s4245 + $0xc] sm:$0xf]
      %v4250 = vld [vmem:[%s4245 + $0x10] sm:$0xf]
      %v4251 = vld [vmem:[%s4245 + $0x14] sm:$0xf]
      %v4252 = vld [vmem:[%s4245 + $0x18] sm:$0xf]
      %v4253 = vld [vmem:[%s4245 + $0x1c] sm:$0xf]
      %v4254 = vld [vmem:[%s4245 + $0x20] sm:$0xf]
      %v4255 = vld [vmem:[%s4245 + $0x24] sm:$0xf]
      %v4256 = vld [vmem:[%s4245 + $0x28] sm:$0xf]
      %v4257 = vld [vmem:[%s4245 + $0x2c] sm:$0xf]
      %v4258 = vld [vmem:[%s4245 + $0x30] sm:$0xf]
      %v4259 = vld [vmem:[%s4245 + $0x34] sm:$0xf]
      %v4260 = vld [vmem:[%s4245 + $0x38] sm:$0xf]
      %v4261 = vld [vmem:[%s4245 + $0x3c] sm:$0xf]
      %v4264 = vunpack.c.l.b16 %v3689
      %v4265 = vunpack.c.l.b16 %v3690
      %v4266 = vpack.c.b16 %v4265, %v4264
      %v4284 = vunpack.c.l.b16 %v4246
      %v4285 = vunpack.c.l.b16 %v4247
      %v4286 = vunpack.c.l.b16 %v4248
      %v4287 = vunpack.c.l.b16 %v4249
      %v4288 = vunpack.c.l.b16 %v4250
      %v4289 = vunpack.c.l.b16 %v4251
      %v4290 = vunpack.c.l.b16 %v4252
      %v4291 = vunpack.c.l.b16 %v4253
      %v4292 = vunpack.c.l.b16 %v4254
      %v4293 = vunpack.c.l.b16 %v4255
      %v4294 = vunpack.c.l.b16 %v4256
      %v4295 = vunpack.c.l.b16 %v4257
      %v4296 = vunpack.c.l.b16 %v4258
      %v4297 = vunpack.c.l.b16 %v4259
      %v4298 = vunpack.c.l.b16 %v4260
      %v4299 = vunpack.c.l.b16 %v4261
      %v4300 = vpack.c.b16 %v4285, %v4284
      %v4301 = vpack.c.b16 %v4287, %v4286
      %v4302 = vpack.c.b16 %v4289, %v4288
      %v4303 = vpack.c.b16 %v4291, %v4290
      %v4304 = vpack.c.b16 %v4293, %v4292
      %v4305 = vpack.c.b16 %v4295, %v4294
      %v4306 = vpack.c.b16 %v4297, %v4296
      %v4307 = vpack.c.b16 %v4299, %v4298
      %4316 = vmatprep.subr.bf16.mxu0 0
      %4317 = vmatpush1.bf16.msra.mxu0 %v4300
      %4318 = vmatprep.subr.bf16.mxu0 0
      %4319 = vmatpush1.bf16.msra.mxu0 %v4301
      %4320 = vmatprep.subr.bf16.mxu0 0
      %4321 = vmatpush1.bf16.msra.mxu0 %v4302
      %4322 = vmatprep.subr.bf16.mxu0 0
      %4323 = vmatpush1.bf16.msra.mxu0 %v4303
      %4324 = vmatprep.subr.bf16.mxu0 0
      %4325 = vmatpush1.bf16.msra.mxu0 %v4304
      %4326 = vmatprep.subr.bf16.mxu0 0
      %4327 = vmatpush1.bf16.msra.mxu0 %v4305
      %4328 = vmatprep.subr.bf16.mxu0 0
      %4329 = vmatpush1.bf16.msra.mxu0 %v4306
      %4330 = vmatprep.subr.bf16.mxu0 0
      %4331 = vmatpush1.bf16.msra.mxu0 %v4307
      %4332 = vmatprep.subr.bf16.mxu0 0
      %4333 = vmatpush1.bf16.msra.mxu0 0
      %4334 = vmatprep.subr.bf16.mxu0 0
      %4335 = vmatpush1.bf16.msra.mxu0 0
      %4336 = vmatprep.subr.bf16.mxu0 0
      %4337 = vmatpush1.bf16.msra.mxu0 0
      %4338 = vmatprep.subr.bf16.mxu0 0
      %4339 = vmatpush1.bf16.msra.mxu0 0
      %4340 = vmatprep.subr.bf16.mxu0 0
      %4341 = vmatpush1.bf16.msra.mxu0 0
      %4342 = vmatprep.subr.bf16.mxu0 0
      %4343 = vmatpush1.bf16.msra.mxu0 0
      %4344 = vmatprep.subr.bf16.mxu0 0
      %4345 = vmatpush1.bf16.msra.mxu0 0
      %4346 = vmatprep.subr.bf16.mxu0 0
      %4347 = vmatpush1.bf16.msra.mxu0 0
      %4348 = vmatprep.mubr.bf16.mxu0 0
      %4349 = vmatmul.mubr.bf16.gmra.mrb[0].mxu0 %v3790
      %v4350 = vpop.f32.mrb[0].mxu0
      %v4351 = vadd.f32 0.0, %v4350
      %v4352 = vpop.f32.mrb[0].mxu0
      %v4353 = vpop.f32.mrb[0].mxu0
      %v4354 = vadd.f32 0.0, %v4353
      %v4355 = vpop.f32.mrb[0].mxu0
      %4356 = vmatprep.mubr.bf16.mxu0 0
      %4357 = vmatmul.mubr.bf16.gmra.mrb[0].mxu0 %v3791
      %v4358 = vpop.f32.mrb[0].mxu0
      %v4359 = vadd.f32 0.0, %v4358
      %v4360 = vpop.f32.mrb[0].mxu0
      %v4361 = vpop.f32.mrb[0].mxu0
      %v4362 = vadd.f32 0.0, %v4361
      %v4363 = vpop.f32.mrb[0].mxu0
      %4364 = vmatprep.mubr.bf16.mxu0 0
      %4365 = vmatmul.mubr.bf16.gmra.mrb[0].mxu0 %v3792
      %v4366 = vpop.f32.mrb[0].mxu0
      %v4367 = vadd.f32 0.0, %v4366
      %v4368 = vpop.f32.mrb[0].mxu0
      %v4369 = vpop.f32.mrb[0].mxu0
      %v4370 = vadd.f32 0.0, %v4369
      %v4371 = vpop.f32.mrb[0].mxu0
      %4372 = vmatprep.mubr.bf16.mxu0 0
      %4373 = vmatmul.mubr.bf16.gmra.mrb[0].mxu0 %v3793
      %v4374 = vpop.f32.mrb[0].mxu0
      %v4375 = vadd.f32 0.0, %v4374
      %v4376 = vpop.f32.mrb[0].mxu0
      %v4377 = vpop.f32.mrb[0].mxu0
      %v4378 = vadd.f32 0.0, %v4377
      %v4379 = vpop.f32.mrb[0].mxu0
      %4380 = vmatprep.mubr.bf16.mxu0 0
      %4381 = vmatmul.mubr.bf16.gmra.mrb[0].mxu0 %v3794
      %v4382 = vpop.f32.mrb[0].mxu0
      %v4383 = vadd.f32 0.0, %v4382
      %v4384 = vpop.f32.mrb[0].mxu0
      %v4385 = vpop.f32.mrb[0].mxu0
      %v4386 = vadd.f32 0.0, %v4385
      %v4387 = vpop.f32.mrb[0].mxu0
      %4388 = vmatprep.mubr.bf16.mxu0 0
      %4389 = vmatmul.mubr.bf16.gmra.mrb[0].mxu0 %v3795
      %v4390 = vpop.f32.mrb[0].mxu0
      %v4391 = vadd.f32 0.0, %v4390
      %v4392 = vpop.f32.mrb[0].mxu0
      %v4393 = vpop.f32.mrb[0].mxu0
      %v4394 = vadd.f32 0.0, %v4393
      %v4395 = vpop.f32.mrb[0].mxu0
      %4396 = vmatprep.mubr.bf16.mxu0 0
      %4397 = vmatmul.mubr.bf16.gmra.mrb[0].mxu0 %v3796
      %v4398 = vpop.f32.mrb[0].mxu0
      %v4399 = vadd.f32 0.0, %v4398
      %v4400 = vpop.f32.mrb[0].mxu0
      %v4401 = vpop.f32.mrb[0].mxu0
      %v4402 = vadd.f32 0.0, %v4401
      %v4403 = vpop.f32.mrb[0].mxu0
      %4404 = vmatprep.mubr.bf16.mxu0 0
      %4405 = vmatmul.mubr.bf16.gmra.mrb[0].mxu0 %v3797
      %v4406 = vpop.f32.mrb[0].mxu0
      %v4407 = vadd.f32 0.0, %v4406
      %v4408 = vpop.f32.mrb[0].mxu0
      %v4409 = vpop.f32.mrb[0].mxu0
      %v4410 = vadd.f32 0.0, %v4409
      %v4411 = vpop.f32.mrb[0].mxu0
      %4412 = vmatprep.mubr.bf16.mxu0 0
      %4413 = vmatmul.mubr.bf16.gmra.mrb[0].mxu0 %v3798
      %v4414 = vpop.f32.mrb[0].mxu0
      %v4415 = vadd.f32 0.0, %v4414
      %v4416 = vpop.f32.mrb[0].mxu0
      %v4417 = vpop.f32.mrb[0].mxu0
      %v4418 = vadd.f32 0.0, %v4417
      %v4419 = vpop.f32.mrb[0].mxu0
      %4420 = vmatprep.mubr.bf16.mxu0 0
      %4421 = vmatmul.mubr.bf16.gmra.mrb[0].mxu0 %v3799
      %v4422 = vpop.f32.mrb[0].mxu0
      %v4423 = vadd.f32 0.0, %v4422
      %v4424 = vpop.f32.mrb[0].mxu0
      %v4425 = vpop.f32.mrb[0].mxu0
      %v4426 = vadd.f32 0.0, %v4425
      %v4427 = vpop.f32.mrb[0].mxu0
      %4428 = vmatprep.mubr.bf16.mxu0 0
      %4429 = vmatmul.mubr.bf16.gmra.mrb[0].mxu0 %v3800
      %v4430 = vpop.f32.mrb[0].mxu0
      %v4431 = vadd.f32 0.0, %v4430
      %v4432 = vpop.f32.mrb[0].mxu0
      %v4433 = vpop.f32.mrb[0].mxu0
      %v4434 = vadd.f32 0.0, %v4433
      %v4435 = vpop.f32.mrb[0].mxu0
      %4436 = vmatprep.mubr.bf16.mxu0 0
      %4437 = vmatmul.mubr.bf16.gmra.mrb[0].mxu0 %v3801
      %v4438 = vpop.f32.mrb[0].mxu0
      %v4439 = vadd.f32 0.0, %v4438
      %v4440 = vpop.f32.mrb[0].mxu0
      %v4441 = vpop.f32.mrb[0].mxu0
      %v4442 = vadd.f32 0.0, %v4441
      %v4443 = vpop.f32.mrb[0].mxu0
      %4444 = vmatprep.mubr.bf16.mxu0 0
      %4445 = vmatmul.mubr.bf16.gmra.mrb[0].mxu0 %v3802
      %v4446 = vpop.f32.mrb[0].mxu0
      %v4447 = vadd.f32 0.0, %v4446
      %v4448 = vpop.f32.mrb[0].mxu0
      %v4449 = vpop.f32.mrb[0].mxu0
      %v4450 = vadd.f32 0.0, %v4449
      %v4451 = vpop.f32.mrb[0].mxu0
      %4452 = vmatprep.mubr.bf16.mxu0 0
      %4453 = vmatmul.mubr.bf16.gmra.mrb[0].mxu0 %v3803
      %v4454 = vpop.f32.mrb[0].mxu0
      %v4455 = vadd.f32 0.0, %v4454
      %v4456 = vpop.f32.mrb[0].mxu0
      %v4457 = vpop.f32.mrb[0].mxu0
      %v4458 = vadd.f32 0.0, %v4457
      %v4459 = vpop.f32.mrb[0].mxu0
      %4460 = vmatprep.mubr.bf16.mxu0 0
      %4461 = vmatmul.mubr.bf16.gmra.mrb[0].mxu0 %v3804
      %v4462 = vpop.f32.mrb[0].mxu0
      %v4463 = vadd.f32 0.0, %v4462
      %v4464 = vpop.f32.mrb[0].mxu0
      %v4465 = vpop.f32.mrb[0].mxu0
      %v4466 = vadd.f32 0.0, %v4465
      %v4467 = vpop.f32.mrb[0].mxu0
      %4468 = vmatprep.mubr.bf16.mxu0 0
      %4469 = vmatmul.mubr.bf16.gmra.mrb[0].mxu0 %v4266
      %v4470 = vpop.f32.mrb[0].mxu0
      %v4471 = vadd.f32 0.0, %v4470
      %v4472 = vpop.f32.mrb[0].mxu0
      %v4473 = vpop.f32.mrb[0].mxu0
      %v4474 = vadd.f32 0.0, %v4473
      %v4475 = vpop.f32.mrb[0].mxu0
      %4476 = vdwg.mxu0
      %v4477 = vadd.f32 %v4119, %v4351
      %v4478 = vadd.f32 %v4122, %v4354
      %v4479 = vadd.f32 %v4127, %v4359
      %v4480 = vadd.f32 %v4130, %v4362
      %v4481 = vadd.f32 %v4135, %v4367
      %v4482 = vadd.f32 %v4138, %v4370
      %v4483 = vadd.f32 %v4143, %v4375
      %v4484 = vadd.f32 %v4146, %v4378
      %v4485 = vadd.f32 %v4151, %v4383
      %v4486 = vadd.f32 %v4154, %v4386
      %v4487 = vadd.f32 %v4159, %v4391
      %v4488 = vadd.f32 %v4162, %v4394
      %v4489 = vadd.f32 %v4167, %v4399
      %v4490 = vadd.f32 %v4170, %v4402
      %v4491 = vadd.f32 %v4175, %v4407
      %v4492 = vadd.f32 %v4178, %v4410
      %v4493 = vadd.f32 %v4183, %v4415
      %v4494 = vadd.f32 %v4186, %v4418
      %v4495 = vadd.f32 %v4191, %v4423
      %v4496 = vadd.f32 %v4194, %v4426
      %v4497 = vadd.f32 %v4199, %v4431
      %v4498 = vadd.f32 %v4202, %v4434
      %v4499 = vadd.f32 %v4207, %v4439
      %v4500 = vadd.f32 %v4210, %v4442
      %v4501 = vadd.f32 %v4215, %v4447
      %v4502 = vadd.f32 %v4218, %v4450
      %v4503 = vadd.f32 %v4223, %v4455
      %v4504 = vadd.f32 %v4226, %v4458
      %v4505 = vadd.f32 %v4231, %v4463
      %v4506 = vadd.f32 %v4234, %v4466
      %v4507 = vadd.f32 %v4239, %v4471
      %v4508 = vadd.f32 %v4242, %v4474
      %v4510 = vshrl.u32 %v3638, 16
      %v4512 = vrot.slane %v4510, 4
      %v4513 = vshll.u32 %v3638, 16
      %v4515 = vrot.slane %v4513, 5
      %v4516 = vor.u32 %v4512, %v4515
      %v4517 = vrot.slane %v4516, 4
      %v4519 = vshll.u32 %v3639, 16
      %v4521 = vrot.slane %v4519, 5
      %v4522 = vsel %vm957, %v4517, %v4521
      %v4523 = vshrl.u32 %v3639, 16
      %v4525 = vrot.slane %v4523, 4
      %v4526 = vor.u32 %v4525, %v4521
      %v4527 = vrot.slane %v4526, 4
      %v4529 = vshll.u32 %v3640, 16
      %v4531 = vrot.slane %v4529, 5
      %v4532 = vsel %vm957, %v4527, %v4531
      %v4534 = vshrl.u32 %v3641, 16
      %v4536 = vrot.slane %v4534, 4
      %v4537 = vshll.u32 %v3641, 16
      %v4539 = vrot.slane %v4537, 5
      %v4540 = vor.u32 %v4536, %v4539
      %v4541 = vrot.slane %v4540, 4
      %v4543 = vshll.u32 %v3642, 16
      %v4545 = vrot.slane %v4543, 5
      %v4546 = vsel %vm957, %v4541, %v4545
      %v4547 = vshrl.u32 %v3642, 16
      %v4549 = vrot.slane %v4547, 4
      %v4550 = vor.u32 %v4549, %v4545
      %v4551 = vrot.slane %v4550, 4
      %v4553 = vshll.u32 %v3643, 16
      %v4555 = vrot.slane %v4553, 5
      %v4556 = vsel %vm957, %v4551, %v4555
      %v4558 = vshrl.u32 %v3644, 16
      %v4560 = vrot.slane %v4558, 4
      %v4561 = vshll.u32 %v3644, 16
      %v4563 = vrot.slane %v4561, 5
      %v4564 = vor.u32 %v4560, %v4563
      %v4565 = vrot.slane %v4564, 4
      %v4567 = vshll.u32 %v3645, 16
      %v4569 = vrot.slane %v4567, 5
      %v4570 = vsel %vm957, %v4565, %v4569
      %v4571 = vshrl.u32 %v3645, 16
      %v4573 = vrot.slane %v4571, 4
      %v4574 = vor.u32 %v4573, %v4569
      %v4575 = vrot.slane %v4574, 4
      %v4577 = vshll.u32 %v3646, 16
      %v4579 = vrot.slane %v4577, 5
      %v4580 = vsel %vm957, %v4575, %v4579
      %v4582 = vshrl.u32 %v3647, 16
      %v4584 = vrot.slane %v4582, 4
      %v4585 = vshll.u32 %v3647, 16
      %v4587 = vrot.slane %v4585, 5
      %v4588 = vor.u32 %v4584, %v4587
      %v4589 = vrot.slane %v4588, 4
      %v4591 = vshll.u32 %v3648, 16
      %v4593 = vrot.slane %v4591, 5
      %v4594 = vsel %vm957, %v4589, %v4593
      %v4595 = vshrl.u32 %v3648, 16
      %v4597 = vrot.slane %v4595, 4
      %v4598 = vor.u32 %v4597, %v4593
      %v4599 = vrot.slane %v4598, 4
      %v4601 = vshll.u32 %v3649, 16
      %v4603 = vrot.slane %v4601, 5
      %v4604 = vsel %vm957, %v4599, %v4603
      %v4606 = vshrl.u32 %v3650, 16
      %v4608 = vrot.slane %v4606, 4
      %v4609 = vshll.u32 %v3650, 16
      %v4611 = vrot.slane %v4609, 5
      %v4612 = vor.u32 %v4608, %v4611
      %v4613 = vrot.slane %v4612, 4
      %v4615 = vshll.u32 %v3651, 16
      %v4617 = vrot.slane %v4615, 5
      %v4618 = vsel %vm957, %v4613, %v4617
      %v4619 = vshrl.u32 %v3651, 16
      %v4621 = vrot.slane %v4619, 4
      %v4622 = vor.u32 %v4621, %v4617
      %v4623 = vrot.slane %v4622, 4
      %v4625 = vshll.u32 %v3652, 16
      %v4627 = vrot.slane %v4625, 5
      %v4628 = vsel %vm957, %v4623, %v4627
      %v4630 = vshrl.u32 %v3653, 16
      %v4632 = vrot.slane %v4630, 4
      %v4633 = vshll.u32 %v3653, 16
      %v4635 = vrot.slane %v4633, 5
      %v4636 = vor.u32 %v4632, %v4635
      %v4637 = vrot.slane %v4636, 4
      %v4639 = vshll.u32 %v3654, 16
      %v4641 = vrot.slane %v4639, 5
      %v4642 = vsel %vm957, %v4637, %v4641
      %v4643 = vshrl.u32 %v3654, 16
      %v4645 = vrot.slane %v4643, 4
      %v4646 = vor.u32 %v4645, %v4641
      %v4647 = vrot.slane %v4646, 4
      %v4649 = vshll.u32 %v3655, 16
      %v4651 = vrot.slane %v4649, 5
      %v4652 = vsel %vm957, %v4647, %v4651
      %v4654 = vshrl.u32 %v3656, 16
      %v4656 = vrot.slane %v4654, 4
      %v4657 = vshll.u32 %v3656, 16
      %v4659 = vrot.slane %v4657, 5
      %v4660 = vor.u32 %v4656, %v4659
      %v4661 = vrot.slane %v4660, 4
      %v4663 = vshll.u32 %v3657, 16
      %v4665 = vrot.slane %v4663, 5
      %v4666 = vsel %vm957, %v4661, %v4665
      %v4667 = vshrl.u32 %v3657, 16
      %v4669 = vrot.slane %v4667, 4
      %v4670 = vor.u32 %v4669, %v4665
      %v4671 = vrot.slane %v4670, 4
      %v4673 = vshll.u32 %v3658, 16
      %v4675 = vrot.slane %v4673, 5
      %v4676 = vsel %vm957, %v4671, %v4675
      %v4678 = vshrl.u32 %v3659, 16
      %v4680 = vrot.slane %v4678, 4
      %v4681 = vshll.u32 %v3659, 16
      %v4683 = vrot.slane %v4681, 5
      %v4684 = vor.u32 %v4680, %v4683
      %v4685 = vrot.slane %v4684, 4
      %v4687 = vshll.u32 %v3660, 16
      %v4689 = vrot.slane %v4687, 5
      %v4690 = vsel %vm957, %v4685, %v4689
      %v4691 = vshrl.u32 %v3660, 16
      %v4693 = vrot.slane %v4691, 4
      %v4694 = vor.u32 %v4693, %v4689
      %v4695 = vrot.slane %v4694, 4
      %v4697 = vshll.u32 %v3661, 16
      %v4699 = vrot.slane %v4697, 5
      %v4700 = vsel %vm957, %v4695, %v4699
      %v4702 = vshrl.u32 %v3662, 16
      %v4704 = vrot.slane %v4702, 4
      %v4705 = vshll.u32 %v3662, 16
      %v4707 = vrot.slane %v4705, 5
      %v4708 = vor.u32 %v4704, %v4707
      %v4709 = vrot.slane %v4708, 4
      %v4711 = vshll.u32 %v3663, 16
      %v4713 = vrot.slane %v4711, 5
      %v4714 = vsel %vm957, %v4709, %v4713
      %v4715 = vshrl.u32 %v3663, 16
      %v4717 = vrot.slane %v4715, 4
      %v4718 = vor.u32 %v4717, %v4713
      %v4719 = vrot.slane %v4718, 4
      %v4721 = vshll.u32 %v3664, 16
      %v4723 = vrot.slane %v4721, 5
      %v4724 = vsel %vm957, %v4719, %v4723
      %v4726 = vshrl.u32 %v3665, 16
      %v4728 = vrot.slane %v4726, 4
      %v4729 = vshll.u32 %v3665, 16
      %v4731 = vrot.slane %v4729, 5
      %v4732 = vor.u32 %v4728, %v4731
      %v4733 = vrot.slane %v4732, 4
      %v4735 = vshll.u32 %v3666, 16
      %v4737 = vrot.slane %v4735, 5
      %v4738 = vsel %vm957, %v4733, %v4737
      %v4739 = vshrl.u32 %v3666, 16
      %v4741 = vrot.slane %v4739, 4
      %v4742 = vor.u32 %v4741, %v4737
      %v4743 = vrot.slane %v4742, 4
      %v4745 = vshll.u32 %v3667, 16
      %v4747 = vrot.slane %v4745, 5
      %v4748 = vsel %vm957, %v4743, %v4747
      %v4750 = vshrl.u32 %v3668, 16
      %v4752 = vrot.slane %v4750, 4
      %v4753 = vshll.u32 %v3668, 16
      %v4755 = vrot.slane %v4753, 5
      %v4756 = vor.u32 %v4752, %v4755
      %v4757 = vrot.slane %v4756, 4
      %v4759 = vshll.u32 %v3669, 16
      %v4761 = vrot.slane %v4759, 5
      %v4762 = vsel %vm957, %v4757, %v4761
      %v4763 = vshrl.u32 %v3669, 16
      %v4765 = vrot.slane %v4763, 4
      %v4766 = vor.u32 %v4765, %v4761
      %v4767 = vrot.slane %v4766, 4
      %v4769 = vshll.u32 %v3670, 16
      %v4771 = vrot.slane %v4769, 5
      %v4772 = vsel %vm957, %v4767, %v4771
      %v4774 = vshrl.u32 %v3671, 16
      %v4776 = vrot.slane %v4774, 4
      %v4777 = vshll.u32 %v3671, 16
      %v4779 = vrot.slane %v4777, 5
      %v4780 = vor.u32 %v4776, %v4779
      %v4781 = vrot.slane %v4780, 4
      %v4783 = vshll.u32 %v3672, 16
      %v4785 = vrot.slane %v4783, 5
      %v4786 = vsel %vm957, %v4781, %v4785
      %v4787 = vshrl.u32 %v3672, 16
      %v4789 = vrot.slane %v4787, 4
      %v4790 = vor.u32 %v4789, %v4785
      %v4791 = vrot.slane %v4790, 4
      %v4793 = vshll.u32 %v3673, 16
      %v4795 = vrot.slane %v4793, 5
      %v4796 = vsel %vm957, %v4791, %v4795
      %v4798 = vshrl.u32 %v3674, 16
      %v4800 = vrot.slane %v4798, 4
      %v4801 = vshll.u32 %v3674, 16
      %v4803 = vrot.slane %v4801, 5
      %v4804 = vor.u32 %v4800, %v4803
      %v4805 = vrot.slane %v4804, 4
      %v4807 = vshll.u32 %v3675, 16
      %v4809 = vrot.slane %v4807, 5
      %v4810 = vsel %vm957, %v4805, %v4809
      %v4811 = vshrl.u32 %v3675, 16
      %v4813 = vrot.slane %v4811, 4
      %v4814 = vor.u32 %v4813, %v4809
      %v4815 = vrot.slane %v4814, 4
      %v4817 = vshll.u32 %v3676, 16
      %v4819 = vrot.slane %v4817, 5
      %v4820 = vsel %vm957, %v4815, %v4819
      %v4822 = vshrl.u32 %v3677, 16
      %v4824 = vrot.slane %v4822, 4
      %v4825 = vshll.u32 %v3677, 16
      %v4827 = vrot.slane %v4825, 5
      %v4828 = vor.u32 %v4824, %v4827
      %v4829 = vrot.slane %v4828, 4
      %v4831 = vshll.u32 %v3678, 16
      %v4833 = vrot.slane %v4831, 5
      %v4834 = vsel %vm957, %v4829, %v4833
      %v4835 = vshrl.u32 %v3678, 16
      %v4837 = vrot.slane %v4835, 4
      %v4838 = vor.u32 %v4837, %v4833
      %v4839 = vrot.slane %v4838, 4
      %v4841 = vshll.u32 %v3679, 16
      %v4843 = vrot.slane %v4841, 5
      %v4844 = vsel %vm957, %v4839, %v4843
      %v4846 = vshrl.u32 %v3680, 16
      %v4848 = vrot.slane %v4846, 4
      %v4849 = vshll.u32 %v3680, 16
      %v4851 = vrot.slane %v4849, 5
      %v4852 = vor.u32 %v4848, %v4851
      %v4853 = vrot.slane %v4852, 4
      %v4855 = vshll.u32 %v3681, 16
      %v4857 = vrot.slane %v4855, 5
      %v4858 = vsel %vm957, %v4853, %v4857
      %v4859 = vshrl.u32 %v3681, 16
      %v4861 = vrot.slane %v4859, 4
      %v4862 = vor.u32 %v4861, %v4857
      %v4863 = vrot.slane %v4862, 4
      %v4865 = vshll.u32 %v3682, 16
      %v4867 = vrot.slane %v4865, 5
      %v4868 = vsel %vm957, %v4863, %v4867
      %v4870 = vshrl.u32 %v3683, 16
      %v4872 = vrot.slane %v4870, 4
      %v4873 = vshll.u32 %v3683, 16
      %v4875 = vrot.slane %v4873, 5
      %v4876 = vor.u32 %v4872, %v4875
      %v4877 = vrot.slane %v4876, 4
      %v4879 = vshll.u32 %v3684, 16
      %v4881 = vrot.slane %v4879, 5
      %v4882 = vsel %vm957, %v4877, %v4881
      %v4883 = vshrl.u32 %v3684, 16
      %v4885 = vrot.slane %v4883, 4
      %v4886 = vor.u32 %v4885, %v4881
      %v4887 = vrot.slane %v4886, 4
      %v4889 = vshll.u32 %v3685, 16
      %v4891 = vrot.slane %v4889, 5
      %v4892 = vsel %vm957, %v4887, %v4891
      %v4894 = vshrl.u32 %v3686, 16
      %v4896 = vrot.slane %v4894, 4
      %v4897 = vshll.u32 %v3686, 16
      %v4899 = vrot.slane %v4897, 5
      %v4900 = vor.u32 %v4896, %v4899
      %v4901 = vrot.slane %v4900, 4
      %v4903 = vshll.u32 %v3687, 16
      %v4905 = vrot.slane %v4903, 5
      %v4906 = vsel %vm957, %v4901, %v4905
      %v4907 = vshrl.u32 %v3687, 16
      %v4909 = vrot.slane %v4907, 4
      %v4910 = vor.u32 %v4909, %v4905
      %v4911 = vrot.slane %v4910, 4
      %v4913 = vshll.u32 %v3688, 16
      %v4915 = vrot.slane %v4913, 5
      %v4916 = vsel %vm957, %v4911, %v4915
      %v4918 = vshrl.u32 %v3689, 16
      %v4920 = vrot.slane %v4918, 4
      %v4921 = vshll.u32 %v3689, 16
      %v4923 = vrot.slane %v4921, 5
      %v4924 = vor.u32 %v4920, %v4923
      %v4925 = vrot.slane %v4924, 4
      %v4927 = vshll.u32 %v3690, 16
      %v4929 = vrot.slane %v4927, 5
      %v4930 = vsel %vm957, %v4925, %v4929
      %v4931 = vshrl.u32 %v3690, 16
      %v4933 = vrot.slane %v4931, 4
      %v4934 = vor.u32 %v4933, %v4929
      %v4935 = vrot.slane %v4934, 4
      %v4937 = vshll.u32 %v3691, 16
      %v4939 = vrot.slane %v4937, 5
      %v4940 = vsel %vm957, %v4935, %v4939
      %s4941 = scalar_lea.vmem %s3, 64
      %v4942 = vld [vmem:[%s4941] sm:$0xf]
      %v4943 = vld [vmem:[%s4941 + $0x4] sm:$0xf]
      %v4944 = vld [vmem:[%s4941 + $0x8] sm:$0xf]
      %v4945 = vld [vmem:[%s4941 + $0xc] sm:$0xf]
      %v4946 = vld [vmem:[%s4941 + $0x10] sm:$0xf]
      %v4947 = vld [vmem:[%s4941 + $0x14] sm:$0xf]
      %v4948 = vld [vmem:[%s4941 + $0x18] sm:$0xf]
      %v4949 = vld [vmem:[%s4941 + $0x1c] sm:$0xf]
      %v4950 = vld [vmem:[%s4941 + $0x20] sm:$0xf]
      %v4951 = vld [vmem:[%s4941 + $0x24] sm:$0xf]
      %v4952 = vld [vmem:[%s4941 + $0x28] sm:$0xf]
      %v4953 = vld [vmem:[%s4941 + $0x2c] sm:$0xf]
      %v4954 = vld [vmem:[%s4941 + $0x30] sm:$0xf]
      %v4955 = vld [vmem:[%s4941 + $0x34] sm:$0xf]
      %v4956 = vld [vmem:[%s4941 + $0x38] sm:$0xf]
      %v4957 = vld [vmem:[%s4941 + $0x3c] sm:$0xf]
      %v4958 = vunpack.c.l.b16 %v4522
      %v4959 = vunpack.c.l.b16 %v4532
      %v4960 = vunpack.c.l.b16 %v4546
      %v4961 = vunpack.c.l.b16 %v4556
      %v4962 = vunpack.c.l.b16 %v4570
      %v4963 = vunpack.c.l.b16 %v4580
      %v4964 = vunpack.c.l.b16 %v4594
      %v4965 = vunpack.c.l.b16 %v4604
      %v4966 = vunpack.c.l.b16 %v4618
      %v4967 = vunpack.c.l.b16 %v4628
      %v4968 = vunpack.c.l.b16 %v4642
      %v4969 = vunpack.c.l.b16 %v4652
      %v4970 = vunpack.c.l.b16 %v4666
      %v4971 = vunpack.c.l.b16 %v4676
      %v4972 = vunpack.c.l.b16 %v4690
      %v4973 = vunpack.c.l.b16 %v4700
      %v4974 = vunpack.c.l.b16 %v4714
      %v4975 = vunpack.c.l.b16 %v4724
      %v4976 = vunpack.c.l.b16 %v4738
      %v4977 = vunpack.c.l.b16 %v4748
      %v4978 = vunpack.c.l.b16 %v4762
      %v4979 = vunpack.c.l.b16 %v4772
      %v4980 = vunpack.c.l.b16 %v4786
      %v4981 = vunpack.c.l.b16 %v4796
      %v4982 = vunpack.c.l.b16 %v4810
      %v4983 = vunpack.c.l.b16 %v4820
      %v4984 = vunpack.c.l.b16 %v4834
      %v4985 = vunpack.c.l.b16 %v4844
      %v4986 = vunpack.c.l.b16 %v4858
      %v4987 = vunpack.c.l.b16 %v4868
      %v4988 = vunpack.c.l.b16 %v4882
      %v4989 = vunpack.c.l.b16 %v4892
      %v4990 = vpack.c.b16 %v4959, %v4958
      %v4991 = vpack.c.b16 %v4961, %v4960
      %v4992 = vpack.c.b16 %v4963, %v4962
      %v4993 = vpack.c.b16 %v4965, %v4964
      %v4994 = vpack.c.b16 %v4967, %v4966
      %v4995 = vpack.c.b16 %v4969, %v4968
      %v4996 = vpack.c.b16 %v4971, %v4970
      %v4997 = vpack.c.b16 %v4973, %v4972
      %v4998 = vpack.c.b16 %v4975, %v4974
      %v4999 = vpack.c.b16 %v4977, %v4976
      %v5000 = vpack.c.b16 %v4979, %v4978
      %v5001 = vpack.c.b16 %v4981, %v4980
      %v5002 = vpack.c.b16 %v4983, %v4982
      %v5003 = vpack.c.b16 %v4985, %v4984
      %v5004 = vpack.c.b16 %v4987, %v4986
      %v5005 = vpack.c.b16 %v4989, %v4988
      %v5038 = vunpack.c.l.b16 %v4942
      %v5039 = vunpack.c.l.b16 %v4943
      %v5040 = vunpack.c.l.b16 %v4944
      %v5041 = vunpack.c.l.b16 %v4945
      %v5042 = vunpack.c.l.b16 %v4946
      %v5043 = vunpack.c.l.b16 %v4947
      %v5044 = vunpack.c.l.b16 %v4948
      %v5045 = vunpack.c.l.b16 %v4949
      %v5046 = vunpack.c.l.b16 %v4950
      %v5047 = vunpack.c.l.b16 %v4951
      %v5048 = vunpack.c.l.b16 %v4952
      %v5049 = vunpack.c.l.b16 %v4953
      %v5050 = vunpack.c.l.b16 %v4954
      %v5051 = vunpack.c.l.b16 %v4955
      %v5052 = vunpack.c.l.b16 %v4956
      %v5053 = vunpack.c.l.b16 %v4957
      %v5054 = vpack.c.b16 %v5039, %v5038
      %v5055 = vpack.c.b16 %v5041, %v5040
      %v5056 = vpack.c.b16 %v5043, %v5042
      %v5057 = vpack.c.b16 %v5045, %v5044
      %v5058 = vpack.c.b16 %v5047, %v5046
      %v5059 = vpack.c.b16 %v5049, %v5048
      %v5060 = vpack.c.b16 %v5051, %v5050
      %v5061 = vpack.c.b16 %v5053, %v5052
      %5070 = vmatprep.subr.bf16.mxu0 0
      %5071 = vmatpush1.bf16.msra.mxu0 %v5054
      %5072 = vmatprep.subr.bf16.mxu0 0
      %5073 = vmatpush1.bf16.msra.mxu0 %v5055
      %5074 = vmatprep.subr.bf16.mxu0 0
      %5075 = vmatpush1.bf16.msra.mxu0 %v5056
      %5076 = vmatprep.subr.bf16.mxu0 0
      %5077 = vmatpush1.bf16.msra.mxu0 %v5057
      %5078 = vmatprep.subr.bf16.mxu0 0
      %5079 = vmatpush1.bf16.msra.mxu0 %v5058
      %5080 = vmatprep.subr.bf16.mxu0 0
      %5081 = vmatpush1.bf16.msra.mxu0 %v5059
      %5082 = vmatprep.subr.bf16.mxu0 0
      %5083 = vmatpush1.bf16.msra.mxu0 %v5060
      %5084 = vmatprep.subr.bf16.mxu0 0
      %5085 = vmatpush1.bf16.msra.mxu0 %v5061
      %5086 = vmatprep.subr.bf16.mxu0 0
      %5087 = vmatpush1.bf16.msra.mxu0 0
      %5088 = vmatprep.subr.bf16.mxu0 0
      %5089 = vmatpush1.bf16.msra.mxu0 0
      %5090 = vmatprep.subr.bf16.mxu0 0
      %5091 = vmatpush1.bf16.msra.mxu0 0
      %5092 = vmatprep.subr.bf16.mxu0 0
      %5093 = vmatpush1.bf16.msra.mxu0 0
      %5094 = vmatprep.subr.bf16.mxu0 0
      %5095 = vmatpush1.bf16.msra.mxu0 0
      %5096 = vmatprep.subr.bf16.mxu0 0
      %5097 = vmatpush1.bf16.msra.mxu0 0
      %5098 = vmatprep.subr.bf16.mxu0 0
      %5099 = vmatpush1.bf16.msra.mxu0 0
      %5100 = vmatprep.subr.bf16.mxu0 0
      %5101 = vmatpush1.bf16.msra.mxu0 0
      %5102 = vmatprep.mubr.bf16.mxu0 0
      %5103 = vmatmul.mubr.bf16.gmra.mrb[0].mxu0 %v4990
      %v5104 = vpop.f32.mrb[0].mxu0
      %v5105 = vadd.f32 0.0, %v5104
      %v5106 = vpop.f32.mrb[0].mxu0
      %v5107 = vpop.f32.mrb[0].mxu0
      %v5108 = vadd.f32 0.0, %v5107
      %v5109 = vpop.f32.mrb[0].mxu0
      %5110 = vmatprep.mubr.bf16.mxu0 0
      %5111 = vmatmul.mubr.bf16.gmra.mrb[0].mxu0 %v4991
      %v5112 = vpop.f32.mrb[0].mxu0
      %v5113 = vadd.f32 0.0, %v5112
      %v5114 = vpop.f32.mrb[0].mxu0
      %v5115 = vpop.f32.mrb[0].mxu0
      %v5116 = vadd.f32 0.0, %v5115
      %v5117 = vpop.f32.mrb[0].mxu0
      %5118 = vmatprep.mubr.bf16.mxu0 0
      %5119 = vmatmul.mubr.bf16.gmra.mrb[0].mxu0 %v4992
      %v5120 = vpop.f32.mrb[0].mxu0
      %v5121 = vadd.f32 0.0, %v5120
      %v5122 = vpop.f32.mrb[0].mxu0
      %v5123 = vpop.f32.mrb[0].mxu0
      %v5124 = vadd.f32 0.0, %v5123
      %v5125 = vpop.f32.mrb[0].mxu0
      %5126 = vmatprep.mubr.bf16.mxu0 0
      %5127 = vmatmul.mubr.bf16.gmra.mrb[0].mxu0 %v4993
      %v5128 = vpop.f32.mrb[0].mxu0
      %v5129 = vadd.f32 0.0, %v5128
      %v5130 = vpop.f32.mrb[0].mxu0
      %v5131 = vpop.f32.mrb[0].mxu0
      %v5132 = vadd.f32 0.0, %v5131
      %v5133 = vpop.f32.mrb[0].mxu0
      %5134 = vmatprep.mubr.bf16.mxu0 0
      %5135 = vmatmul.mubr.bf16.gmra.mrb[0].mxu0 %v4994
      %v5136 = vpop.f32.mrb[0].mxu0
      %v5137 = vadd.f32 0.0, %v5136
      %v5138 = vpop.f32.mrb[0].mxu0
      %v5139 = vpop.f32.mrb[0].mxu0
      %v5140 = vadd.f32 0.0, %v5139
      %v5141 = vpop.f32.mrb[0].mxu0
      %5142 = vmatprep.mubr.bf16.mxu0 0
      %5143 = vmatmul.mubr.bf16.gmra.mrb[0].mxu0 %v4995
      %v5144 = vpop.f32.mrb[0].mxu0
      %v5145 = vadd.f32 0.0, %v5144
      %v5146 = vpop.f32.mrb[0].mxu0
      %v5147 = vpop.f32.mrb[0].mxu0
      %v5148 = vadd.f32 0.0, %v5147
      %v5149 = vpop.f32.mrb[0].mxu0
      %5150 = vmatprep.mubr.bf16.mxu0 0
      %5151 = vmatmul.mubr.bf16.gmra.mrb[0].mxu0 %v4996
      %v5152 = vpop.f32.mrb[0].mxu0
      %v5153 = vadd.f32 0.0, %v5152
      %v5154 = vpop.f32.mrb[0].mxu0
      %v5155 = vpop.f32.mrb[0].mxu0
      %v5156 = vadd.f32 0.0, %v5155
      %v5157 = vpop.f32.mrb[0].mxu0
      %5158 = vmatprep.mubr.bf16.mxu0 0
      %5159 = vmatmul.mubr.bf16.gmra.mrb[0].mxu0 %v4997
      %v5160 = vpop.f32.mrb[0].mxu0
      %v5161 = vadd.f32 0.0, %v5160
      %v5162 = vpop.f32.mrb[0].mxu0
      %v5163 = vpop.f32.mrb[0].mxu0
      %v5164 = vadd.f32 0.0, %v5163
      %v5165 = vpop.f32.mrb[0].mxu0
      %5166 = vmatprep.mubr.bf16.mxu0 0
      %5167 = vmatmul.mubr.bf16.gmra.mrb[0].mxu0 %v4998
      %v5168 = vpop.f32.mrb[0].mxu0
      %v5169 = vadd.f32 0.0, %v5168
      %v5170 = vpop.f32.mrb[0].mxu0
      %v5171 = vpop.f32.mrb[0].mxu0
      %v5172 = vadd.f32 0.0, %v5171
      %v5173 = vpop.f32.mrb[0].mxu0
      %5174 = vmatprep.mubr.bf16.mxu0 0
      %5175 = vmatmul.mubr.bf16.gmra.mrb[0].mxu0 %v4999
      %v5176 = vpop.f32.mrb[0].mxu0
      %v5177 = vadd.f32 0.0, %v5176
      %v5178 = vpop.f32.mrb[0].mxu0
      %v5179 = vpop.f32.mrb[0].mxu0
      %v5180 = vadd.f32 0.0, %v5179
      %v5181 = vpop.f32.mrb[0].mxu0
      %5182 = vmatprep.mubr.bf16.mxu0 0
      %5183 = vmatmul.mubr.bf16.gmra.mrb[0].mxu0 %v5000
      %v5184 = vpop.f32.mrb[0].mxu0
      %v5185 = vadd.f32 0.0, %v5184
      %v5186 = vpop.f32.mrb[0].mxu0
      %v5187 = vpop.f32.mrb[0].mxu0
      %v5188 = vadd.f32 0.0, %v5187
      %v5189 = vpop.f32.mrb[0].mxu0
      %5190 = vmatprep.mubr.bf16.mxu0 0
      %5191 = vmatmul.mubr.bf16.gmra.mrb[0].mxu0 %v5001
      %v5192 = vpop.f32.mrb[0].mxu0
      %v5193 = vadd.f32 0.0, %v5192
      %v5194 = vpop.f32.mrb[0].mxu0
      %v5195 = vpop.f32.mrb[0].mxu0
      %v5196 = vadd.f32 0.0, %v5195
      %v5197 = vpop.f32.mrb[0].mxu0
      %5198 = vmatprep.mubr.bf16.mxu0 0
      %5199 = vmatmul.mubr.bf16.gmra.mrb[0].mxu0 %v5002
      %v5200 = vpop.f32.mrb[0].mxu0
      %v5201 = vadd.f32 0.0, %v5200
      %v5202 = vpop.f32.mrb[0].mxu0
      %v5203 = vpop.f32.mrb[0].mxu0
      %v5204 = vadd.f32 0.0, %v5203
      %v5205 = vpop.f32.mrb[0].mxu0
      %5206 = vmatprep.mubr.bf16.mxu0 0
      %5207 = vmatmul.mubr.bf16.gmra.mrb[0].mxu0 %v5003
      %v5208 = vpop.f32.mrb[0].mxu0
      %v5209 = vadd.f32 0.0, %v5208
      %v5210 = vpop.f32.mrb[0].mxu0
      %v5211 = vpop.f32.mrb[0].mxu0
      %v5212 = vadd.f32 0.0, %v5211
      %v5213 = vpop.f32.mrb[0].mxu0
      %5214 = vmatprep.mubr.bf16.mxu0 0
      %5215 = vmatmul.mubr.bf16.gmra.mrb[0].mxu0 %v5004
      %v5216 = vpop.f32.mrb[0].mxu0
      %v5217 = vadd.f32 0.0, %v5216
      %v5218 = vpop.f32.mrb[0].mxu0
      %v5219 = vpop.f32.mrb[0].mxu0
      %v5220 = vadd.f32 0.0, %v5219
      %v5221 = vpop.f32.mrb[0].mxu0
      %5222 = vmatprep.mubr.bf16.mxu0 0
      %5223 = vmatmul.mubr.bf16.gmra.mrb[0].mxu0 %v5005
      %v5224 = vpop.f32.mrb[0].mxu0
      %v5225 = vadd.f32 0.0, %v5224
      %v5226 = vpop.f32.mrb[0].mxu0
      %v5227 = vpop.f32.mrb[0].mxu0
      %v5228 = vadd.f32 0.0, %v5227
      %v5229 = vpop.f32.mrb[0].mxu0
      %5230 = vdwg.mxu0
      %v5231 = vadd.f32 %v4477, %v5105
      %v5232 = vadd.f32 %v4478, %v5108
      %v5233 = vadd.f32 %v4479, %v5113
      %v5234 = vadd.f32 %v4480, %v5116
      %v5235 = vadd.f32 %v4481, %v5121
      %v5236 = vadd.f32 %v4482, %v5124
      %v5237 = vadd.f32 %v4483, %v5129
      %v5238 = vadd.f32 %v4484, %v5132
      %v5239 = vadd.f32 %v4485, %v5137
      %v5240 = vadd.f32 %v4486, %v5140
      %v5241 = vadd.f32 %v4487, %v5145
      %v5242 = vadd.f32 %v4488, %v5148
      %v5243 = vadd.f32 %v4489, %v5153
      %v5244 = vadd.f32 %v4490, %v5156
      %v5245 = vadd.f32 %v4491, %v5161
      %v5246 = vadd.f32 %v4492, %v5164
      %v5247 = vadd.f32 %v4493, %v5169
      %v5248 = vadd.f32 %v4494, %v5172
      %v5249 = vadd.f32 %v4495, %v5177
      %v5250 = vadd.f32 %v4496, %v5180
      %v5251 = vadd.f32 %v4497, %v5185
      %v5252 = vadd.f32 %v4498, %v5188
      %v5253 = vadd.f32 %v4499, %v5193
      %v5254 = vadd.f32 %v4500, %v5196
      %v5255 = vadd.f32 %v4501, %v5201
      %v5256 = vadd.f32 %v4502, %v5204
      %v5257 = vadd.f32 %v4503, %v5209
      %v5258 = vadd.f32 %v4504, %v5212
      %v5259 = vadd.f32 %v4505, %v5217
      %v5260 = vadd.f32 %v4506, %v5220
      %v5261 = vadd.f32 %v4507, %v5225
      %v5262 = vadd.f32 %v4508, %v5228
      %s5263 = scalar_lea.vmem %s3, 256
      %v5264 = vld [vmem:[%s5263] sm:$0xf]
      %v5265 = vld [vmem:[%s5263 + $0x4] sm:$0xf]
      %v5266 = vld [vmem:[%s5263 + $0x8] sm:$0xf]
      %v5267 = vld [vmem:[%s5263 + $0xc] sm:$0xf]
      %v5268 = vld [vmem:[%s5263 + $0x10] sm:$0xf]
      %v5269 = vld [vmem:[%s5263 + $0x14] sm:$0xf]
      %v5270 = vld [vmem:[%s5263 + $0x18] sm:$0xf]
      %v5271 = vld [vmem:[%s5263 + $0x1c] sm:$0xf]
      %v5272 = vld [vmem:[%s5263 + $0x20] sm:$0xf]
      %v5273 = vld [vmem:[%s5263 + $0x24] sm:$0xf]
      %v5274 = vld [vmem:[%s5263 + $0x28] sm:$0xf]
      %v5275 = vld [vmem:[%s5263 + $0x2c] sm:$0xf]
      %v5276 = vld [vmem:[%s5263 + $0x30] sm:$0xf]
      %v5277 = vld [vmem:[%s5263 + $0x34] sm:$0xf]
      %v5278 = vld [vmem:[%s5263 + $0x38] sm:$0xf]
      %v5279 = vld [vmem:[%s5263 + $0x3c] sm:$0xf]
      %v5280 = vunpack.c.l.b16 %v4906
      %v5281 = vunpack.c.l.b16 %v4916
      %v5282 = vpack.c.b16 %v5281, %v5280
      %v5300 = vunpack.c.l.b16 %v5264
      %v5301 = vunpack.c.l.b16 %v5265
      %v5302 = vunpack.c.l.b16 %v5266
      %v5303 = vunpack.c.l.b16 %v5267
      %v5304 = vunpack.c.l.b16 %v5268
      %v5305 = vunpack.c.l.b16 %v5269
      %v5306 = vunpack.c.l.b16 %v5270
      %v5307 = vunpack.c.l.b16 %v5271
      %v5308 = vunpack.c.l.b16 %v5272
      %v5309 = vunpack.c.l.b16 %v5273
      %v5310 = vunpack.c.l.b16 %v5274
      %v5311 = vunpack.c.l.b16 %v5275
      %v5312 = vunpack.c.l.b16 %v5276
      %v5313 = vunpack.c.l.b16 %v5277
      %v5314 = vunpack.c.l.b16 %v5278
      %v5315 = vunpack.c.l.b16 %v5279
      %v5316 = vpack.c.b16 %v5301, %v5300
      %v5317 = vpack.c.b16 %v5303, %v5302
      %v5318 = vpack.c.b16 %v5305, %v5304
      %v5319 = vpack.c.b16 %v5307, %v5306
      %v5320 = vpack.c.b16 %v5309, %v5308
      %v5321 = vpack.c.b16 %v5311, %v5310
      %v5322 = vpack.c.b16 %v5313, %v5312
      %v5323 = vpack.c.b16 %v5315, %v5314
      %5332 = vmatprep.subr.bf16.mxu0 0
      %5333 = vmatpush1.bf16.msra.mxu0 %v5316
      %5334 = vmatprep.subr.bf16.mxu0 0
      %5335 = vmatpush1.bf16.msra.mxu0 %v5317
      %5336 = vmatprep.subr.bf16.mxu0 0
      %5337 = vmatpush1.bf16.msra.mxu0 %v5318
      %5338 = vmatprep.subr.bf16.mxu0 0
      %5339 = vmatpush1.bf16.msra.mxu0 %v5319
      %5340 = vmatprep.subr.bf16.mxu0 0
      %5341 = vmatpush1.bf16.msra.mxu0 %v5320
      %5342 = vmatprep.subr.bf16.mxu0 0
      %5343 = vmatpush1.bf16.msra.mxu0 %v5321
      %5344 = vmatprep.subr.bf16.mxu0 0
      %5345 = vmatpush1.bf16.msra.mxu0 %v5322
      %5346 = vmatprep.subr.bf16.mxu0 0
      %5347 = vmatpush1.bf16.msra.mxu0 %v5323
      %5348 = vmatprep.subr.bf16.mxu0 0
      %5349 = vmatpush1.bf16.msra.mxu0 0
      %5350 = vmatprep.subr.bf16.mxu0 0
      %5351 = vmatpush1.bf16.msra.mxu0 0
      %5352 = vmatprep.subr.bf16.mxu0 0
      %5353 = vmatpush1.bf16.msra.mxu0 0
      %5354 = vmatprep.subr.bf16.mxu0 0
      %5355 = vmatpush1.bf16.msra.mxu0 0
      %5356 = vmatprep.subr.bf16.mxu0 0
      %5357 = vmatpush1.bf16.msra.mxu0 0
      %5358 = vmatprep.subr.bf16.mxu0 0
      %5359 = vmatpush1.bf16.msra.mxu0 0
      %5360 = vmatprep.subr.bf16.mxu0 0
      %5361 = vmatpush1.bf16.msra.mxu0 0
      %5362 = vmatprep.subr.bf16.mxu0 0
      %5363 = vmatpush1.bf16.msra.mxu0 0
      %5364 = vmatprep.mubr.bf16.mxu0 0
      %5365 = vmatmul.mubr.bf16.gmra.mrb[0].mxu0 %v4991
      %v5366 = vpop.f32.mrb[0].mxu0
      %v5367 = vadd.f32 0.0, %v5366
      %v5368 = vpop.f32.mrb[0].mxu0
      %v5369 = vpop.f32.mrb[0].mxu0
      %v5370 = vadd.f32 0.0, %v5369
      %v5371 = vpop.f32.mrb[0].mxu0
      %5372 = vmatprep.mubr.bf16.mxu0 0
      %5373 = vmatmul.mubr.bf16.gmra.mrb[0].mxu0 %v4992
      %v5374 = vpop.f32.mrb[0].mxu0
      %v5375 = vadd.f32 0.0, %v5374
      %v5376 = vpop.f32.mrb[0].mxu0
      %v5377 = vpop.f32.mrb[0].mxu0
      %v5378 = vadd.f32 0.0, %v5377
      %v5379 = vpop.f32.mrb[0].mxu0
      %5380 = vmatprep.mubr.bf16.mxu0 0
      %5381 = vmatmul.mubr.bf16.gmra.mrb[0].mxu0 %v4993
      %v5382 = vpop.f32.mrb[0].mxu0
      %v5383 = vadd.f32 0.0, %v5382
      %v5384 = vpop.f32.mrb[0].mxu0
      %v5385 = vpop.f32.mrb[0].mxu0
      %v5386 = vadd.f32 0.0, %v5385
      %v5387 = vpop.f32.mrb[0].mxu0
      %5388 = vmatprep.mubr.bf16.mxu0 0
      %5389 = vmatmul.mubr.bf16.gmra.mrb[0].mxu0 %v4994
      %v5390 = vpop.f32.mrb[0].mxu0
      %v5391 = vadd.f32 0.0, %v5390
      %v5392 = vpop.f32.mrb[0].mxu0
      %v5393 = vpop.f32.mrb[0].mxu0
      %v5394 = vadd.f32 0.0, %v5393
      %v5395 = vpop.f32.mrb[0].mxu0
      %5396 = vmatprep.mubr.bf16.mxu0 0
      %5397 = vmatmul.mubr.bf16.gmra.mrb[0].mxu0 %v4995
      %v5398 = vpop.f32.mrb[0].mxu0
      %v5399 = vadd.f32 0.0, %v5398
      %v5400 = vpop.f32.mrb[0].mxu0
      %v5401 = vpop.f32.mrb[0].mxu0
      %v5402 = vadd.f32 0.0, %v5401
      %v5403 = vpop.f32.mrb[0].mxu0
      %5404 = vmatprep.mubr.bf16.mxu0 0
      %5405 = vmatmul.mubr.bf16.gmra.mrb[0].mxu0 %v4996
      %v5406 = vpop.f32.mrb[0].mxu0
      %v5407 = vadd.f32 0.0, %v5406
      %v5408 = vpop.f32.mrb[0].mxu0
      %v5409 = vpop.f32.mrb[0].mxu0
      %v5410 = vadd.f32 0.0, %v5409
      %v5411 = vpop.f32.mrb[0].mxu0
      %5412 = vmatprep.mubr.bf16.mxu0 0
      %5413 = vmatmul.mubr.bf16.gmra.mrb[0].mxu0 %v4997
      %v5414 = vpop.f32.mrb[0].mxu0
      %v5415 = vadd.f32 0.0, %v5414
      %v5416 = vpop.f32.mrb[0].mxu0
      %v5417 = vpop.f32.mrb[0].mxu0
      %v5418 = vadd.f32 0.0, %v5417
      %v5419 = vpop.f32.mrb[0].mxu0
      %5420 = vmatprep.mubr.bf16.mxu0 0
      %5421 = vmatmul.mubr.bf16.gmra.mrb[0].mxu0 %v4998
      %v5422 = vpop.f32.mrb[0].mxu0
      %v5423 = vadd.f32 0.0, %v5422
      %v5424 = vpop.f32.mrb[0].mxu0
      %v5425 = vpop.f32.mrb[0].mxu0
      %v5426 = vadd.f32 0.0, %v5425
      %v5427 = vpop.f32.mrb[0].mxu0
      %5428 = vmatprep.mubr.bf16.mxu0 0
      %5429 = vmatmul.mubr.bf16.gmra.mrb[0].mxu0 %v4999
      %v5430 = vpop.f32.mrb[0].mxu0
      %v5431 = vadd.f32 0.0, %v5430
      %v5432 = vpop.f32.mrb[0].mxu0
      %v5433 = vpop.f32.mrb[0].mxu0
      %v5434 = vadd.f32 0.0, %v5433
      %v5435 = vpop.f32.mrb[0].mxu0
      %5436 = vmatprep.mubr.bf16.mxu0 0
      %5437 = vmatmul.mubr.bf16.gmra.mrb[0].mxu0 %v5000
      %v5438 = vpop.f32.mrb[0].mxu0
      %v5439 = vadd.f32 0.0, %v5438
      %v5440 = vpop.f32.mrb[0].mxu0
      %v5441 = vpop.f32.mrb[0].mxu0
      %v5442 = vadd.f32 0.0, %v5441
      %v5443 = vpop.f32.mrb[0].mxu0
      %5444 = vmatprep.mubr.bf16.mxu0 0
      %5445 = vmatmul.mubr.bf16.gmra.mrb[0].mxu0 %v5001
      %v5446 = vpop.f32.mrb[0].mxu0
      %v5447 = vadd.f32 0.0, %v5446
      %v5448 = vpop.f32.mrb[0].mxu0
      %v5449 = vpop.f32.mrb[0].mxu0
      %v5450 = vadd.f32 0.0, %v5449
      %v5451 = vpop.f32.mrb[0].mxu0
      %5452 = vmatprep.mubr.bf16.mxu0 0
      %5453 = vmatmul.mubr.bf16.gmra.mrb[0].mxu0 %v5002
      %v5454 = vpop.f32.mrb[0].mxu0
      %v5455 = vadd.f32 0.0, %v5454
      %v5456 = vpop.f32.mrb[0].mxu0
      %v5457 = vpop.f32.mrb[0].mxu0
      %v5458 = vadd.f32 0.0, %v5457
      %v5459 = vpop.f32.mrb[0].mxu0
      %5460 = vmatprep.mubr.bf16.mxu0 0
      %5461 = vmatmul.mubr.bf16.gmra.mrb[0].mxu0 %v5003
      %v5462 = vpop.f32.mrb[0].mxu0
      %v5463 = vadd.f32 0.0, %v5462
      %v5464 = vpop.f32.mrb[0].mxu0
      %v5465 = vpop.f32.mrb[0].mxu0
      %v5466 = vadd.f32 0.0, %v5465
      %v5467 = vpop.f32.mrb[0].mxu0
      %5468 = vmatprep.mubr.bf16.mxu0 0
      %5469 = vmatmul.mubr.bf16.gmra.mrb[0].mxu0 %v5004
      %v5470 = vpop.f32.mrb[0].mxu0
      %v5471 = vadd.f32 0.0, %v5470
      %v5472 = vpop.f32.mrb[0].mxu0
      %v5473 = vpop.f32.mrb[0].mxu0
      %v5474 = vadd.f32 0.0, %v5473
      %v5475 = vpop.f32.mrb[0].mxu0
      %5476 = vmatprep.mubr.bf16.mxu0 0
      %5477 = vmatmul.mubr.bf16.gmra.mrb[0].mxu0 %v5005
      %v5478 = vpop.f32.mrb[0].mxu0
      %v5479 = vadd.f32 0.0, %v5478
      %v5480 = vpop.f32.mrb[0].mxu0
      %v5481 = vpop.f32.mrb[0].mxu0
      %v5482 = vadd.f32 0.0, %v5481
      %v5483 = vpop.f32.mrb[0].mxu0
      %5484 = vmatprep.mubr.bf16.mxu0 0
      %5485 = vmatmul.mubr.bf16.gmra.mrb[0].mxu0 %v5282
      %v5486 = vpop.f32.mrb[0].mxu0
      %v5487 = vadd.f32 0.0, %v5486
      %v5488 = vpop.f32.mrb[0].mxu0
      %v5489 = vpop.f32.mrb[0].mxu0
      %v5490 = vadd.f32 0.0, %v5489
      %v5491 = vpop.f32.mrb[0].mxu0
      %5492 = vdwg.mxu0
      %v5493 = vadd.f32 %v5231, %v5367
      %v5494 = vadd.f32 %v5232, %v5370
      %v5495 = vadd.f32 %v5233, %v5375
      %v5496 = vadd.f32 %v5234, %v5378
      %v5497 = vadd.f32 %v5235, %v5383
      %v5498 = vadd.f32 %v5236, %v5386
      %v5499 = vadd.f32 %v5237, %v5391
      %v5500 = vadd.f32 %v5238, %v5394
      %v5501 = vadd.f32 %v5239, %v5399
      %v5502 = vadd.f32 %v5240, %v5402
      %v5503 = vadd.f32 %v5241, %v5407
      %v5504 = vadd.f32 %v5242, %v5410
      %v5505 = vadd.f32 %v5243, %v5415
      %v5506 = vadd.f32 %v5244, %v5418
      %v5507 = vadd.f32 %v5245, %v5423
      %v5508 = vadd.f32 %v5246, %v5426
      %v5509 = vadd.f32 %v5247, %v5431
      %v5510 = vadd.f32 %v5248, %v5434
      %v5511 = vadd.f32 %v5249, %v5439
      %v5512 = vadd.f32 %v5250, %v5442
      %v5513 = vadd.f32 %v5251, %v5447
      %v5514 = vadd.f32 %v5252, %v5450
      %v5515 = vadd.f32 %v5253, %v5455
      %v5516 = vadd.f32 %v5254, %v5458
      %v5517 = vadd.f32 %v5255, %v5463
      %v5518 = vadd.f32 %v5256, %v5466
      %v5519 = vadd.f32 %v5257, %v5471
      %v5520 = vadd.f32 %v5258, %v5474
      %v5521 = vadd.f32 %v5259, %v5479
      %v5522 = vadd.f32 %v5260, %v5482
      %v5523 = vadd.f32 %v5261, %v5487
      %v5524 = vadd.f32 %v5262, %v5490
      %s5525 = scalar_lea.vmem %s3, 448
      %v5526 = vld [vmem:[%s5525] sm:$0xf]
      %v5527 = vld [vmem:[%s5525 + $0x4] sm:$0xf]
      %v5528 = vld [vmem:[%s5525 + $0x8] sm:$0xf]
      %v5529 = vld [vmem:[%s5525 + $0xc] sm:$0xf]
      %v5530 = vld [vmem:[%s5525 + $0x10] sm:$0xf]
      %v5531 = vld [vmem:[%s5525 + $0x14] sm:$0xf]
      %v5532 = vld [vmem:[%s5525 + $0x18] sm:$0xf]
      %v5533 = vld [vmem:[%s5525 + $0x1c] sm:$0xf]
      %v5534 = vld [vmem:[%s5525 + $0x20] sm:$0xf]
      %v5535 = vld [vmem:[%s5525 + $0x24] sm:$0xf]
      %v5536 = vld [vmem:[%s5525 + $0x28] sm:$0xf]
      %v5537 = vld [vmem:[%s5525 + $0x2c] sm:$0xf]
      %v5538 = vld [vmem:[%s5525 + $0x30] sm:$0xf]
      %v5539 = vld [vmem:[%s5525 + $0x34] sm:$0xf]
      %v5540 = vld [vmem:[%s5525 + $0x38] sm:$0xf]
      %v5541 = vld [vmem:[%s5525 + $0x3c] sm:$0xf]
      %v5542 = vunpack.c.l.b16 %v4930
      %v5543 = vunpack.c.l.b16 %v4940
      %v5544 = vpack.c.b16 %v5543, %v5542
      %v5562 = vunpack.c.l.b16 %v5526
      %v5563 = vunpack.c.l.b16 %v5527
      %v5564 = vunpack.c.l.b16 %v5528
      %v5565 = vunpack.c.l.b16 %v5529
      %v5566 = vunpack.c.l.b16 %v5530
      %v5567 = vunpack.c.l.b16 %v5531
      %v5568 = vunpack.c.l.b16 %v5532
      %v5569 = vunpack.c.l.b16 %v5533
      %v5570 = vunpack.c.l.b16 %v5534
      %v5571 = vunpack.c.l.b16 %v5535
      %v5572 = vunpack.c.l.b16 %v5536
      %v5573 = vunpack.c.l.b16 %v5537
      %v5574 = vunpack.c.l.b16 %v5538
      %v5575 = vunpack.c.l.b16 %v5539
      %v5576 = vunpack.c.l.b16 %v5540
      %v5577 = vunpack.c.l.b16 %v5541
      %v5578 = vpack.c.b16 %v5563, %v5562
      %v5579 = vpack.c.b16 %v5565, %v5564
      %v5580 = vpack.c.b16 %v5567, %v5566
      %v5581 = vpack.c.b16 %v5569, %v5568
      %v5582 = vpack.c.b16 %v5571, %v5570
      %v5583 = vpack.c.b16 %v5573, %v5572
      %v5584 = vpack.c.b16 %v5575, %v5574
      %v5585 = vpack.c.b16 %v5577, %v5576
      %5594 = vmatprep.subr.bf16.mxu0 0
      %5595 = vmatpush1.bf16.msra.mxu0 %v5578
      %5596 = vmatprep.subr.bf16.mxu0 0
      %5597 = vmatpush1.bf16.msra.mxu0 %v5579
      %5598 = vmatprep.subr.bf16.mxu0 0
      %5599 = vmatpush1.bf16.msra.mxu0 %v5580
      %5600 = vmatprep.subr.bf16.mxu0 0
      %5601 = vmatpush1.bf16.msra.mxu0 %v5581
      %5602 = vmatprep.subr.bf16.mxu0 0
      %5603 = vmatpush1.bf16.msra.mxu0 %v5582
      %5604 = vmatprep.subr.bf16.mxu0 0
      %5605 = vmatpush1.bf16.msra.mxu0 %v5583
      %5606 = vmatprep.subr.bf16.mxu0 0
      %5607 = vmatpush1.bf16.msra.mxu0 %v5584
      %5608 = vmatprep.subr.bf16.mxu0 0
      %5609 = vmatpush1.bf16.msra.mxu0 %v5585
      %5610 = vmatprep.subr.bf16.mxu0 0
      %5611 = vmatpush1.bf16.msra.mxu0 0
      %5612 = vmatprep.subr.bf16.mxu0 0
      %5613 = vmatpush1.bf16.msra.mxu0 0
      %5614 = vmatprep.subr.bf16.mxu0 0
      %5615 = vmatpush1.bf16.msra.mxu0 0
      %5616 = vmatprep.subr.bf16.mxu0 0
      %5617 = vmatpush1.bf16.msra.mxu0 0
      %5618 = vmatprep.subr.bf16.mxu0 0
      %5619 = vmatpush1.bf16.msra.mxu0 0
      %5620 = vmatprep.subr.bf16.mxu0 0
      %5621 = vmatpush1.bf16.msra.mxu0 0
      %5622 = vmatprep.subr.bf16.mxu0 0
      %5623 = vmatpush1.bf16.msra.mxu0 0
      %5624 = vmatprep.subr.bf16.mxu0 0
      %5625 = vmatpush1.bf16.msra.mxu0 0
      %5626 = vmatprep.mubr.bf16.mxu0 0
      %5627 = vmatmul.mubr.bf16.gmra.mrb[0].mxu0 %v4992
      %v5628 = vpop.f32.mrb[0].mxu0
      %v5629 = vadd.f32 0.0, %v5628
      %v5630 = vpop.f32.mrb[0].mxu0
      %v5631 = vpop.f32.mrb[0].mxu0
      %v5632 = vadd.f32 0.0, %v5631
      %v5633 = vpop.f32.mrb[0].mxu0
      %5634 = vmatprep.mubr.bf16.mxu0 0
      %5635 = vmatmul.mubr.bf16.gmra.mrb[0].mxu0 %v4993
      %v5636 = vpop.f32.mrb[0].mxu0
      %v5637 = vadd.f32 0.0, %v5636
      %v5638 = vpop.f32.mrb[0].mxu0
      %v5639 = vpop.f32.mrb[0].mxu0
      %v5640 = vadd.f32 0.0, %v5639
      %v5641 = vpop.f32.mrb[0].mxu0
      %5642 = vmatprep.mubr.bf16.mxu0 0
      %5643 = vmatmul.mubr.bf16.gmra.mrb[0].mxu0 %v4994
      %v5644 = vpop.f32.mrb[0].mxu0
      %v5645 = vadd.f32 0.0, %v5644
      %v5646 = vpop.f32.mrb[0].mxu0
      %v5647 = vpop.f32.mrb[0].mxu0
      %v5648 = vadd.f32 0.0, %v5647
      %v5649 = vpop.f32.mrb[0].mxu0
      %5650 = vmatprep.mubr.bf16.mxu0 0
      %5651 = vmatmul.mubr.bf16.gmra.mrb[0].mxu0 %v4995
      %v5652 = vpop.f32.mrb[0].mxu0
      %v5653 = vadd.f32 0.0, %v5652
      %v5654 = vpop.f32.mrb[0].mxu0
      %v5655 = vpop.f32.mrb[0].mxu0
      %v5656 = vadd.f32 0.0, %v5655
      %v5657 = vpop.f32.mrb[0].mxu0
      %5658 = vmatprep.mubr.bf16.mxu0 0
      %5659 = vmatmul.mubr.bf16.gmra.mrb[0].mxu0 %v4996
      %v5660 = vpop.f32.mrb[0].mxu0
      %v5661 = vadd.f32 0.0, %v5660
      %v5662 = vpop.f32.mrb[0].mxu0
      %v5663 = vpop.f32.mrb[0].mxu0
      %v5664 = vadd.f32 0.0, %v5663
      %v5665 = vpop.f32.mrb[0].mxu0
      %5666 = vmatprep.mubr.bf16.mxu0 0
      %5667 = vmatmul.mubr.bf16.gmra.mrb[0].mxu0 %v4997
      %v5668 = vpop.f32.mrb[0].mxu0
      %v5669 = vadd.f32 0.0, %v5668
      %v5670 = vpop.f32.mrb[0].mxu0
      %v5671 = vpop.f32.mrb[0].mxu0
      %v5672 = vadd.f32 0.0, %v5671
      %v5673 = vpop.f32.mrb[0].mxu0
      %5674 = vmatprep.mubr.bf16.mxu0 0
      %5675 = vmatmul.mubr.bf16.gmra.mrb[0].mxu0 %v4998
      %v5676 = vpop.f32.mrb[0].mxu0
      %v5677 = vadd.f32 0.0, %v5676
      %v5678 = vpop.f32.mrb[0].mxu0
      %v5679 = vpop.f32.mrb[0].mxu0
      %v5680 = vadd.f32 0.0, %v5679
      %v5681 = vpop.f32.mrb[0].mxu0
      %5682 = vmatprep.mubr.bf16.mxu0 0
      %5683 = vmatmul.mubr.bf16.gmra.mrb[0].mxu0 %v4999
      %v5684 = vpop.f32.mrb[0].mxu0
      %v5685 = vadd.f32 0.0, %v5684
      %v5686 = vpop.f32.mrb[0].mxu0
      %v5687 = vpop.f32.mrb[0].mxu0
      %v5688 = vadd.f32 0.0, %v5687
      %v5689 = vpop.f32.mrb[0].mxu0
      %5690 = vmatprep.mubr.bf16.mxu0 0
      %5691 = vmatmul.mubr.bf16.gmra.mrb[0].mxu0 %v5000
      %v5692 = vpop.f32.mrb[0].mxu0
      %v5693 = vadd.f32 0.0, %v5692
      %v5694 = vpop.f32.mrb[0].mxu0
      %v5695 = vpop.f32.mrb[0].mxu0
      %v5696 = vadd.f32 0.0, %v5695
      %v5697 = vpop.f32.mrb[0].mxu0
      %5698 = vmatprep.mubr.bf16.mxu0 0
      %5699 = vmatmul.mubr.bf16.gmra.mrb[0].mxu0 %v5001
      %v5700 = vpop.f32.mrb[0].mxu0
      %v5701 = vadd.f32 0.0, %v5700
      %v5702 = vpop.f32.mrb[0].mxu0
      %v5703 = vpop.f32.mrb[0].mxu0
      %v5704 = vadd.f32 0.0, %v5703
      %v5705 = vpop.f32.mrb[0].mxu0
      %5706 = vmatprep.mubr.bf16.mxu0 0
      %5707 = vmatmul.mubr.bf16.gmra.mrb[0].mxu0 %v5002
      %v5708 = vpop.f32.mrb[0].mxu0
      %v5709 = vadd.f32 0.0, %v5708
      %v5710 = vpop.f32.mrb[0].mxu0
      %v5711 = vpop.f32.mrb[0].mxu0
      %v5712 = vadd.f32 0.0, %v5711
      %v5713 = vpop.f32.mrb[0].mxu0
      %5714 = vmatprep.mubr.bf16.mxu0 0
      %5715 = vmatmul.mubr.bf16.gmra.mrb[0].mxu0 %v5003
      %v5716 = vpop.f32.mrb[0].mxu0
      %v5717 = vadd.f32 0.0, %v5716
      %v5718 = vpop.f32.mrb[0].mxu0
      %v5719 = vpop.f32.mrb[0].mxu0
      %v5720 = vadd.f32 0.0, %v5719
      %v5721 = vpop.f32.mrb[0].mxu0
      %5722 = vmatprep.mubr.bf16.mxu0 0
      %5723 = vmatmul.mubr.bf16.gmra.mrb[0].mxu0 %v5004
      %v5724 = vpop.f32.mrb[0].mxu0
      %v5725 = vadd.f32 0.0, %v5724
      %v5726 = vpop.f32.mrb[0].mxu0
      %v5727 = vpop.f32.mrb[0].mxu0
      %v5728 = vadd.f32 0.0, %v5727
      %v5729 = vpop.f32.mrb[0].mxu0
      %5730 = vmatprep.mubr.bf16.mxu0 0
      %5731 = vmatmul.mubr.bf16.gmra.mrb[0].mxu0 %v5005
      %v5732 = vpop.f32.mrb[0].mxu0
      %v5733 = vadd.f32 0.0, %v5732
      %v5734 = vpop.f32.mrb[0].mxu0
      %v5735 = vpop.f32.mrb[0].mxu0
      %v5736 = vadd.f32 0.0, %v5735
      %v5737 = vpop.f32.mrb[0].mxu0
      %5738 = vmatprep.mubr.bf16.mxu0 0
      %5739 = vmatmul.mubr.bf16.gmra.mrb[0].mxu0 %v5282
      %v5740 = vpop.f32.mrb[0].mxu0
      %v5741 = vadd.f32 0.0, %v5740
      %v5742 = vpop.f32.mrb[0].mxu0
      %v5743 = vpop.f32.mrb[0].mxu0
      %v5744 = vadd.f32 0.0, %v5743
      %v5745 = vpop.f32.mrb[0].mxu0
      %5746 = vmatprep.mubr.bf16.mxu0 0
      %5747 = vmatmul.mubr.bf16.gmra.mrb[0].mxu0 %v5544
      %v5748 = vpop.f32.mrb[0].mxu0
      %v5749 = vadd.f32 0.0, %v5748
      %v5750 = vpop.f32.mrb[0].mxu0
      %v5751 = vpop.f32.mrb[0].mxu0
      %v5752 = vadd.f32 0.0, %v5751
      %v5753 = vpop.f32.mrb[0].mxu0
      %5754 = vdwg.mxu0
      %v5755 = vadd.f32 %v5493, %v5629
      %v5756 = vadd.f32 %v5494, %v5632
      %v5757 = vadd.f32 %v5495, %v5637
      %v5758 = vadd.f32 %v5496, %v5640
      %v5759 = vadd.f32 %v5497, %v5645
      %v5760 = vadd.f32 %v5498, %v5648
      %v5761 = vadd.f32 %v5499, %v5653
      %v5762 = vadd.f32 %v5500, %v5656
      %v5763 = vadd.f32 %v5501, %v5661
      %v5764 = vadd.f32 %v5502, %v5664
      %v5765 = vadd.f32 %v5503, %v5669
      %v5766 = vadd.f32 %v5504, %v5672
      %v5767 = vadd.f32 %v5505, %v5677
      %v5768 = vadd.f32 %v5506, %v5680
      %v5769 = vadd.f32 %v5507, %v5685
      %v5770 = vadd.f32 %v5508, %v5688
      %v5771 = vadd.f32 %v5509, %v5693
      %v5772 = vadd.f32 %v5510, %v5696
      %v5773 = vadd.f32 %v5511, %v5701
      %v5774 = vadd.f32 %v5512, %v5704
      %v5775 = vadd.f32 %v5513, %v5709
      %v5776 = vadd.f32 %v5514, %v5712
      %v5777 = vadd.f32 %v5515, %v5717
      %v5778 = vadd.f32 %v5516, %v5720
      %v5779 = vadd.f32 %v5517, %v5725
      %v5780 = vadd.f32 %v5518, %v5728
      %v5781 = vadd.f32 %v5519, %v5733
      %v5782 = vadd.f32 %v5520, %v5736
      %v5783 = vadd.f32 %v5521, %v5741
      %v5784 = vadd.f32 %v5522, %v5744
      %v5785 = vadd.f32 %v5523, %v5749
      %v5786 = vadd.f32 %v5524, %v5752
      %v5805 = vrot.slane %v3638, 5
      %v5806 = vrot.slane %v5805, 4
      %v5807 = vrot.slane %v3639, 5
      %v5808 = vsel %vm2112, %v5806, %v5807
      %v5809 = vrot.slane %v5807, 4
      %v5810 = vrot.slane %v3640, 5
      %v5811 = vsel %vm2112, %v5809, %v5810
      %v5812 = vrot.slane %v3641, 5
      %v5813 = vrot.slane %v5812, 4
      %v5814 = vrot.slane %v3642, 5
      %v5815 = vsel %vm2112, %v5813, %v5814
      %v5816 = vrot.slane %v5814, 4
      %v5817 = vrot.slane %v3643, 5
      %v5818 = vsel %vm2112, %v5816, %v5817
      %v5819 = vrot.slane %v3644, 5
      %v5820 = vrot.slane %v5819, 4
      %v5821 = vrot.slane %v3645, 5
      %v5822 = vsel %vm2112, %v5820, %v5821
      %v5823 = vrot.slane %v5821, 4
      %v5824 = vrot.slane %v3646, 5
      %v5825 = vsel %vm2112, %v5823, %v5824
      %v5826 = vrot.slane %v3647, 5
      %v5827 = vrot.slane %v5826, 4
      %v5828 = vrot.slane %v3648, 5
      %v5829 = vsel %vm2112, %v5827, %v5828
      %v5830 = vrot.slane %v5828, 4
      %v5831 = vrot.slane %v3649, 5
      %v5832 = vsel %vm2112, %v5830, %v5831
      %v5833 = vrot.slane %v3650, 5
      %v5834 = vrot.slane %v5833, 4
      %v5835 = vrot.slane %v3651, 5
      %v5836 = vsel %vm2112, %v5834, %v5835
      %v5837 = vrot.slane %v5835, 4
      %v5838 = vrot.slane %v3652, 5
      %v5839 = vsel %vm2112, %v5837, %v5838
      %v5840 = vrot.slane %v3653, 5
      %v5841 = vrot.slane %v5840, 4
      %v5842 = vrot.slane %v3654, 5
      %v5843 = vsel %vm2112, %v5841, %v5842
      %v5844 = vrot.slane %v5842, 4
      %v5845 = vrot.slane %v3655, 5
      %v5846 = vsel %vm2112, %v5844, %v5845
      %v5847 = vrot.slane %v3656, 5
      %v5848 = vrot.slane %v5847, 4
      %v5849 = vrot.slane %v3657, 5
      %v5850 = vsel %vm2112, %v5848, %v5849
      %v5851 = vrot.slane %v5849, 4
      %v5852 = vrot.slane %v3658, 5
      %v5853 = vsel %vm2112, %v5851, %v5852
      %v5854 = vrot.slane %v3659, 5
      %v5855 = vrot.slane %v5854, 4
      %v5856 = vrot.slane %v3660, 5
      %v5857 = vsel %vm2112, %v5855, %v5856
      %v5858 = vrot.slane %v5856, 4
      %v5859 = vrot.slane %v3661, 5
      %v5860 = vsel %vm2112, %v5858, %v5859
      %v5861 = vrot.slane %v3662, 5
      %v5862 = vrot.slane %v5861, 4
      %v5863 = vrot.slane %v3663, 5
      %v5864 = vsel %vm2112, %v5862, %v5863
      %v5865 = vrot.slane %v5863, 4
      %v5866 = vrot.slane %v3664, 5
      %v5867 = vsel %vm2112, %v5865, %v5866
      %v5868 = vrot.slane %v3665, 5
      %v5869 = vrot.slane %v5868, 4
      %v5870 = vrot.slane %v3666, 5
      %v5871 = vsel %vm2112, %v5869, %v5870
      %v5872 = vrot.slane %v5870, 4
      %v5873 = vrot.slane %v3667, 5
      %v5874 = vsel %vm2112, %v5872, %v5873
      %v5875 = vrot.slane %v3668, 5
      %v5876 = vrot.slane %v5875, 4
      %v5877 = vrot.slane %v3669, 5
      %v5878 = vsel %vm2112, %v5876, %v5877
      %v5879 = vrot.slane %v5877, 4
      %v5880 = vrot.slane %v3670, 5
      %v5881 = vsel %vm2112, %v5879, %v5880
      %v5882 = vrot.slane %v3671, 5
      %v5883 = vrot.slane %v5882, 4
      %v5884 = vrot.slane %v3672, 5
      %v5885 = vsel %vm2112, %v5883, %v5884
      %v5886 = vrot.slane %v5884, 4
      %v5887 = vrot.slane %v3673, 5
      %v5888 = vsel %vm2112, %v5886, %v5887
      %v5889 = vrot.slane %v3674, 5
      %v5890 = vrot.slane %v5889, 4
      %v5891 = vrot.slane %v3675, 5
      %v5892 = vsel %vm2112, %v5890, %v5891
      %v5893 = vrot.slane %v5891, 4
      %v5894 = vrot.slane %v3676, 5
      %v5895 = vsel %vm2112, %v5893, %v5894
      %v5896 = vrot.slane %v3677, 5
      %v5897 = vrot.slane %v5896, 4
      %v5898 = vrot.slane %v3678, 5
      %v5899 = vsel %vm2112, %v5897, %v5898
      %v5900 = vrot.slane %v5898, 4
      %v5901 = vrot.slane %v3679, 5
      %v5902 = vsel %vm2112, %v5900, %v5901
      %v5903 = vrot.slane %v3680, 5
      %v5904 = vrot.slane %v5903, 4
      %v5905 = vrot.slane %v3681, 5
      %v5906 = vsel %vm2112, %v5904, %v5905
      %v5907 = vrot.slane %v5905, 4
      %v5908 = vrot.slane %v3682, 5
      %v5909 = vsel %vm2112, %v5907, %v5908
      %v5910 = vrot.slane %v3683, 5
      %v5911 = vrot.slane %v5910, 4
      %v5912 = vrot.slane %v3684, 5
      %v5913 = vsel %vm2112, %v5911, %v5912
      %v5914 = vrot.slane %v5912, 4
      %v5915 = vrot.slane %v3685, 5
      %v5916 = vsel %vm2112, %v5914, %v5915
      %v5917 = vrot.slane %v3686, 5
      %v5918 = vrot.slane %v5917, 4
      %v5919 = vrot.slane %v3687, 5
      %v5920 = vsel %vm2112, %v5918, %v5919
      %v5921 = vrot.slane %v5919, 4
      %v5922 = vrot.slane %v3688, 5
      %v5923 = vsel %vm2112, %v5921, %v5922
      %v5924 = vrot.slane %v3689, 5
      %v5925 = vrot.slane %v5924, 4
      %v5926 = vrot.slane %v3690, 5
      %v5927 = vsel %vm2112, %v5925, %v5926
      %v5928 = vrot.slane %v5926, 4
      %v5929 = vrot.slane %v3691, 5
      %v5930 = vsel %vm2112, %v5928, %v5929
      %s5931 = scalar_lea.vmem %s3, 128
      %v5932 = vld [vmem:[%s5931] sm:$0xf]
      %v5933 = vld [vmem:[%s5931 + $0x4] sm:$0xf]
      %v5934 = vld [vmem:[%s5931 + $0x8] sm:$0xf]
      %v5935 = vld [vmem:[%s5931 + $0xc] sm:$0xf]
      %v5936 = vld [vmem:[%s5931 + $0x10] sm:$0xf]
      %v5937 = vld [vmem:[%s5931 + $0x14] sm:$0xf]
      %v5938 = vld [vmem:[%s5931 + $0x18] sm:$0xf]
      %v5939 = vld [vmem:[%s5931 + $0x1c] sm:$0xf]
      %v5940 = vld [vmem:[%s5931 + $0x20] sm:$0xf]
      %v5941 = vld [vmem:[%s5931 + $0x24] sm:$0xf]
      %v5942 = vld [vmem:[%s5931 + $0x28] sm:$0xf]
      %v5943 = vld [vmem:[%s5931 + $0x2c] sm:$0xf]
      %v5944 = vld [vmem:[%s5931 + $0x30] sm:$0xf]
      %v5945 = vld [vmem:[%s5931 + $0x34] sm:$0xf]
      %v5946 = vld [vmem:[%s5931 + $0x38] sm:$0xf]
      %v5947 = vld [vmem:[%s5931 + $0x3c] sm:$0xf]
      %v5948 = vunpack.c.l.b16 %v5808
      %v5949 = vunpack.c.l.b16 %v5811
      %v5950 = vunpack.c.l.b16 %v5815
      %v5951 = vunpack.c.l.b16 %v5818
      %v5952 = vunpack.c.l.b16 %v5822
      %v5953 = vunpack.c.l.b16 %v5825
      %v5954 = vunpack.c.l.b16 %v5829
      %v5955 = vunpack.c.l.b16 %v5832
      %v5956 = vunpack.c.l.b16 %v5836
      %v5957 = vunpack.c.l.b16 %v5839
      %v5958 = vunpack.c.l.b16 %v5843
      %v5959 = vunpack.c.l.b16 %v5846
      %v5960 = vunpack.c.l.b16 %v5850
      %v5961 = vunpack.c.l.b16 %v5853
      %v5962 = vunpack.c.l.b16 %v5857
      %v5963 = vunpack.c.l.b16 %v5860
      %v5964 = vunpack.c.l.b16 %v5864
      %v5965 = vunpack.c.l.b16 %v5867
      %v5966 = vunpack.c.l.b16 %v5871
      %v5967 = vunpack.c.l.b16 %v5874
      %v5968 = vunpack.c.l.b16 %v5878
      %v5969 = vunpack.c.l.b16 %v5881
      %v5970 = vunpack.c.l.b16 %v5885
      %v5971 = vunpack.c.l.b16 %v5888
      %v5972 = vunpack.c.l.b16 %v5892
      %v5973 = vunpack.c.l.b16 %v5895
      %v5974 = vunpack.c.l.b16 %v5899
      %v5975 = vunpack.c.l.b16 %v5902
      %v5976 = vunpack.c.l.b16 %v5906
      %v5977 = vunpack.c.l.b16 %v5909
      %v5978 = vunpack.c.l.b16 %v5913
      %v5979 = vunpack.c.l.b16 %v5916
      %v5980 = vpack.c.b16 %v5949, %v5948
      %v5981 = vpack.c.b16 %v5951, %v5950
      %v5982 = vpack.c.b16 %v5953, %v5952
      %v5983 = vpack.c.b16 %v5955, %v5954
      %v5984 = vpack.c.b16 %v5957, %v5956
      %v5985 = vpack.c.b16 %v5959, %v5958
      %v5986 = vpack.c.b16 %v5961, %v5960
      %v5987 = vpack.c.b16 %v5963, %v5962
      %v5988 = vpack.c.b16 %v5965, %v5964
      %v5989 = vpack.c.b16 %v5967, %v5966
      %v5990 = vpack.c.b16 %v5969, %v5968
      %v5991 = vpack.c.b16 %v5971, %v5970
      %v5992 = vpack.c.b16 %v5973, %v5972
      %v5993 = vpack.c.b16 %v5975, %v5974
      %v5994 = vpack.c.b16 %v5977, %v5976
      %v5995 = vpack.c.b16 %v5979, %v5978
      %v6028 = vunpack.c.l.b16 %v5932
      %v6029 = vunpack.c.l.b16 %v5933
      %v6030 = vunpack.c.l.b16 %v5934
      %v6031 = vunpack.c.l.b16 %v5935
      %v6032 = vunpack.c.l.b16 %v5936
      %v6033 = vunpack.c.l.b16 %v5937
      %v6034 = vunpack.c.l.b16 %v5938
      %v6035 = vunpack.c.l.b16 %v5939
      %v6036 = vunpack.c.l.b16 %v5940
      %v6037 = vunpack.c.l.b16 %v5941
      %v6038 = vunpack.c.l.b16 %v5942
      %v6039 = vunpack.c.l.b16 %v5943
      %v6040 = vunpack.c.l.b16 %v5944
      %v6041 = vunpack.c.l.b16 %v5945
      %v6042 = vunpack.c.l.b16 %v5946
      %v6043 = vunpack.c.l.b16 %v5947
      %v6044 = vpack.c.b16 %v6029, %v6028
      %v6045 = vpack.c.b16 %v6031, %v6030
      %v6046 = vpack.c.b16 %v6033, %v6032
      %v6047 = vpack.c.b16 %v6035, %v6034
      %v6048 = vpack.c.b16 %v6037, %v6036
      %v6049 = vpack.c.b16 %v6039, %v6038
      %v6050 = vpack.c.b16 %v6041, %v6040
      %v6051 = vpack.c.b16 %v6043, %v6042
      %6060 = vmatprep.subr.bf16.mxu0 0
      %6061 = vmatpush1.bf16.msra.mxu0 %v6044
      %6062 = vmatprep.subr.bf16.mxu0 0
      %6063 = vmatpush1.bf16.msra.mxu0 %v6045
      %6064 = vmatprep.subr.bf16.mxu0 0
      %6065 = vmatpush1.bf16.msra.mxu0 %v6046
      %6066 = vmatprep.subr.bf16.mxu0 0
      %6067 = vmatpush1.bf16.msra.mxu0 %v6047
      %6068 = vmatprep.subr.bf16.mxu0 0
      %6069 = vmatpush1.bf16.msra.mxu0 %v6048
      %6070 = vmatprep.subr.bf16.mxu0 0
      %6071 = vmatpush1.bf16.msra.mxu0 %v6049
      %6072 = vmatprep.subr.bf16.mxu0 0
      %6073 = vmatpush1.bf16.msra.mxu0 %v6050
      %6074 = vmatprep.subr.bf16.mxu0 0
      %6075 = vmatpush1.bf16.msra.mxu0 %v6051
      %6076 = vmatprep.subr.bf16.mxu0 0
      %6077 = vmatpush1.bf16.msra.mxu0 0
      %6078 = vmatprep.subr.bf16.mxu0 0
      %6079 = vmatpush1.bf16.msra.mxu0 0
      %6080 = vmatprep.subr.bf16.mxu0 0
      %6081 = vmatpush1.bf16.msra.mxu0 0
      %6082 = vmatprep.subr.bf16.mxu0 0
      %6083 = vmatpush1.bf16.msra.mxu0 0
      %6084 = vmatprep.subr.bf16.mxu0 0
      %6085 = vmatpush1.bf16.msra.mxu0 0
      %6086 = vmatprep.subr.bf16.mxu0 0
      %6087 = vmatpush1.bf16.msra.mxu0 0
      %6088 = vmatprep.subr.bf16.mxu0 0
      %6089 = vmatpush1.bf16.msra.mxu0 0
      %6090 = vmatprep.subr.bf16.mxu0 0
      %6091 = vmatpush1.bf16.msra.mxu0 0
      %6092 = vmatprep.mubr.bf16.mxu0 0
      %6093 = vmatmul.mubr.bf16.gmra.mrb[0].mxu0 %v5980
      %v6094 = vpop.f32.mrb[0].mxu0
      %v6095 = vadd.f32 0.0, %v6094
      %v6096 = vpop.f32.mrb[0].mxu0
      %v6097 = vpop.f32.mrb[0].mxu0
      %v6098 = vadd.f32 0.0, %v6097
      %v6099 = vpop.f32.mrb[0].mxu0
      %6100 = vmatprep.mubr.bf16.mxu0 0
      %6101 = vmatmul.mubr.bf16.gmra.mrb[0].mxu0 %v5981
      %v6102 = vpop.f32.mrb[0].mxu0
      %v6103 = vadd.f32 0.0, %v6102
      %v6104 = vpop.f32.mrb[0].mxu0
      %v6105 = vpop.f32.mrb[0].mxu0
      %v6106 = vadd.f32 0.0, %v6105
      %v6107 = vpop.f32.mrb[0].mxu0
      %6108 = vmatprep.mubr.bf16.mxu0 0
      %6109 = vmatmul.mubr.bf16.gmra.mrb[0].mxu0 %v5982
      %v6110 = vpop.f32.mrb[0].mxu0
      %v6111 = vadd.f32 0.0, %v6110
      %v6112 = vpop.f32.mrb[0].mxu0
      %v6113 = vpop.f32.mrb[0].mxu0
      %v6114 = vadd.f32 0.0, %v6113
      %v6115 = vpop.f32.mrb[0].mxu0
      %6116 = vmatprep.mubr.bf16.mxu0 0
      %6117 = vmatmul.mubr.bf16.gmra.mrb[0].mxu0 %v5983
      %v6118 = vpop.f32.mrb[0].mxu0
      %v6119 = vadd.f32 0.0, %v6118
      %v6120 = vpop.f32.mrb[0].mxu0
      %v6121 = vpop.f32.mrb[0].mxu0
      %v6122 = vadd.f32 0.0, %v6121
      %v6123 = vpop.f32.mrb[0].mxu0
      %6124 = vmatprep.mubr.bf16.mxu0 0
      %6125 = vmatmul.mubr.bf16.gmra.mrb[0].mxu0 %v5984
      %v6126 = vpop.f32.mrb[0].mxu0
      %v6127 = vadd.f32 0.0, %v6126
      %v6128 = vpop.f32.mrb[0].mxu0
      %v6129 = vpop.f32.mrb[0].mxu0
      %v6130 = vadd.f32 0.0, %v6129
      %v6131 = vpop.f32.mrb[0].mxu0
      %6132 = vmatprep.mubr.bf16.mxu0 0
      %6133 = vmatmul.mubr.bf16.gmra.mrb[0].mxu0 %v5985
      %v6134 = vpop.f32.mrb[0].mxu0
      %v6135 = vadd.f32 0.0, %v6134
      %v6136 = vpop.f32.mrb[0].mxu0
      %v6137 = vpop.f32.mrb[0].mxu0
      %v6138 = vadd.f32 0.0, %v6137
      %v6139 = vpop.f32.mrb[0].mxu0
      %6140 = vmatprep.mubr.bf16.mxu0 0
      %6141 = vmatmul.mubr.bf16.gmra.mrb[0].mxu0 %v5986
      %v6142 = vpop.f32.mrb[0].mxu0
      %v6143 = vadd.f32 0.0, %v6142
      %v6144 = vpop.f32.mrb[0].mxu0
      %v6145 = vpop.f32.mrb[0].mxu0
      %v6146 = vadd.f32 0.0, %v6145
      %v6147 = vpop.f32.mrb[0].mxu0
      %6148 = vmatprep.mubr.bf16.mxu0 0
      %6149 = vmatmul.mubr.bf16.gmra.mrb[0].mxu0 %v5987
      %v6150 = vpop.f32.mrb[0].mxu0
      %v6151 = vadd.f32 0.0, %v6150
      %v6152 = vpop.f32.mrb[0].mxu0
      %v6153 = vpop.f32.mrb[0].mxu0
      %v6154 = vadd.f32 0.0, %v6153
      %v6155 = vpop.f32.mrb[0].mxu0
      %6156 = vmatprep.mubr.bf16.mxu0 0
      %6157 = vmatmul.mubr.bf16.gmra.mrb[0].mxu0 %v5988
      %v6158 = vpop.f32.mrb[0].mxu0
      %v6159 = vadd.f32 0.0, %v6158
      %v6160 = vpop.f32.mrb[0].mxu0
      %v6161 = vpop.f32.mrb[0].mxu0
      %v6162 = vadd.f32 0.0, %v6161
      %v6163 = vpop.f32.mrb[0].mxu0
      %6164 = vmatprep.mubr.bf16.mxu0 0
      %6165 = vmatmul.mubr.bf16.gmra.mrb[0].mxu0 %v5989
      %v6166 = vpop.f32.mrb[0].mxu0
      %v6167 = vadd.f32 0.0, %v6166
      %v6168 = vpop.f32.mrb[0].mxu0
      %v6169 = vpop.f32.mrb[0].mxu0
      %v6170 = vadd.f32 0.0, %v6169
      %v6171 = vpop.f32.mrb[0].mxu0
      %6172 = vmatprep.mubr.bf16.mxu0 0
      %6173 = vmatmul.mubr.bf16.gmra.mrb[0].mxu0 %v5990
      %v6174 = vpop.f32.mrb[0].mxu0
      %v6175 = vadd.f32 0.0, %v6174
      %v6176 = vpop.f32.mrb[0].mxu0
      %v6177 = vpop.f32.mrb[0].mxu0
      %v6178 = vadd.f32 0.0, %v6177
      %v6179 = vpop.f32.mrb[0].mxu0
      %6180 = vmatprep.mubr.bf16.mxu0 0
      %6181 = vmatmul.mubr.bf16.gmra.mrb[0].mxu0 %v5991
      %v6182 = vpop.f32.mrb[0].mxu0
      %v6183 = vadd.f32 0.0, %v6182
      %v6184 = vpop.f32.mrb[0].mxu0
      %v6185 = vpop.f32.mrb[0].mxu0
      %v6186 = vadd.f32 0.0, %v6185
      %v6187 = vpop.f32.mrb[0].mxu0
      %6188 = vmatprep.mubr.bf16.mxu0 0
      %6189 = vmatmul.mubr.bf16.gmra.mrb[0].mxu0 %v5992
      %v6190 = vpop.f32.mrb[0].mxu0
      %v6191 = vadd.f32 0.0, %v6190
      %v6192 = vpop.f32.mrb[0].mxu0
      %v6193 = vpop.f32.mrb[0].mxu0
      %v6194 = vadd.f32 0.0, %v6193
      %v6195 = vpop.f32.mrb[0].mxu0
      %6196 = vmatprep.mubr.bf16.mxu0 0
      %6197 = vmatmul.mubr.bf16.gmra.mrb[0].mxu0 %v5993
      %v6198 = vpop.f32.mrb[0].mxu0
      %v6199 = vadd.f32 0.0, %v6198
      %v6200 = vpop.f32.mrb[0].mxu0
      %v6201 = vpop.f32.mrb[0].mxu0
      %v6202 = vadd.f32 0.0, %v6201
      %v6203 = vpop.f32.mrb[0].mxu0
      %6204 = vmatprep.mubr.bf16.mxu0 0
      %6205 = vmatmul.mubr.bf16.gmra.mrb[0].mxu0 %v5994
      %v6206 = vpop.f32.mrb[0].mxu0
      %v6207 = vadd.f32 0.0, %v6206
      %v6208 = vpop.f32.mrb[0].mxu0
      %v6209 = vpop.f32.mrb[0].mxu0
      %v6210 = vadd.f32 0.0, %v6209
      %v6211 = vpop.f32.mrb[0].mxu0
      %6212 = vmatprep.mubr.bf16.mxu0 0
      %6213 = vmatmul.mubr.bf16.gmra.mrb[0].mxu0 %v5995
      %v6214 = vpop.f32.mrb[0].mxu0
      %v6215 = vadd.f32 0.0, %v6214
      %v6216 = vpop.f32.mrb[0].mxu0
      %v6217 = vpop.f32.mrb[0].mxu0
      %v6218 = vadd.f32 0.0, %v6217
      %v6219 = vpop.f32.mrb[0].mxu0
      %6220 = vdwg.mxu0
      %v6221 = vadd.f32 %v5755, %v6095
      %v6222 = vadd.f32 %v5756, %v6098
      %v6223 = vadd.f32 %v5757, %v6103
      %v6224 = vadd.f32 %v5758, %v6106
      %v6225 = vadd.f32 %v5759, %v6111
      %v6226 = vadd.f32 %v5760, %v6114
      %v6227 = vadd.f32 %v5761, %v6119
      %v6228 = vadd.f32 %v5762, %v6122
      %v6229 = vadd.f32 %v5763, %v6127
      %v6230 = vadd.f32 %v5764, %v6130
      %v6231 = vadd.f32 %v5765, %v6135
      %v6232 = vadd.f32 %v5766, %v6138
      %v6233 = vadd.f32 %v5767, %v6143
      %v6234 = vadd.f32 %v5768, %v6146
      %v6235 = vadd.f32 %v5769, %v6151
      %v6236 = vadd.f32 %v5770, %v6154
      %v6237 = vadd.f32 %v5771, %v6159
      %v6238 = vadd.f32 %v5772, %v6162
      %v6239 = vadd.f32 %v5773, %v6167
      %v6240 = vadd.f32 %v5774, %v6170
      %v6241 = vadd.f32 %v5775, %v6175
      %v6242 = vadd.f32 %v5776, %v6178
      %v6243 = vadd.f32 %v5777, %v6183
      %v6244 = vadd.f32 %v5778, %v6186
      %v6245 = vadd.f32 %v5779, %v6191
      %v6246 = vadd.f32 %v5780, %v6194
      %v6247 = vadd.f32 %v5781, %v6199
      %v6248 = vadd.f32 %v5782, %v6202
      %v6249 = vadd.f32 %v5783, %v6207
      %v6250 = vadd.f32 %v5784, %v6210
      %v6251 = vadd.f32 %v5785, %v6215
      %v6252 = vadd.f32 %v5786, %v6218
      %s6253 = scalar_lea.vmem %s3, 320
      %v6254 = vld [vmem:[%s6253] sm:$0xf]
      %v6255 = vld [vmem:[%s6253 + $0x4] sm:$0xf]
      %v6256 = vld [vmem:[%s6253 + $0x8] sm:$0xf]
      %v6257 = vld [vmem:[%s6253 + $0xc] sm:$0xf]
      %v6258 = vld [vmem:[%s6253 + $0x10] sm:$0xf]
      %v6259 = vld [vmem:[%s6253 + $0x14] sm:$0xf]
      %v6260 = vld [vmem:[%s6253 + $0x18] sm:$0xf]
      %v6261 = vld [vmem:[%s6253 + $0x1c] sm:$0xf]
      %v6262 = vld [vmem:[%s6253 + $0x20] sm:$0xf]
      %v6263 = vld [vmem:[%s6253 + $0x24] sm:$0xf]
      %v6264 = vld [vmem:[%s6253 + $0x28] sm:$0xf]
      %v6265 = vld [vmem:[%s6253 + $0x2c] sm:$0xf]
      %v6266 = vld [vmem:[%s6253 + $0x30] sm:$0xf]
      %v6267 = vld [vmem:[%s6253 + $0x34] sm:$0xf]
      %v6268 = vld [vmem:[%s6253 + $0x38] sm:$0xf]
      %v6269 = vld [vmem:[%s6253 + $0x3c] sm:$0xf]
      %v6270 = vunpack.c.l.b16 %v5920
      %v6271 = vunpack.c.l.b16 %v5923
      %v6272 = vpack.c.b16 %v6271, %v6270
      %v6290 = vunpack.c.l.b16 %v6254
      %v6291 = vunpack.c.l.b16 %v6255
      %v6292 = vunpack.c.l.b16 %v6256
      %v6293 = vunpack.c.l.b16 %v6257
      %v6294 = vunpack.c.l.b16 %v6258
      %v6295 = vunpack.c.l.b16 %v6259
      %v6296 = vunpack.c.l.b16 %v6260
      %v6297 = vunpack.c.l.b16 %v6261
      %v6298 = vunpack.c.l.b16 %v6262
      %v6299 = vunpack.c.l.b16 %v6263
      %v6300 = vunpack.c.l.b16 %v6264
      %v6301 = vunpack.c.l.b16 %v6265
      %v6302 = vunpack.c.l.b16 %v6266
      %v6303 = vunpack.c.l.b16 %v6267
      %v6304 = vunpack.c.l.b16 %v6268
      %v6305 = vunpack.c.l.b16 %v6269
      %v6306 = vpack.c.b16 %v6291, %v6290
      %v6307 = vpack.c.b16 %v6293, %v6292
      %v6308 = vpack.c.b16 %v6295, %v6294
      %v6309 = vpack.c.b16 %v6297, %v6296
      %v6310 = vpack.c.b16 %v6299, %v6298
      %v6311 = vpack.c.b16 %v6301, %v6300
      %v6312 = vpack.c.b16 %v6303, %v6302
      %v6313 = vpack.c.b16 %v6305, %v6304
      %6322 = vmatprep.subr.bf16.mxu0 0
      %6323 = vmatpush1.bf16.msra.mxu0 %v6306
      %6324 = vmatprep.subr.bf16.mxu0 0
      %6325 = vmatpush1.bf16.msra.mxu0 %v6307
      %6326 = vmatprep.subr.bf16.mxu0 0
      %6327 = vmatpush1.bf16.msra.mxu0 %v6308
      %6328 = vmatprep.subr.bf16.mxu0 0
      %6329 = vmatpush1.bf16.msra.mxu0 %v6309
      %6330 = vmatprep.subr.bf16.mxu0 0
      %6331 = vmatpush1.bf16.msra.mxu0 %v6310
      %6332 = vmatprep.subr.bf16.mxu0 0
      %6333 = vmatpush1.bf16.msra.mxu0 %v6311
      %6334 = vmatprep.subr.bf16.mxu0 0
      %6335 = vmatpush1.bf16.msra.mxu0 %v6312
      %6336 = vmatprep.subr.bf16.mxu0 0
      %6337 = vmatpush1.bf16.msra.mxu0 %v6313
      %6338 = vmatprep.subr.bf16.mxu0 0
      %6339 = vmatpush1.bf16.msra.mxu0 0
      %6340 = vmatprep.subr.bf16.mxu0 0
      %6341 = vmatpush1.bf16.msra.mxu0 0
      %6342 = vmatprep.subr.bf16.mxu0 0
      %6343 = vmatpush1.bf16.msra.mxu0 0
      %6344 = vmatprep.subr.bf16.mxu0 0
      %6345 = vmatpush1.bf16.msra.mxu0 0
      %6346 = vmatprep.subr.bf16.mxu0 0
      %6347 = vmatpush1.bf16.msra.mxu0 0
      %6348 = vmatprep.subr.bf16.mxu0 0
      %6349 = vmatpush1.bf16.msra.mxu0 0
      %6350 = vmatprep.subr.bf16.mxu0 0
      %6351 = vmatpush1.bf16.msra.mxu0 0
      %6352 = vmatprep.subr.bf16.mxu0 0
      %6353 = vmatpush1.bf16.msra.mxu0 0
      %6354 = vmatprep.mubr.bf16.mxu0 0
      %6355 = vmatmul.mubr.bf16.gmra.mrb[0].mxu0 %v5981
      %v6356 = vpop.f32.mrb[0].mxu0
      %v6357 = vadd.f32 0.0, %v6356
      %v6358 = vpop.f32.mrb[0].mxu0
      %v6359 = vpop.f32.mrb[0].mxu0
      %v6360 = vadd.f32 0.0, %v6359
      %v6361 = vpop.f32.mrb[0].mxu0
      %6362 = vmatprep.mubr.bf16.mxu0 0
      %6363 = vmatmul.mubr.bf16.gmra.mrb[0].mxu0 %v5982
      %v6364 = vpop.f32.mrb[0].mxu0
      %v6365 = vadd.f32 0.0, %v6364
      %v6366 = vpop.f32.mrb[0].mxu0
      %v6367 = vpop.f32.mrb[0].mxu0
      %v6368 = vadd.f32 0.0, %v6367
      %v6369 = vpop.f32.mrb[0].mxu0
      %6370 = vmatprep.mubr.bf16.mxu0 0
      %6371 = vmatmul.mubr.bf16.gmra.mrb[0].mxu0 %v5983
      %v6372 = vpop.f32.mrb[0].mxu0
      %v6373 = vadd.f32 0.0, %v6372
      %v6374 = vpop.f32.mrb[0].mxu0
      %v6375 = vpop.f32.mrb[0].mxu0
      %v6376 = vadd.f32 0.0, %v6375
      %v6377 = vpop.f32.mrb[0].mxu0
      %6378 = vmatprep.mubr.bf16.mxu0 0
      %6379 = vmatmul.mubr.bf16.gmra.mrb[0].mxu0 %v5984
      %v6380 = vpop.f32.mrb[0].mxu0
      %v6381 = vadd.f32 0.0, %v6380
      %v6382 = vpop.f32.mrb[0].mxu0
      %v6383 = vpop.f32.mrb[0].mxu0
      %v6384 = vadd.f32 0.0, %v6383
      %v6385 = vpop.f32.mrb[0].mxu0
      %6386 = vmatprep.mubr.bf16.mxu0 0
      %6387 = vmatmul.mubr.bf16.gmra.mrb[0].mxu0 %v5985
      %v6388 = vpop.f32.mrb[0].mxu0
      %v6389 = vadd.f32 0.0, %v6388
      %v6390 = vpop.f32.mrb[0].mxu0
      %v6391 = vpop.f32.mrb[0].mxu0
      %v6392 = vadd.f32 0.0, %v6391
      %v6393 = vpop.f32.mrb[0].mxu0
      %6394 = vmatprep.mubr.bf16.mxu0 0
      %6395 = vmatmul.mubr.bf16.gmra.mrb[0].mxu0 %v5986
      %v6396 = vpop.f32.mrb[0].mxu0
      %v6397 = vadd.f32 0.0, %v6396
      %v6398 = vpop.f32.mrb[0].mxu0
      %v6399 = vpop.f32.mrb[0].mxu0
      %v6400 = vadd.f32 0.0, %v6399
      %v6401 = vpop.f32.mrb[0].mxu0
      %6402 = vmatprep.mubr.bf16.mxu0 0
      %6403 = vmatmul.mubr.bf16.gmra.mrb[0].mxu0 %v5987
      %v6404 = vpop.f32.mrb[0].mxu0
      %v6405 = vadd.f32 0.0, %v6404
      %v6406 = vpop.f32.mrb[0].mxu0
      %v6407 = vpop.f32.mrb[0].mxu0
      %v6408 = vadd.f32 0.0, %v6407
      %v6409 = vpop.f32.mrb[0].mxu0
      %6410 = vmatprep.mubr.bf16.mxu0 0
      %6411 = vmatmul.mubr.bf16.gmra.mrb[0].mxu0 %v5988
      %v6412 = vpop.f32.mrb[0].mxu0
      %v6413 = vadd.f32 0.0, %v6412
      %v6414 = vpop.f32.mrb[0].mxu0
      %v6415 = vpop.f32.mrb[0].mxu0
      %v6416 = vadd.f32 0.0, %v6415
      %v6417 = vpop.f32.mrb[0].mxu0
      %6418 = vmatprep.mubr.bf16.mxu0 0
      %6419 = vmatmul.mubr.bf16.gmra.mrb[0].mxu0 %v5989
      %v6420 = vpop.f32.mrb[0].mxu0
      %v6421 = vadd.f32 0.0, %v6420
      %v6422 = vpop.f32.mrb[0].mxu0
      %v6423 = vpop.f32.mrb[0].mxu0
      %v6424 = vadd.f32 0.0, %v6423
      %v6425 = vpop.f32.mrb[0].mxu0
      %6426 = vmatprep.mubr.bf16.mxu0 0
      %6427 = vmatmul.mubr.bf16.gmra.mrb[0].mxu0 %v5990
      %v6428 = vpop.f32.mrb[0].mxu0
      %v6429 = vadd.f32 0.0, %v6428
      %v6430 = vpop.f32.mrb[0].mxu0
      %v6431 = vpop.f32.mrb[0].mxu0
      %v6432 = vadd.f32 0.0, %v6431
      %v6433 = vpop.f32.mrb[0].mxu0
      %6434 = vmatprep.mubr.bf16.mxu0 0
      %6435 = vmatmul.mubr.bf16.gmra.mrb[0].mxu0 %v5991
      %v6436 = vpop.f32.mrb[0].mxu0
      %v6437 = vadd.f32 0.0, %v6436
      %v6438 = vpop.f32.mrb[0].mxu0
      %v6439 = vpop.f32.mrb[0].mxu0
      %v6440 = vadd.f32 0.0, %v6439
      %v6441 = vpop.f32.mrb[0].mxu0
      %6442 = vmatprep.mubr.bf16.mxu0 0
      %6443 = vmatmul.mubr.bf16.gmra.mrb[0].mxu0 %v5992
      %v6444 = vpop.f32.mrb[0].mxu0
      %v6445 = vadd.f32 0.0, %v6444
      %v6446 = vpop.f32.mrb[0].mxu0
      %v6447 = vpop.f32.mrb[0].mxu0
      %v6448 = vadd.f32 0.0, %v6447
      %v6449 = vpop.f32.mrb[0].mxu0
      %6450 = vmatprep.mubr.bf16.mxu0 0
      %6451 = vmatmul.mubr.bf16.gmra.mrb[0].mxu0 %v5993
      %v6452 = vpop.f32.mrb[0].mxu0
      %v6453 = vadd.f32 0.0, %v6452
      %v6454 = vpop.f32.mrb[0].mxu0
      %v6455 = vpop.f32.mrb[0].mxu0
      %v6456 = vadd.f32 0.0, %v6455
      %v6457 = vpop.f32.mrb[0].mxu0
      %6458 = vmatprep.mubr.bf16.mxu0 0
      %6459 = vmatmul.mubr.bf16.gmra.mrb[0].mxu0 %v5994
      %v6460 = vpop.f32.mrb[0].mxu0
      %v6461 = vadd.f32 0.0, %v6460
      %v6462 = vpop.f32.mrb[0].mxu0
      %v6463 = vpop.f32.mrb[0].mxu0
      %v6464 = vadd.f32 0.0, %v6463
      %v6465 = vpop.f32.mrb[0].mxu0
      %6466 = vmatprep.mubr.bf16.mxu0 0
      %6467 = vmatmul.mubr.bf16.gmra.mrb[0].mxu0 %v5995
      %v6468 = vpop.f32.mrb[0].mxu0
      %v6469 = vadd.f32 0.0, %v6468
      %v6470 = vpop.f32.mrb[0].mxu0
      %v6471 = vpop.f32.mrb[0].mxu0
      %v6472 = vadd.f32 0.0, %v6471
      %v6473 = vpop.f32.mrb[0].mxu0
      %6474 = vmatprep.mubr.bf16.mxu0 0
      %6475 = vmatmul.mubr.bf16.gmra.mrb[0].mxu0 %v6272
      %v6476 = vpop.f32.mrb[0].mxu0
      %v6477 = vadd.f32 0.0, %v6476
      %v6478 = vpop.f32.mrb[0].mxu0
      %v6479 = vpop.f32.mrb[0].mxu0
      %v6480 = vadd.f32 0.0, %v6479
      %v6481 = vpop.f32.mrb[0].mxu0
      %6482 = vdwg.mxu0
      %v6483 = vadd.f32 %v6221, %v6357
      %v6484 = vadd.f32 %v6222, %v6360
      %v6485 = vadd.f32 %v6223, %v6365
      %v6486 = vadd.f32 %v6224, %v6368
      %v6487 = vadd.f32 %v6225, %v6373
      %v6488 = vadd.f32 %v6226, %v6376
      %v6489 = vadd.f32 %v6227, %v6381
      %v6490 = vadd.f32 %v6228, %v6384
      %v6491 = vadd.f32 %v6229, %v6389
      %v6492 = vadd.f32 %v6230, %v6392
      %v6493 = vadd.f32 %v6231, %v6397
      %v6494 = vadd.f32 %v6232, %v6400
      %v6495 = vadd.f32 %v6233, %v6405
      %v6496 = vadd.f32 %v6234, %v6408
      %v6497 = vadd.f32 %v6235, %v6413
      %v6498 = vadd.f32 %v6236, %v6416
      %v6499 = vadd.f32 %v6237, %v6421
      %v6500 = vadd.f32 %v6238, %v6424
      %v6501 = vadd.f32 %v6239, %v6429
      %v6502 = vadd.f32 %v6240, %v6432
      %v6503 = vadd.f32 %v6241, %v6437
      %v6504 = vadd.f32 %v6242, %v6440
      %v6505 = vadd.f32 %v6243, %v6445
      %v6506 = vadd.f32 %v6244, %v6448
      %v6507 = vadd.f32 %v6245, %v6453
      %v6508 = vadd.f32 %v6246, %v6456
      %v6509 = vadd.f32 %v6247, %v6461
      %v6510 = vadd.f32 %v6248, %v6464
      %v6511 = vadd.f32 %v6249, %v6469
      %v6512 = vadd.f32 %v6250, %v6472
      %v6513 = vadd.f32 %v6251, %v6477
      %v6514 = vadd.f32 %v6252, %v6480
      %s6515 = scalar_lea.vmem %s3, 512
      %v6516 = vld [vmem:[%s6515] sm:$0xf]
      %v6517 = vld [vmem:[%s6515 + $0x4] sm:$0xf]
      %v6518 = vld [vmem:[%s6515 + $0x8] sm:$0xf]
      %v6519 = vld [vmem:[%s6515 + $0xc] sm:$0xf]
      %v6520 = vld [vmem:[%s6515 + $0x10] sm:$0xf]
      %v6521 = vld [vmem:[%s6515 + $0x14] sm:$0xf]
      %v6522 = vld [vmem:[%s6515 + $0x18] sm:$0xf]
      %v6523 = vld [vmem:[%s6515 + $0x1c] sm:$0xf]
      %v6524 = vld [vmem:[%s6515 + $0x20] sm:$0xf]
      %v6525 = vld [vmem:[%s6515 + $0x24] sm:$0xf]
      %v6526 = vld [vmem:[%s6515 + $0x28] sm:$0xf]
      %v6527 = vld [vmem:[%s6515 + $0x2c] sm:$0xf]
      %v6528 = vld [vmem:[%s6515 + $0x30] sm:$0xf]
      %v6529 = vld [vmem:[%s6515 + $0x34] sm:$0xf]
      %v6530 = vld [vmem:[%s6515 + $0x38] sm:$0xf]
      %v6531 = vld [vmem:[%s6515 + $0x3c] sm:$0xf]
      %v6532 = vunpack.c.l.b16 %v5927
      %v6533 = vunpack.c.l.b16 %v5930
      %v6534 = vpack.c.b16 %v6533, %v6532
      %v6552 = vunpack.c.l.b16 %v6516
      %v6553 = vunpack.c.l.b16 %v6517
      %v6554 = vunpack.c.l.b16 %v6518
      %v6555 = vunpack.c.l.b16 %v6519
      %v6556 = vunpack.c.l.b16 %v6520
      %v6557 = vunpack.c.l.b16 %v6521
      %v6558 = vunpack.c.l.b16 %v6522
      %v6559 = vunpack.c.l.b16 %v6523
      %v6560 = vunpack.c.l.b16 %v6524
      %v6561 = vunpack.c.l.b16 %v6525
      %v6562 = vunpack.c.l.b16 %v6526
      %v6563 = vunpack.c.l.b16 %v6527
      %v6564 = vunpack.c.l.b16 %v6528
      %v6565 = vunpack.c.l.b16 %v6529
      %v6566 = vunpack.c.l.b16 %v6530
      %v6567 = vunpack.c.l.b16 %v6531
      %v6568 = vpack.c.b16 %v6553, %v6552
      %v6569 = vpack.c.b16 %v6555, %v6554
      %v6570 = vpack.c.b16 %v6557, %v6556
      %v6571 = vpack.c.b16 %v6559, %v6558
      %v6572 = vpack.c.b16 %v6561, %v6560
      %v6573 = vpack.c.b16 %v6563, %v6562
      %v6574 = vpack.c.b16 %v6565, %v6564
      %v6575 = vpack.c.b16 %v6567, %v6566
      %6584 = vmatprep.subr.bf16.mxu0 0
      %6585 = vmatpush1.bf16.msra.mxu0 %v6568
      %6586 = vmatprep.subr.bf16.mxu0 0
      %6587 = vmatpush1.bf16.msra.mxu0 %v6569
      %6588 = vmatprep.subr.bf16.mxu0 0
      %6589 = vmatpush1.bf16.msra.mxu0 %v6570
      %6590 = vmatprep.subr.bf16.mxu0 0
      %6591 = vmatpush1.bf16.msra.mxu0 %v6571
      %6592 = vmatprep.subr.bf16.mxu0 0
      %6593 = vmatpush1.bf16.msra.mxu0 %v6572
      %6594 = vmatprep.subr.bf16.mxu0 0
      %6595 = vmatpush1.bf16.msra.mxu0 %v6573
      %6596 = vmatprep.subr.bf16.mxu0 0
      %6597 = vmatpush1.bf16.msra.mxu0 %v6574
      %6598 = vmatprep.subr.bf16.mxu0 0
      %6599 = vmatpush1.bf16.msra.mxu0 %v6575
      %6600 = vmatprep.subr.bf16.mxu0 0
      %6601 = vmatpush1.bf16.msra.mxu0 0
      %6602 = vmatprep.subr.bf16.mxu0 0
      %6603 = vmatpush1.bf16.msra.mxu0 0
      %6604 = vmatprep.subr.bf16.mxu0 0
      %6605 = vmatpush1.bf16.msra.mxu0 0
      %6606 = vmatprep.subr.bf16.mxu0 0
      %6607 = vmatpush1.bf16.msra.mxu0 0
      %6608 = vmatprep.subr.bf16.mxu0 0
      %6609 = vmatpush1.bf16.msra.mxu0 0
      %6610 = vmatprep.subr.bf16.mxu0 0
      %6611 = vmatpush1.bf16.msra.mxu0 0
      %6612 = vmatprep.subr.bf16.mxu0 0
      %6613 = vmatpush1.bf16.msra.mxu0 0
      %6614 = vmatprep.subr.bf16.mxu0 0
      %6615 = vmatpush1.bf16.msra.mxu0 0
      %6616 = vmatprep.mubr.bf16.mxu0 0
      %6617 = vmatmul.mubr.bf16.gmra.mrb[0].mxu0 %v5982
      %v6618 = vpop.f32.mrb[0].mxu0
      %v6619 = vadd.f32 0.0, %v6618
      %v6620 = vpop.f32.mrb[0].mxu0
      %v6621 = vpop.f32.mrb[0].mxu0
      %v6622 = vadd.f32 0.0, %v6621
      %v6623 = vpop.f32.mrb[0].mxu0
      %6624 = vmatprep.mubr.bf16.mxu0 0
      %6625 = vmatmul.mubr.bf16.gmra.mrb[0].mxu0 %v5983
      %v6626 = vpop.f32.mrb[0].mxu0
      %v6627 = vadd.f32 0.0, %v6626
      %v6628 = vpop.f32.mrb[0].mxu0
      %v6629 = vpop.f32.mrb[0].mxu0
      %v6630 = vadd.f32 0.0, %v6629
      %v6631 = vpop.f32.mrb[0].mxu0
      %6632 = vmatprep.mubr.bf16.mxu0 0
      %6633 = vmatmul.mubr.bf16.gmra.mrb[0].mxu0 %v5984
      %v6634 = vpop.f32.mrb[0].mxu0
      %v6635 = vadd.f32 0.0, %v6634
      %v6636 = vpop.f32.mrb[0].mxu0
      %v6637 = vpop.f32.mrb[0].mxu0
      %v6638 = vadd.f32 0.0, %v6637
      %v6639 = vpop.f32.mrb[0].mxu0
      %6640 = vmatprep.mubr.bf16.mxu0 0
      %6641 = vmatmul.mubr.bf16.gmra.mrb[0].mxu0 %v5985
      %v6642 = vpop.f32.mrb[0].mxu0
      %v6643 = vadd.f32 0.0, %v6642
      %v6644 = vpop.f32.mrb[0].mxu0
      %v6645 = vpop.f32.mrb[0].mxu0
      %v6646 = vadd.f32 0.0, %v6645
      %v6647 = vpop.f32.mrb[0].mxu0
      %6648 = vmatprep.mubr.bf16.mxu0 0
      %6649 = vmatmul.mubr.bf16.gmra.mrb[0].mxu0 %v5986
      %v6650 = vpop.f32.mrb[0].mxu0
      %v6651 = vadd.f32 0.0, %v6650
      %v6652 = vpop.f32.mrb[0].mxu0
      %v6653 = vpop.f32.mrb[0].mxu0
      %v6654 = vadd.f32 0.0, %v6653
      %v6655 = vpop.f32.mrb[0].mxu0
      %6656 = vmatprep.mubr.bf16.mxu0 0
      %6657 = vmatmul.mubr.bf16.gmra.mrb[0].mxu0 %v5987
      %v6658 = vpop.f32.mrb[0].mxu0
      %v6659 = vadd.f32 0.0, %v6658
      %v6660 = vpop.f32.mrb[0].mxu0
      %v6661 = vpop.f32.mrb[0].mxu0
      %v6662 = vadd.f32 0.0, %v6661
      %v6663 = vpop.f32.mrb[0].mxu0
      %6664 = vmatprep.mubr.bf16.mxu0 0
      %6665 = vmatmul.mubr.bf16.gmra.mrb[0].mxu0 %v5988
      %v6666 = vpop.f32.mrb[0].mxu0
      %v6667 = vadd.f32 0.0, %v6666
      %v6668 = vpop.f32.mrb[0].mxu0
      %v6669 = vpop.f32.mrb[0].mxu0
      %v6670 = vadd.f32 0.0, %v6669
      %v6671 = vpop.f32.mrb[0].mxu0
      %6672 = vmatprep.mubr.bf16.mxu0 0
      %6673 = vmatmul.mubr.bf16.gmra.mrb[0].mxu0 %v5989
      %v6674 = vpop.f32.mrb[0].mxu0
      %v6675 = vadd.f32 0.0, %v6674
      %v6676 = vpop.f32.mrb[0].mxu0
      %v6677 = vpop.f32.mrb[0].mxu0
      %v6678 = vadd.f32 0.0, %v6677
      %v6679 = vpop.f32.mrb[0].mxu0
      %6680 = vmatprep.mubr.bf16.mxu0 0
      %6681 = vmatmul.mubr.bf16.gmra.mrb[0].mxu0 %v5990
      %v6682 = vpop.f32.mrb[0].mxu0
      %v6683 = vadd.f32 0.0, %v6682
      %v6684 = vpop.f32.mrb[0].mxu0
      %v6685 = vpop.f32.mrb[0].mxu0
      %v6686 = vadd.f32 0.0, %v6685
      %v6687 = vpop.f32.mrb[0].mxu0
      %6688 = vmatprep.mubr.bf16.mxu0 0
      %6689 = vmatmul.mubr.bf16.gmra.mrb[0].mxu0 %v5991
      %v6690 = vpop.f32.mrb[0].mxu0
      %v6691 = vadd.f32 0.0, %v6690
      %v6692 = vpop.f32.mrb[0].mxu0
      %v6693 = vpop.f32.mrb[0].mxu0
      %v6694 = vadd.f32 0.0, %v6693
      %v6695 = vpop.f32.mrb[0].mxu0
      %6696 = vmatprep.mubr.bf16.mxu0 0
      %6697 = vmatmul.mubr.bf16.gmra.mrb[0].mxu0 %v5992
      %v6698 = vpop.f32.mrb[0].mxu0
      %v6699 = vadd.f32 0.0, %v6698
      %v6700 = vpop.f32.mrb[0].mxu0
      %v6701 = vpop.f32.mrb[0].mxu0
      %v6702 = vadd.f32 0.0, %v6701
      %v6703 = vpop.f32.mrb[0].mxu0
      %6704 = vmatprep.mubr.bf16.mxu0 0
      %6705 = vmatmul.mubr.bf16.gmra.mrb[0].mxu0 %v5993
      %v6706 = vpop.f32.mrb[0].mxu0
      %v6707 = vadd.f32 0.0, %v6706
      %v6708 = vpop.f32.mrb[0].mxu0
      %v6709 = vpop.f32.mrb[0].mxu0
      %v6710 = vadd.f32 0.0, %v6709
      %v6711 = vpop.f32.mrb[0].mxu0
      %6712 = vmatprep.mubr.bf16.mxu0 0
      %6713 = vmatmul.mubr.bf16.gmra.mrb[0].mxu0 %v5994
      %v6714 = vpop.f32.mrb[0].mxu0
      %v6715 = vadd.f32 0.0, %v6714
      %v6716 = vpop.f32.mrb[0].mxu0
      %v6717 = vpop.f32.mrb[0].mxu0
      %v6718 = vadd.f32 0.0, %v6717
      %v6719 = vpop.f32.mrb[0].mxu0
      %6720 = vmatprep.mubr.bf16.mxu0 0
      %6721 = vmatmul.mubr.bf16.gmra.mrb[0].mxu0 %v5995
      %v6722 = vpop.f32.mrb[0].mxu0
      %v6723 = vadd.f32 0.0, %v6722
      %v6724 = vpop.f32.mrb[0].mxu0
      %v6725 = vpop.f32.mrb[0].mxu0
      %v6726 = vadd.f32 0.0, %v6725
      %v6727 = vpop.f32.mrb[0].mxu0
      %6728 = vmatprep.mubr.bf16.mxu0 0
      %6729 = vmatmul.mubr.bf16.gmra.mrb[0].mxu0 %v6272
      %v6730 = vpop.f32.mrb[0].mxu0
      %v6731 = vadd.f32 0.0, %v6730
      %v6732 = vpop.f32.mrb[0].mxu0
      %v6733 = vpop.f32.mrb[0].mxu0
      %v6734 = vadd.f32 0.0, %v6733
      %v6735 = vpop.f32.mrb[0].mxu0
      %6736 = vmatprep.mubr.bf16.mxu0 0
      %6737 = vmatmul.mubr.bf16.gmra.mrb[0].mxu0 %v6534
      %v6738 = vpop.f32.mrb[0].mxu0
      %v6739 = vadd.f32 0.0, %v6738
      %v6740 = vpop.f32.mrb[0].mxu0
      %v6741 = vpop.f32.mrb[0].mxu0
      %v6742 = vadd.f32 0.0, %v6741
      %v6743 = vpop.f32.mrb[0].mxu0
      %6744 = vdwg.mxu0
      %v6745 = vadd.f32 %v6483, %v6619
      %v6746 = vadd.f32 %v6484, %v6622
      %v6747 = vadd.f32 %v6485, %v6627
      %v6748 = vadd.f32 %v6486, %v6630
      %v6749 = vadd.f32 %v6487, %v6635
      %v6750 = vadd.f32 %v6488, %v6638
      %v6751 = vadd.f32 %v6489, %v6643
      %v6752 = vadd.f32 %v6490, %v6646
      %v6753 = vadd.f32 %v6491, %v6651
      %v6754 = vadd.f32 %v6492, %v6654
      %v6755 = vadd.f32 %v6493, %v6659
      %v6756 = vadd.f32 %v6494, %v6662
      %v6757 = vadd.f32 %v6495, %v6667
      %v6758 = vadd.f32 %v6496, %v6670
      %v6759 = vadd.f32 %v6497, %v6675
      %v6760 = vadd.f32 %v6498, %v6678
      %v6761 = vadd.f32 %v6499, %v6683
      %v6762 = vadd.f32 %v6500, %v6686
      %v6763 = vadd.f32 %v6501, %v6691
      %v6764 = vadd.f32 %v6502, %v6694
      %v6765 = vadd.f32 %v6503, %v6699
      %v6766 = vadd.f32 %v6504, %v6702
      %v6767 = vadd.f32 %v6505, %v6707
      %v6768 = vadd.f32 %v6506, %v6710
      %v6769 = vadd.f32 %v6507, %v6715
      %v6770 = vadd.f32 %v6508, %v6718
      %v6771 = vadd.f32 %v6509, %v6723
      %v6772 = vadd.f32 %v6510, %v6726
      %v6773 = vadd.f32 %v6511, %v6731
      %v6774 = vadd.f32 %v6512, %v6734
      %v6775 = vadd.f32 %v6513, %v6739
      %v6776 = vadd.f32 %v6514, %v6742
      %v6777 = vld [vmem:[%s4] sm:$0x1]
      %v6778 = vlaneseq
      %v6779 = vshrl.u32 %v6778, 7
      %v6780 = vsub.s32 0, %v6779
      %v6781 = vrot.slane %v6777, %v6780
      %v6782 = vmul.f32 %v6745, %v6781
      %v6783 = vmul.f32 %v6746, %v6781
      %v6784 = vmul.f32 %v6747, %v6781
      %v6785 = vmul.f32 %v6748, %v6781
      %v6786 = vmul.f32 %v6749, %v6781
      %v6787 = vmul.f32 %v6750, %v6781
      %v6788 = vmul.f32 %v6751, %v6781
      %v6789 = vmul.f32 %v6752, %v6781
      %v6790 = vmul.f32 %v6753, %v6781
      %v6791 = vmul.f32 %v6754, %v6781
      %v6792 = vmul.f32 %v6755, %v6781
      %v6793 = vmul.f32 %v6756, %v6781
      %v6794 = vmul.f32 %v6757, %v6781
      %v6795 = vmul.f32 %v6758, %v6781
      %v6796 = vmul.f32 %v6759, %v6781
      %v6797 = vmul.f32 %v6760, %v6781
      %v6798 = vmul.f32 %v6761, %v6781
      %v6799 = vmul.f32 %v6762, %v6781
      %v6800 = vmul.f32 %v6763, %v6781
      %v6801 = vmul.f32 %v6764, %v6781
      %v6802 = vmul.f32 %v6765, %v6781
      %v6803 = vmul.f32 %v6766, %v6781
      %v6804 = vmul.f32 %v6767, %v6781
      %v6805 = vmul.f32 %v6768, %v6781
      %v6806 = vmul.f32 %v6769, %v6781
      %v6807 = vmul.f32 %v6770, %v6781
      %v6808 = vmul.f32 %v6771, %v6781
      %v6809 = vmul.f32 %v6772, %v6781
      %v6810 = vmul.f32 %v6773, %v6781
      %v6811 = vmul.f32 %v6774, %v6781
      %v6812 = vmul.f32 %v6775, %v6781
      %v6813 = vmul.f32 %v6776, %v6781
      %v6814 = vld [vmem:[%s4 + $0x1] sm:$0x1]
      %v6815 = vlaneseq
      %v6816 = vshrl.u32 %v6815, 7
      %v6817 = vsub.s32 0, %v6816
      %v6818 = vrot.slane %v6814, %v6817
      %v6819 = vadd.f32 %v6782, %v6818
      %v6820 = vadd.f32 %v6783, %v6818
      %v6821 = vadd.f32 %v6784, %v6818
      %v6822 = vadd.f32 %v6785, %v6818
      %v6823 = vadd.f32 %v6786, %v6818
      %v6824 = vadd.f32 %v6787, %v6818
      %v6825 = vadd.f32 %v6788, %v6818
      %v6826 = vadd.f32 %v6789, %v6818
      %v6827 = vadd.f32 %v6790, %v6818
      %v6828 = vadd.f32 %v6791, %v6818
      %v6829 = vadd.f32 %v6792, %v6818
      %v6830 = vadd.f32 %v6793, %v6818
      %v6831 = vadd.f32 %v6794, %v6818
      %v6832 = vadd.f32 %v6795, %v6818
      %v6833 = vadd.f32 %v6796, %v6818
      %v6834 = vadd.f32 %v6797, %v6818
      %v6835 = vadd.f32 %v6798, %v6818
      %v6836 = vadd.f32 %v6799, %v6818
      %v6837 = vadd.f32 %v6800, %v6818
      %v6838 = vadd.f32 %v6801, %v6818
      %v6839 = vadd.f32 %v6802, %v6818
      %v6840 = vadd.f32 %v6803, %v6818
      %v6841 = vadd.f32 %v6804, %v6818
      %v6842 = vadd.f32 %v6805, %v6818
      %v6843 = vadd.f32 %v6806, %v6818
      %v6844 = vadd.f32 %v6807, %v6818
      %v6845 = vadd.f32 %v6808, %v6818
      %v6846 = vadd.f32 %v6809, %v6818
      %v6847 = vadd.f32 %v6810, %v6818
      %v6848 = vadd.f32 %v6811, %v6818
      %v6849 = vadd.f32 %v6812, %v6818
      %v6850 = vadd.f32 %v6813, %v6818
      %v6851 = vmax.f32 %v6819, 0.0
      %v6852 = vmax.f32 %v6820, 0.0
      %v6853 = vmax.f32 %v6821, 0.0
      %v6854 = vmax.f32 %v6822, 0.0
      %v6855 = vmax.f32 %v6823, 0.0
      %v6856 = vmax.f32 %v6824, 0.0
      %v6857 = vmax.f32 %v6825, 0.0
      %v6858 = vmax.f32 %v6826, 0.0
      %v6859 = vmax.f32 %v6827, 0.0
      %v6860 = vmax.f32 %v6828, 0.0
      %v6861 = vmax.f32 %v6829, 0.0
      %v6862 = vmax.f32 %v6830, 0.0
      %v6863 = vmax.f32 %v6831, 0.0
      %v6864 = vmax.f32 %v6832, 0.0
      %v6865 = vmax.f32 %v6833, 0.0
      %v6866 = vmax.f32 %v6834, 0.0
      %v6867 = vmax.f32 %v6835, 0.0
      %v6868 = vmax.f32 %v6836, 0.0
      %v6869 = vmax.f32 %v6837, 0.0
      %v6870 = vmax.f32 %v6838, 0.0
      %v6871 = vmax.f32 %v6839, 0.0
      %v6872 = vmax.f32 %v6840, 0.0
      %v6873 = vmax.f32 %v6841, 0.0
      %v6874 = vmax.f32 %v6842, 0.0
      %v6875 = vmax.f32 %v6843, 0.0
      %v6876 = vmax.f32 %v6844, 0.0
      %v6877 = vmax.f32 %v6845, 0.0
      %v6878 = vmax.f32 %v6846, 0.0
      %v6879 = vmax.f32 %v6847, 0.0
      %v6880 = vmax.f32 %v6848, 0.0
      %v6881 = vmax.f32 %v6849, 0.0
      %v6882 = vmax.f32 %v6850, 0.0
      %6883 = vst [vmem:[%s224] sm:$0xff] %v6851
      %6884 = vst [vmem:[%s224 + $0x8] sm:$0xff] %v6852
      %6885 = vst [vmem:[%s224 + $0x10] sm:$0xff] %v6853
      %6886 = vst [vmem:[%s224 + $0x18] sm:$0xff] %v6854
      %6887 = vst [vmem:[%s224 + $0x20] sm:$0xff] %v6855
      %6888 = vst [vmem:[%s224 + $0x28] sm:$0xff] %v6856
      %6889 = vst [vmem:[%s224 + $0x30] sm:$0xff] %v6857
      %6890 = vst [vmem:[%s224 + $0x38] sm:$0xff] %v6858
      %6891 = vst [vmem:[%s224 + $0x40] sm:$0xff] %v6859
      %6892 = vst [vmem:[%s224 + $0x48] sm:$0xff] %v6860
      %6893 = vst [vmem:[%s224 + $0x50] sm:$0xff] %v6861
      %6894 = vst [vmem:[%s224 + $0x58] sm:$0xff] %v6862
      %6895 = vst [vmem:[%s224 + $0x60] sm:$0xff] %v6863
      %6896 = vst [vmem:[%s224 + $0x68] sm:$0xff] %v6864
      %6897 = vst [vmem:[%s224 + $0x70] sm:$0xff] %v6865
      %6898 = vst [vmem:[%s224 + $0x78] sm:$0xff] %v6866
      %6899 = vst [vmem:[%s224 + $0x80] sm:$0xff] %v6867
      %6900 = vst [vmem:[%s224 + $0x88] sm:$0xff] %v6868
      %6901 = vst [vmem:[%s224 + $0x90] sm:$0xff] %v6869
      %6902 = vst [vmem:[%s224 + $0x98] sm:$0xff] %v6870
      %6903 = vst [vmem:[%s224 + $0xa0] sm:$0xff] %v6871
      %6904 = vst [vmem:[%s224 + $0xa8] sm:$0xff] %v6872
      %6905 = vst [vmem:[%s224 + $0xb0] sm:$0xff] %v6873
      %6906 = vst [vmem:[%s224 + $0xb8] sm:$0xff] %v6874
      %6907 = vst [vmem:[%s224 + $0xc0] sm:$0xff] %v6875
      %6908 = vst [vmem:[%s224 + $0xc8] sm:$0xff] %v6876
      %6909 = vst [vmem:[%s224 + $0xd0] sm:$0xff] %v6877
      %6910 = vst [vmem:[%s224 + $0xd8] sm:$0xff] %v6878
      %6911 = vst [vmem:[%s224 + $0xe0] sm:$0xff] %v6879
      %6912 = vst [vmem:[%s224 + $0xe8] sm:$0xff] %v6880
      %6913 = vst [vmem:[%s224 + $0xf0] sm:$0xff] %v6881
      %6914 = vst [vmem:[%s224 + $0xf8] sm:$0xff] %v6882
      %p6915 = scmp.lt.s32.totalorder %s16, 1
      %s6916 = scalar_select %p6915, %s16, 1
      %s6917 = smul.addr %s6916, 32
      %s6918 = smul.addr %s6917, 8
      %s6919 = scalar_lea.vmem %s5, %s6918
      // Predicated region
      $region41: #{conv_block_forward.1} parent=39 // pred_check
        %p6920 = pneg %p144
      $region42: #{conv_block_forward.1} parent=39 // pred_check_branch
        %6922 = sbr.rel (%p6920) target = $region44
      $region43: #{conv_block_forward.1} parent=39 // pred_region
        _
      $region44: #{conv_block_forward.1} parent=39 // pred_fallthru
        _
    $region40: #{conv_block_forward.1} parent=5 // pred_fallthru
      _
    %p6923 = scmp.le.s32.totalorder 2, %s11
    // Predicated region
    $region45: #{conv_block_forward.1} parent=5 // pred_check
      %p6924 = pneg %p6923
    $region46: #{conv_block_forward.1} parent=5 // pred_check_branch
      %6926 = sbr.rel (%p6924) target = $region48
    $region47: #{conv_block_forward.1} parent=5 // pred_region
      %s6927 = ssub.s32 %s11, 2
      // Predicated region
      $region49: #{conv_block_forward.1} parent=47 // pred_check
        %p6928 = pneg %p150
      $region50: #{conv_block_forward.1} parent=47 // pred_check_branch
        %6930 = sbr.rel (%p6928) target = $region52
      $region51: #{conv_block_forward.1} parent=47 // pred_region
        %p6931 = scmp.lt.s32.totalorder %s17, 1
        %s6932 = scalar_select %p6931, %s17, 1
        %s6933 = smul.addr %s6932, 32
        %s6934 = smul.addr %s6933, 8
        %s6935 = scalar_lea.vmem %s5, %s6934
      $region52: #{conv_block_forward.1} parent=47 // pred_fallthru
        _
    $region48: #{conv_block_forward.1} parent=5 // pred_fallthru
      _
  $region6: #{conv_block_forward.1} parent=0 // loop_footer
    %s15 = sadd.s32 1, %s11
  $region7: #{conv_block_forward.1} parent=0 // loop_footer_branch
    %10 = sbr.rel target = $region3
  $region8: #{conv_block_forward.1} parent=0 // loop_exit
    _

</llo_original>
